<compile_context>
chip_gen: v6e
topology: v6e:2x2x1
jax: 0.10.0
libtpu: 0.0.40
codegen_flags: <defaults>
</compile_context>

<pallas_src>
import numpy as np

import jax
import jax.numpy as jnp
from jax.experimental import pallas as pl
from jax.experimental.pallas import tpu as pltpu


COMPUTE_DTYPE = jnp.bfloat16     # MXU operand dtype; accumulation / VPU math is f32

# Architecture fixed by the PyTorch module (View((-1, 64, 5, 5)) => 20x20 input):
IN_SIZE = 3
ENC_SIZES = [32, 64]
DEC_SIZES = [64, 32]
LATENT = 8
SPATIAL = 20                     # 20 -> 10 -> 5 under the k=4, s=2, p=1 convs

_C0, _C1, _C2 = IN_SIZE, ENC_SIZES[0], ENC_SIZES[1]   # 3, 32, 64
_H0, _H1, _H2 = SPATIAL, SPATIAL // 2, SPATIAL // 4   # 20, 10, 5
_LX = 4 * _H0 * _C0              # 240: lanes of one 4-padded-row group of the input
_L1 = _H1 * _C1                  # 320: lanes of one 10-wide, 32-channel row
_L2 = _H2 * _C2                  # 320: lanes of one 5-wide, 64-channel row
_LR = _H0 * _C0                  # 60 : lanes of one reconstruction row
_LRP = 64                        # 60 padded to 64 output lanes


def _elu(y):
    # ELU(alpha=1): y if y > 0 else exp(y) - 1   (exp rides the EUP slot)
    return jnp.where(y > 0.0, y, jnp.exp(jnp.minimum(y, 0.0)) - 1.0)


# ----------------------------------------------------------------------------
# The single fused kernel (one batch element per grid step)
# ----------------------------------------------------------------------------
def _bvae_kernel(x_ref, eps_ref,
                 a0e_ref, a0o_ref, a1_ref, ge_ref, we1_ref, wd0_ref,
                 d1_ref, t0_ref, t1_ref,
                 bc0_ref, bc1_ref, be0_ref, be1_ref, bd0_ref, bd1_ref,
                 bt0_ref, bt1_ref,
                 par_ref, rec_ref):
    cdt = COMPUTE_DTYPE

    def mm(lhs, rhs):
        return jnp.dot(lhs.astype(cdt), rhs, preferred_element_type=jnp.float32)

    zrow = jnp.zeros((1, _L1), jnp.float32)          # _L1 == _L2 == 320
    x = x_ref[0]                                     # (6, 240) bf16: padded-H rows grouped by 4

    # -------- encoder conv0 (k=4,s=2,p=1, ELU): even / odd output rows --------
    e0 = _elu(mm(x[0:5], a0e_ref[...]) + bc0_ref[...])                        # rows 0,2,..,8
    o0 = _elu(mm(x[0:5], a0o_ref[0]) + mm(x[1:6], a0o_ref[1]) + bc0_ref[...]) # rows 1,3,..,9

    # -------- encoder conv1 (ELU): one matmul per kernel-row tap --------------
    epad = jnp.concatenate([e0, zrow], axis=0)       # (6, 320)
    opad = jnp.concatenate([zrow, o0], axis=0)       # (6, 320)
    y1 = _elu(mm(opad[0:5], a1_ref[0]) + mm(epad[0:5], a1_ref[1]) +
              mm(opad[1:6], a1_ref[2]) + mm(epad[1:6], a1_ref[3]) +
              bc1_ref[...])                          # (5, 320): rows=i2, lanes=(j2, c2)

    # -------- encoder FCs (flatten permutation folded into ge blocks) ---------
    h = be0_ref[...]
    for r in range(_H2):
        h = h + mm(y1[r:r + 1, :], ge_ref[r])
    h = jnp.maximum(h, 0.0)                          # (1, 256)
    par = mm(h, we1_ref[...]) + be1_ref[...]         # (1, 128): lanes >= 16 are zero
    par_ref[0] = par

    # -------- reparametrize (padded-K trick: no tiny-K matmul) ---------------
    lane = jax.lax.broadcasted_iota(jnp.int32, (1, 128), 1)
    zx = jnp.where(lane < LATENT, par, 0.0) + jnp.exp(par * 0.5) * eps_ref[0]
    # zx lanes [0:8) = mean, [8:16) = std*eps, rest 0; wd0 has duplicated rows
    # so zx @ wd0 == (mean + std*eps) @ Wd0.

    # -------- decoder FCs (View((-1,64,5,5)) folded into d1 row blocks) -------
    g = jnp.maximum(mm(zx, wd0_ref[...]) + bd0_ref[...], 0.0)                 # (1, 256)
    rows = [jnp.maximum(mm(g, d1_ref[r]) + bd1_ref[r], 0.0) for r in range(_H2)]
    d = jnp.concatenate(rows, axis=0)                # (5, 320): rows=i2, lanes=(j2, c2)

    # -------- decoder deconv0 (ELU): output split by output-row parity --------
    dpad = jnp.concatenate([zrow, d, zrow], axis=0)  # (7, 320)
    p0 = _elu(mm(dpad[1:6], t0_ref[1]) + mm(dpad[0:5], t0_ref[3]) + bt0_ref[...])  # rows 0,2,..
    p1 = _elu(mm(dpad[2:7], t0_ref[0]) + mm(dpad[1:6], t0_ref[2]) + bt0_ref[...])  # rows 1,3,..

    # -------- decoder deconv1 (no activation): rows grouped by (oh mod 4) -----
    p0x = jnp.concatenate([p0, zrow], axis=0)        # (6, 320)
    p1x = jnp.concatenate([zrow, p1], axis=0)        # (6, 320)
    rec_ref[0, 0] = mm(p0x[0:5], t1_ref[1]) + mm(p1x[0:5], t1_ref[3]) + bt1_ref[...]
    rec_ref[0, 1] = mm(p1x[1:6], t1_ref[0]) + mm(p0x[0:5], t1_ref[2]) + bt1_ref[...]
    rec_ref[0, 2] = mm(p1x[1:6], t1_ref[1]) + mm(p0x[0:5], t1_ref[3]) + bt1_ref[...]
    rec_ref[0, 3] = mm(p0x[1:6], t1_ref[0]) + mm(p1x[1:6], t1_ref[2]) + bt1_ref[...]


# ----------------------------------------------------------------------------
# BlockSpec helpers
# ----------------------------------------------------------------------------
def _const_spec(shape):
    nd = len(shape)
    return pl.BlockSpec(tuple(shape), lambda b, _nd=nd: (0,) * _nd)


def _batch_spec(tail):
    block = (1,) + tuple(tail)
    nd = len(block)
    return pl.BlockSpec(block, lambda b, _nd=nd: (b,) + (0,) * (_nd - 1))


_KP_ORDER = ["a0e", "a0o", "a1", "ge", "we1", "wd0", "d1", "t0", "t1",
             "bc0", "bc1", "be0", "be1", "bd0", "bd1", "bt0", "bt1"]


# ----------------------------------------------------------------------------
# Forward wrapper (only tiny input/output layout ops happen outside the kernel)
# ----------------------------------------------------------------------------
def bvae_forward(kp, x_nchw, eps):
    """Mirrors BVAE.forward: returns (reconstruction [NCHW], mean, logvar)."""
    b = x_nchw.shape[0]
    # Input prep on the original (tiny) input: NCHW -> NHWC, pad H by (1, 3) and
    # group the padded rows by 4 so every in-kernel row access is contiguous.
    xh = jnp.transpose(x_nchw, (0, 2, 3, 1))
    xh = jnp.pad(xh, ((0, 0), (1, 3), (0, 0), (0, 0)))
    x4 = xh.reshape(b, 6, _LX).astype(COMPUTE_DTYPE)
    # eps embedded at lanes [LATENT, 2*LATENT) of a 128-wide row (see kernel).
    eps_pad = jnp.zeros((b, 1, 128), jnp.float32)
    eps_pad = eps_pad.at[:, 0, LATENT:2 * LATENT].set(eps.astype(jnp.float32))

    weights = [kp[k] for k in _KP_ORDER]
    in_specs = ([_batch_spec((6, _LX)), _batch_spec((1, 128))]
                + [_const_spec(w.shape) for w in weights])

    par, rec = pl.pallas_call(
        _bvae_kernel,
        out_shape=(jax.ShapeDtypeStruct((b, 1, 128), jnp.float32),
                   jax.ShapeDtypeStruct((b, 4, _H2, _LRP), jnp.float32)),
        grid=(b,),
        in_specs=in_specs,
        out_specs=(_batch_spec((1, 128)), _batch_spec((4, _H2, _LRP))),
        compiler_params=pltpu.CompilerParams(
            dimension_semantics=("parallel",),
            vmem_limit_bytes=32 * 1024 * 1024),
    )(x4, eps_pad, *weights)

    mean = par[:, 0, :LATENT]
    logvar = par[:, 0, LATENT:2 * LATENT]
    # Un-group the reconstruction: kernel layout is [b, oh%4, oh//4, ow, c].
    rec = rec[..., :_LR].reshape(b, 4, _H2, _H0, _C0)
    recon = jnp.transpose(rec, (0, 4, 2, 1, 3)).reshape(b, _C0, _H0, _H0)
    return recon, mean, logvar


# ----------------------------------------------------------------------------
# Parameters: canonical (PyTorch-layout) init + one-time kernel-ready repack
# ----------------------------------------------------------------------------
def init_params(key):
    """Deterministic synthetic parameters (shapes follow the PyTorch module)."""
    def nrm(k, shape, fan_in):
        return jax.random.normal(k, shape, jnp.float32) / jnp.sqrt(fan_in)

    keys = iter(jax.random.split(key, 24))
    p = {}
    enc_chain = [IN_SIZE] + ENC_SIZES
    for li, (ci, co) in enumerate(zip(enc_chain, enc_chain[1:])):
        p[f"enc_conv{li}_w"] = nrm(next(keys), (co, ci, 4, 4), ci * 16)   # OIHW
        p[f"enc_conv{li}_b"] = nrm(next(keys), (co,), ci * 16)
    flat = _H2 * _H2 * _C2                                                # 1600
    p["enc_fc0_w"] = nrm(next(keys), (flat, 256), flat)
    p["enc_fc0_b"] = nrm(next(keys), (256,), flat)
    p["enc_fc1_w"] = nrm(next(keys), (256, LATENT * 2), 256)
    p["enc_fc1_b"] = nrm(next(keys), (LATENT * 2,), 256)
    p["dec_fc0_w"] = nrm(next(keys), (LATENT, 256), LATENT)
    p["dec_fc0_b"] = nrm(next(keys), (256,), LATENT)
    p["dec_fc1_w"] = nrm(next(keys), (256, flat), 256)
    p["dec_fc1_b"] = nrm(next(keys), (flat,), 256)
    dec_chain = DEC_SIZES + [IN_SIZE]
    for li, (ci, co) in enumerate(zip(dec_chain, dec_chain[1:])):
        p[f"dec_conv{li}_w"] = nrm(next(keys), (ci, co, 4, 4), ci * 16)   # IOHW
        p[f"dec_conv{li}_b"] = nrm(next(keys), (co,), ci * 16)
    return p


def prepare_params(p):
    """One-time numpy repack into block-banded / block-split bf16 matrices."""
    f32 = np.float32

    def conv_band(w_oihw, kh, win, wout):
        # M[(w, ci), (j, co)] = W[co, ci, kh, kw] with w = 2j + kw - 1 (pad-1 conv)
        co, ci = w_oihw.shape[:2]
        m = np.zeros((win * ci, wout * co), f32)
        for j in range(wout):
            for kw in range(4):
                w = 2 * j + kw - 1
                if 0 <= w < win:
                    m[w * ci:(w + 1) * ci, j * co:(j + 1) * co] = w_oihw[:, :, kh, kw].T
        return m

    def deconv_band(w_iohw, kh, win, wout, out_pad=0):
        # M[(iw, ci), (ow, co)] = W[ci, co, kh, kw] with kw = ow + 1 - 2*iw
        ci, co = w_iohw.shape[:2]
        m = np.zeros((win * ci, wout * co + out_pad), f32)
        for iw in range(win):
            for kw in range(4):
                ow = 2 * iw + kw - 1
                if 0 <= ow < wout:
                    m[iw * ci:(iw + 1) * ci, ow * co:(ow + 1) * co] = w_iohw[:, :, kh, kw]
        return m

    g = {k: np.asarray(v, f32) for k, v in p.items()}
    w0, c0 = g["enc_conv0_w"], g["enc_conv0_b"]
    w1, c1 = g["enc_conv1_w"], g["enc_conv1_b"]
    wt0, tb0 = g["dec_conv0_w"], g["dec_conv0_b"]
    wt1, tb1 = g["dec_conv1_w"], g["dec_conv1_b"]

    # conv0: input lanes are (sub-row s, w, ci) for 4 padded-H rows per group.
    a0e = np.concatenate([conv_band(w0, s, _H0, _H1) for s in range(4)], axis=0)
    zblk = np.zeros((_H0 * _C0, _L1), f32)
    a0o = np.stack([
        np.concatenate([zblk, zblk, conv_band(w0, 0, _H0, _H1),
                        conv_band(w0, 1, _H0, _H1)], axis=0),
        np.concatenate([conv_band(w0, 2, _H0, _H1), conv_band(w0, 3, _H0, _H1),
                        zblk, zblk], axis=0)])
    # conv1 / deconv0 / deconv1: one block-banded matrix per kernel-row tap kh.
    a1 = np.stack([conv_band(w1, kh, _H1, _H2) for kh in range(4)])
    t0m = np.stack([deconv_band(wt0, kh, _H2, _H1) for kh in range(4)])
    t1m = np.stack([deconv_band(wt1, kh, _H1, _H0, out_pad=_LRP - _LR)
                    for kh in range(4)])

    # enc_fc0: fold the NCHW flatten (c*25 + i*5 + j) into per-image-row blocks.
    ge = g["enc_fc0_w"].reshape(_C2, _H2, _H2, 256).transpose(1, 2, 0, 3)
    ge = ge.reshape(_H2, _L2, 256)
    # enc_fc1: pad 16 -> 128 output lanes.
    we1 = np.zeros((256, 128), f32); we1[:, :2 * LATENT] = g["enc_fc1_w"]
    be1 = np.zeros((1, 128), f32);   be1[0, :2 * LATENT] = g["enc_fc1_b"]
    # dec_fc0: duplicated rows so the padded z vector (mean | std*eps | 0) works.
    wd0 = np.zeros((128, 256), f32)
    wd0[0:LATENT] = g["dec_fc0_w"]
    wd0[LATENT:2 * LATENT] = g["dec_fc0_w"]
    # dec_fc1: fold View((-1, 64, 5, 5)) into per-image-row blocks.
    d1 = g["dec_fc1_w"].reshape(256, _C2, _H2, _H2).transpose(2, 0, 3, 1)
    d1 = d1.reshape(_H2, 256, _L2)
    bd1 = g["dec_fc1_b"].reshape(_C2, _H2, _H2).transpose(1, 2, 0).reshape(_H2, 1, _L2)

    cdt = COMPUTE_DTYPE
    return {
        "a0e": jnp.asarray(a0e, cdt), "a0o": jnp.asarray(a0o, cdt),
        "a1": jnp.asarray(a1, cdt), "ge": jnp.asarray(ge, cdt),
        "we1": jnp.asarray(we1, cdt), "wd0": jnp.asarray(wd0, cdt),
        "d1": jnp.asarray(d1, cdt), "t0": jnp.asarray(t0m, cdt),
        "t1": jnp.asarray(t1m, cdt),
        "bc0": jnp.asarray(np.tile(c0, _H1)[None, :], jnp.float32),
        "bc1": jnp.asarray(np.tile(c1, _H2)[None, :], jnp.float32),
        "be0": jnp.asarray(g["enc_fc0_b"][None, :], jnp.float32),
        "be1": jnp.asarray(be1, jnp.float32),
        "bd0": jnp.asarray(g["dec_fc0_b"][None, :], jnp.float32),
        "bd1": jnp.asarray(bd1, jnp.float32),
        "bt0": jnp.asarray(np.tile(tb0, _H1)[None, :], jnp.float32),
        "bt1": jnp.asarray(np.concatenate([np.tile(tb1, _H0),
                                           np.zeros(_LRP - _LR, f32)])[None, :],
                           jnp.float32),
    }


# ----------------------------------------------------------------------------
# Pure-JAX reference (same bf16-operand / f32-accumulate precision) for checking
# ----------------------------------------------------------------------------
def _reference_forward(p, x_nchw, eps):
    cdt = COMPUTE_DTYPE

    def elu(v):
        return jnp.where(v > 0.0, v, jnp.exp(jnp.minimum(v, 0.0)) - 1.0)

    def conv(x, w, bias):
        y = jax.lax.conv_general_dilated(
            x.astype(cdt), w.astype(cdt), window_strides=(2, 2),
            padding=((1, 1), (1, 1)),
            dimension_numbers=("NCHW", "OIHW", "NCHW"),
            preferred_element_type=jnp.float32)
        return y + bias.reshape(1, -1, 1, 1)

    def deconv(x, w, bias):
        wk = jnp.transpose(jnp.flip(w, (2, 3)), (1, 0, 2, 3))
        y = jax.lax.conv_general_dilated(
            x.astype(cdt), wk.astype(cdt), window_strides=(1, 1),
            padding=((2, 2), (2, 2)), lhs_dilation=(2, 2),
            dimension_numbers=("NCHW", "OIHW", "NCHW"),
            preferred_element_type=jnp.float32)
        return y + bias.reshape(1, -1, 1, 1)

    def fc(h, w, bias):
        return jnp.dot(h.astype(cdt), w.astype(cdt),
                       preferred_element_type=jnp.float32) + bias

    b = x_nchw.shape[0]
    h = elu(conv(x_nchw, p["enc_conv0_w"], p["enc_conv0_b"]))
    h = elu(conv(h, p["enc_conv1_w"], p["enc_conv1_b"]))
    h = h.reshape(b, -1)
    h = jnp.maximum(fc(h, p["enc_fc0_w"], p["enc_fc0_b"]), 0.0)
    par = fc(h, p["enc_fc1_w"], p["enc_fc1_b"])
    mean, logvar = par[:, :LATENT], par[:, LATENT:]
    z = mean + jnp.exp(logvar * 0.5) * eps
    d = jnp.maximum(fc(z, p["dec_fc0_w"], p["dec_fc0_b"]), 0.0)
    d = jnp.maximum(fc(d, p["dec_fc1_w"], p["dec_fc1_b"]), 0.0)
    d = d.reshape(b, ENC_SIZES[-1], _H2, _H2)
    d = elu(deconv(d, p["dec_conv0_w"], p["dec_conv0_b"]))
    d = deconv(d, p["dec_conv1_w"], p["dec_conv1_b"])
    return d, mean, logvar


if __name__ == "__main__":
    key = jax.random.PRNGKey(0)
    k_param, k_x, k_eps = jax.random.split(key, 3)

    params = init_params(k_param)
    kparams = prepare_params(params)
    x = jax.random.normal(k_x, (2, IN_SIZE, SPATIAL, SPATIAL), jnp.float32)
    eps = jax.random.normal(k_eps, (2, LATENT), jnp.float32)

    recon, mean, logvar = jax.jit(bvae_forward)(kparams, x, eps)
    jax.block_until_ready((recon, mean, logvar))

    assert recon.shape == (2, IN_SIZE, SPATIAL, SPATIAL), recon.shape
    assert mean.shape == (2, LATENT) and logvar.shape == (2, LATENT)
    assert bool(jnp.all(jnp.isfinite(recon)))

    # Cross-check against a pure-JAX reference at matching precision.
    r_ref, m_ref, lv_ref = jax.jit(_reference_forward)(params, x, eps)
    assert float(jnp.max(jnp.abs(recon - r_ref))) < 5e-2
    assert float(jnp.max(jnp.abs(mean - m_ref))) < 5e-2
    assert float(jnp.max(jnp.abs(logvar - lv_ref))) < 5e-2

    print("KERNEL_OK")
</pallas_src>

<mosaic_0001>
module attributes {stable_mosaic.version = 11 : i64} {
  func.func @_bvae_kernel(%arg0: i32, %arg1: memref<1x6x240xbf16, #tpu.memory_space<vmem>>, %arg2: memref<1x1x128xf32, #tpu.memory_space<vmem>>, %arg3: memref<240x320xbf16, #tpu.memory_space<vmem>>, %arg4: memref<2x240x320xbf16, #tpu.memory_space<vmem>>, %arg5: memref<4x320x320xbf16, #tpu.memory_space<vmem>>, %arg6: memref<5x320x256xbf16, #tpu.memory_space<vmem>>, %arg7: memref<256x128xbf16, #tpu.memory_space<vmem>>, %arg8: memref<128x256xbf16, #tpu.memory_space<vmem>>, %arg9: memref<5x256x320xbf16, #tpu.memory_space<vmem>>, %arg10: memref<4x320x320xbf16, #tpu.memory_space<vmem>>, %arg11: memref<4x320x64xbf16, #tpu.memory_space<vmem>>, %arg12: memref<1x320xf32, #tpu.memory_space<vmem>>, %arg13: memref<1x320xf32, #tpu.memory_space<vmem>>, %arg14: memref<1x256xf32, #tpu.memory_space<vmem>>, %arg15: memref<1x128xf32, #tpu.memory_space<vmem>>, %arg16: memref<1x256xf32, #tpu.memory_space<vmem>>, %arg17: memref<5x1x320xf32, #tpu.memory_space<vmem>>, %arg18: memref<1x320xf32, #tpu.memory_space<vmem>>, %arg19: memref<1x64xf32, #tpu.memory_space<vmem>>, %arg20: memref<1x1x128xf32, #tpu.memory_space<vmem>>, %arg21: memref<1x4x5x64xf32, #tpu.memory_space<vmem>>) attributes {dimension_semantics = [#tpu.dimension_semantics<parallel>], iteration_bounds = array<i64: 2>, scalar_prefetch = 0 : i64, scratch_operands = 0 : i64, tpu.core_type = #tpu.core_type<tc>, window_params = [{transform_indices = @transform_0, window_bounds = array<i64: 1, 6, 240>}, {transform_indices = @transform_1, window_bounds = array<i64: 1, 1, 128>}, {pipeline_mode = #tpu.pipeline_mode<synchronous>, transform_indices = @transform_2, window_bounds = array<i64: 240, 320>}, {pipeline_mode = #tpu.pipeline_mode<synchronous>, transform_indices = @transform_3, window_bounds = array<i64: 2, 240, 320>}, {pipeline_mode = #tpu.pipeline_mode<synchronous>, transform_indices = @transform_4, window_bounds = array<i64: 4, 320, 320>}, {pipeline_mode = #tpu.pipeline_mode<synchronous>, transform_indices = @transform_5, window_bounds = array<i64: 5, 320, 256>}, {pipeline_mode = #tpu.pipeline_mode<synchronous>, transform_indices = @transform_6, window_bounds = array<i64: 256, 128>}, {pipeline_mode = #tpu.pipeline_mode<synchronous>, transform_indices = @transform_7, window_bounds = array<i64: 128, 256>}, {pipeline_mode = #tpu.pipeline_mode<synchronous>, transform_indices = @transform_8, window_bounds = array<i64: 5, 256, 320>}, {pipeline_mode = #tpu.pipeline_mode<synchronous>, transform_indices = @transform_9, window_bounds = array<i64: 4, 320, 320>}, {pipeline_mode = #tpu.pipeline_mode<synchronous>, transform_indices = @transform_10, window_bounds = array<i64: 4, 320, 64>}, {pipeline_mode = #tpu.pipeline_mode<synchronous>, transform_indices = @transform_11, window_bounds = array<i64: 1, 320>}, {pipeline_mode = #tpu.pipeline_mode<synchronous>, transform_indices = @transform_12, window_bounds = array<i64: 1, 320>}, {pipeline_mode = #tpu.pipeline_mode<synchronous>, transform_indices = @transform_13, window_bounds = array<i64: 1, 256>}, {pipeline_mode = #tpu.pipeline_mode<synchronous>, transform_indices = @transform_14, window_bounds = array<i64: 1, 128>}, {pipeline_mode = #tpu.pipeline_mode<synchronous>, transform_indices = @transform_15, window_bounds = array<i64: 1, 256>}, {pipeline_mode = #tpu.pipeline_mode<synchronous>, transform_indices = @transform_16, window_bounds = array<i64: 5, 1, 320>}, {pipeline_mode = #tpu.pipeline_mode<synchronous>, transform_indices = @transform_17, window_bounds = array<i64: 1, 320>}, {pipeline_mode = #tpu.pipeline_mode<synchronous>, transform_indices = @transform_18, window_bounds = array<i64: 1, 64>}, {transform_indices = @transform_19, window_bounds = array<i64: 1, 1, 128>}, {transform_indices = @transform_20, window_bounds = array<i64: 1, 4, 5, 64>}]} {
    %cst = arith.constant 0.000000e+00 : f32
    %0 = vector.broadcast %cst : f32 to vector<1x320xf32>
    %c0 = arith.constant 0 : index
    %c0_0 = arith.constant 0 : index
    %c0_1 = arith.constant 0 : index
    %1 = vector.load %arg1[%c0, %c0_0, %c0_1] : memref<1x6x240xbf16, #tpu.memory_space<vmem>>, vector<1x6x240xbf16>
    %2 = vector.shape_cast %1 : vector<1x6x240xbf16> to vector<6x240xbf16>
    %3 = vector.extract_strided_slice %2 {offsets = [0, 0], sizes = [5, 240], strides = [1, 1]} : vector<6x240xbf16> to vector<5x240xbf16>
    %c0_2 = arith.constant 0 : index
    %c0_3 = arith.constant 0 : index
    %4 = vector.load %arg3[%c0_2, %c0_3] : memref<240x320xbf16, #tpu.memory_space<vmem>>, vector<240x320xbf16>
    %cst_4 = arith.constant dense<0.000000e+00> : vector<5x320xf32>
    %5 = tpu.matmul %3, %4, %cst_4 {dimension_numbers = #tpu.dot_dimension_numbers<[1], [0], [0], [1], [0, 0, 1, 1], [], []>} : vector<5x240xbf16>, vector<240x320xbf16>, vector<5x320xf32> -> vector<5x320xf32>
    %c0_5 = arith.constant 0 : index
    %c0_6 = arith.constant 0 : index
    %6 = vector.load %arg12[%c0_5, %c0_6] : memref<1x320xf32, #tpu.memory_space<vmem>>, vector<1x320xf32>
    %7 = vector.broadcast %6 : vector<1x320xf32> to vector<5x320xf32>
    %8 = arith.addf %5, %7 : vector<5x320xf32>
    %cst_7 = arith.constant 0.000000e+00 : f32
    %9 = vector.broadcast %cst_7 : f32 to vector<5x320xf32>
    %10 = arith.cmpf ogt, %8, %9 : vector<5x320xf32>
    %cst_8 = arith.constant 0.000000e+00 : f32
    %11 = vector.broadcast %cst_8 : f32 to vector<5x320xf32>
    %12 = arith.minimumf %8, %11 : vector<5x320xf32>
    %13 = math.exp %12 : vector<5x320xf32>
    %cst_9 = arith.constant 1.000000e+00 : f32
    %14 = vector.broadcast %cst_9 : f32 to vector<5x320xf32>
    %15 = arith.subf %13, %14 : vector<5x320xf32>
    %16 = arith.select %10, %8, %15 : vector<5x320xi1>, vector<5x320xf32>
    %17 = vector.extract_strided_slice %2 {offsets = [0, 0], sizes = [5, 240], strides = [1, 1]} : vector<6x240xbf16> to vector<5x240xbf16>
    %c0_10 = arith.constant 0 : index
    %c0_11 = arith.constant 0 : index
    %c0_12 = arith.constant 0 : index
    %18 = vector.load %arg4[%c0_10, %c0_11, %c0_12] : memref<2x240x320xbf16, #tpu.memory_space<vmem>>, vector<1x240x320xbf16>
    %19 = vector.shape_cast %18 : vector<1x240x320xbf16> to vector<240x320xbf16>
    %cst_13 = arith.constant dense<0.000000e+00> : vector<5x320xf32>
    %20 = tpu.matmul %17, %19, %cst_13 {dimension_numbers = #tpu.dot_dimension_numbers<[1], [0], [0], [1], [0, 0, 1, 1], [], []>} : vector<5x240xbf16>, vector<240x320xbf16>, vector<5x320xf32> -> vector<5x320xf32>
    %21 = vector.extract_strided_slice %2 {offsets = [1, 0], sizes = [5, 240], strides = [1, 1]} : vector<6x240xbf16> to vector<5x240xbf16>
    %c1 = arith.constant 1 : index
    %c0_14 = arith.constant 0 : index
    %c0_15 = arith.constant 0 : index
    %22 = vector.load %arg4[%c1, %c0_14, %c0_15] : memref<2x240x320xbf16, #tpu.memory_space<vmem>>, vector<1x240x320xbf16>
    %23 = vector.shape_cast %22 : vector<1x240x320xbf16> to vector<240x320xbf16>
    %cst_16 = arith.constant dense<0.000000e+00> : vector<5x320xf32>
    %24 = tpu.matmul %21, %23, %cst_16 {dimension_numbers = #tpu.dot_dimension_numbers<[1], [0], [0], [1], [0, 0, 1, 1], [], []>} : vector<5x240xbf16>, vector<240x320xbf16>, vector<5x320xf32> -> vector<5x320xf32>
    %25 = arith.addf %20, %24 : vector<5x320xf32>
    %c0_17 = arith.constant 0 : index
    %c0_18 = arith.constant 0 : index
    %26 = vector.load %arg12[%c0_17, %c0_18] : memref<1x320xf32, #tpu.memory_space<vmem>>, vector<1x320xf32>
    %27 = vector.broadcast %26 : vector<1x320xf32> to vector<5x320xf32>
    %28 = arith.addf %25, %27 : vector<5x320xf32>
    %cst_19 = arith.constant 0.000000e+00 : f32
    %29 = vector.broadcast %cst_19 : f32 to vector<5x320xf32>
    %30 = arith.cmpf ogt, %28, %29 : vector<5x320xf32>
    %cst_20 = arith.constant 0.000000e+00 : f32
    %31 = vector.broadcast %cst_20 : f32 to vector<5x320xf32>
    %32 = arith.minimumf %28, %31 : vector<5x320xf32>
    %33 = math.exp %32 : vector<5x320xf32>
    %cst_21 = arith.constant 1.000000e+00 : f32
    %34 = vector.broadcast %cst_21 : f32 to vector<5x320xf32>
    %35 = arith.subf %33, %34 : vector<5x320xf32>
    %36 = arith.select %30, %28, %35 : vector<5x320xi1>, vector<5x320xf32>
    %37 = tpu.concatenate %16, %0 in 0 : vector<5x320xf32>, vector<1x320xf32> -> vector<6x320xf32>
    %38 = tpu.concatenate %0, %36 in 0 : vector<1x320xf32>, vector<5x320xf32> -> vector<6x320xf32>
    %39 = vector.extract_strided_slice %38 {offsets = [0, 0], sizes = [5, 320], strides = [1, 1]} : vector<6x320xf32> to vector<5x320xf32>
    %c0_22 = arith.constant 0 : index
    %c0_23 = arith.constant 0 : index
    %c0_24 = arith.constant 0 : index
    %40 = vector.load %arg5[%c0_22, %c0_23, %c0_24] : memref<4x320x320xbf16, #tpu.memory_space<vmem>>, vector<1x320x320xbf16>
    %41 = vector.shape_cast %40 : vector<1x320x320xbf16> to vector<320x320xbf16>
    %42 = arith.truncf %39 : vector<5x320xf32> to vector<5x320xbf16>
    %cst_25 = arith.constant dense<0.000000e+00> : vector<5x320xf32>
    %43 = tpu.matmul %42, %41, %cst_25 {dimension_numbers = #tpu.dot_dimension_numbers<[1], [0], [0], [1], [0, 0, 1, 1], [], []>} : vector<5x320xbf16>, vector<320x320xbf16>, vector<5x320xf32> -> vector<5x320xf32>
    %44 = vector.extract_strided_slice %37 {offsets = [0, 0], sizes = [5, 320], strides = [1, 1]} : vector<6x320xf32> to vector<5x320xf32>
    %c1_26 = arith.constant 1 : index
    %c0_27 = arith.constant 0 : index
    %c0_28 = arith.constant 0 : index
    %45 = vector.load %arg5[%c1_26, %c0_27, %c0_28] : memref<4x320x320xbf16, #tpu.memory_space<vmem>>, vector<1x320x320xbf16>
    %46 = vector.shape_cast %45 : vector<1x320x320xbf16> to vector<320x320xbf16>
    %47 = arith.truncf %44 : vector<5x320xf32> to vector<5x320xbf16>
    %cst_29 = arith.constant dense<0.000000e+00> : vector<5x320xf32>
    %48 = tpu.matmul %47, %46, %cst_29 {dimension_numbers = #tpu.dot_dimension_numbers<[1], [0], [0], [1], [0, 0, 1, 1], [], []>} : vector<5x320xbf16>, vector<320x320xbf16>, vector<5x320xf32> -> vector<5x320xf32>
    %49 = arith.addf %43, %48 : vector<5x320xf32>
    %50 = vector.extract_strided_slice %38 {offsets = [1, 0], sizes = [5, 320], strides = [1, 1]} : vector<6x320xf32> to vector<5x320xf32>
    %c2 = arith.constant 2 : index
    %c0_30 = arith.constant 0 : index
    %c0_31 = arith.constant 0 : index
    %51 = vector.load %arg5[%c2, %c0_30, %c0_31] : memref<4x320x320xbf16, #tpu.memory_space<vmem>>, vector<1x320x320xbf16>
    %52 = vector.shape_cast %51 : vector<1x320x320xbf16> to vector<320x320xbf16>
    %53 = arith.truncf %50 : vector<5x320xf32> to vector<5x320xbf16>
    %cst_32 = arith.constant dense<0.000000e+00> : vector<5x320xf32>
    %54 = tpu.matmul %53, %52, %cst_32 {dimension_numbers = #tpu.dot_dimension_numbers<[1], [0], [0], [1], [0, 0, 1, 1], [], []>} : vector<5x320xbf16>, vector<320x320xbf16>, vector<5x320xf32> -> vector<5x320xf32>
    %55 = arith.addf %49, %54 : vector<5x320xf32>
    %56 = vector.extract_strided_slice %37 {offsets = [1, 0], sizes = [5, 320], strides = [1, 1]} : vector<6x320xf32> to vector<5x320xf32>
    %c3 = arith.constant 3 : index
    %c0_33 = arith.constant 0 : index
    %c0_34 = arith.constant 0 : index
    %57 = vector.load %arg5[%c3, %c0_33, %c0_34] : memref<4x320x320xbf16, #tpu.memory_space<vmem>>, vector<1x320x320xbf16>
    %58 = vector.shape_cast %57 : vector<1x320x320xbf16> to vector<320x320xbf16>
    %59 = arith.truncf %56 : vector<5x320xf32> to vector<5x320xbf16>
    %cst_35 = arith.constant dense<0.000000e+00> : vector<5x320xf32>
    %60 = tpu.matmul %59, %58, %cst_35 {dimension_numbers = #tpu.dot_dimension_numbers<[1], [0], [0], [1], [0, 0, 1, 1], [], []>} : vector<5x320xbf16>, vector<320x320xbf16>, vector<5x320xf32> -> vector<5x320xf32>
    %61 = arith.addf %55, %60 : vector<5x320xf32>
    %c0_36 = arith.constant 0 : index
    %c0_37 = arith.constant 0 : index
    %62 = vector.load %arg13[%c0_36, %c0_37] : memref<1x320xf32, #tpu.memory_space<vmem>>, vector<1x320xf32>
    %63 = vector.broadcast %62 : vector<1x320xf32> to vector<5x320xf32>
    %64 = arith.addf %61, %63 : vector<5x320xf32>
    %cst_38 = arith.constant 0.000000e+00 : f32
    %65 = vector.broadcast %cst_38 : f32 to vector<5x320xf32>
    %66 = arith.cmpf ogt, %64, %65 : vector<5x320xf32>
    %cst_39 = arith.constant 0.000000e+00 : f32
    %67 = vector.broadcast %cst_39 : f32 to vector<5x320xf32>
    %68 = arith.minimumf %64, %67 : vector<5x320xf32>
    %69 = math.exp %68 : vector<5x320xf32>
    %cst_40 = arith.constant 1.000000e+00 : f32
    %70 = vector.broadcast %cst_40 : f32 to vector<5x320xf32>
    %71 = arith.subf %69, %70 : vector<5x320xf32>
    %72 = arith.select %66, %64, %71 : vector<5x320xi1>, vector<5x320xf32>
    %c0_41 = arith.constant 0 : index
    %c0_42 = arith.constant 0 : index
    %73 = vector.load %arg14[%c0_41, %c0_42] : memref<1x256xf32, #tpu.memory_space<vmem>>, vector<1x256xf32>
    %74 = vector.extract_strided_slice %72 {offsets = [0, 0], sizes = [1, 320], strides = [1, 1]} : vector<5x320xf32> to vector<1x320xf32>
    %c0_43 = arith.constant 0 : index
    %c0_44 = arith.constant 0 : index
    %c0_45 = arith.constant 0 : index
    %75 = vector.load %arg6[%c0_43, %c0_44, %c0_45] : memref<5x320x256xbf16, #tpu.memory_space<vmem>>, vector<1x320x256xbf16>
    %76 = vector.shape_cast %75 : vector<1x320x256xbf16> to vector<320x256xbf16>
    %77 = arith.truncf %74 : vector<1x320xf32> to vector<1x320xbf16>
    %cst_46 = arith.constant dense<0.000000e+00> : vector<1x256xf32>
    %78 = tpu.matmul %77, %76, %cst_46 {dimension_numbers = #tpu.dot_dimension_numbers<[1], [0], [0], [1], [0, 0, 1, 1], [], []>} : vector<1x320xbf16>, vector<320x256xbf16>, vector<1x256xf32> -> vector<1x256xf32>
    %79 = arith.addf %73, %78 : vector<1x256xf32>
    %80 = vector.extract_strided_slice %72 {offsets = [1, 0], sizes = [1, 320], strides = [1, 1]} : vector<5x320xf32> to vector<1x320xf32>
    %c1_47 = arith.constant 1 : index
    %c0_48 = arith.constant 0 : index
    %c0_49 = arith.constant 0 : index
    %81 = vector.load %arg6[%c1_47, %c0_48, %c0_49] : memref<5x320x256xbf16, #tpu.memory_space<vmem>>, vector<1x320x256xbf16>
    %82 = vector.shape_cast %81 : vector<1x320x256xbf16> to vector<320x256xbf16>
    %83 = arith.truncf %80 : vector<1x320xf32> to vector<1x320xbf16>
    %cst_50 = arith.constant dense<0.000000e+00> : vector<1x256xf32>
    %84 = tpu.matmul %83, %82, %cst_50 {dimension_numbers = #tpu.dot_dimension_numbers<[1], [0], [0], [1], [0, 0, 1, 1], [], []>} : vector<1x320xbf16>, vector<320x256xbf16>, vector<1x256xf32> -> vector<1x256xf32>
    %85 = arith.addf %79, %84 : vector<1x256xf32>
    %86 = vector.extract_strided_slice %72 {offsets = [2, 0], sizes = [1, 320], strides = [1, 1]} : vector<5x320xf32> to vector<1x320xf32>
    %c2_51 = arith.constant 2 : index
    %c0_52 = arith.constant 0 : index
    %c0_53 = arith.constant 0 : index
    %87 = vector.load %arg6[%c2_51, %c0_52, %c0_53] : memref<5x320x256xbf16, #tpu.memory_space<vmem>>, vector<1x320x256xbf16>
    %88 = vector.shape_cast %87 : vector<1x320x256xbf16> to vector<320x256xbf16>
    %89 = arith.truncf %86 : vector<1x320xf32> to vector<1x320xbf16>
    %cst_54 = arith.constant dense<0.000000e+00> : vector<1x256xf32>
    %90 = tpu.matmul %89, %88, %cst_54 {dimension_numbers = #tpu.dot_dimension_numbers<[1], [0], [0], [1], [0, 0, 1, 1], [], []>} : vector<1x320xbf16>, vector<320x256xbf16>, vector<1x256xf32> -> vector<1x256xf32>
    %91 = arith.addf %85, %90 : vector<1x256xf32>
    %92 = vector.extract_strided_slice %72 {offsets = [3, 0], sizes = [1, 320], strides = [1, 1]} : vector<5x320xf32> to vector<1x320xf32>
    %c3_55 = arith.constant 3 : index
    %c0_56 = arith.constant 0 : index
    %c0_57 = arith.constant 0 : index
    %93 = vector.load %arg6[%c3_55, %c0_56, %c0_57] : memref<5x320x256xbf16, #tpu.memory_space<vmem>>, vector<1x320x256xbf16>
    %94 = vector.shape_cast %93 : vector<1x320x256xbf16> to vector<320x256xbf16>
    %95 = arith.truncf %92 : vector<1x320xf32> to vector<1x320xbf16>
    %cst_58 = arith.constant dense<0.000000e+00> : vector<1x256xf32>
    %96 = tpu.matmul %95, %94, %cst_58 {dimension_numbers = #tpu.dot_dimension_numbers<[1], [0], [0], [1], [0, 0, 1, 1], [], []>} : vector<1x320xbf16>, vector<320x256xbf16>, vector<1x256xf32> -> vector<1x256xf32>
    %97 = arith.addf %91, %96 : vector<1x256xf32>
    %98 = vector.extract_strided_slice %72 {offsets = [4, 0], sizes = [1, 320], strides = [1, 1]} : vector<5x320xf32> to vector<1x320xf32>
    %c4 = arith.constant 4 : index
    %c0_59 = arith.constant 0 : index
    %c0_60 = arith.constant 0 : index
    %99 = vector.load %arg6[%c4, %c0_59, %c0_60] : memref<5x320x256xbf16, #tpu.memory_space<vmem>>, vector<1x320x256xbf16>
    %100 = vector.shape_cast %99 : vector<1x320x256xbf16> to vector<320x256xbf16>
    %101 = arith.truncf %98 : vector<1x320xf32> to vector<1x320xbf16>
    %cst_61 = arith.constant dense<0.000000e+00> : vector<1x256xf32>
    %102 = tpu.matmul %101, %100, %cst_61 {dimension_numbers = #tpu.dot_dimension_numbers<[1], [0], [0], [1], [0, 0, 1, 1], [], []>} : vector<1x320xbf16>, vector<320x256xbf16>, vector<1x256xf32> -> vector<1x256xf32>
    %103 = arith.addf %97, %102 : vector<1x256xf32>
    %cst_62 = arith.constant 0.000000e+00 : f32
    %104 = vector.broadcast %cst_62 : f32 to vector<1x256xf32>
    %105 = arith.maximumf %103, %104 : vector<1x256xf32>
    %c0_63 = arith.constant 0 : index
    %c0_64 = arith.constant 0 : index
    %106 = vector.load %arg7[%c0_63, %c0_64] : memref<256x128xbf16, #tpu.memory_space<vmem>>, vector<256x128xbf16>
    %107 = arith.truncf %105 : vector<1x256xf32> to vector<1x256xbf16>
    %cst_65 = arith.constant dense<0.000000e+00> : vector<1x128xf32>
    %108 = tpu.matmul %107, %106, %cst_65 {dimension_numbers = #tpu.dot_dimension_numbers<[1], [0], [0], [1], [0, 0, 1, 1], [], []>} : vector<1x256xbf16>, vector<256x128xbf16>, vector<1x128xf32> -> vector<1x128xf32>
    %c0_66 = arith.constant 0 : index
    %c0_67 = arith.constant 0 : index
    %109 = vector.load %arg15[%c0_66, %c0_67] : memref<1x128xf32, #tpu.memory_space<vmem>>, vector<1x128xf32>
    %110 = arith.addf %108, %109 : vector<1x128xf32>
    %c0_68 = arith.constant 0 : index
    %c0_69 = arith.constant 0 : index
    %c0_70 = arith.constant 0 : index
    %111 = vector.load %arg20[%c0_68, %c0_69, %c0_70] : memref<1x1x128xf32, #tpu.memory_space<vmem>>, vector<1x1x128xf32>
    %112 = vector.shape_cast %111 : vector<1x1x128xf32> to vector<1x128xf32>
    %113 = vector.shape_cast %110 : vector<1x128xf32> to vector<1x1x128xf32>
    tpu.vector_store %arg20[%c0_68, %c0_69, %c0_70], %113 {strides = array<i32>} : memref<1x1x128xf32, #tpu.memory_space<vmem>>, vector<1x1x128xf32>,
    %114 = tpu.iota {dimensions = array<i32: 1>} : vector<1x128xi32>
    %c8_i32 = arith.constant 8 : i32
    %115 = vector.broadcast %c8_i32 : i32 to vector<1x128xi32>
    %116 = arith.cmpi slt, %114, %115 : vector<1x128xi32>
    %cst_71 = arith.constant 0.000000e+00 : f32
    %117 = vector.broadcast %cst_71 : f32 to vector<1x128xf32>
    %118 = arith.select %116, %110, %117 : vector<1x128xi1>, vector<1x128xf32>
    %cst_72 = arith.constant 5.000000e-01 : f32
    %119 = vector.broadcast %cst_72 : f32 to vector<1x128xf32>
    %120 = arith.mulf %110, %119 : vector<1x128xf32>
    %121 = math.exp %120 : vector<1x128xf32>
    %c0_73 = arith.constant 0 : index
    %c0_74 = arith.constant 0 : index
    %c0_75 = arith.constant 0 : index
    %122 = vector.load %arg2[%c0_73, %c0_74, %c0_75] : memref<1x1x128xf32, #tpu.memory_space<vmem>>, vector<1x1x128xf32>
    %123 = vector.shape_cast %122 : vector<1x1x128xf32> to vector<1x128xf32>
    %124 = arith.mulf %121, %123 : vector<1x128xf32>
    %125 = arith.addf %118, %124 : vector<1x128xf32>
    %c0_76 = arith.constant 0 : index
    %c0_77 = arith.constant 0 : index
    %126 = vector.load %arg8[%c0_76, %c0_77] : memref<128x256xbf16, #tpu.memory_space<vmem>>, vector<128x256xbf16>
    %127 = arith.truncf %125 : vector<1x128xf32> to vector<1x128xbf16>
    %cst_78 = arith.constant dense<0.000000e+00> : vector<1x256xf32>
    %128 = tpu.matmul %127, %126, %cst_78 {dimension_numbers = #tpu.dot_dimension_numbers<[1], [0], [0], [1], [0, 0, 1, 1], [], []>} : vector<1x128xbf16>, vector<128x256xbf16>, vector<1x256xf32> -> vector<1x256xf32>
    %c0_79 = arith.constant 0 : index
    %c0_80 = arith.constant 0 : index
    %129 = vector.load %arg16[%c0_79, %c0_80] : memref<1x256xf32, #tpu.memory_space<vmem>>, vector<1x256xf32>
    %130 = arith.addf %128, %129 : vector<1x256xf32>
    %cst_81 = arith.constant 0.000000e+00 : f32
    %131 = vector.broadcast %cst_81 : f32 to vector<1x256xf32>
    %132 = arith.maximumf %130, %131 : vector<1x256xf32>
    %c0_82 = arith.constant 0 : index
    %c0_83 = arith.constant 0 : index
    %c0_84 = arith.constant 0 : index
    %133 = vector.load %arg9[%c0_82, %c0_83, %c0_84] : memref<5x256x320xbf16, #tpu.memory_space<vmem>>, vector<1x256x320xbf16>
    %134 = vector.shape_cast %133 : vector<1x256x320xbf16> to vector<256x320xbf16>
    %135 = arith.truncf %132 : vector<1x256xf32> to vector<1x256xbf16>
    %cst_85 = arith.constant dense<0.000000e+00> : vector<1x320xf32>
    %136 = tpu.matmul %135, %134, %cst_85 {dimension_numbers = #tpu.dot_dimension_numbers<[1], [0], [0], [1], [0, 0, 1, 1], [], []>} : vector<1x256xbf16>, vector<256x320xbf16>, vector<1x320xf32> -> vector<1x320xf32>
    %c0_86 = arith.constant 0 : index
    %c0_87 = arith.constant 0 : index
    %c0_88 = arith.constant 0 : index
    %137 = vector.load %arg17[%c0_86, %c0_87, %c0_88] : memref<5x1x320xf32, #tpu.memory_space<vmem>>, vector<1x1x320xf32>
    %138 = vector.shape_cast %137 : vector<1x1x320xf32> to vector<1x320xf32>
    %139 = arith.addf %136, %138 : vector<1x320xf32>
    %cst_89 = arith.constant 0.000000e+00 : f32
    %140 = vector.broadcast %cst_89 : f32 to vector<1x320xf32>
    %141 = arith.maximumf %139, %140 : vector<1x320xf32>
    %c1_90 = arith.constant 1 : index
    %c0_91 = arith.constant 0 : index
    %c0_92 = arith.constant 0 : index
    %142 = vector.load %arg9[%c1_90, %c0_91, %c0_92] : memref<5x256x320xbf16, #tpu.memory_space<vmem>>, vector<1x256x320xbf16>
    %143 = vector.shape_cast %142 : vector<1x256x320xbf16> to vector<256x320xbf16>
    %144 = arith.truncf %132 : vector<1x256xf32> to vector<1x256xbf16>
    %cst_93 = arith.constant dense<0.000000e+00> : vector<1x320xf32>
    %145 = tpu.matmul %144, %143, %cst_93 {dimension_numbers = #tpu.dot_dimension_numbers<[1], [0], [0], [1], [0, 0, 1, 1], [], []>} : vector<1x256xbf16>, vector<256x320xbf16>, vector<1x320xf32> -> vector<1x320xf32>
    %c1_94 = arith.constant 1 : index
    %c0_95 = arith.constant 0 : index
    %c0_96 = arith.constant 0 : index
    %146 = vector.load %arg17[%c1_94, %c0_95, %c0_96] : memref<5x1x320xf32, #tpu.memory_space<vmem>>, vector<1x1x320xf32>
    %147 = vector.shape_cast %146 : vector<1x1x320xf32> to vector<1x320xf32>
    %148 = arith.addf %145, %147 : vector<1x320xf32>
    %cst_97 = arith.constant 0.000000e+00 : f32
    %149 = vector.broadcast %cst_97 : f32 to vector<1x320xf32>
    %150 = arith.maximumf %148, %149 : vector<1x320xf32>
    %c2_98 = arith.constant 2 : index
    %c0_99 = arith.constant 0 : index
    %c0_100 = arith.constant 0 : index
    %151 = vector.load %arg9[%c2_98, %c0_99, %c0_100] : memref<5x256x320xbf16, #tpu.memory_space<vmem>>, vector<1x256x320xbf16>
    %152 = vector.shape_cast %151 : vector<1x256x320xbf16> to vector<256x320xbf16>
    %153 = arith.truncf %132 : vector<1x256xf32> to vector<1x256xbf16>
    %cst_101 = arith.constant dense<0.000000e+00> : vector<1x320xf32>
    %154 = tpu.matmul %153, %152, %cst_101 {dimension_numbers = #tpu.dot_dimension_numbers<[1], [0], [0], [1], [0, 0, 1, 1], [], []>} : vector<1x256xbf16>, vector<256x320xbf16>, vector<1x320xf32> -> vector<1x320xf32>
    %c2_102 = arith.constant 2 : index
    %c0_103 = arith.constant 0 : index
    %c0_104 = arith.constant 0 : index
    %155 = vector.load %arg17[%c2_102, %c0_103, %c0_104] : memref<5x1x320xf32, #tpu.memory_space<vmem>>, vector<1x1x320xf32>
    %156 = vector.shape_cast %155 : vector<1x1x320xf32> to vector<1x320xf32>
    %157 = arith.addf %154, %156 : vector<1x320xf32>
    %cst_105 = arith.constant 0.000000e+00 : f32
    %158 = vector.broadcast %cst_105 : f32 to vector<1x320xf32>
    %159 = arith.maximumf %157, %158 : vector<1x320xf32>
    %c3_106 = arith.constant 3 : index
    %c0_107 = arith.constant 0 : index
    %c0_108 = arith.constant 0 : index
    %160 = vector.load %arg9[%c3_106, %c0_107, %c0_108] : memref<5x256x320xbf16, #tpu.memory_space<vmem>>, vector<1x256x320xbf16>
    %161 = vector.shape_cast %160 : vector<1x256x320xbf16> to vector<256x320xbf16>
    %162 = arith.truncf %132 : vector<1x256xf32> to vector<1x256xbf16>
    %cst_109 = arith.constant dense<0.000000e+00> : vector<1x320xf32>
    %163 = tpu.matmul %162, %161, %cst_109 {dimension_numbers = #tpu.dot_dimension_numbers<[1], [0], [0], [1], [0, 0, 1, 1], [], []>} : vector<1x256xbf16>, vector<256x320xbf16>, vector<1x320xf32> -> vector<1x320xf32>
    %c3_110 = arith.constant 3 : index
    %c0_111 = arith.constant 0 : index
    %c0_112 = arith.constant 0 : index
    %164 = vector.load %arg17[%c3_110, %c0_111, %c0_112] : memref<5x1x320xf32, #tpu.memory_space<vmem>>, vector<1x1x320xf32>
    %165 = vector.shape_cast %164 : vector<1x1x320xf32> to vector<1x320xf32>
    %166 = arith.addf %163, %165 : vector<1x320xf32>
    %cst_113 = arith.constant 0.000000e+00 : f32
    %167 = vector.broadcast %cst_113 : f32 to vector<1x320xf32>
    %168 = arith.maximumf %166, %167 : vector<1x320xf32>
    %c4_114 = arith.constant 4 : index
    %c0_115 = arith.constant 0 : index
    %c0_116 = arith.constant 0 : index
    %169 = vector.load %arg9[%c4_114, %c0_115, %c0_116] : memref<5x256x320xbf16, #tpu.memory_space<vmem>>, vector<1x256x320xbf16>
    %170 = vector.shape_cast %169 : vector<1x256x320xbf16> to vector<256x320xbf16>
    %171 = arith.truncf %132 : vector<1x256xf32> to vector<1x256xbf16>
    %cst_117 = arith.constant dense<0.000000e+00> : vector<1x320xf32>
    %172 = tpu.matmul %171, %170, %cst_117 {dimension_numbers = #tpu.dot_dimension_numbers<[1], [0], [0], [1], [0, 0, 1, 1], [], []>} : vector<1x256xbf16>, vector<256x320xbf16>, vector<1x320xf32> -> vector<1x320xf32>
    %c4_118 = arith.constant 4 : index
    %c0_119 = arith.constant 0 : index
    %c0_120 = arith.constant 0 : index
    %173 = vector.load %arg17[%c4_118, %c0_119, %c0_120] : memref<5x1x320xf32, #tpu.memory_space<vmem>>, vector<1x1x320xf32>
    %174 = vector.shape_cast %173 : vector<1x1x320xf32> to vector<1x320xf32>
    %175 = arith.addf %172, %174 : vector<1x320xf32>
    %cst_121 = arith.constant 0.000000e+00 : f32
    %176 = vector.broadcast %cst_121 : f32 to vector<1x320xf32>
    %177 = arith.maximumf %175, %176 : vector<1x320xf32>
    %178 = tpu.concatenate %141, %150, %159, %168, %177 in 0 : vector<1x320xf32>, vector<1x320xf32>, vector<1x320xf32>, vector<1x320xf32>, vector<1x320xf32> -> vector<5x320xf32>
    %179 = tpu.concatenate %0, %178, %0 in 0 : vector<1x320xf32>, vector<5x320xf32>, vector<1x320xf32> -> vector<7x320xf32>
    %180 = vector.extract_strided_slice %179 {offsets = [1, 0], sizes = [5, 320], strides = [1, 1]} : vector<7x320xf32> to vector<5x320xf32>
    %c1_122 = arith.constant 1 : index
    %c0_123 = arith.constant 0 : index
    %c0_124 = arith.constant 0 : index
    %181 = vector.load %arg10[%c1_122, %c0_123, %c0_124] : memref<4x320x320xbf16, #tpu.memory_space<vmem>>, vector<1x320x320xbf16>
    %182 = vector.shape_cast %181 : vector<1x320x320xbf16> to vector<320x320xbf16>
    %183 = arith.truncf %180 : vector<5x320xf32> to vector<5x320xbf16>
    %cst_125 = arith.constant dense<0.000000e+00> : vector<5x320xf32>
    %184 = tpu.matmul %183, %182, %cst_125 {dimension_numbers = #tpu.dot_dimension_numbers<[1], [0], [0], [1], [0, 0, 1, 1], [], []>} : vector<5x320xbf16>, vector<320x320xbf16>, vector<5x320xf32> -> vector<5x320xf32>
    %185 = vector.extract_strided_slice %179 {offsets = [0, 0], sizes = [5, 320], strides = [1, 1]} : vector<7x320xf32> to vector<5x320xf32>
    %c3_126 = arith.constant 3 : index
    %c0_127 = arith.constant 0 : index
    %c0_128 = arith.constant 0 : index
    %186 = vector.load %arg10[%c3_126, %c0_127, %c0_128] : memref<4x320x320xbf16, #tpu.memory_space<vmem>>, vector<1x320x320xbf16>
    %187 = vector.shape_cast %186 : vector<1x320x320xbf16> to vector<320x320xbf16>
    %188 = arith.truncf %185 : vector<5x320xf32> to vector<5x320xbf16>
    %cst_129 = arith.constant dense<0.000000e+00> : vector<5x320xf32>
    %189 = tpu.matmul %188, %187, %cst_129 {dimension_numbers = #tpu.dot_dimension_numbers<[1], [0], [0], [1], [0, 0, 1, 1], [], []>} : vector<5x320xbf16>, vector<320x320xbf16>, vector<5x320xf32> -> vector<5x320xf32>
    %190 = arith.addf %184, %189 : vector<5x320xf32>
    %c0_130 = arith.constant 0 : index
    %c0_131 = arith.constant 0 : index
    %191 = vector.load %arg18[%c0_130, %c0_131] : memref<1x320xf32, #tpu.memory_space<vmem>>, vector<1x320xf32>
    %192 = vector.broadcast %191 : vector<1x320xf32> to vector<5x320xf32>
    %193 = arith.addf %190, %192 : vector<5x320xf32>
    %cst_132 = arith.constant 0.000000e+00 : f32
    %194 = vector.broadcast %cst_132 : f32 to vector<5x320xf32>
    %195 = arith.cmpf ogt, %193, %194 : vector<5x320xf32>
    %cst_133 = arith.constant 0.000000e+00 : f32
    %196 = vector.broadcast %cst_133 : f32 to vector<5x320xf32>
    %197 = arith.minimumf %193, %196 : vector<5x320xf32>
    %198 = math.exp %197 : vector<5x320xf32>
    %cst_134 = arith.constant 1.000000e+00 : f32
    %199 = vector.broadcast %cst_134 : f32 to vector<5x320xf32>
    %200 = arith.subf %198, %199 : vector<5x320xf32>
    %201 = arith.select %195, %193, %200 : vector<5x320xi1>, vector<5x320xf32>
    %202 = vector.extract_strided_slice %179 {offsets = [2, 0], sizes = [5, 320], strides = [1, 1]} : vector<7x320xf32> to vector<5x320xf32>
    %c0_135 = arith.constant 0 : index
    %c0_136 = arith.constant 0 : index
    %c0_137 = arith.constant 0 : index
    %203 = vector.load %arg10[%c0_135, %c0_136, %c0_137] : memref<4x320x320xbf16, #tpu.memory_space<vmem>>, vector<1x320x320xbf16>
    %204 = vector.shape_cast %203 : vector<1x320x320xbf16> to vector<320x320xbf16>
    %205 = arith.truncf %202 : vector<5x320xf32> to vector<5x320xbf16>
    %cst_138 = arith.constant dense<0.000000e+00> : vector<5x320xf32>
    %206 = tpu.matmul %205, %204, %cst_138 {dimension_numbers = #tpu.dot_dimension_numbers<[1], [0], [0], [1], [0, 0, 1, 1], [], []>} : vector<5x320xbf16>, vector<320x320xbf16>, vector<5x320xf32> -> vector<5x320xf32>
    %207 = vector.extract_strided_slice %179 {offsets = [1, 0], sizes = [5, 320], strides = [1, 1]} : vector<7x320xf32> to vector<5x320xf32>
    %c2_139 = arith.constant 2 : index
    %c0_140 = arith.constant 0 : index
    %c0_141 = arith.constant 0 : index
    %208 = vector.load %arg10[%c2_139, %c0_140, %c0_141] : memref<4x320x320xbf16, #tpu.memory_space<vmem>>, vector<1x320x320xbf16>
    %209 = vector.shape_cast %208 : vector<1x320x320xbf16> to vector<320x320xbf16>
    %210 = arith.truncf %207 : vector<5x320xf32> to vector<5x320xbf16>
    %cst_142 = arith.constant dense<0.000000e+00> : vector<5x320xf32>
    %211 = tpu.matmul %210, %209, %cst_142 {dimension_numbers = #tpu.dot_dimension_numbers<[1], [0], [0], [1], [0, 0, 1, 1], [], []>} : vector<5x320xbf16>, vector<320x320xbf16>, vector<5x320xf32> -> vector<5x320xf32>
    %212 = arith.addf %206, %211 : vector<5x320xf32>
    %c0_143 = arith.constant 0 : index
    %c0_144 = arith.constant 0 : index
    %213 = vector.load %arg18[%c0_143, %c0_144] : memref<1x320xf32, #tpu.memory_space<vmem>>, vector<1x320xf32>
    %214 = vector.broadcast %213 : vector<1x320xf32> to vector<5x320xf32>
    %215 = arith.addf %212, %214 : vector<5x320xf32>
    %cst_145 = arith.constant 0.000000e+00 : f32
    %216 = vector.broadcast %cst_145 : f32 to vector<5x320xf32>
    %217 = arith.cmpf ogt, %215, %216 : vector<5x320xf32>
    %cst_146 = arith.constant 0.000000e+00 : f32
    %218 = vector.broadcast %cst_146 : f32 to vector<5x320xf32>
    %219 = arith.minimumf %215, %218 : vector<5x320xf32>
    %220 = math.exp %219 : vector<5x320xf32>
    %cst_147 = arith.constant 1.000000e+00 : f32
    %221 = vector.broadcast %cst_147 : f32 to vector<5x320xf32>
    %222 = arith.subf %220, %221 : vector<5x320xf32>
    %223 = arith.select %217, %215, %222 : vector<5x320xi1>, vector<5x320xf32>
    %224 = tpu.concatenate %201, %0 in 0 : vector<5x320xf32>, vector<1x320xf32> -> vector<6x320xf32>
    %225 = tpu.concatenate %0, %223 in 0 : vector<1x320xf32>, vector<5x320xf32> -> vector<6x320xf32>
    %226 = vector.extract_strided_slice %224 {offsets = [0, 0], sizes = [5, 320], strides = [1, 1]} : vector<6x320xf32> to vector<5x320xf32>
    %c1_148 = arith.constant 1 : index
    %c0_149 = arith.constant 0 : index
    %c0_150 = arith.constant 0 : index
    %227 = vector.load %arg11[%c1_148, %c0_149, %c0_150] : memref<4x320x64xbf16, #tpu.memory_space<vmem>>, vector<1x320x64xbf16>
    %228 = vector.shape_cast %227 : vector<1x320x64xbf16> to vector<320x64xbf16>
    %229 = arith.truncf %226 : vector<5x320xf32> to vector<5x320xbf16>
    %cst_151 = arith.constant dense<0.000000e+00> : vector<5x64xf32>
    %230 = tpu.matmul %229, %228, %cst_151 {dimension_numbers = #tpu.dot_dimension_numbers<[1], [0], [0], [1], [0, 0, 1, 1], [], []>} : vector<5x320xbf16>, vector<320x64xbf16>, vector<5x64xf32> -> vector<5x64xf32>
    %231 = vector.extract_strided_slice %225 {offsets = [0, 0], sizes = [5, 320], strides = [1, 1]} : vector<6x320xf32> to vector<5x320xf32>
    %c3_152 = arith.constant 3 : index
    %c0_153 = arith.constant 0 : index
    %c0_154 = arith.constant 0 : index
    %232 = vector.load %arg11[%c3_152, %c0_153, %c0_154] : memref<4x320x64xbf16, #tpu.memory_space<vmem>>, vector<1x320x64xbf16>
    %233 = vector.shape_cast %232 : vector<1x320x64xbf16> to vector<320x64xbf16>
    %234 = arith.truncf %231 : vector<5x320xf32> to vector<5x320xbf16>
    %cst_155 = arith.constant dense<0.000000e+00> : vector<5x64xf32>
    %235 = tpu.matmul %234, %233, %cst_155 {dimension_numbers = #tpu.dot_dimension_numbers<[1], [0], [0], [1], [0, 0, 1, 1], [], []>} : vector<5x320xbf16>, vector<320x64xbf16>, vector<5x64xf32> -> vector<5x64xf32>
    %236 = arith.addf %230, %235 : vector<5x64xf32>
    %c0_156 = arith.constant 0 : index
    %c0_157 = arith.constant 0 : index
    %237 = vector.load %arg19[%c0_156, %c0_157] : memref<1x64xf32, #tpu.memory_space<vmem>>, vector<1x64xf32>
    %238 = vector.broadcast %237 : vector<1x64xf32> to vector<5x64xf32>
    %239 = arith.addf %236, %238 : vector<5x64xf32>
    %c0_158 = arith.constant 0 : index
    %c0_159 = arith.constant 0 : index
    %c0_160 = arith.constant 0 : index
    %c0_161 = arith.constant 0 : index
    %240 = vector.load %arg21[%c0_158, %c0_159, %c0_160, %c0_161] : memref<1x4x5x64xf32, #tpu.memory_space<vmem>>, vector<1x1x5x64xf32>
    %241 = vector.shape_cast %240 : vector<1x1x5x64xf32> to vector<5x64xf32>
    %242 = vector.shape_cast %239 : vector<5x64xf32> to vector<1x1x5x64xf32>
    tpu.vector_store %arg21[%c0_158, %c0_159, %c0_160, %c0_161], %242 {strides = array<i32>} : memref<1x4x5x64xf32, #tpu.memory_space<vmem>>, vector<1x1x5x64xf32>,
    %243 = vector.extract_strided_slice %225 {offsets = [1, 0], sizes = [5, 320], strides = [1, 1]} : vector<6x320xf32> to vector<5x320xf32>
    %c0_162 = arith.constant 0 : index
    %c0_163 = arith.constant 0 : index
    %c0_164 = arith.constant 0 : index
    %244 = vector.load %arg11[%c0_162, %c0_163, %c0_164] : memref<4x320x64xbf16, #tpu.memory_space<vmem>>, vector<1x320x64xbf16>
    %245 = vector.shape_cast %244 : vector<1x320x64xbf16> to vector<320x64xbf16>
    %246 = arith.truncf %243 : vector<5x320xf32> to vector<5x320xbf16>
    %cst_165 = arith.constant dense<0.000000e+00> : vector<5x64xf32>
    %247 = tpu.matmul %246, %245, %cst_165 {dimension_numbers = #tpu.dot_dimension_numbers<[1], [0], [0], [1], [0, 0, 1, 1], [], []>} : vector<5x320xbf16>, vector<320x64xbf16>, vector<5x64xf32> -> vector<5x64xf32>
    %248 = vector.extract_strided_slice %224 {offsets = [0, 0], sizes = [5, 320], strides = [1, 1]} : vector<6x320xf32> to vector<5x320xf32>
    %c2_166 = arith.constant 2 : index
    %c0_167 = arith.constant 0 : index
    %c0_168 = arith.constant 0 : index
    %249 = vector.load %arg11[%c2_166, %c0_167, %c0_168] : memref<4x320x64xbf16, #tpu.memory_space<vmem>>, vector<1x320x64xbf16>
    %250 = vector.shape_cast %249 : vector<1x320x64xbf16> to vector<320x64xbf16>
    %251 = arith.truncf %248 : vector<5x320xf32> to vector<5x320xbf16>
    %cst_169 = arith.constant dense<0.000000e+00> : vector<5x64xf32>
    %252 = tpu.matmul %251, %250, %cst_169 {dimension_numbers = #tpu.dot_dimension_numbers<[1], [0], [0], [1], [0, 0, 1, 1], [], []>} : vector<5x320xbf16>, vector<320x64xbf16>, vector<5x64xf32> -> vector<5x64xf32>
    %253 = arith.addf %247, %252 : vector<5x64xf32>
    %c0_170 = arith.constant 0 : index
    %c0_171 = arith.constant 0 : index
    %254 = vector.load %arg19[%c0_170, %c0_171] : memref<1x64xf32, #tpu.memory_space<vmem>>, vector<1x64xf32>
    %255 = vector.broadcast %254 : vector<1x64xf32> to vector<5x64xf32>
    %256 = arith.addf %253, %255 : vector<5x64xf32>
    %c0_172 = arith.constant 0 : index
    %c1_173 = arith.constant 1 : index
    %c0_174 = arith.constant 0 : index
    %c0_175 = arith.constant 0 : index
    %257 = vector.load %arg21[%c0_172, %c1_173, %c0_174, %c0_175] : memref<1x4x5x64xf32, #tpu.memory_space<vmem>>, vector<1x1x5x64xf32>
    %258 = vector.shape_cast %257 : vector<1x1x5x64xf32> to vector<5x64xf32>
    %259 = vector.shape_cast %256 : vector<5x64xf32> to vector<1x1x5x64xf32>
    tpu.vector_store %arg21[%c0_172, %c1_173, %c0_174, %c0_175], %259 {strides = array<i32>} : memref<1x4x5x64xf32, #tpu.memory_space<vmem>>, vector<1x1x5x64xf32>,
    %260 = vector.extract_strided_slice %225 {offsets = [1, 0], sizes = [5, 320], strides = [1, 1]} : vector<6x320xf32> to vector<5x320xf32>
    %c1_176 = arith.constant 1 : index
    %c0_177 = arith.constant 0 : index
    %c0_178 = arith.constant 0 : index
    %261 = vector.load %arg11[%c1_176, %c0_177, %c0_178] : memref<4x320x64xbf16, #tpu.memory_space<vmem>>, vector<1x320x64xbf16>
    %262 = vector.shape_cast %261 : vector<1x320x64xbf16> to vector<320x64xbf16>
    %263 = arith.truncf %260 : vector<5x320xf32> to vector<5x320xbf16>
    %cst_179 = arith.constant dense<0.000000e+00> : vector<5x64xf32>
    %264 = tpu.matmul %263, %262, %cst_179 {dimension_numbers = #tpu.dot_dimension_numbers<[1], [0], [0], [1], [0, 0, 1, 1], [], []>} : vector<5x320xbf16>, vector<320x64xbf16>, vector<5x64xf32> -> vector<5x64xf32>
    %265 = vector.extract_strided_slice %224 {offsets = [0, 0], sizes = [5, 320], strides = [1, 1]} : vector<6x320xf32> to vector<5x320xf32>
    %c3_180 = arith.constant 3 : index
    %c0_181 = arith.constant 0 : index
    %c0_182 = arith.constant 0 : index
    %266 = vector.load %arg11[%c3_180, %c0_181, %c0_182] : memref<4x320x64xbf16, #tpu.memory_space<vmem>>, vector<1x320x64xbf16>
    %267 = vector.shape_cast %266 : vector<1x320x64xbf16> to vector<320x64xbf16>
    %268 = arith.truncf %265 : vector<5x320xf32> to vector<5x320xbf16>
    %cst_183 = arith.constant dense<0.000000e+00> : vector<5x64xf32>
    %269 = tpu.matmul %268, %267, %cst_183 {dimension_numbers = #tpu.dot_dimension_numbers<[1], [0], [0], [1], [0, 0, 1, 1], [], []>} : vector<5x320xbf16>, vector<320x64xbf16>, vector<5x64xf32> -> vector<5x64xf32>
    %270 = arith.addf %264, %269 : vector<5x64xf32>
    %c0_184 = arith.constant 0 : index
    %c0_185 = arith.constant 0 : index
    %271 = vector.load %arg19[%c0_184, %c0_185] : memref<1x64xf32, #tpu.memory_space<vmem>>, vector<1x64xf32>
    %272 = vector.broadcast %271 : vector<1x64xf32> to vector<5x64xf32>
    %273 = arith.addf %270, %272 : vector<5x64xf32>
    %c0_186 = arith.constant 0 : index
    %c2_187 = arith.constant 2 : index
    %c0_188 = arith.constant 0 : index
    %c0_189 = arith.constant 0 : index
    %274 = vector.load %arg21[%c0_186, %c2_187, %c0_188, %c0_189] : memref<1x4x5x64xf32, #tpu.memory_space<vmem>>, vector<1x1x5x64xf32>
    %275 = vector.shape_cast %274 : vector<1x1x5x64xf32> to vector<5x64xf32>
    %276 = vector.shape_cast %273 : vector<5x64xf32> to vector<1x1x5x64xf32>
    tpu.vector_store %arg21[%c0_186, %c2_187, %c0_188, %c0_189], %276 {strides = array<i32>} : memref<1x4x5x64xf32, #tpu.memory_space<vmem>>, vector<1x1x5x64xf32>,
    %277 = vector.extract_strided_slice %224 {offsets = [1, 0], sizes = [5, 320], strides = [1, 1]} : vector<6x320xf32> to vector<5x320xf32>
    %c0_190 = arith.constant 0 : index
    %c0_191 = arith.constant 0 : index
    %c0_192 = arith.constant 0 : index
    %278 = vector.load %arg11[%c0_190, %c0_191, %c0_192] : memref<4x320x64xbf16, #tpu.memory_space<vmem>>, vector<1x320x64xbf16>
    %279 = vector.shape_cast %278 : vector<1x320x64xbf16> to vector<320x64xbf16>
    %280 = arith.truncf %277 : vector<5x320xf32> to vector<5x320xbf16>
    %cst_193 = arith.constant dense<0.000000e+00> : vector<5x64xf32>
    %281 = tpu.matmul %280, %279, %cst_193 {dimension_numbers = #tpu.dot_dimension_numbers<[1], [0], [0], [1], [0, 0, 1, 1], [], []>} : vector<5x320xbf16>, vector<320x64xbf16>, vector<5x64xf32> -> vector<5x64xf32>
    %282 = vector.extract_strided_slice %225 {offsets = [1, 0], sizes = [5, 320], strides = [1, 1]} : vector<6x320xf32> to vector<5x320xf32>
    %c2_194 = arith.constant 2 : index
    %c0_195 = arith.constant 0 : index
    %c0_196 = arith.constant 0 : index
    %283 = vector.load %arg11[%c2_194, %c0_195, %c0_196] : memref<4x320x64xbf16, #tpu.memory_space<vmem>>, vector<1x320x64xbf16>
    %284 = vector.shape_cast %283 : vector<1x320x64xbf16> to vector<320x64xbf16>
    %285 = arith.truncf %282 : vector<5x320xf32> to vector<5x320xbf16>
    %cst_197 = arith.constant dense<0.000000e+00> : vector<5x64xf32>
    %286 = tpu.matmul %285, %284, %cst_197 {dimension_numbers = #tpu.dot_dimension_numbers<[1], [0], [0], [1], [0, 0, 1, 1], [], []>} : vector<5x320xbf16>, vector<320x64xbf16>, vector<5x64xf32> -> vector<5x64xf32>
    %287 = arith.addf %281, %286 : vector<5x64xf32>
    %c0_198 = arith.constant 0 : index
    %c0_199 = arith.constant 0 : index
    %288 = vector.load %arg19[%c0_198, %c0_199] : memref<1x64xf32, #tpu.memory_space<vmem>>, vector<1x64xf32>
    %289 = vector.broadcast %288 : vector<1x64xf32> to vector<5x64xf32>
    %290 = arith.addf %287, %289 : vector<5x64xf32>
    %c0_200 = arith.constant 0 : index
    %c3_201 = arith.constant 3 : index
    %c0_202 = arith.constant 0 : index
    %c0_203 = arith.constant 0 : index
    %291 = vector.load %arg21[%c0_200, %c3_201, %c0_202, %c0_203] : memref<1x4x5x64xf32, #tpu.memory_space<vmem>>, vector<1x1x5x64xf32>
    %292 = vector.shape_cast %291 : vector<1x1x5x64xf32> to vector<5x64xf32>
    %293 = vector.shape_cast %290 : vector<5x64xf32> to vector<1x1x5x64xf32>
    tpu.vector_store %arg21[%c0_200, %c3_201, %c0_202, %c0_203], %293 {strides = array<i32>} : memref<1x4x5x64xf32, #tpu.memory_space<vmem>>, vector<1x1x5x64xf32>,
    return
  }
  func.func @transform_0(%arg0: i32) -> (i32, i32, i32) {
    %c0_i32 = arith.constant 0 : i32
    %c0_i32_0 = arith.constant 0 : i32
    %c0_i32_1 = arith.constant 0 : i32
    return %arg0, %c0_i32, %c0_i32_0 : i32, i32, i32
  }
  func.func @transform_1(%arg0: i32) -> (i32, i32, i32) {
    %c0_i32 = arith.constant 0 : i32
    %c0_i32_0 = arith.constant 0 : i32
    %c0_i32_1 = arith.constant 0 : i32
    return %arg0, %c0_i32, %c0_i32_0 : i32, i32, i32
  }
  func.func @transform_2(%arg0: i32) -> (i32, i32) {
    %c0_i32 = arith.constant 0 : i32
    %c0_i32_0 = arith.constant 0 : i32
    %c0_i32_1 = arith.constant 0 : i32
    return %c0_i32, %c0_i32_0 : i32, i32
  }
  func.func @transform_3(%arg0: i32) -> (i32, i32, i32) {
    %c0_i32 = arith.constant 0 : i32
    %c0_i32_0 = arith.constant 0 : i32
    %c0_i32_1 = arith.constant 0 : i32
    %c0_i32_2 = arith.constant 0 : i32
    return %c0_i32, %c0_i32_0, %c0_i32_1 : i32, i32, i32
  }
  func.func @transform_4(%arg0: i32) -> (i32, i32, i32) {
    %c0_i32 = arith.constant 0 : i32
    %c0_i32_0 = arith.constant 0 : i32
    %c0_i32_1 = arith.constant 0 : i32
    %c0_i32_2 = arith.constant 0 : i32
    return %c0_i32, %c0_i32_0, %c0_i32_1 : i32, i32, i32
  }
  func.func @transform_5(%arg0: i32) -> (i32, i32, i32) {
    %c0_i32 = arith.constant 0 : i32
    %c0_i32_0 = arith.constant 0 : i32
    %c0_i32_1 = arith.constant 0 : i32
    %c0_i32_2 = arith.constant 0 : i32
    return %c0_i32, %c0_i32_0, %c0_i32_1 : i32, i32, i32
  }
  func.func @transform_6(%arg0: i32) -> (i32, i32) {
    %c0_i32 = arith.constant 0 : i32
    %c0_i32_0 = arith.constant 0 : i32
    %c0_i32_1 = arith.constant 0 : i32
    return %c0_i32, %c0_i32_0 : i32, i32
  }
  func.func @transform_7(%arg0: i32) -> (i32, i32) {
    %c0_i32 = arith.constant 0 : i32
    %c0_i32_0 = arith.constant 0 : i32
    %c0_i32_1 = arith.constant 0 : i32
    return %c0_i32, %c0_i32_0 : i32, i32
  }
  func.func @transform_8(%arg0: i32) -> (i32, i32, i32) {
    %c0_i32 = arith.constant 0 : i32
    %c0_i32_0 = arith.constant 0 : i32
    %c0_i32_1 = arith.constant 0 : i32
    %c0_i32_2 = arith.constant 0 : i32
    return %c0_i32, %c0_i32_0, %c0_i32_1 : i32, i32, i32
  }
  func.func @transform_9(%arg0: i32) -> (i32, i32, i32) {
    %c0_i32 = arith.constant 0 : i32
    %c0_i32_0 = arith.constant 0 : i32
    %c0_i32_1 = arith.constant 0 : i32
    %c0_i32_2 = arith.constant 0 : i32
    return %c0_i32, %c0_i32_0, %c0_i32_1 : i32, i32, i32
  }
  func.func @transform_10(%arg0: i32) -> (i32, i32, i32) {
    %c0_i32 = arith.constant 0 : i32
    %c0_i32_0 = arith.constant 0 : i32
    %c0_i32_1 = arith.constant 0 : i32
    %c0_i32_2 = arith.constant 0 : i32
    return %c0_i32, %c0_i32_0, %c0_i32_1 : i32, i32, i32
  }
  func.func @transform_11(%arg0: i32) -> (i32, i32) {
    %c0_i32 = arith.constant 0 : i32
    %c0_i32_0 = arith.constant 0 : i32
    %c0_i32_1 = arith.constant 0 : i32
    return %c0_i32, %c0_i32_0 : i32, i32
  }
  func.func @transform_12(%arg0: i32) -> (i32, i32) {
    %c0_i32 = arith.constant 0 : i32
    %c0_i32_0 = arith.constant 0 : i32
    %c0_i32_1 = arith.constant 0 : i32
    return %c0_i32, %c0_i32_0 : i32, i32
  }
  func.func @transform_13(%arg0: i32) -> (i32, i32) {
    %c0_i32 = arith.constant 0 : i32
    %c0_i32_0 = arith.constant 0 : i32
    %c0_i32_1 = arith.constant 0 : i32
    return %c0_i32, %c0_i32_0 : i32, i32
  }
  func.func @transform_14(%arg0: i32) -> (i32, i32) {
    %c0_i32 = arith.constant 0 : i32
    %c0_i32_0 = arith.constant 0 : i32
    %c0_i32_1 = arith.constant 0 : i32
    return %c0_i32, %c0_i32_0 : i32, i32
  }
  func.func @transform_15(%arg0: i32) -> (i32, i32) {
    %c0_i32 = arith.constant 0 : i32
    %c0_i32_0 = arith.constant 0 : i32
    %c0_i32_1 = arith.constant 0 : i32
    return %c0_i32, %c0_i32_0 : i32, i32
  }
  func.func @transform_16(%arg0: i32) -> (i32, i32, i32) {
    %c0_i32 = arith.constant 0 : i32
    %c0_i32_0 = arith.constant 0 : i32
    %c0_i32_1 = arith.constant 0 : i32
    %c0_i32_2 = arith.constant 0 : i32
    return %c0_i32, %c0_i32_0, %c0_i32_1 : i32, i32, i32
  }
  func.func @transform_17(%arg0: i32) -> (i32, i32) {
    %c0_i32 = arith.constant 0 : i32
    %c0_i32_0 = arith.constant 0 : i32
    %c0_i32_1 = arith.constant 0 : i32
    return %c0_i32, %c0_i32_0 : i32, i32
  }
  func.func @transform_18(%arg0: i32) -> (i32, i32) {
    %c0_i32 = arith.constant 0 : i32
    %c0_i32_0 = arith.constant 0 : i32
    %c0_i32_1 = arith.constant 0 : i32
    return %c0_i32, %c0_i32_0 : i32, i32
  }
  func.func @transform_19(%arg0: i32) -> (i32, i32, i32) {
    %c0_i32 = arith.constant 0 : i32
    %c0_i32_0 = arith.constant 0 : i32
    %c0_i32_1 = arith.constant 0 : i32
    return %arg0, %c0_i32, %c0_i32_0 : i32, i32, i32
  }
  func.func @transform_20(%arg0: i32) -> (i32, i32, i32, i32) {
    %c0_i32 = arith.constant 0 : i32
    %c0_i32_0 = arith.constant 0 : i32
    %c0_i32_1 = arith.constant 0 : i32
    %c0_i32_2 = arith.constant 0 : i32
    return %arg0, %c0_i32, %c0_i32_0, %c0_i32_1 : i32, i32, i32, i32
  }
}

</mosaic_0001>

<llo_original>
// kernel: bvae_forward.1
$region0: #{bvae_forward.1}
  #allocation0 [shape = 'u32[]', space=smem, size = 0x4, offset = 0x4, fixed_abs, tag = 'smem constant byte address 0x4 - core index']
  #allocation1 [shape = 'u32[144,128]{1,0:T(1,128)}', space=vmem, size = 0x12000, scoped, tag = 'internal scratch']
  %s0 = inlined_call_operand.vmem [shape: bf16[2,6,240], index: 0, kind: input, shape index: {}]
  %s1 = inlined_call_operand.vmem [shape: f32[2,1,128], index: 1, kind: input, shape index: {}]
  %s2 = inlined_call_operand.vmem [shape: bf16[240,320], index: 2, kind: input, shape index: {}]
  %s3 = inlined_call_operand.vmem [shape: bf16[2,240,320], index: 3, kind: input, shape index: {}]
  %s4 = inlined_call_operand.vmem [shape: bf16[4,320,320], index: 4, kind: input, shape index: {}]
  %s5 = inlined_call_operand.vmem [shape: bf16[5,320,256], index: 5, kind: input, shape index: {}]
  %s6 = inlined_call_operand.vmem [shape: bf16[256,128], index: 6, kind: input, shape index: {}]
  %s7 = inlined_call_operand.vmem [shape: bf16[128,256], index: 7, kind: input, shape index: {}]
  %s8 = inlined_call_operand.vmem [shape: bf16[5,256,320], index: 8, kind: input, shape index: {}]
  %s9 = inlined_call_operand.vmem [shape: bf16[4,320,320], index: 9, kind: input, shape index: {}]
  %s10 = inlined_call_operand.vmem [shape: bf16[4,320,64], index: 10, kind: input, shape index: {}]
  %s11 = inlined_call_operand.vmem [shape: f32[1,320], index: 11, kind: input, shape index: {}]
  %s12 = inlined_call_operand.vmem [shape: f32[1,320], index: 12, kind: input, shape index: {}]
  %s13 = inlined_call_operand.vmem [shape: f32[1,256], index: 13, kind: input, shape index: {}]
  %s14 = inlined_call_operand.vmem [shape: f32[1,128], index: 14, kind: input, shape index: {}]
  %s15 = inlined_call_operand.vmem [shape: f32[1,256], index: 15, kind: input, shape index: {}]
  %s16 = inlined_call_operand.vmem [shape: f32[5,1,320], index: 16, kind: input, shape index: {}]
  %s17 = inlined_call_operand.vmem [shape: f32[1,320], index: 17, kind: input, shape index: {}]
  %s18 = inlined_call_operand.vmem [shape: f32[1,64], index: 18, kind: input, shape index: {}]
  %s19 = inlined_call_operand.vmem [shape: f32[2,1,128], index: 19, kind: output, shape index: {0}]
  %s20 = inlined_call_operand.vmem [shape: f32[2,4,5,64], index: 20, kind: output, shape index: {1}]
  %21 = xla_tuple %s19, %s20
  %s22 = sld [smem:[#allocation0]]
  $region117: #{bvae_forward.1} parent=0
    _
  %s24 = ssub.s32 1, %s22
  %s25 = scalar_select 0, %s24, %s22
  loop: start=0, step=1, limit=4
  $region2: #{bvae_forward.1} parent=0 // loop_pre_header
    _
  $region3: #{bvae_forward.1} parent=0 // loop_header
    %s27 = sphi 0, %s31
    %p28 = scmp.ge.s32.totalorder %s27, 4
    %s37 = sphi 0, %s39
    %s40 = sphi 0, %s37
    %s41 = sphi 0, %s40
    %s57 = sphi 0, %s41
    %s63 = sphi 0, %s65
    %s66 = sphi 0, %s63
    %s67 = sphi 0, %s66
    %s83 = sphi 0, %s67
    %s87 = sphi 0, %s87
    %s89 = sphi 0, %s87
    %s90 = sphi 0, %s89
    %s104 = sphi 0, %s90
    %s108 = sphi 0, %s108
    %s110 = sphi 0, %s108
    %s111 = sphi 0, %s110
    %s125 = sphi 0, %s111
    %s129 = sphi 0, %s129
    %s131 = sphi 0, %s129
    %s132 = sphi 0, %s131
    %s146 = sphi 0, %s132
    %s150 = sphi 0, %s150
    %s152 = sphi 0, %s150
    %s153 = sphi 0, %s152
    %s167 = sphi 0, %s153
    %s171 = sphi 0, %s171
    %s173 = sphi 0, %s171
    %s174 = sphi 0, %s173
    %s188 = sphi 0, %s174
    %s192 = sphi 0, %s192
    %s194 = sphi 0, %s192
    %s195 = sphi 0, %s194
    %s209 = sphi 0, %s195
    %s213 = sphi 0, %s213
    %s215 = sphi 0, %s213
    %s216 = sphi 0, %s215
    %s230 = sphi 0, %s216
    %s234 = sphi 0, %s234
    %s236 = sphi 0, %s234
    %s237 = sphi 0, %s236
    %s251 = sphi 0, %s237
    %s255 = sphi 0, %s255
    %s257 = sphi 0, %s255
    %s258 = sphi 0, %s257
    %s272 = sphi 0, %s258
    %s276 = sphi 0, %s276
    %s278 = sphi 0, %s276
    %s279 = sphi 0, %s278
    %s293 = sphi 0, %s279
    %s297 = sphi 0, %s297
    %s299 = sphi 0, %s297
    %s300 = sphi 0, %s299
    %s314 = sphi 0, %s300
    %s318 = sphi 0, %s318
    %s320 = sphi 0, %s318
    %s321 = sphi 0, %s320
    %s335 = sphi 0, %s321
    %s339 = sphi 0, %s339
    %s341 = sphi 0, %s339
    %s342 = sphi 0, %s341
    %s356 = sphi 0, %s342
    %s360 = sphi 0, %s360
    %s362 = sphi 0, %s360
    %s363 = sphi 0, %s362
    %s377 = sphi 0, %s363
    %s381 = sphi 0, %s381
    %s383 = sphi 0, %s381
    %s384 = sphi 0, %s383
    %s398 = sphi 0, %s384
    %s402 = sphi 0, %s402
    %s404 = sphi 0, %s402
    %s405 = sphi 0, %s404
    %s419 = sphi 0, %s405
    %s423 = sphi 0, %s423
    %s425 = sphi 0, %s423
    %s426 = sphi 0, %s425
    %s440 = sphi 0, %s426
    %s446 = sphi 0, %s448
    %s449 = sphi 0, %s446
    %s450 = sphi 0, %s449
    %s466 = sphi 0, %s450
    %s472 = sphi 0, %s474
    %s475 = sphi 0, %s472
    %s476 = sphi 0, %s475
    %s492 = sphi 0, %s476
  $region4: #{bvae_forward.1} parent=0 // loop_header_branch
    %30 = sbr.rel (%p28) target = $region8
  $region5: #{bvae_forward.1} parent=0 // loop_body
    %s32 = ssub.s32 %s27, 1
    %s33 = ssub.s32 %s27, 2
    %s34 = sadd.s32 %s27, 1
    %s35 = ssub.s32 %s27, %s34
    %p36 = scmp.eq.s32.totalorder %s35, 0
    %s38 = sadd.s32 %s37, 1
    %s39 = scalar_select %p36, %s37, %s38
    %p42 = pneg %p36
    %p43 = scmp.eq.s32.totalorder %s27, 1
    %p44 = por %p42, %p43
    %p45 = scmp.ne.s32.totalorder %s37, %s40
    %p46 = scmp.eq.s32.totalorder %s27, 0
    %p47 = por %p45, %p46
    %p48 = scmp.ne.s32.totalorder %s37, %s40
    %p49 = scmp.eq.s32.totalorder %s32, 1
    %p50 = por %p48, %p49
    %p51 = scmp.ne.s32.totalorder %s40, %s41
    %p52 = scmp.eq.s32.totalorder %s32, 0
    %p53 = por %p51, %p52
    %p54 = scmp.ne.s32.totalorder %s40, %s41
    %p55 = scmp.eq.s32.totalorder %s33, 1
    %p56 = por %p54, %p55
    %p58 = scmp.ne.s32.totalorder %s41, %s57
    %p59 = scmp.eq.s32.totalorder %s33, 0
    %p60 = por %p58, %p59
    %s61 = ssub.s32 %s27, %s34
    %p62 = scmp.eq.s32.totalorder %s61, 0
    %s64 = sadd.s32 %s63, 1
    %s65 = scalar_select %p62, %s63, %s64
    %p68 = pneg %p62
    %p69 = scmp.eq.s32.totalorder %s27, 1
    %p70 = por %p68, %p69
    %p71 = scmp.ne.s32.totalorder %s63, %s66
    %p72 = scmp.eq.s32.totalorder %s27, 0
    %p73 = por %p71, %p72
    %p74 = scmp.ne.s32.totalorder %s63, %s66
    %p75 = scmp.eq.s32.totalorder %s32, 1
    %p76 = por %p74, %p75
    %p77 = scmp.ne.s32.totalorder %s66, %s67
    %p78 = scmp.eq.s32.totalorder %s32, 0
    %p79 = por %p77, %p78
    %p80 = scmp.ne.s32.totalorder %s66, %s67
    %p81 = scmp.eq.s32.totalorder %s33, 1
    %p82 = por %p80, %p81
    %p84 = scmp.ne.s32.totalorder %s67, %s83
    %p85 = scmp.eq.s32.totalorder %s33, 0
    %p86 = por %p84, %p85
    %s88 = sadd.s32 %s87, 1
    %p91 = scmp.eq.s32.totalorder %s27, 1
    %p92 = scmp.ne.s32.totalorder %s87, %s89
    %p93 = scmp.eq.s32.totalorder %s27, 0
    %p94 = por %p92, %p93
    %p95 = scmp.ne.s32.totalorder %s87, %s89
    %p96 = scmp.eq.s32.totalorder %s32, 1
    %p97 = por %p95, %p96
    %p98 = scmp.ne.s32.totalorder %s89, %s90
    %p99 = scmp.eq.s32.totalorder %s32, 0
    %p100 = por %p98, %p99
    %p101 = scmp.ne.s32.totalorder %s89, %s90
    %p102 = scmp.eq.s32.totalorder %s33, 1
    %p103 = por %p101, %p102
    %p105 = scmp.ne.s32.totalorder %s90, %s104
    %p106 = scmp.eq.s32.totalorder %s33, 0
    %p107 = por %p105, %p106
    %s109 = sadd.s32 %s108, 1
    %p112 = scmp.eq.s32.totalorder %s27, 1
    %p113 = scmp.ne.s32.totalorder %s108, %s110
    %p114 = scmp.eq.s32.totalorder %s27, 0
    %p115 = por %p113, %p114
    %p116 = scmp.ne.s32.totalorder %s108, %s110
    %p117 = scmp.eq.s32.totalorder %s32, 1
    %p118 = por %p116, %p117
    %p119 = scmp.ne.s32.totalorder %s110, %s111
    %p120 = scmp.eq.s32.totalorder %s32, 0
    %p121 = por %p119, %p120
    %p122 = scmp.ne.s32.totalorder %s110, %s111
    %p123 = scmp.eq.s32.totalorder %s33, 1
    %p124 = por %p122, %p123
    %p126 = scmp.ne.s32.totalorder %s111, %s125
    %p127 = scmp.eq.s32.totalorder %s33, 0
    %p128 = por %p126, %p127
    %s130 = sadd.s32 %s129, 1
    %p133 = scmp.eq.s32.totalorder %s27, 1
    %p134 = scmp.ne.s32.totalorder %s129, %s131
    %p135 = scmp.eq.s32.totalorder %s27, 0
    %p136 = por %p134, %p135
    %p137 = scmp.ne.s32.totalorder %s129, %s131
    %p138 = scmp.eq.s32.totalorder %s32, 1
    %p139 = por %p137, %p138
    %p140 = scmp.ne.s32.totalorder %s131, %s132
    %p141 = scmp.eq.s32.totalorder %s32, 0
    %p142 = por %p140, %p141
    %p143 = scmp.ne.s32.totalorder %s131, %s132
    %p144 = scmp.eq.s32.totalorder %s33, 1
    %p145 = por %p143, %p144
    %p147 = scmp.ne.s32.totalorder %s132, %s146
    %p148 = scmp.eq.s32.totalorder %s33, 0
    %p149 = por %p147, %p148
    %s151 = sadd.s32 %s150, 1
    %p154 = scmp.eq.s32.totalorder %s27, 1
    %p155 = scmp.ne.s32.totalorder %s150, %s152
    %p156 = scmp.eq.s32.totalorder %s27, 0
    %p157 = por %p155, %p156
    %p158 = scmp.ne.s32.totalorder %s150, %s152
    %p159 = scmp.eq.s32.totalorder %s32, 1
    %p160 = por %p158, %p159
    %p161 = scmp.ne.s32.totalorder %s152, %s153
    %p162 = scmp.eq.s32.totalorder %s32, 0
    %p163 = por %p161, %p162
    %p164 = scmp.ne.s32.totalorder %s152, %s153
    %p165 = scmp.eq.s32.totalorder %s33, 1
    %p166 = por %p164, %p165
    %p168 = scmp.ne.s32.totalorder %s153, %s167
    %p169 = scmp.eq.s32.totalorder %s33, 0
    %p170 = por %p168, %p169
    %s172 = sadd.s32 %s171, 1
    %p175 = scmp.eq.s32.totalorder %s27, 1
    %p176 = scmp.ne.s32.totalorder %s171, %s173
    %p177 = scmp.eq.s32.totalorder %s27, 0
    %p178 = por %p176, %p177
    %p179 = scmp.ne.s32.totalorder %s171, %s173
    %p180 = scmp.eq.s32.totalorder %s32, 1
    %p181 = por %p179, %p180
    %p182 = scmp.ne.s32.totalorder %s173, %s174
    %p183 = scmp.eq.s32.totalorder %s32, 0
    %p184 = por %p182, %p183
    %p185 = scmp.ne.s32.totalorder %s173, %s174
    %p186 = scmp.eq.s32.totalorder %s33, 1
    %p187 = por %p185, %p186
    %p189 = scmp.ne.s32.totalorder %s174, %s188
    %p190 = scmp.eq.s32.totalorder %s33, 0
    %p191 = por %p189, %p190
    %s193 = sadd.s32 %s192, 1
    %p196 = scmp.eq.s32.totalorder %s27, 1
    %p197 = scmp.ne.s32.totalorder %s192, %s194
    %p198 = scmp.eq.s32.totalorder %s27, 0
    %p199 = por %p197, %p198
    %p200 = scmp.ne.s32.totalorder %s192, %s194
    %p201 = scmp.eq.s32.totalorder %s32, 1
    %p202 = por %p200, %p201
    %p203 = scmp.ne.s32.totalorder %s194, %s195
    %p204 = scmp.eq.s32.totalorder %s32, 0
    %p205 = por %p203, %p204
    %p206 = scmp.ne.s32.totalorder %s194, %s195
    %p207 = scmp.eq.s32.totalorder %s33, 1
    %p208 = por %p206, %p207
    %p210 = scmp.ne.s32.totalorder %s195, %s209
    %p211 = scmp.eq.s32.totalorder %s33, 0
    %p212 = por %p210, %p211
    %s214 = sadd.s32 %s213, 1
    %p217 = scmp.eq.s32.totalorder %s27, 1
    %p218 = scmp.ne.s32.totalorder %s213, %s215
    %p219 = scmp.eq.s32.totalorder %s27, 0
    %p220 = por %p218, %p219
    %p221 = scmp.ne.s32.totalorder %s213, %s215
    %p222 = scmp.eq.s32.totalorder %s32, 1
    %p223 = por %p221, %p222
    %p224 = scmp.ne.s32.totalorder %s215, %s216
    %p225 = scmp.eq.s32.totalorder %s32, 0
    %p226 = por %p224, %p225
    %p227 = scmp.ne.s32.totalorder %s215, %s216
    %p228 = scmp.eq.s32.totalorder %s33, 1
    %p229 = por %p227, %p228
    %p231 = scmp.ne.s32.totalorder %s216, %s230
    %p232 = scmp.eq.s32.totalorder %s33, 0
    %p233 = por %p231, %p232
    %s235 = sadd.s32 %s234, 1
    %p238 = scmp.eq.s32.totalorder %s27, 1
    %p239 = scmp.ne.s32.totalorder %s234, %s236
    %p240 = scmp.eq.s32.totalorder %s27, 0
    %p241 = por %p239, %p240
    %p242 = scmp.ne.s32.totalorder %s234, %s236
    %p243 = scmp.eq.s32.totalorder %s32, 1
    %p244 = por %p242, %p243
    %p245 = scmp.ne.s32.totalorder %s236, %s237
    %p246 = scmp.eq.s32.totalorder %s32, 0
    %p247 = por %p245, %p246
    %p248 = scmp.ne.s32.totalorder %s236, %s237
    %p249 = scmp.eq.s32.totalorder %s33, 1
    %p250 = por %p248, %p249
    %p252 = scmp.ne.s32.totalorder %s237, %s251
    %p253 = scmp.eq.s32.totalorder %s33, 0
    %p254 = por %p252, %p253
    %s256 = sadd.s32 %s255, 1
    %p259 = scmp.eq.s32.totalorder %s27, 1
    %p260 = scmp.ne.s32.totalorder %s255, %s257
    %p261 = scmp.eq.s32.totalorder %s27, 0
    %p262 = por %p260, %p261
    %p263 = scmp.ne.s32.totalorder %s255, %s257
    %p264 = scmp.eq.s32.totalorder %s32, 1
    %p265 = por %p263, %p264
    %p266 = scmp.ne.s32.totalorder %s257, %s258
    %p267 = scmp.eq.s32.totalorder %s32, 0
    %p268 = por %p266, %p267
    %p269 = scmp.ne.s32.totalorder %s257, %s258
    %p270 = scmp.eq.s32.totalorder %s33, 1
    %p271 = por %p269, %p270
    %p273 = scmp.ne.s32.totalorder %s258, %s272
    %p274 = scmp.eq.s32.totalorder %s33, 0
    %p275 = por %p273, %p274
    %s277 = sadd.s32 %s276, 1
    %p280 = scmp.eq.s32.totalorder %s27, 1
    %p281 = scmp.ne.s32.totalorder %s276, %s278
    %p282 = scmp.eq.s32.totalorder %s27, 0
    %p283 = por %p281, %p282
    %p284 = scmp.ne.s32.totalorder %s276, %s278
    %p285 = scmp.eq.s32.totalorder %s32, 1
    %p286 = por %p284, %p285
    %p287 = scmp.ne.s32.totalorder %s278, %s279
    %p288 = scmp.eq.s32.totalorder %s32, 0
    %p289 = por %p287, %p288
    %p290 = scmp.ne.s32.totalorder %s278, %s279
    %p291 = scmp.eq.s32.totalorder %s33, 1
    %p292 = por %p290, %p291
    %p294 = scmp.ne.s32.totalorder %s279, %s293
    %p295 = scmp.eq.s32.totalorder %s33, 0
    %p296 = por %p294, %p295
    %s298 = sadd.s32 %s297, 1
    %p301 = scmp.eq.s32.totalorder %s27, 1
    %p302 = scmp.ne.s32.totalorder %s297, %s299
    %p303 = scmp.eq.s32.totalorder %s27, 0
    %p304 = por %p302, %p303
    %p305 = scmp.ne.s32.totalorder %s297, %s299
    %p306 = scmp.eq.s32.totalorder %s32, 1
    %p307 = por %p305, %p306
    %p308 = scmp.ne.s32.totalorder %s299, %s300
    %p309 = scmp.eq.s32.totalorder %s32, 0
    %p310 = por %p308, %p309
    %p311 = scmp.ne.s32.totalorder %s299, %s300
    %p312 = scmp.eq.s32.totalorder %s33, 1
    %p313 = por %p311, %p312
    %p315 = scmp.ne.s32.totalorder %s300, %s314
    %p316 = scmp.eq.s32.totalorder %s33, 0
    %p317 = por %p315, %p316
    %s319 = sadd.s32 %s318, 1
    %p322 = scmp.eq.s32.totalorder %s27, 1
    %p323 = scmp.ne.s32.totalorder %s318, %s320
    %p324 = scmp.eq.s32.totalorder %s27, 0
    %p325 = por %p323, %p324
    %p326 = scmp.ne.s32.totalorder %s318, %s320
    %p327 = scmp.eq.s32.totalorder %s32, 1
    %p328 = por %p326, %p327
    %p329 = scmp.ne.s32.totalorder %s320, %s321
    %p330 = scmp.eq.s32.totalorder %s32, 0
    %p331 = por %p329, %p330
    %p332 = scmp.ne.s32.totalorder %s320, %s321
    %p333 = scmp.eq.s32.totalorder %s33, 1
    %p334 = por %p332, %p333
    %p336 = scmp.ne.s32.totalorder %s321, %s335
    %p337 = scmp.eq.s32.totalorder %s33, 0
    %p338 = por %p336, %p337
    %s340 = sadd.s32 %s339, 1
    %p343 = scmp.eq.s32.totalorder %s27, 1
    %p344 = scmp.ne.s32.totalorder %s339, %s341
    %p345 = scmp.eq.s32.totalorder %s27, 0
    %p346 = por %p344, %p345
    %p347 = scmp.ne.s32.totalorder %s339, %s341
    %p348 = scmp.eq.s32.totalorder %s32, 1
    %p349 = por %p347, %p348
    %p350 = scmp.ne.s32.totalorder %s341, %s342
    %p351 = scmp.eq.s32.totalorder %s32, 0
    %p352 = por %p350, %p351
    %p353 = scmp.ne.s32.totalorder %s341, %s342
    %p354 = scmp.eq.s32.totalorder %s33, 1
    %p355 = por %p353, %p354
    %p357 = scmp.ne.s32.totalorder %s342, %s356
    %p358 = scmp.eq.s32.totalorder %s33, 0
    %p359 = por %p357, %p358
    %s361 = sadd.s32 %s360, 1
    %p364 = scmp.eq.s32.totalorder %s27, 1
    %p365 = scmp.ne.s32.totalorder %s360, %s362
    %p366 = scmp.eq.s32.totalorder %s27, 0
    %p367 = por %p365, %p366
    %p368 = scmp.ne.s32.totalorder %s360, %s362
    %p369 = scmp.eq.s32.totalorder %s32, 1
    %p370 = por %p368, %p369
    %p371 = scmp.ne.s32.totalorder %s362, %s363
    %p372 = scmp.eq.s32.totalorder %s32, 0
    %p373 = por %p371, %p372
    %p374 = scmp.ne.s32.totalorder %s362, %s363
    %p375 = scmp.eq.s32.totalorder %s33, 1
    %p376 = por %p374, %p375
    %p378 = scmp.ne.s32.totalorder %s363, %s377
    %p379 = scmp.eq.s32.totalorder %s33, 0
    %p380 = por %p378, %p379
    %s382 = sadd.s32 %s381, 1
    %p385 = scmp.eq.s32.totalorder %s27, 1
    %p386 = scmp.ne.s32.totalorder %s381, %s383
    %p387 = scmp.eq.s32.totalorder %s27, 0
    %p388 = por %p386, %p387
    %p389 = scmp.ne.s32.totalorder %s381, %s383
    %p390 = scmp.eq.s32.totalorder %s32, 1
    %p391 = por %p389, %p390
    %p392 = scmp.ne.s32.totalorder %s383, %s384
    %p393 = scmp.eq.s32.totalorder %s32, 0
    %p394 = por %p392, %p393
    %p395 = scmp.ne.s32.totalorder %s383, %s384
    %p396 = scmp.eq.s32.totalorder %s33, 1
    %p397 = por %p395, %p396
    %p399 = scmp.ne.s32.totalorder %s384, %s398
    %p400 = scmp.eq.s32.totalorder %s33, 0
    %p401 = por %p399, %p400
    %s403 = sadd.s32 %s402, 1
    %p406 = scmp.eq.s32.totalorder %s27, 1
    %p407 = scmp.ne.s32.totalorder %s402, %s404
    %p408 = scmp.eq.s32.totalorder %s27, 0
    %p409 = por %p407, %p408
    %p410 = scmp.ne.s32.totalorder %s402, %s404
    %p411 = scmp.eq.s32.totalorder %s32, 1
    %p412 = por %p410, %p411
    %p413 = scmp.ne.s32.totalorder %s404, %s405
    %p414 = scmp.eq.s32.totalorder %s32, 0
    %p415 = por %p413, %p414
    %p416 = scmp.ne.s32.totalorder %s404, %s405
    %p417 = scmp.eq.s32.totalorder %s33, 1
    %p418 = por %p416, %p417
    %p420 = scmp.ne.s32.totalorder %s405, %s419
    %p421 = scmp.eq.s32.totalorder %s33, 0
    %p422 = por %p420, %p421
    %s424 = sadd.s32 %s423, 1
    %p427 = scmp.eq.s32.totalorder %s27, 1
    %p428 = scmp.ne.s32.totalorder %s423, %s425
    %p429 = scmp.eq.s32.totalorder %s27, 0
    %p430 = por %p428, %p429
    %p431 = scmp.ne.s32.totalorder %s423, %s425
    %p432 = scmp.eq.s32.totalorder %s32, 1
    %p433 = por %p431, %p432
    %p434 = scmp.ne.s32.totalorder %s425, %s426
    %p435 = scmp.eq.s32.totalorder %s32, 0
    %p436 = por %p434, %p435
    %p437 = scmp.ne.s32.totalorder %s425, %s426
    %p438 = scmp.eq.s32.totalorder %s33, 1
    %p439 = por %p437, %p438
    %p441 = scmp.ne.s32.totalorder %s426, %s440
    %p442 = scmp.eq.s32.totalorder %s33, 0
    %p443 = por %p441, %p442
    %s444 = ssub.s32 %s27, %s34
    %p445 = scmp.eq.s32.totalorder %s444, 0
    %s447 = sadd.s32 %s446, 1
    %s448 = scalar_select %p445, %s446, %s447
    %p451 = pneg %p445
    %p452 = scmp.eq.s32.totalorder %s27, 1
    %p453 = por %p451, %p452
    %p454 = scmp.ne.s32.totalorder %s446, %s449
    %p455 = scmp.eq.s32.totalorder %s27, 0
    %p456 = por %p454, %p455
    %p457 = scmp.ne.s32.totalorder %s446, %s449
    %p458 = scmp.eq.s32.totalorder %s32, 1
    %p459 = por %p457, %p458
    %p460 = scmp.ne.s32.totalorder %s449, %s450
    %p461 = scmp.eq.s32.totalorder %s32, 0
    %p462 = por %p460, %p461
    %p463 = scmp.ne.s32.totalorder %s449, %s450
    %p464 = scmp.eq.s32.totalorder %s33, 1
    %p465 = por %p463, %p464
    %p467 = scmp.ne.s32.totalorder %s450, %s466
    %p468 = scmp.eq.s32.totalorder %s33, 0
    %p469 = por %p467, %p468
    %s470 = ssub.s32 %s27, %s34
    %p471 = scmp.eq.s32.totalorder %s470, 0
    %s473 = sadd.s32 %s472, 1
    %s474 = scalar_select %p471, %s472, %s473
    %p477 = pneg %p471
    %p478 = scmp.eq.s32.totalorder %s27, 1
    %p479 = por %p477, %p478
    %p480 = scmp.ne.s32.totalorder %s472, %s475
    %p481 = scmp.eq.s32.totalorder %s27, 0
    %p482 = por %p480, %p481
    %p483 = scmp.ne.s32.totalorder %s472, %s475
    %p484 = scmp.eq.s32.totalorder %s32, 1
    %p485 = por %p483, %p484
    %p486 = scmp.ne.s32.totalorder %s475, %s476
    %p487 = scmp.eq.s32.totalorder %s32, 0
    %p488 = por %p486, %p487
    %p489 = scmp.ne.s32.totalorder %s475, %s476
    %p490 = scmp.eq.s32.totalorder %s33, 1
    %p491 = por %p489, %p490
    %p493 = scmp.ne.s32.totalorder %s476, %s492
    %p494 = scmp.eq.s32.totalorder %s33, 0
    %p495 = por %p493, %p494
    %p496 = scmp.le.s32.totalorder 1, %s27
    %p497 = scmp.lt.s32.totalorder %s27, 3
    %p498 = pnand %p496, %p497
    %p499 = pneg %p498
    // Predicated region
    $region9: #{bvae_forward.1} parent=5 // pred_check
      _
    $region10: #{bvae_forward.1} parent=5 // pred_check_branch
      %501 = sbr.rel (%p498) target = $region12
    $region11: #{bvae_forward.1} parent=5 // pred_region
      %s502 = ssub.s32 %s27, 1
      // Predicated region
      $region13: #{bvae_forward.1} parent=11 // pred_check
        %p503 = pneg %p100
      $region14: #{bvae_forward.1} parent=11 // pred_check_branch
        %505 = sbr.rel (%p503) target = $region16
      $region15: #{bvae_forward.1} parent=11 // pred_region
        _
      $region16: #{bvae_forward.1} parent=11 // pred_fallthru
        _
      // Predicated region
      $region17: #{bvae_forward.1} parent=11 // pred_check
        %p506 = pneg %p121
      $region18: #{bvae_forward.1} parent=11 // pred_check_branch
        %508 = sbr.rel (%p506) target = $region20
      $region19: #{bvae_forward.1} parent=11 // pred_region
        _
      $region20: #{bvae_forward.1} parent=11 // pred_fallthru
        _
      // Predicated region
      $region21: #{bvae_forward.1} parent=11 // pred_check
        %p509 = pneg %p142
      $region22: #{bvae_forward.1} parent=11 // pred_check_branch
        %511 = sbr.rel (%p509) target = $region24
      $region23: #{bvae_forward.1} parent=11 // pred_region
        _
      $region24: #{bvae_forward.1} parent=11 // pred_fallthru
        _
      // Predicated region
      $region25: #{bvae_forward.1} parent=11 // pred_check
        %p512 = pneg %p163
      $region26: #{bvae_forward.1} parent=11 // pred_check_branch
        %514 = sbr.rel (%p512) target = $region28
      $region27: #{bvae_forward.1} parent=11 // pred_region
        _
      $region28: #{bvae_forward.1} parent=11 // pred_fallthru
        _
      // Predicated region
      $region29: #{bvae_forward.1} parent=11 // pred_check
        %p515 = pneg %p184
      $region30: #{bvae_forward.1} parent=11 // pred_check_branch
        %517 = sbr.rel (%p515) target = $region32
      $region31: #{bvae_forward.1} parent=11 // pred_region
        _
      $region32: #{bvae_forward.1} parent=11 // pred_fallthru
        _
      // Predicated region
      $region33: #{bvae_forward.1} parent=11 // pred_check
        %p518 = pneg %p205
      $region34: #{bvae_forward.1} parent=11 // pred_check_branch
        %520 = sbr.rel (%p518) target = $region36
      $region35: #{bvae_forward.1} parent=11 // pred_region
        _
      $region36: #{bvae_forward.1} parent=11 // pred_fallthru
        _
      // Predicated region
      $region37: #{bvae_forward.1} parent=11 // pred_check
        %p521 = pneg %p226
      $region38: #{bvae_forward.1} parent=11 // pred_check_branch
        %523 = sbr.rel (%p521) target = $region40
      $region39: #{bvae_forward.1} parent=11 // pred_region
        _
      $region40: #{bvae_forward.1} parent=11 // pred_fallthru
        _
      // Predicated region
      $region41: #{bvae_forward.1} parent=11 // pred_check
        %p524 = pneg %p247
      $region42: #{bvae_forward.1} parent=11 // pred_check_branch
        %526 = sbr.rel (%p524) target = $region44
      $region43: #{bvae_forward.1} parent=11 // pred_region
        _
      $region44: #{bvae_forward.1} parent=11 // pred_fallthru
        _
      // Predicated region
      $region45: #{bvae_forward.1} parent=11 // pred_check
        %p527 = pneg %p268
      $region46: #{bvae_forward.1} parent=11 // pred_check_branch
        %529 = sbr.rel (%p527) target = $region48
      $region47: #{bvae_forward.1} parent=11 // pred_region
        _
      $region48: #{bvae_forward.1} parent=11 // pred_fallthru
        _
      // Predicated region
      $region49: #{bvae_forward.1} parent=11 // pred_check
        %p530 = pneg %p289
      $region50: #{bvae_forward.1} parent=11 // pred_check_branch
        %532 = sbr.rel (%p530) target = $region52
      $region51: #{bvae_forward.1} parent=11 // pred_region
        _
      $region52: #{bvae_forward.1} parent=11 // pred_fallthru
        _
      // Predicated region
      $region53: #{bvae_forward.1} parent=11 // pred_check
        %p533 = pneg %p310
      $region54: #{bvae_forward.1} parent=11 // pred_check_branch
        %535 = sbr.rel (%p533) target = $region56
      $region55: #{bvae_forward.1} parent=11 // pred_region
        _
      $region56: #{bvae_forward.1} parent=11 // pred_fallthru
        _
      // Predicated region
      $region57: #{bvae_forward.1} parent=11 // pred_check
        %p536 = pneg %p331
      $region58: #{bvae_forward.1} parent=11 // pred_check_branch
        %538 = sbr.rel (%p536) target = $region60
      $region59: #{bvae_forward.1} parent=11 // pred_region
        _
      $region60: #{bvae_forward.1} parent=11 // pred_fallthru
        _
      // Predicated region
      $region61: #{bvae_forward.1} parent=11 // pred_check
        %p539 = pneg %p352
      $region62: #{bvae_forward.1} parent=11 // pred_check_branch
        %541 = sbr.rel (%p539) target = $region64
      $region63: #{bvae_forward.1} parent=11 // pred_region
        _
      $region64: #{bvae_forward.1} parent=11 // pred_fallthru
        _
      // Predicated region
      $region65: #{bvae_forward.1} parent=11 // pred_check
        %p542 = pneg %p373
      $region66: #{bvae_forward.1} parent=11 // pred_check_branch
        %544 = sbr.rel (%p542) target = $region68
      $region67: #{bvae_forward.1} parent=11 // pred_region
        _
      $region68: #{bvae_forward.1} parent=11 // pred_fallthru
        _
      // Predicated region
      $region69: #{bvae_forward.1} parent=11 // pred_check
        %p545 = pneg %p394
      $region70: #{bvae_forward.1} parent=11 // pred_check_branch
        %547 = sbr.rel (%p545) target = $region72
      $region71: #{bvae_forward.1} parent=11 // pred_region
        _
      $region72: #{bvae_forward.1} parent=11 // pred_fallthru
        _
      // Predicated region
      $region73: #{bvae_forward.1} parent=11 // pred_check
        %p548 = pneg %p415
      $region74: #{bvae_forward.1} parent=11 // pred_check_branch
        %550 = sbr.rel (%p548) target = $region76
      $region75: #{bvae_forward.1} parent=11 // pred_region
        _
      $region76: #{bvae_forward.1} parent=11 // pred_fallthru
        _
      // Predicated region
      $region77: #{bvae_forward.1} parent=11 // pred_check
        %p551 = pneg %p436
      $region78: #{bvae_forward.1} parent=11 // pred_check_branch
        %553 = sbr.rel (%p551) target = $region80
      $region79: #{bvae_forward.1} parent=11 // pred_region
        _
      $region80: #{bvae_forward.1} parent=11 // pred_fallthru
        _
    $region12: #{bvae_forward.1} parent=5 // pred_fallthru
      _
    %p554 = scmp.lt.s32.totalorder %s27, 2
    // Predicated region
    $region81: #{bvae_forward.1} parent=5 // pred_check
      %p555 = pneg %p554
    $region82: #{bvae_forward.1} parent=5 // pred_check_branch
      %557 = sbr.rel (%p555) target = $region84
    $region83: #{bvae_forward.1} parent=5 // pred_region
      // Predicated region
      $region85: #{bvae_forward.1} parent=83 // pred_check
        %p558 = pneg %p47
      $region86: #{bvae_forward.1} parent=83 // pred_check_branch
        %560 = sbr.rel (%p558) target = $region88
      $region87: #{bvae_forward.1} parent=83 // pred_region
        %p561 = scmp.lt.s32.totalorder %s27, 1
        %s562 = scalar_select %p561, %s27, 1
        %s563 = smul.addr %s562, 2
        %s564 = smul.addr %s563, 4
        %s565 = scalar_lea.vmem %s0, %s564
      $region88: #{bvae_forward.1} parent=83 // pred_fallthru
        _
      // Predicated region
      $region89: #{bvae_forward.1} parent=83 // pred_check
        %p566 = pneg %p73
      $region90: #{bvae_forward.1} parent=83 // pred_check_branch
        %568 = sbr.rel (%p566) target = $region92
      $region91: #{bvae_forward.1} parent=83 // pred_region
        %p569 = scmp.lt.s32.totalorder %s27, 1
        %s570 = scalar_select %p569, %s27, 1
        %s571 = scalar_lea.vmem %s1, %s570
      $region92: #{bvae_forward.1} parent=83 // pred_fallthru
        _
    $region84: #{bvae_forward.1} parent=5 // pred_fallthru
      _
    %p572 = scmp.le.s32.totalorder 1, %s27
    %p573 = scmp.lt.s32.totalorder %s27, 3
    %p574 = pnand %p572, %p573
    %p575 = pneg %p574
    // Predicated region
    $region93: #{bvae_forward.1} parent=5 // pred_check
      _
    $region94: #{bvae_forward.1} parent=5 // pred_check_branch
      %577 = sbr.rel (%p574) target = $region96
    $region95: #{bvae_forward.1} parent=5 // pred_region
      %s578 = ssub.s32 %s27, 1
      %p579 = scmp.lt.s32.totalorder %s32, 1
      %s580 = scalar_select %p579, %s32, 1
      %s581 = smul.addr %s580, 2
      %s582 = smul.addr %s581, 4
      %s583 = scalar_lea.vmem %s0, %s582
      %p584 = pneg %p53
      %p585 = pneg %p50
      %p586 = scmp.lt.s32.totalorder %s32, 1
      %s587 = scalar_select %p586, %s32, 1
      %s588 = scalar_lea.vmem %s1, %s587
      %p589 = pneg %p79
      %p590 = pneg %p76
      %p591 = pneg %p100
      %p592 = pneg %p97
      %p593 = pneg %p121
      %p594 = pneg %p118
      %p595 = pneg %p142
      %p596 = pneg %p139
      %p597 = pneg %p163
      %p598 = pneg %p160
      %p599 = pneg %p184
      %p600 = pneg %p181
      %p601 = pneg %p205
      %p602 = pneg %p202
      %p603 = pneg %p226
      %p604 = pneg %p223
      %p605 = pneg %p247
      %p606 = pneg %p244
      %p607 = pneg %p268
      %p608 = pneg %p265
      %p609 = pneg %p289
      %p610 = pneg %p286
      %p611 = pneg %p310
      %p612 = pneg %p307
      %p613 = pneg %p331
      %p614 = pneg %p328
      %p615 = pneg %p352
      %p616 = pneg %p349
      %p617 = pneg %p373
      %p618 = pneg %p370
      %p619 = pneg %p394
      %p620 = pneg %p391
      %p621 = pneg %p415
      %p622 = pneg %p412
      %p623 = pneg %p436
      %p624 = pneg %p433
      %p625 = pneg %p462
      %p626 = pneg %p459
      %p627 = scmp.lt.s32.totalorder %s32, 1
      %s628 = scalar_select %p627, %s32, 1
      %s629 = scalar_lea.vmem %s19, %s628
      %p630 = pneg %p488
      %p631 = pneg %p485
      %p632 = scmp.lt.s32.totalorder %s32, 1
      %s633 = scalar_select %p632, %s32, 1
      %s634 = smul.addr %s633, 4
      %s635 = smul.addr %s634, 8
      %s636 = scalar_lea.vmem %s20, %s635
      %p637 = scmp.lt.s32.totalorder %s32, 1
      %s638 = scalar_select %p637, %s32, 1
      %s639 = smul.addr %s638, 2
      %s640 = smul.addr %s639, 4
      %s641 = scalar_lea.vmem %s0, %s640
      %p642 = scmp.lt.s32.totalorder %s32, 1
      %s643 = scalar_select %p642, %s32, 1
      %s644 = scalar_lea.vmem %s1, %s643
      %p645 = scmp.lt.s32.totalorder %s32, 1
      %s646 = scalar_select %p645, %s32, 1
      %s647 = scalar_lea.vmem %s19, %s646
      %p648 = scmp.lt.s32.totalorder %s32, 1
      %s649 = scalar_select %p648, %s32, 1
      %s650 = smul.addr %s649, 4
      %s651 = smul.addr %s650, 8
      %s652 = scalar_lea.vmem %s20, %s651
      %v654 = vld [vmem:[%s641] sm:$0x77]
      %v655 = vld [vmem:[%s2] sm:$0xff]
      %v656 = vld [vmem:[%s2 + $0x8] sm:$0xf]
      %v657 = vld [vmem:[%s2 + $0xc] sm:$0xff]
      %v658 = vld [vmem:[%s2 + $0x14] sm:$0xf]
      %v659 = vld [vmem:[%s2 + $0x18] sm:$0xff]
      %v660 = vld [vmem:[%s2 + $0x20] sm:$0xf]
      %v661 = vld [vmem:[%s2 + $0x24] sm:$0xff]
      %v662 = vld [vmem:[%s2 + $0x2c] sm:$0xf]
      %v663 = vld [vmem:[%s2 + $0x30] sm:$0xff]
      %v664 = vld [vmem:[%s2 + $0x38] sm:$0xf]
      %v665 = vld [vmem:[%s2 + $0x3c] sm:$0xff]
      %v666 = vld [vmem:[%s2 + $0x44] sm:$0xf]
      %v667 = vld [vmem:[%s2 + $0x48] sm:$0xff]
      %v668 = vld [vmem:[%s2 + $0x50] sm:$0xf]
      %v669 = vld [vmem:[%s2 + $0x54] sm:$0xff]
      %v670 = vld [vmem:[%s2 + $0x5c] sm:$0xf]
      %v671 = vld [vmem:[%s2 + $0x60] sm:$0xff]
      %v672 = vld [vmem:[%s2 + $0x68] sm:$0xf]
      %v673 = vld [vmem:[%s2 + $0x6c] sm:$0xff]
      %v674 = vld [vmem:[%s2 + $0x74] sm:$0xf]
      %v675 = vld [vmem:[%s2 + $0x78] sm:$0xff]
      %v676 = vld [vmem:[%s2 + $0x80] sm:$0xf]
      %v677 = vld [vmem:[%s2 + $0x84] sm:$0xff]
      %v678 = vld [vmem:[%s2 + $0x8c] sm:$0xf]
      %v679 = vld [vmem:[%s2 + $0x90] sm:$0xff]
      %v680 = vld [vmem:[%s2 + $0x98] sm:$0xf]
      %v681 = vld [vmem:[%s2 + $0x9c] sm:$0xff]
      %v682 = vld [vmem:[%s2 + $0xa4] sm:$0xf]
      %v683 = vld [vmem:[%s2 + $0xa8] sm:$0xff]
      %v684 = vld [vmem:[%s2 + $0xb0] sm:$0xf]
      %v685 = vld [vmem:[%s2 + $0xb4] sm:$0xff]
      %v686 = vld [vmem:[%s2 + $0xbc] sm:$0xf]
      %v687 = vld [vmem:[%s2 + $0xc0] sm:$0xff]
      %v688 = vld [vmem:[%s2 + $0xc8] sm:$0xf]
      %v689 = vld [vmem:[%s2 + $0xcc] sm:$0xff]
      %v690 = vld [vmem:[%s2 + $0xd4] sm:$0xf]
      %v691 = vld [vmem:[%s2 + $0xd8] sm:$0xff]
      %v692 = vld [vmem:[%s2 + $0xe0] sm:$0xf]
      %v693 = vld [vmem:[%s2 + $0xe4] sm:$0xff]
      %v694 = vld [vmem:[%s2 + $0xec] sm:$0xf]
      %v695 = vld [vmem:[%s2 + $0xf0] sm:$0xff]
      %v696 = vld [vmem:[%s2 + $0xf8] sm:$0xf]
      %v697 = vld [vmem:[%s2 + $0xfc] sm:$0xff]
      %v698 = vld [vmem:[%s2 + $0x104] sm:$0xf]
      %v699 = vld [vmem:[%s2 + $0x108] sm:$0xff]
      %v700 = vld [vmem:[%s2 + $0x110] sm:$0xf]
      %v701 = vld [vmem:[%s2 + $0x114] sm:$0xff]
      %v702 = vld [vmem:[%s2 + $0x11c] sm:$0xf]
      %v703 = vld [vmem:[%s2 + $0x120] sm:$0xff]
      %v704 = vld [vmem:[%s2 + $0x128] sm:$0xf]
      %v705 = vld [vmem:[%s2 + $0x12c] sm:$0xff]
      %v706 = vld [vmem:[%s2 + $0x134] sm:$0xf]
      %v707 = vld [vmem:[%s2 + $0x138] sm:$0xff]
      %v708 = vld [vmem:[%s2 + $0x140] sm:$0xf]
      %v709 = vld [vmem:[%s2 + $0x144] sm:$0xff]
      %v710 = vld [vmem:[%s2 + $0x14c] sm:$0xf]
      %v711 = vld [vmem:[%s2 + $0x150] sm:$0xff]
      %v712 = vld [vmem:[%s2 + $0x158] sm:$0xf]
      %v713 = vld [vmem:[%s2 + $0x15c] sm:$0xff]
      %v714 = vld [vmem:[%s2 + $0x164] sm:$0xf]
      %v715 = vld [vmem:[%s11] sm:$0x7]
      %v717 = vlaneseq
      %v718 = vshrl.u32 %v717, 7
      %v719 = vsub.s32 0, %v718
      %v720 = vrot.slane %v715, %v719
      %v721 = vlaneseq
      %v722 = vshrl.u32 %v721, 7
      %v723 = vsub.s32 1, %v722
      %v724 = vrot.slane %v715, %v723
      %v725 = vlaneseq
      %v726 = vshrl.u32 %v725, 7
      %v727 = vsub.s32 2, %v726
      %v728 = vrot.slane %v715, %v727
      %v733 = vunpack.c.l.b16 %v654
      %v734 = vunpack.c.h.b16 %v654
      %v735 = vpack.c.b16 %v733, %v733
      %v736 = vpack.c.b16 %v734, %v734
      %v798 = vunpack.c.l.b16 %v655
      %v799 = vunpack.c.h.b16 %v655
      %v800 = vunpack.c.l.b16 %v656
      %v801 = vunpack.c.l.b16 %v657
      %v802 = vunpack.c.h.b16 %v657
      %v803 = vunpack.c.l.b16 %v658
      %v804 = vunpack.c.l.b16 %v659
      %v805 = vunpack.c.h.b16 %v659
      %v806 = vunpack.c.l.b16 %v660
      %v807 = vunpack.c.l.b16 %v661
      %v808 = vunpack.c.h.b16 %v661
      %v809 = vunpack.c.l.b16 %v662
      %v810 = vunpack.c.l.b16 %v663
      %v811 = vunpack.c.h.b16 %v663
      %v812 = vunpack.c.l.b16 %v664
      %v813 = vunpack.c.l.b16 %v665
      %v814 = vunpack.c.h.b16 %v665
      %v815 = vunpack.c.l.b16 %v666
      %v816 = vunpack.c.l.b16 %v667
      %v817 = vunpack.c.h.b16 %v667
      %v818 = vunpack.c.l.b16 %v668
      %v819 = vunpack.c.l.b16 %v669
      %v820 = vunpack.c.h.b16 %v669
      %v821 = vunpack.c.l.b16 %v670
      %v822 = vunpack.c.l.b16 %v671
      %v823 = vunpack.c.h.b16 %v671
      %v824 = vunpack.c.l.b16 %v672
      %v825 = vunpack.c.l.b16 %v673
      %v826 = vunpack.c.h.b16 %v673
      %v827 = vunpack.c.l.b16 %v674
      %v828 = vunpack.c.l.b16 %v675
      %v829 = vunpack.c.h.b16 %v675
      %v830 = vunpack.c.l.b16 %v676
      %v831 = vunpack.c.l.b16 %v677
      %v832 = vunpack.c.h.b16 %v677
      %v833 = vunpack.c.l.b16 %v678
      %v834 = vunpack.c.l.b16 %v679
      %v835 = vunpack.c.h.b16 %v679
      %v836 = vunpack.c.l.b16 %v680
      %v837 = vunpack.c.l.b16 %v681
      %v838 = vunpack.c.h.b16 %v681
      %v839 = vunpack.c.l.b16 %v682
      %v840 = vunpack.c.l.b16 %v683
      %v841 = vunpack.c.h.b16 %v683
      %v842 = vunpack.c.l.b16 %v684
      %v843 = vunpack.c.l.b16 %v685
      %v844 = vunpack.c.h.b16 %v685
      %v845 = vunpack.c.l.b16 %v686
      %v846 = vunpack.c.l.b16 %v687
      %v847 = vunpack.c.h.b16 %v687
      %v848 = vunpack.c.l.b16 %v688
      %v849 = vunpack.c.l.b16 %v689
      %v850 = vunpack.c.h.b16 %v689
      %v851 = vunpack.c.l.b16 %v690
      %v852 = vunpack.c.l.b16 %v691
      %v853 = vunpack.c.h.b16 %v691
      %v854 = vunpack.c.l.b16 %v692
      %v855 = vunpack.c.l.b16 %v693
      %v856 = vunpack.c.h.b16 %v693
      %v857 = vunpack.c.l.b16 %v694
      %v858 = vunpack.c.l.b16 %v695
      %v859 = vunpack.c.h.b16 %v695
      %v860 = vunpack.c.l.b16 %v696
      %v861 = vunpack.c.l.b16 %v697
      %v862 = vunpack.c.h.b16 %v697
      %v863 = vunpack.c.l.b16 %v698
      %v864 = vunpack.c.l.b16 %v699
      %v865 = vunpack.c.h.b16 %v699
      %v866 = vunpack.c.l.b16 %v700
      %v867 = vunpack.c.l.b16 %v701
      %v868 = vunpack.c.h.b16 %v701
      %v869 = vunpack.c.l.b16 %v702
      %v870 = vunpack.c.l.b16 %v703
      %v871 = vunpack.c.h.b16 %v703
      %v872 = vunpack.c.l.b16 %v704
      %v873 = vunpack.c.l.b16 %v705
      %v874 = vunpack.c.h.b16 %v705
      %v875 = vunpack.c.l.b16 %v706
      %v876 = vunpack.c.l.b16 %v707
      %v877 = vunpack.c.h.b16 %v707
      %v878 = vunpack.c.l.b16 %v708
      %v879 = vunpack.c.l.b16 %v709
      %v880 = vunpack.c.h.b16 %v709
      %v881 = vunpack.c.l.b16 %v710
      %v882 = vunpack.c.l.b16 %v711
      %v883 = vunpack.c.h.b16 %v711
      %v884 = vunpack.c.l.b16 %v712
      %v885 = vunpack.c.l.b16 %v713
      %v886 = vunpack.c.h.b16 %v713
      %v887 = vunpack.c.l.b16 %v714
      %v888 = vpack.c.b16 %v801, %v798
      %v889 = vpack.c.b16 %v802, %v799
      %v890 = vpack.c.b16 %v803, %v800
      %v891 = vpack.c.b16 %v807, %v804
      %v892 = vpack.c.b16 %v808, %v805
      %v893 = vpack.c.b16 %v809, %v806
      %v894 = vpack.c.b16 %v813, %v810
      %v895 = vpack.c.b16 %v814, %v811
      %v896 = vpack.c.b16 %v815, %v812
      %v897 = vpack.c.b16 %v819, %v816
      %v898 = vpack.c.b16 %v820, %v817
      %v899 = vpack.c.b16 %v821, %v818
      %v900 = vpack.c.b16 %v825, %v822
      %v901 = vpack.c.b16 %v826, %v823
      %v902 = vpack.c.b16 %v827, %v824
      %v903 = vpack.c.b16 %v831, %v828
      %v904 = vpack.c.b16 %v832, %v829
      %v905 = vpack.c.b16 %v833, %v830
      %v906 = vpack.c.b16 %v837, %v834
      %v907 = vpack.c.b16 %v838, %v835
      %v908 = vpack.c.b16 %v839, %v836
      %v909 = vpack.c.b16 %v843, %v840
      %v910 = vpack.c.b16 %v844, %v841
      %v911 = vpack.c.b16 %v845, %v842
      %v912 = vpack.c.b16 %v849, %v846
      %v913 = vpack.c.b16 %v850, %v847
      %v914 = vpack.c.b16 %v851, %v848
      %v915 = vpack.c.b16 %v855, %v852
      %v916 = vpack.c.b16 %v856, %v853
      %v917 = vpack.c.b16 %v857, %v854
      %v918 = vpack.c.b16 %v861, %v858
      %v919 = vpack.c.b16 %v862, %v859
      %v920 = vpack.c.b16 %v863, %v860
      %v921 = vpack.c.b16 %v867, %v864
      %v922 = vpack.c.b16 %v868, %v865
      %v923 = vpack.c.b16 %v869, %v866
      %v924 = vpack.c.b16 %v873, %v870
      %v925 = vpack.c.b16 %v874, %v871
      %v926 = vpack.c.b16 %v875, %v872
      %v927 = vpack.c.b16 %v879, %v876
      %v928 = vpack.c.b16 %v880, %v877
      %v929 = vpack.c.b16 %v881, %v878
      %v930 = vpack.c.b16 %v885, %v882
      %v931 = vpack.c.b16 %v886, %v883
      %v932 = vpack.c.b16 %v887, %v884
      %vm978 = vcmask 916480
      %v980 = vsel %vm978, %v736, 0
      %982 = vmatprep.subr.bf16.mxu0 %v910
      %983 = vmatpush1.bf16.msra.mxu0 %v909
      %984 = vmatprep.subr.bf16.mxu0 %v907
      %985 = vmatpush1.bf16.msra.mxu0 %v906
      %986 = vmatprep.subr.bf16.mxu0 %v904
      %987 = vmatpush1.bf16.msra.mxu0 %v903
      %988 = vmatprep.subr.bf16.mxu0 %v901
      %989 = vmatpush1.bf16.msra.mxu0 %v900
      %990 = vmatprep.subr.bf16.mxu0 %v898
      %991 = vmatpush1.bf16.msra.mxu0 %v897
      %992 = vmatprep.subr.bf16.mxu0 %v895
      %993 = vmatpush1.bf16.msra.mxu0 %v894
      %994 = vmatprep.subr.bf16.mxu0 %v892
      %995 = vmatpush1.bf16.msra.mxu0 %v891
      %996 = vmatprep.subr.bf16.mxu0 %v889
      %997 = vmatpush1.bf16.msra.mxu0 %v888
      %998 = vmatprep.subr.bf16.mxu0 0
      %999 = vmatpush2.bf16.msra.mxu0 0
      %1000 = vmatprep.subr.bf16.mxu0 %v931
      %1001 = vmatpush2.bf16.msra.mxu0 %v930
      %1002 = vmatprep.subr.bf16.mxu0 %v928
      %1003 = vmatpush2.bf16.msra.mxu0 %v927
      %1004 = vmatprep.subr.bf16.mxu0 %v925
      %1005 = vmatpush2.bf16.msra.mxu0 %v924
      %1006 = vmatprep.subr.bf16.mxu0 %v922
      %1007 = vmatpush2.bf16.msra.mxu0 %v921
      %1008 = vmatprep.subr.bf16.mxu0 %v919
      %1009 = vmatpush2.bf16.msra.mxu0 %v918
      %1010 = vmatprep.subr.bf16.mxu0 %v916
      %1011 = vmatpush2.bf16.msra.mxu0 %v915
      %1012 = vmatprep.subr.bf16.mxu0 %v913
      %1013 = vmatpush2.bf16.msra.mxu0 %v912
      %1014 = vmatprep.mubr.bf16.mxu0 %v980
      %1015 = vmatmul.mubr.bf16.gmra.mxu0 %v735
      %v1016 = vpop.f32.mrf.mxu0
      %v1017 = vadd.f32 %v720, %v1016
      %v1018 = vpop.f32.mrf.mxu0
      %v1019 = vadd.f32 %v724, %v1018
      %v1020 = vpop.f32.mrf.mxu0
      %v1021 = vpop.f32.mrf.mxu0
      %1022 = vdwg.mxu0
      %1023 = vmatprep.subr.bf16.mxu0 0
      %1024 = vmatpush1.bf16.msra.mxu0 %v911
      %1025 = vmatprep.subr.bf16.mxu0 0
      %1026 = vmatpush1.bf16.msra.mxu0 %v908
      %1027 = vmatprep.subr.bf16.mxu0 0
      %1028 = vmatpush1.bf16.msra.mxu0 %v905
      %1029 = vmatprep.subr.bf16.mxu0 0
      %1030 = vmatpush1.bf16.msra.mxu0 %v902
      %1031 = vmatprep.subr.bf16.mxu0 0
      %1032 = vmatpush1.bf16.msra.mxu0 %v899
      %1033 = vmatprep.subr.bf16.mxu0 0
      %1034 = vmatpush1.bf16.msra.mxu0 %v896
      %1035 = vmatprep.subr.bf16.mxu0 0
      %1036 = vmatpush1.bf16.msra.mxu0 %v893
      %1037 = vmatprep.subr.bf16.mxu0 0
      %1038 = vmatpush1.bf16.msra.mxu0 %v890
      %1039 = vmatprep.subr.bf16.mxu0 0
      %1040 = vmatpush2.bf16.msra.mxu0 0
      %1041 = vmatprep.subr.bf16.mxu0 0
      %1042 = vmatpush2.bf16.msra.mxu0 %v932
      %1043 = vmatprep.subr.bf16.mxu0 0
      %1044 = vmatpush2.bf16.msra.mxu0 %v929
      %1045 = vmatprep.subr.bf16.mxu0 0
      %1046 = vmatpush2.bf16.msra.mxu0 %v926
      %1047 = vmatprep.subr.bf16.mxu0 0
      %1048 = vmatpush2.bf16.msra.mxu0 %v923
      %1049 = vmatprep.subr.bf16.mxu0 0
      %1050 = vmatpush2.bf16.msra.mxu0 %v920
      %1051 = vmatprep.subr.bf16.mxu0 0
      %1052 = vmatpush2.bf16.msra.mxu0 %v917
      %1053 = vmatprep.subr.bf16.mxu0 0
      %1054 = vmatpush2.bf16.msra.mxu0 %v914
      %1055 = vmatprep.mubr.bf16.mxu0 %v980
      %1056 = vmatmul.mubr.bf16.gmra.mxu0 %v735
      %v1057 = vpop.f32.mrf.mxu0
      %v1058 = vadd.f32 %v728, %v1057
      %v1059 = vpop.f32.mrf.mxu0
      %v1060 = vpop.f32.mrf.mxu0
      %v1061 = vpop.f32.mrf.mxu0
      %1062 = vdwg.mxu0
      %vm1063 = vcmp.gt.f32.partialorder %v1017, 0.0
      %vm1064 = vcmp.gt.f32.partialorder %v1019, 0.0
      %vm1065 = vcmp.gt.f32.partialorder %v1058, 0.0
      %v1066 = vmin.f32 %v1017, 0.0
      %v1067 = vmin.f32 %v1019, 0.0
      %v1068 = vmin.f32 %v1058, 0.0
      %v1069 = vmul.f32 %v1066, 1.442695
      %v1070 = vpow.pop %v1069
      %v1071 = vmul.f32 %v1067, 1.442695
      %v1072 = vpow.pop %v1071
      %v1073 = vmul.f32 %v1068, 1.442695
      %v1074 = vpow.pop %v1073
      %v1075 = vsub.f32 %v1070, 1.0
      %v1076 = vsub.f32 %v1072, 1.0
      %v1077 = vsub.f32 %v1074, 1.0
      %v1078 = vsel %vm1063, %v1017, %v1075
      %v1079 = vsel %vm1064, %v1019, %v1076
      %v1080 = vsel %vm1065, %v1058, %v1077
      %v1081 = vld [vmem:[%s3] sm:$0xff]
      %v1082 = vld [vmem:[%s3 + $0x8] sm:$0xf]
      %v1083 = vld [vmem:[%s3 + $0xc] sm:$0xff]
      %v1084 = vld [vmem:[%s3 + $0x14] sm:$0xf]
      %v1085 = vld [vmem:[%s3 + $0x18] sm:$0xff]
      %v1086 = vld [vmem:[%s3 + $0x20] sm:$0xf]
      %v1087 = vld [vmem:[%s3 + $0x24] sm:$0xff]
      %v1088 = vld [vmem:[%s3 + $0x2c] sm:$0xf]
      %v1089 = vld [vmem:[%s3 + $0x30] sm:$0xff]
      %v1090 = vld [vmem:[%s3 + $0x38] sm:$0xf]
      %v1091 = vld [vmem:[%s3 + $0x3c] sm:$0xff]
      %v1092 = vld [vmem:[%s3 + $0x44] sm:$0xf]
      %v1093 = vld [vmem:[%s3 + $0x48] sm:$0xff]
      %v1094 = vld [vmem:[%s3 + $0x50] sm:$0xf]
      %v1095 = vld [vmem:[%s3 + $0x54] sm:$0xff]
      %v1096 = vld [vmem:[%s3 + $0x5c] sm:$0xf]
      %v1097 = vld [vmem:[%s3 + $0x60] sm:$0xff]
      %v1098 = vld [vmem:[%s3 + $0x68] sm:$0xf]
      %v1099 = vld [vmem:[%s3 + $0x6c] sm:$0xff]
      %v1100 = vld [vmem:[%s3 + $0x74] sm:$0xf]
      %v1101 = vld [vmem:[%s3 + $0x78] sm:$0xff]
      %v1102 = vld [vmem:[%s3 + $0x80] sm:$0xf]
      %v1103 = vld [vmem:[%s3 + $0x84] sm:$0xff]
      %v1104 = vld [vmem:[%s3 + $0x8c] sm:$0xf]
      %v1105 = vld [vmem:[%s3 + $0x90] sm:$0xff]
      %v1106 = vld [vmem:[%s3 + $0x98] sm:$0xf]
      %v1107 = vld [vmem:[%s3 + $0x9c] sm:$0xff]
      %v1108 = vld [vmem:[%s3 + $0xa4] sm:$0xf]
      %v1109 = vld [vmem:[%s3 + $0xa8] sm:$0xff]
      %v1110 = vld [vmem:[%s3 + $0xb0] sm:$0xf]
      %v1111 = vld [vmem:[%s3 + $0xb4] sm:$0xff]
      %v1112 = vld [vmem:[%s3 + $0xbc] sm:$0xf]
      %v1113 = vld [vmem:[%s3 + $0xc0] sm:$0xff]
      %v1114 = vld [vmem:[%s3 + $0xc8] sm:$0xf]
      %v1115 = vld [vmem:[%s3 + $0xcc] sm:$0xff]
      %v1116 = vld [vmem:[%s3 + $0xd4] sm:$0xf]
      %v1117 = vld [vmem:[%s3 + $0xd8] sm:$0xff]
      %v1118 = vld [vmem:[%s3 + $0xe0] sm:$0xf]
      %v1119 = vld [vmem:[%s3 + $0xe4] sm:$0xff]
      %v1120 = vld [vmem:[%s3 + $0xec] sm:$0xf]
      %v1121 = vld [vmem:[%s3 + $0xf0] sm:$0xff]
      %v1122 = vld [vmem:[%s3 + $0xf8] sm:$0xf]
      %v1123 = vld [vmem:[%s3 + $0xfc] sm:$0xff]
      %v1124 = vld [vmem:[%s3 + $0x104] sm:$0xf]
      %v1125 = vld [vmem:[%s3 + $0x108] sm:$0xff]
      %v1126 = vld [vmem:[%s3 + $0x110] sm:$0xf]
      %v1127 = vld [vmem:[%s3 + $0x114] sm:$0xff]
      %v1128 = vld [vmem:[%s3 + $0x11c] sm:$0xf]
      %v1129 = vld [vmem:[%s3 + $0x120] sm:$0xff]
      %v1130 = vld [vmem:[%s3 + $0x128] sm:$0xf]
      %v1131 = vld [vmem:[%s3 + $0x12c] sm:$0xff]
      %v1132 = vld [vmem:[%s3 + $0x134] sm:$0xf]
      %v1133 = vld [vmem:[%s3 + $0x138] sm:$0xff]
      %v1134 = vld [vmem:[%s3 + $0x140] sm:$0xf]
      %v1135 = vld [vmem:[%s3 + $0x144] sm:$0xff]
      %v1136 = vld [vmem:[%s3 + $0x14c] sm:$0xf]
      %v1137 = vld [vmem:[%s3 + $0x150] sm:$0xff]
      %v1138 = vld [vmem:[%s3 + $0x158] sm:$0xf]
      %v1139 = vld [vmem:[%s3 + $0x15c] sm:$0xff]
      %v1140 = vld [vmem:[%s3 + $0x164] sm:$0xf]
      %s1141 = scalar_lea.vmem %s3, 360
      %v1142 = vld [vmem:[%s1141] sm:$0xff]
      %v1143 = vld [vmem:[%s1141 + $0x8] sm:$0xf]
      %v1144 = vld [vmem:[%s1141 + $0xc] sm:$0xff]
      %v1145 = vld [vmem:[%s1141 + $0x14] sm:$0xf]
      %v1146 = vld [vmem:[%s1141 + $0x18] sm:$0xff]
      %v1147 = vld [vmem:[%s1141 + $0x20] sm:$0xf]
      %v1148 = vld [vmem:[%s1141 + $0x24] sm:$0xff]
      %v1149 = vld [vmem:[%s1141 + $0x2c] sm:$0xf]
      %v1150 = vld [vmem:[%s1141 + $0x30] sm:$0xff]
      %v1151 = vld [vmem:[%s1141 + $0x38] sm:$0xf]
      %v1152 = vld [vmem:[%s1141 + $0x3c] sm:$0xff]
      %v1153 = vld [vmem:[%s1141 + $0x44] sm:$0xf]
      %v1154 = vld [vmem:[%s1141 + $0x48] sm:$0xff]
      %v1155 = vld [vmem:[%s1141 + $0x50] sm:$0xf]
      %v1156 = vld [vmem:[%s1141 + $0x54] sm:$0xff]
      %v1157 = vld [vmem:[%s1141 + $0x5c] sm:$0xf]
      %v1158 = vld [vmem:[%s1141 + $0x60] sm:$0xff]
      %v1159 = vld [vmem:[%s1141 + $0x68] sm:$0xf]
      %v1160 = vld [vmem:[%s1141 + $0x6c] sm:$0xff]
      %v1161 = vld [vmem:[%s1141 + $0x74] sm:$0xf]
      %v1162 = vld [vmem:[%s1141 + $0x78] sm:$0xff]
      %v1163 = vld [vmem:[%s1141 + $0x80] sm:$0xf]
      %v1164 = vld [vmem:[%s1141 + $0x84] sm:$0xff]
      %v1165 = vld [vmem:[%s1141 + $0x8c] sm:$0xf]
      %v1166 = vld [vmem:[%s1141 + $0x90] sm:$0xff]
      %v1167 = vld [vmem:[%s1141 + $0x98] sm:$0xf]
      %v1168 = vld [vmem:[%s1141 + $0x9c] sm:$0xff]
      %v1169 = vld [vmem:[%s1141 + $0xa4] sm:$0xf]
      %v1170 = vld [vmem:[%s1141 + $0xa8] sm:$0xff]
      %v1171 = vld [vmem:[%s1141 + $0xb0] sm:$0xf]
      %v1172 = vld [vmem:[%s1141 + $0xb4] sm:$0xff]
      %v1173 = vld [vmem:[%s1141 + $0xbc] sm:$0xf]
      %v1174 = vld [vmem:[%s1141 + $0xc0] sm:$0xff]
      %v1175 = vld [vmem:[%s1141 + $0xc8] sm:$0xf]
      %v1176 = vld [vmem:[%s1141 + $0xcc] sm:$0xff]
      %v1177 = vld [vmem:[%s1141 + $0xd4] sm:$0xf]
      %v1178 = vld [vmem:[%s1141 + $0xd8] sm:$0xff]
      %v1179 = vld [vmem:[%s1141 + $0xe0] sm:$0xf]
      %v1180 = vld [vmem:[%s1141 + $0xe4] sm:$0xff]
      %v1181 = vld [vmem:[%s1141 + $0xec] sm:$0xf]
      %v1182 = vld [vmem:[%s1141 + $0xf0] sm:$0xff]
      %v1183 = vld [vmem:[%s1141 + $0xf8] sm:$0xf]
      %v1184 = vld [vmem:[%s1141 + $0xfc] sm:$0xff]
      %v1185 = vld [vmem:[%s1141 + $0x104] sm:$0xf]
      %v1186 = vld [vmem:[%s1141 + $0x108] sm:$0xff]
      %v1187 = vld [vmem:[%s1141 + $0x110] sm:$0xf]
      %v1188 = vld [vmem:[%s1141 + $0x114] sm:$0xff]
      %v1189 = vld [vmem:[%s1141 + $0x11c] sm:$0xf]
      %v1190 = vld [vmem:[%s1141 + $0x120] sm:$0xff]
      %v1191 = vld [vmem:[%s1141 + $0x128] sm:$0xf]
      %v1192 = vld [vmem:[%s1141 + $0x12c] sm:$0xff]
      %v1193 = vld [vmem:[%s1141 + $0x134] sm:$0xf]
      %v1194 = vld [vmem:[%s1141 + $0x138] sm:$0xff]
      %v1195 = vld [vmem:[%s1141 + $0x140] sm:$0xf]
      %v1196 = vld [vmem:[%s1141 + $0x144] sm:$0xff]
      %v1197 = vld [vmem:[%s1141 + $0x14c] sm:$0xf]
      %v1198 = vld [vmem:[%s1141 + $0x150] sm:$0xff]
      %v1199 = vld [vmem:[%s1141 + $0x158] sm:$0xf]
      %v1200 = vld [vmem:[%s1141 + $0x15c] sm:$0xff]
      %v1201 = vld [vmem:[%s1141 + $0x164] sm:$0xf]
      %v1203 = vshrl.u32 %v735, 16
      %v1205 = vshll.u32 %v735, 16
      %v1207 = vrot.slane %v1205, 1
      %v1208 = vor.u32 %v1203, %v1207
      %v1209 = vshrl.u32 %v736, 16
      %v1211 = vshll.u32 %v736, 16
      %v1213 = vrot.slane %v1211, 1
      %v1214 = vor.u32 %v1209, %v1213
      %v1276 = vunpack.c.l.b16 %v1142
      %v1277 = vunpack.c.h.b16 %v1142
      %v1278 = vunpack.c.l.b16 %v1143
      %v1279 = vunpack.c.l.b16 %v1144
      %v1280 = vunpack.c.h.b16 %v1144
      %v1281 = vunpack.c.l.b16 %v1145
      %v1282 = vunpack.c.l.b16 %v1146
      %v1283 = vunpack.c.h.b16 %v1146
      %v1284 = vunpack.c.l.b16 %v1147
      %v1285 = vunpack.c.l.b16 %v1148
      %v1286 = vunpack.c.h.b16 %v1148
      %v1287 = vunpack.c.l.b16 %v1149
      %v1288 = vunpack.c.l.b16 %v1150
      %v1289 = vunpack.c.h.b16 %v1150
      %v1290 = vunpack.c.l.b16 %v1151
      %v1291 = vunpack.c.l.b16 %v1152
      %v1292 = vunpack.c.h.b16 %v1152
      %v1293 = vunpack.c.l.b16 %v1153
      %v1294 = vunpack.c.l.b16 %v1154
      %v1295 = vunpack.c.h.b16 %v1154
      %v1296 = vunpack.c.l.b16 %v1155
      %v1297 = vunpack.c.l.b16 %v1156
      %v1298 = vunpack.c.h.b16 %v1156
      %v1299 = vunpack.c.l.b16 %v1157
      %v1300 = vunpack.c.l.b16 %v1158
      %v1301 = vunpack.c.h.b16 %v1158
      %v1302 = vunpack.c.l.b16 %v1159
      %v1303 = vunpack.c.l.b16 %v1160
      %v1304 = vunpack.c.h.b16 %v1160
      %v1305 = vunpack.c.l.b16 %v1161
      %v1306 = vunpack.c.l.b16 %v1162
      %v1307 = vunpack.c.h.b16 %v1162
      %v1308 = vunpack.c.l.b16 %v1163
      %v1309 = vunpack.c.l.b16 %v1164
      %v1310 = vunpack.c.h.b16 %v1164
      %v1311 = vunpack.c.l.b16 %v1165
      %v1312 = vunpack.c.l.b16 %v1166
      %v1313 = vunpack.c.h.b16 %v1166
      %v1314 = vunpack.c.l.b16 %v1167
      %v1315 = vunpack.c.l.b16 %v1168
      %v1316 = vunpack.c.h.b16 %v1168
      %v1317 = vunpack.c.l.b16 %v1169
      %v1318 = vunpack.c.l.b16 %v1170
      %v1319 = vunpack.c.h.b16 %v1170
      %v1320 = vunpack.c.l.b16 %v1171
      %v1321 = vunpack.c.l.b16 %v1172
      %v1322 = vunpack.c.h.b16 %v1172
      %v1323 = vunpack.c.l.b16 %v1173
      %v1324 = vunpack.c.l.b16 %v1174
      %v1325 = vunpack.c.h.b16 %v1174
      %v1326 = vunpack.c.l.b16 %v1175
      %v1327 = vunpack.c.l.b16 %v1176
      %v1328 = vunpack.c.h.b16 %v1176
      %v1329 = vunpack.c.l.b16 %v1177
      %v1330 = vunpack.c.l.b16 %v1178
      %v1331 = vunpack.c.h.b16 %v1178
      %v1332 = vunpack.c.l.b16 %v1179
      %v1333 = vunpack.c.l.b16 %v1180
      %v1334 = vunpack.c.h.b16 %v1180
      %v1335 = vunpack.c.l.b16 %v1181
      %v1336 = vunpack.c.l.b16 %v1182
      %v1337 = vunpack.c.h.b16 %v1182
      %v1338 = vunpack.c.l.b16 %v1183
      %v1339 = vunpack.c.l.b16 %v1184
      %v1340 = vunpack.c.h.b16 %v1184
      %v1341 = vunpack.c.l.b16 %v1185
      %v1342 = vunpack.c.l.b16 %v1186
      %v1343 = vunpack.c.h.b16 %v1186
      %v1344 = vunpack.c.l.b16 %v1187
      %v1345 = vunpack.c.l.b16 %v1188
      %v1346 = vunpack.c.h.b16 %v1188
      %v1347 = vunpack.c.l.b16 %v1189
      %v1348 = vunpack.c.l.b16 %v1190
      %v1349 = vunpack.c.h.b16 %v1190
      %v1350 = vunpack.c.l.b16 %v1191
      %v1351 = vunpack.c.l.b16 %v1192
      %v1352 = vunpack.c.h.b16 %v1192
      %v1353 = vunpack.c.l.b16 %v1193
      %v1354 = vunpack.c.l.b16 %v1194
      %v1355 = vunpack.c.h.b16 %v1194
      %v1356 = vunpack.c.l.b16 %v1195
      %v1357 = vunpack.c.l.b16 %v1196
      %v1358 = vunpack.c.h.b16 %v1196
      %v1359 = vunpack.c.l.b16 %v1197
      %v1360 = vunpack.c.l.b16 %v1198
      %v1361 = vunpack.c.h.b16 %v1198
      %v1362 = vunpack.c.l.b16 %v1199
      %v1363 = vunpack.c.l.b16 %v1200
      %v1364 = vunpack.c.h.b16 %v1200
      %v1365 = vunpack.c.l.b16 %v1201
      %v1366 = vpack.c.b16 %v1279, %v1276
      %v1367 = vpack.c.b16 %v1280, %v1277
      %v1368 = vpack.c.b16 %v1281, %v1278
      %v1369 = vpack.c.b16 %v1285, %v1282
      %v1370 = vpack.c.b16 %v1286, %v1283
      %v1371 = vpack.c.b16 %v1287, %v1284
      %v1372 = vpack.c.b16 %v1291, %v1288
      %v1373 = vpack.c.b16 %v1292, %v1289
      %v1374 = vpack.c.b16 %v1293, %v1290
      %v1375 = vpack.c.b16 %v1297, %v1294
      %v1376 = vpack.c.b16 %v1298, %v1295
      %v1377 = vpack.c.b16 %v1299, %v1296
      %v1378 = vpack.c.b16 %v1303, %v1300
      %v1379 = vpack.c.b16 %v1304, %v1301
      %v1380 = vpack.c.b16 %v1305, %v1302
      %v1381 = vpack.c.b16 %v1309, %v1306
      %v1382 = vpack.c.b16 %v1310, %v1307
      %v1383 = vpack.c.b16 %v1311, %v1308
      %v1384 = vpack.c.b16 %v1315, %v1312
      %v1385 = vpack.c.b16 %v1316, %v1313
      %v1386 = vpack.c.b16 %v1317, %v1314
      %v1387 = vpack.c.b16 %v1321, %v1318
      %v1388 = vpack.c.b16 %v1322, %v1319
      %v1389 = vpack.c.b16 %v1323, %v1320
      %v1390 = vpack.c.b16 %v1327, %v1324
      %v1391 = vpack.c.b16 %v1328, %v1325
      %v1392 = vpack.c.b16 %v1329, %v1326
      %v1393 = vpack.c.b16 %v1333, %v1330
      %v1394 = vpack.c.b16 %v1334, %v1331
      %v1395 = vpack.c.b16 %v1335, %v1332
      %v1396 = vpack.c.b16 %v1339, %v1336
      %v1397 = vpack.c.b16 %v1340, %v1337
      %v1398 = vpack.c.b16 %v1341, %v1338
      %v1399 = vpack.c.b16 %v1345, %v1342
      %v1400 = vpack.c.b16 %v1346, %v1343
      %v1401 = vpack.c.b16 %v1347, %v1344
      %v1402 = vpack.c.b16 %v1351, %v1348
      %v1403 = vpack.c.b16 %v1352, %v1349
      %v1404 = vpack.c.b16 %v1353, %v1350
      %v1405 = vpack.c.b16 %v1357, %v1354
      %v1406 = vpack.c.b16 %v1358, %v1355
      %v1407 = vpack.c.b16 %v1359, %v1356
      %v1408 = vpack.c.b16 %v1363, %v1360
      %v1409 = vpack.c.b16 %v1364, %v1361
      %v1410 = vpack.c.b16 %v1365, %v1362
      %v1457 = vsel %vm978, %v1214, 0
      %1459 = vmatprep.subr.bf16.mxu0 %v1388
      %1460 = vmatpush1.bf16.msra.mxu0 %v1387
      %1461 = vmatprep.subr.bf16.mxu0 %v1385
      %1462 = vmatpush1.bf16.msra.mxu0 %v1384
      %1463 = vmatprep.subr.bf16.mxu0 %v1382
      %1464 = vmatpush1.bf16.msra.mxu0 %v1381
      %1465 = vmatprep.subr.bf16.mxu0 %v1379
      %1466 = vmatpush1.bf16.msra.mxu0 %v1378
      %1467 = vmatprep.subr.bf16.mxu0 %v1376
      %1468 = vmatpush1.bf16.msra.mxu0 %v1375
      %1469 = vmatprep.subr.bf16.mxu0 %v1373
      %1470 = vmatpush1.bf16.msra.mxu0 %v1372
      %1471 = vmatprep.subr.bf16.mxu0 %v1370
      %1472 = vmatpush1.bf16.msra.mxu0 %v1369
      %1473 = vmatprep.subr.bf16.mxu0 %v1367
      %1474 = vmatpush1.bf16.msra.mxu0 %v1366
      %1475 = vmatprep.subr.bf16.mxu0 0
      %1476 = vmatpush2.bf16.msra.mxu0 0
      %1477 = vmatprep.subr.bf16.mxu0 %v1409
      %1478 = vmatpush2.bf16.msra.mxu0 %v1408
      %1479 = vmatprep.subr.bf16.mxu0 %v1406
      %1480 = vmatpush2.bf16.msra.mxu0 %v1405
      %1481 = vmatprep.subr.bf16.mxu0 %v1403
      %1482 = vmatpush2.bf16.msra.mxu0 %v1402
      %1483 = vmatprep.subr.bf16.mxu0 %v1400
      %1484 = vmatpush2.bf16.msra.mxu0 %v1399
      %1485 = vmatprep.subr.bf16.mxu0 %v1397
      %1486 = vmatpush2.bf16.msra.mxu0 %v1396
      %1487 = vmatprep.subr.bf16.mxu0 %v1394
      %1488 = vmatpush2.bf16.msra.mxu0 %v1393
      %1489 = vmatprep.subr.bf16.mxu0 %v1391
      %1490 = vmatpush2.bf16.msra.mxu0 %v1390
      %1491 = vmatprep.mubr.bf16.mxu0 %v1457
      %1492 = vmatmul.mubr.bf16.gmra.mxu0 %v1208
      %v1493 = vpop.f32.mrf.mxu0
      %v1494 = vadd.f32 0.0, %v1493
      %v1495 = vpop.f32.mrf.mxu0
      %v1496 = vadd.f32 0.0, %v1495
      %v1497 = vpop.f32.mrf.mxu0
      %v1498 = vpop.f32.mrf.mxu0
      %1499 = vdwg.mxu0
      %1500 = vmatprep.subr.bf16.mxu0 0
      %1501 = vmatpush1.bf16.msra.mxu0 %v1389
      %1502 = vmatprep.subr.bf16.mxu0 0
      %1503 = vmatpush1.bf16.msra.mxu0 %v1386
      %1504 = vmatprep.subr.bf16.mxu0 0
      %1505 = vmatpush1.bf16.msra.mxu0 %v1383
      %1506 = vmatprep.subr.bf16.mxu0 0
      %1507 = vmatpush1.bf16.msra.mxu0 %v1380
      %1508 = vmatprep.subr.bf16.mxu0 0
      %1509 = vmatpush1.bf16.msra.mxu0 %v1377
      %1510 = vmatprep.subr.bf16.mxu0 0
      %1511 = vmatpush1.bf16.msra.mxu0 %v1374
      %1512 = vmatprep.subr.bf16.mxu0 0
      %1513 = vmatpush1.bf16.msra.mxu0 %v1371
      %1514 = vmatprep.subr.bf16.mxu0 0
      %1515 = vmatpush1.bf16.msra.mxu0 %v1368
      %1516 = vmatprep.subr.bf16.mxu0 0
      %1517 = vmatpush2.bf16.msra.mxu0 0
      %1518 = vmatprep.subr.bf16.mxu0 0
      %1519 = vmatpush2.bf16.msra.mxu0 %v1410
      %1520 = vmatprep.subr.bf16.mxu0 0
      %1521 = vmatpush2.bf16.msra.mxu0 %v1407
      %1522 = vmatprep.subr.bf16.mxu0 0
      %1523 = vmatpush2.bf16.msra.mxu0 %v1404
      %1524 = vmatprep.subr.bf16.mxu0 0
      %1525 = vmatpush2.bf16.msra.mxu0 %v1401
      %1526 = vmatprep.subr.bf16.mxu0 0
      %1527 = vmatpush2.bf16.msra.mxu0 %v1398
      %1528 = vmatprep.subr.bf16.mxu0 0
      %1529 = vmatpush2.bf16.msra.mxu0 %v1395
      %1530 = vmatprep.subr.bf16.mxu0 0
      %1531 = vmatpush2.bf16.msra.mxu0 %v1392
      %1532 = vmatprep.mubr.bf16.mxu0 %v1457
      %1533 = vmatmul.mubr.bf16.gmra.mxu0 %v1208
      %v1534 = vpop.f32.mrf.mxu0
      %v1535 = vadd.f32 0.0, %v1534
      %v1536 = vpop.f32.mrf.mxu0
      %v1537 = vpop.f32.mrf.mxu0
      %v1538 = vpop.f32.mrf.mxu0
      %1539 = vdwg.mxu0
      %v1600 = vunpack.c.l.b16 %v1081
      %v1601 = vunpack.c.h.b16 %v1081
      %v1602 = vunpack.c.l.b16 %v1082
      %v1603 = vunpack.c.l.b16 %v1083
      %v1604 = vunpack.c.h.b16 %v1083
      %v1605 = vunpack.c.l.b16 %v1084
      %v1606 = vunpack.c.l.b16 %v1085
      %v1607 = vunpack.c.h.b16 %v1085
      %v1608 = vunpack.c.l.b16 %v1086
      %v1609 = vunpack.c.l.b16 %v1087
      %v1610 = vunpack.c.h.b16 %v1087
      %v1611 = vunpack.c.l.b16 %v1088
      %v1612 = vunpack.c.l.b16 %v1089
      %v1613 = vunpack.c.h.b16 %v1089
      %v1614 = vunpack.c.l.b16 %v1090
      %v1615 = vunpack.c.l.b16 %v1091
      %v1616 = vunpack.c.h.b16 %v1091
      %v1617 = vunpack.c.l.b16 %v1092
      %v1618 = vunpack.c.l.b16 %v1093
      %v1619 = vunpack.c.h.b16 %v1093
      %v1620 = vunpack.c.l.b16 %v1094
      %v1621 = vunpack.c.l.b16 %v1095
      %v1622 = vunpack.c.h.b16 %v1095
      %v1623 = vunpack.c.l.b16 %v1096
      %v1624 = vunpack.c.l.b16 %v1097
      %v1625 = vunpack.c.h.b16 %v1097
      %v1626 = vunpack.c.l.b16 %v1098
      %v1627 = vunpack.c.l.b16 %v1099
      %v1628 = vunpack.c.h.b16 %v1099
      %v1629 = vunpack.c.l.b16 %v1100
      %v1630 = vunpack.c.l.b16 %v1101
      %v1631 = vunpack.c.h.b16 %v1101
      %v1632 = vunpack.c.l.b16 %v1102
      %v1633 = vunpack.c.l.b16 %v1103
      %v1634 = vunpack.c.h.b16 %v1103
      %v1635 = vunpack.c.l.b16 %v1104
      %v1636 = vunpack.c.l.b16 %v1105
      %v1637 = vunpack.c.h.b16 %v1105
      %v1638 = vunpack.c.l.b16 %v1106
      %v1639 = vunpack.c.l.b16 %v1107
      %v1640 = vunpack.c.h.b16 %v1107
      %v1641 = vunpack.c.l.b16 %v1108
      %v1642 = vunpack.c.l.b16 %v1109
      %v1643 = vunpack.c.h.b16 %v1109
      %v1644 = vunpack.c.l.b16 %v1110
      %v1645 = vunpack.c.l.b16 %v1111
      %v1646 = vunpack.c.h.b16 %v1111
      %v1647 = vunpack.c.l.b16 %v1112
      %v1648 = vunpack.c.l.b16 %v1113
      %v1649 = vunpack.c.h.b16 %v1113
      %v1650 = vunpack.c.l.b16 %v1114
      %v1651 = vunpack.c.l.b16 %v1115
      %v1652 = vunpack.c.h.b16 %v1115
      %v1653 = vunpack.c.l.b16 %v1116
      %v1654 = vunpack.c.l.b16 %v1117
      %v1655 = vunpack.c.h.b16 %v1117
      %v1656 = vunpack.c.l.b16 %v1118
      %v1657 = vunpack.c.l.b16 %v1119
      %v1658 = vunpack.c.h.b16 %v1119
      %v1659 = vunpack.c.l.b16 %v1120
      %v1660 = vunpack.c.l.b16 %v1121
      %v1661 = vunpack.c.h.b16 %v1121
      %v1662 = vunpack.c.l.b16 %v1122
      %v1663 = vunpack.c.l.b16 %v1123
      %v1664 = vunpack.c.h.b16 %v1123
      %v1665 = vunpack.c.l.b16 %v1124
      %v1666 = vunpack.c.l.b16 %v1125
      %v1667 = vunpack.c.h.b16 %v1125
      %v1668 = vunpack.c.l.b16 %v1126
      %v1669 = vunpack.c.l.b16 %v1127
      %v1670 = vunpack.c.h.b16 %v1127
      %v1671 = vunpack.c.l.b16 %v1128
      %v1672 = vunpack.c.l.b16 %v1129
      %v1673 = vunpack.c.h.b16 %v1129
      %v1674 = vunpack.c.l.b16 %v1130
      %v1675 = vunpack.c.l.b16 %v1131
      %v1676 = vunpack.c.h.b16 %v1131
      %v1677 = vunpack.c.l.b16 %v1132
      %v1678 = vunpack.c.l.b16 %v1133
      %v1679 = vunpack.c.h.b16 %v1133
      %v1680 = vunpack.c.l.b16 %v1134
      %v1681 = vunpack.c.l.b16 %v1135
      %v1682 = vunpack.c.h.b16 %v1135
      %v1683 = vunpack.c.l.b16 %v1136
      %v1684 = vunpack.c.l.b16 %v1137
      %v1685 = vunpack.c.h.b16 %v1137
      %v1686 = vunpack.c.l.b16 %v1138
      %v1687 = vunpack.c.l.b16 %v1139
      %v1688 = vunpack.c.h.b16 %v1139
      %v1689 = vunpack.c.l.b16 %v1140
      %v1690 = vpack.c.b16 %v1603, %v1600
      %v1691 = vpack.c.b16 %v1604, %v1601
      %v1692 = vpack.c.b16 %v1605, %v1602
      %v1693 = vpack.c.b16 %v1609, %v1606
      %v1694 = vpack.c.b16 %v1610, %v1607
      %v1695 = vpack.c.b16 %v1611, %v1608
      %v1696 = vpack.c.b16 %v1615, %v1612
      %v1697 = vpack.c.b16 %v1616, %v1613
      %v1698 = vpack.c.b16 %v1617, %v1614
      %v1699 = vpack.c.b16 %v1621, %v1618
      %v1700 = vpack.c.b16 %v1622, %v1619
      %v1701 = vpack.c.b16 %v1623, %v1620
      %v1702 = vpack.c.b16 %v1627, %v1624
      %v1703 = vpack.c.b16 %v1628, %v1625
      %v1704 = vpack.c.b16 %v1629, %v1626
      %v1705 = vpack.c.b16 %v1633, %v1630
      %v1706 = vpack.c.b16 %v1634, %v1631
      %v1707 = vpack.c.b16 %v1635, %v1632
      %v1708 = vpack.c.b16 %v1639, %v1636
      %v1709 = vpack.c.b16 %v1640, %v1637
      %v1710 = vpack.c.b16 %v1641, %v1638
      %v1711 = vpack.c.b16 %v1645, %v1642
      %v1712 = vpack.c.b16 %v1646, %v1643
      %v1713 = vpack.c.b16 %v1647, %v1644
      %v1714 = vpack.c.b16 %v1651, %v1648
      %v1715 = vpack.c.b16 %v1652, %v1649
      %v1716 = vpack.c.b16 %v1653, %v1650
      %v1717 = vpack.c.b16 %v1657, %v1654
      %v1718 = vpack.c.b16 %v1658, %v1655
      %v1719 = vpack.c.b16 %v1659, %v1656
      %v1720 = vpack.c.b16 %v1663, %v1660
      %v1721 = vpack.c.b16 %v1664, %v1661
      %v1722 = vpack.c.b16 %v1665, %v1662
      %v1723 = vpack.c.b16 %v1669, %v1666
      %v1724 = vpack.c.b16 %v1670, %v1667
      %v1725 = vpack.c.b16 %v1671, %v1668
      %v1726 = vpack.c.b16 %v1675, %v1672
      %v1727 = vpack.c.b16 %v1676, %v1673
      %v1728 = vpack.c.b16 %v1677, %v1674
      %v1729 = vpack.c.b16 %v1681, %v1678
      %v1730 = vpack.c.b16 %v1682, %v1679
      %v1731 = vpack.c.b16 %v1683, %v1680
      %v1732 = vpack.c.b16 %v1687, %v1684
      %v1733 = vpack.c.b16 %v1688, %v1685
      %v1734 = vpack.c.b16 %v1689, %v1686
      %1780 = vmatprep.subr.bf16.mxu0 %v1712
      %1781 = vmatpush1.bf16.msra.mxu0 %v1711
      %1782 = vmatprep.subr.bf16.mxu0 %v1709
      %1783 = vmatpush1.bf16.msra.mxu0 %v1708
      %1784 = vmatprep.subr.bf16.mxu0 %v1706
      %1785 = vmatpush1.bf16.msra.mxu0 %v1705
      %1786 = vmatprep.subr.bf16.mxu0 %v1703
      %1787 = vmatpush1.bf16.msra.mxu0 %v1702
      %1788 = vmatprep.subr.bf16.mxu0 %v1700
      %1789 = vmatpush1.bf16.msra.mxu0 %v1699
      %1790 = vmatprep.subr.bf16.mxu0 %v1697
      %1791 = vmatpush1.bf16.msra.mxu0 %v1696
      %1792 = vmatprep.subr.bf16.mxu0 %v1694
      %1793 = vmatpush1.bf16.msra.mxu0 %v1693
      %1794 = vmatprep.subr.bf16.mxu0 %v1691
      %1795 = vmatpush1.bf16.msra.mxu0 %v1690
      %1796 = vmatprep.subr.bf16.mxu0 0
      %1797 = vmatpush2.bf16.msra.mxu0 0
      %1798 = vmatprep.subr.bf16.mxu0 %v1733
      %1799 = vmatpush2.bf16.msra.mxu0 %v1732
      %1800 = vmatprep.subr.bf16.mxu0 %v1730
      %1801 = vmatpush2.bf16.msra.mxu0 %v1729
      %1802 = vmatprep.subr.bf16.mxu0 %v1727
      %1803 = vmatpush2.bf16.msra.mxu0 %v1726
      %1804 = vmatprep.subr.bf16.mxu0 %v1724
      %1805 = vmatpush2.bf16.msra.mxu0 %v1723
      %1806 = vmatprep.subr.bf16.mxu0 %v1721
      %1807 = vmatpush2.bf16.msra.mxu0 %v1720
      %1808 = vmatprep.subr.bf16.mxu0 %v1718
      %1809 = vmatpush2.bf16.msra.mxu0 %v1717
      %1810 = vmatprep.subr.bf16.mxu0 %v1715
      %1811 = vmatpush2.bf16.msra.mxu0 %v1714
      %1812 = vmatprep.mubr.bf16.mxu0 %v980
      %1813 = vmatmul.mubr.bf16.gmra.mxu0 %v735
      %v1814 = vpop.f32.mrf.mxu0
      %v1815 = vadd.f32 %v1494, %v1814
      %v1816 = vpop.f32.mrf.mxu0
      %v1817 = vadd.f32 %v1496, %v1816
      %v1818 = vpop.f32.mrf.mxu0
      %v1819 = vpop.f32.mrf.mxu0
      %1820 = vdwg.mxu0
      %1821 = vmatprep.subr.bf16.mxu0 0
      %1822 = vmatpush1.bf16.msra.mxu0 %v1713
      %1823 = vmatprep.subr.bf16.mxu0 0
      %1824 = vmatpush1.bf16.msra.mxu0 %v1710
      %1825 = vmatprep.subr.bf16.mxu0 0
      %1826 = vmatpush1.bf16.msra.mxu0 %v1707
      %1827 = vmatprep.subr.bf16.mxu0 0
      %1828 = vmatpush1.bf16.msra.mxu0 %v1704
      %1829 = vmatprep.subr.bf16.mxu0 0
      %1830 = vmatpush1.bf16.msra.mxu0 %v1701
      %1831 = vmatprep.subr.bf16.mxu0 0
      %1832 = vmatpush1.bf16.msra.mxu0 %v1698
      %1833 = vmatprep.subr.bf16.mxu0 0
      %1834 = vmatpush1.bf16.msra.mxu0 %v1695
      %1835 = vmatprep.subr.bf16.mxu0 0
      %1836 = vmatpush1.bf16.msra.mxu0 %v1692
      %1837 = vmatprep.subr.bf16.mxu0 0
      %1838 = vmatpush2.bf16.msra.mxu0 0
      %1839 = vmatprep.subr.bf16.mxu0 0
      %1840 = vmatpush2.bf16.msra.mxu0 %v1734
      %1841 = vmatprep.subr.bf16.mxu0 0
      %1842 = vmatpush2.bf16.msra.mxu0 %v1731
      %1843 = vmatprep.subr.bf16.mxu0 0
      %1844 = vmatpush2.bf16.msra.mxu0 %v1728
      %1845 = vmatprep.subr.bf16.mxu0 0
      %1846 = vmatpush2.bf16.msra.mxu0 %v1725
      %1847 = vmatprep.subr.bf16.mxu0 0
      %1848 = vmatpush2.bf16.msra.mxu0 %v1722
      %1849 = vmatprep.subr.bf16.mxu0 0
      %1850 = vmatpush2.bf16.msra.mxu0 %v1719
      %1851 = vmatprep.subr.bf16.mxu0 0
      %1852 = vmatpush2.bf16.msra.mxu0 %v1716
      %1853 = vmatprep.mubr.bf16.mxu0 %v980
      %1854 = vmatmul.mubr.bf16.gmra.mxu0 %v735
      %v1855 = vpop.f32.mrf.mxu0
      %v1856 = vadd.f32 %v1535, %v1855
      %v1857 = vpop.f32.mrf.mxu0
      %v1858 = vpop.f32.mrf.mxu0
      %v1859 = vpop.f32.mrf.mxu0
      %1860 = vdwg.mxu0
      %v1861 = vadd.f32 %v1815, %v720
      %v1862 = vadd.f32 %v1817, %v724
      %v1863 = vadd.f32 %v1856, %v728
      %vm1864 = vcmp.gt.f32.partialorder %v1861, 0.0
      %vm1865 = vcmp.gt.f32.partialorder %v1862, 0.0
      %vm1866 = vcmp.gt.f32.partialorder %v1863, 0.0
      %v1867 = vmin.f32 %v1861, 0.0
      %v1868 = vmin.f32 %v1862, 0.0
      %v1869 = vmin.f32 %v1863, 0.0
      %v1870 = vmul.f32 %v1867, 1.442695
      %v1871 = vpow.pop %v1870
      %v1872 = vmul.f32 %v1868, 1.442695
      %v1873 = vpow.pop %v1872
      %v1874 = vmul.f32 %v1869, 1.442695
      %v1875 = vpow.pop %v1874
      %v1876 = vsub.f32 %v1871, 1.0
      %v1877 = vsub.f32 %v1873, 1.0
      %v1878 = vsub.f32 %v1875, 1.0
      %v1879 = vsel %vm1864, %v1861, %v1876
      %v1880 = vsel %vm1865, %v1862, %v1877
      %v1881 = vsel %vm1866, %v1863, %v1878
      %vm1882 = vcmask 1044480
      %v1883 = vsel %vm1882, %v1078, 0.0
      %v1884 = vsel %vm1882, %v1079, 0.0
      %v1885 = vsel %vm1882, %v1080, 0.0
      %v1889 = vrot.slane %v1879, 7
      %v1890 = vrot.slane %v1880, 7
      %v1891 = vrot.slane %v1881, 7
      %vm1895 = vcmask 1040384
      %v1896 = vsel %vm1895, 0.0, %v1889
      %v1897 = vsel %vm1895, 0.0, %v1890
      %v1898 = vsel %vm1895, 0.0, %v1891
      %v1899 = vld [vmem:[%s4] sm:$0xff]
      %v1900 = vld [vmem:[%s4 + $0x8] sm:$0xf]
      %v1901 = vld [vmem:[%s4 + $0xc] sm:$0xff]
      %v1902 = vld [vmem:[%s4 + $0x14] sm:$0xf]
      %v1903 = vld [vmem:[%s4 + $0x18] sm:$0xff]
      %v1904 = vld [vmem:[%s4 + $0x20] sm:$0xf]
      %v1905 = vld [vmem:[%s4 + $0x24] sm:$0xff]
      %v1906 = vld [vmem:[%s4 + $0x2c] sm:$0xf]
      %v1907 = vld [vmem:[%s4 + $0x30] sm:$0xff]
      %v1908 = vld [vmem:[%s4 + $0x38] sm:$0xf]
      %v1909 = vld [vmem:[%s4 + $0x3c] sm:$0xff]
      %v1910 = vld [vmem:[%s4 + $0x44] sm:$0xf]
      %v1911 = vld [vmem:[%s4 + $0x48] sm:$0xff]
      %v1912 = vld [vmem:[%s4 + $0x50] sm:$0xf]
      %v1913 = vld [vmem:[%s4 + $0x54] sm:$0xff]
      %v1914 = vld [vmem:[%s4 + $0x5c] sm:$0xf]
      %v1915 = vld [vmem:[%s4 + $0x60] sm:$0xff]
      %v1916 = vld [vmem:[%s4 + $0x68] sm:$0xf]
      %v1917 = vld [vmem:[%s4 + $0x6c] sm:$0xff]
      %v1918 = vld [vmem:[%s4 + $0x74] sm:$0xf]
      %v1919 = vld [vmem:[%s4 + $0x78] sm:$0xff]
      %v1920 = vld [vmem:[%s4 + $0x80] sm:$0xf]
      %v1921 = vld [vmem:[%s4 + $0x84] sm:$0xff]
      %v1922 = vld [vmem:[%s4 + $0x8c] sm:$0xf]
      %v1923 = vld [vmem:[%s4 + $0x90] sm:$0xff]
      %v1924 = vld [vmem:[%s4 + $0x98] sm:$0xf]
      %v1925 = vld [vmem:[%s4 + $0x9c] sm:$0xff]
      %v1926 = vld [vmem:[%s4 + $0xa4] sm:$0xf]
      %v1927 = vld [vmem:[%s4 + $0xa8] sm:$0xff]
      %v1928 = vld [vmem:[%s4 + $0xb0] sm:$0xf]
      %v1929 = vld [vmem:[%s4 + $0xb4] sm:$0xff]
      %v1930 = vld [vmem:[%s4 + $0xbc] sm:$0xf]
      %v1931 = vld [vmem:[%s4 + $0xc0] sm:$0xff]
      %v1932 = vld [vmem:[%s4 + $0xc8] sm:$0xf]
      %v1933 = vld [vmem:[%s4 + $0xcc] sm:$0xff]
      %v1934 = vld [vmem:[%s4 + $0xd4] sm:$0xf]
      %v1935 = vld [vmem:[%s4 + $0xd8] sm:$0xff]
      %v1936 = vld [vmem:[%s4 + $0xe0] sm:$0xf]
      %v1937 = vld [vmem:[%s4 + $0xe4] sm:$0xff]
      %v1938 = vld [vmem:[%s4 + $0xec] sm:$0xf]
      %v1939 = vld [vmem:[%s4 + $0xf0] sm:$0xff]
      %v1940 = vld [vmem:[%s4 + $0xf8] sm:$0xf]
      %v1941 = vld [vmem:[%s4 + $0xfc] sm:$0xff]
      %v1942 = vld [vmem:[%s4 + $0x104] sm:$0xf]
      %v1943 = vld [vmem:[%s4 + $0x108] sm:$0xff]
      %v1944 = vld [vmem:[%s4 + $0x110] sm:$0xf]
      %v1945 = vld [vmem:[%s4 + $0x114] sm:$0xff]
      %v1946 = vld [vmem:[%s4 + $0x11c] sm:$0xf]
      %v1947 = vld [vmem:[%s4 + $0x120] sm:$0xff]
      %v1948 = vld [vmem:[%s4 + $0x128] sm:$0xf]
      %v1949 = vld [vmem:[%s4 + $0x12c] sm:$0xff]
      %v1950 = vld [vmem:[%s4 + $0x134] sm:$0xf]
      %v1951 = vld [vmem:[%s4 + $0x138] sm:$0xff]
      %v1952 = vld [vmem:[%s4 + $0x140] sm:$0xf]
      %v1953 = vld [vmem:[%s4 + $0x144] sm:$0xff]
      %v1954 = vld [vmem:[%s4 + $0x14c] sm:$0xf]
      %v1955 = vld [vmem:[%s4 + $0x150] sm:$0xff]
      %v1956 = vld [vmem:[%s4 + $0x158] sm:$0xf]
      %v1957 = vld [vmem:[%s4 + $0x15c] sm:$0xff]
      %v1958 = vld [vmem:[%s4 + $0x164] sm:$0xf]
      %v1959 = vld [vmem:[%s4 + $0x168] sm:$0xff]
      %v1960 = vld [vmem:[%s4 + $0x170] sm:$0xf]
      %v1961 = vld [vmem:[%s4 + $0x174] sm:$0xff]
      %v1962 = vld [vmem:[%s4 + $0x17c] sm:$0xf]
      %v1963 = vld [vmem:[%s4 + $0x180] sm:$0xff]
      %v1964 = vld [vmem:[%s4 + $0x188] sm:$0xf]
      %v1965 = vld [vmem:[%s4 + $0x18c] sm:$0xff]
      %v1966 = vld [vmem:[%s4 + $0x194] sm:$0xf]
      %v1967 = vld [vmem:[%s4 + $0x198] sm:$0xff]
      %v1968 = vld [vmem:[%s4 + $0x1a0] sm:$0xf]
      %v1969 = vld [vmem:[%s4 + $0x1a4] sm:$0xff]
      %v1970 = vld [vmem:[%s4 + $0x1ac] sm:$0xf]
      %v1971 = vld [vmem:[%s4 + $0x1b0] sm:$0xff]
      %v1972 = vld [vmem:[%s4 + $0x1b8] sm:$0xf]
      %v1973 = vld [vmem:[%s4 + $0x1bc] sm:$0xff]
      %v1974 = vld [vmem:[%s4 + $0x1c4] sm:$0xf]
      %v1975 = vld [vmem:[%s4 + $0x1c8] sm:$0xff]
      %v1976 = vld [vmem:[%s4 + $0x1d0] sm:$0xf]
      %v1977 = vld [vmem:[%s4 + $0x1d4] sm:$0xff]
      %v1978 = vld [vmem:[%s4 + $0x1dc] sm:$0xf]
      %v1979 = vpack.c.bf16 %v1896, %v1896
      %v1980 = vpack.c.bf16 %v1897, %v1897
      %v1981 = vpack.c.bf16 %v1898, %v1898
      %s1982 = scalar_lea.vmem %s4, 480
      %v1983 = vld [vmem:[%s1982] sm:$0xff]
      %v1984 = vld [vmem:[%s1982 + $0x8] sm:$0xf]
      %v1985 = vld [vmem:[%s1982 + $0xc] sm:$0xff]
      %v1986 = vld [vmem:[%s1982 + $0x14] sm:$0xf]
      %v1987 = vld [vmem:[%s1982 + $0x18] sm:$0xff]
      %v1988 = vld [vmem:[%s1982 + $0x20] sm:$0xf]
      %v1989 = vld [vmem:[%s1982 + $0x24] sm:$0xff]
      %v1990 = vld [vmem:[%s1982 + $0x2c] sm:$0xf]
      %v1991 = vld [vmem:[%s1982 + $0x30] sm:$0xff]
      %v1992 = vld [vmem:[%s1982 + $0x38] sm:$0xf]
      %v1993 = vld [vmem:[%s1982 + $0x3c] sm:$0xff]
      %v1994 = vld [vmem:[%s1982 + $0x44] sm:$0xf]
      %v1995 = vld [vmem:[%s1982 + $0x48] sm:$0xff]
      %v1996 = vld [vmem:[%s1982 + $0x50] sm:$0xf]
      %v1997 = vld [vmem:[%s1982 + $0x54] sm:$0xff]
      %v1998 = vld [vmem:[%s1982 + $0x5c] sm:$0xf]
      %v1999 = vld [vmem:[%s1982 + $0x60] sm:$0xff]
      %v2000 = vld [vmem:[%s1982 + $0x68] sm:$0xf]
      %v2001 = vld [vmem:[%s1982 + $0x6c] sm:$0xff]
      %v2002 = vld [vmem:[%s1982 + $0x74] sm:$0xf]
      %v2003 = vld [vmem:[%s1982 + $0x78] sm:$0xff]
      %v2004 = vld [vmem:[%s1982 + $0x80] sm:$0xf]
      %v2005 = vld [vmem:[%s1982 + $0x84] sm:$0xff]
      %v2006 = vld [vmem:[%s1982 + $0x8c] sm:$0xf]
      %v2007 = vld [vmem:[%s1982 + $0x90] sm:$0xff]
      %v2008 = vld [vmem:[%s1982 + $0x98] sm:$0xf]
      %v2009 = vld [vmem:[%s1982 + $0x9c] sm:$0xff]
      %v2010 = vld [vmem:[%s1982 + $0xa4] sm:$0xf]
      %v2011 = vld [vmem:[%s1982 + $0xa8] sm:$0xff]
      %v2012 = vld [vmem:[%s1982 + $0xb0] sm:$0xf]
      %v2013 = vld [vmem:[%s1982 + $0xb4] sm:$0xff]
      %v2014 = vld [vmem:[%s1982 + $0xbc] sm:$0xf]
      %v2015 = vld [vmem:[%s1982 + $0xc0] sm:$0xff]
      %v2016 = vld [vmem:[%s1982 + $0xc8] sm:$0xf]
      %v2017 = vld [vmem:[%s1982 + $0xcc] sm:$0xff]
      %v2018 = vld [vmem:[%s1982 + $0xd4] sm:$0xf]
      %v2019 = vld [vmem:[%s1982 + $0xd8] sm:$0xff]
      %v2020 = vld [vmem:[%s1982 + $0xe0] sm:$0xf]
      %v2021 = vld [vmem:[%s1982 + $0xe4] sm:$0xff]
      %v2022 = vld [vmem:[%s1982 + $0xec] sm:$0xf]
      %v2023 = vld [vmem:[%s1982 + $0xf0] sm:$0xff]
      %v2024 = vld [vmem:[%s1982 + $0xf8] sm:$0xf]
      %v2025 = vld [vmem:[%s1982 + $0xfc] sm:$0xff]
      %v2026 = vld [vmem:[%s1982 + $0x104] sm:$0xf]
      %v2027 = vld [vmem:[%s1982 + $0x108] sm:$0xff]
      %v2028 = vld [vmem:[%s1982 + $0x110] sm:$0xf]
      %v2029 = vld [vmem:[%s1982 + $0x114] sm:$0xff]
      %v2030 = vld [vmem:[%s1982 + $0x11c] sm:$0xf]
      %v2031 = vld [vmem:[%s1982 + $0x120] sm:$0xff]
      %v2032 = vld [vmem:[%s1982 + $0x128] sm:$0xf]
      %v2033 = vld [vmem:[%s1982 + $0x12c] sm:$0xff]
      %v2034 = vld [vmem:[%s1982 + $0x134] sm:$0xf]
      %v2035 = vld [vmem:[%s1982 + $0x138] sm:$0xff]
      %v2036 = vld [vmem:[%s1982 + $0x140] sm:$0xf]
      %v2037 = vld [vmem:[%s1982 + $0x144] sm:$0xff]
      %v2038 = vld [vmem:[%s1982 + $0x14c] sm:$0xf]
      %v2039 = vld [vmem:[%s1982 + $0x150] sm:$0xff]
      %v2040 = vld [vmem:[%s1982 + $0x158] sm:$0xf]
      %v2041 = vld [vmem:[%s1982 + $0x15c] sm:$0xff]
      %v2042 = vld [vmem:[%s1982 + $0x164] sm:$0xf]
      %v2043 = vld [vmem:[%s1982 + $0x168] sm:$0xff]
      %v2044 = vld [vmem:[%s1982 + $0x170] sm:$0xf]
      %v2045 = vld [vmem:[%s1982 + $0x174] sm:$0xff]
      %v2046 = vld [vmem:[%s1982 + $0x17c] sm:$0xf]
      %v2047 = vld [vmem:[%s1982 + $0x180] sm:$0xff]
      %v2048 = vld [vmem:[%s1982 + $0x188] sm:$0xf]
      %v2049 = vld [vmem:[%s1982 + $0x18c] sm:$0xff]
      %v2050 = vld [vmem:[%s1982 + $0x194] sm:$0xf]
      %v2051 = vld [vmem:[%s1982 + $0x198] sm:$0xff]
      %v2052 = vld [vmem:[%s1982 + $0x1a0] sm:$0xf]
      %v2053 = vld [vmem:[%s1982 + $0x1a4] sm:$0xff]
      %v2054 = vld [vmem:[%s1982 + $0x1ac] sm:$0xf]
      %v2055 = vld [vmem:[%s1982 + $0x1b0] sm:$0xff]
      %v2056 = vld [vmem:[%s1982 + $0x1b8] sm:$0xf]
      %v2057 = vld [vmem:[%s1982 + $0x1bc] sm:$0xff]
      %v2058 = vld [vmem:[%s1982 + $0x1c4] sm:$0xf]
      %v2059 = vld [vmem:[%s1982 + $0x1c8] sm:$0xff]
      %v2060 = vld [vmem:[%s1982 + $0x1d0] sm:$0xf]
      %v2061 = vld [vmem:[%s1982 + $0x1d4] sm:$0xff]
      %v2062 = vld [vmem:[%s1982 + $0x1dc] sm:$0xf]
      %v2063 = vpack.c.bf16 %v1883, %v1883
      %v2064 = vpack.c.bf16 %v1884, %v1884
      %v2065 = vpack.c.bf16 %v1885, %v1885
      %v2146 = vunpack.c.l.b16 %v1983
      %v2147 = vunpack.c.h.b16 %v1983
      %v2148 = vunpack.c.l.b16 %v1984
      %v2149 = vunpack.c.l.b16 %v1985
      %v2150 = vunpack.c.h.b16 %v1985
      %v2151 = vunpack.c.l.b16 %v1986
      %v2152 = vunpack.c.l.b16 %v1987
      %v2153 = vunpack.c.h.b16 %v1987
      %v2154 = vunpack.c.l.b16 %v1988
      %v2155 = vunpack.c.l.b16 %v1989
      %v2156 = vunpack.c.h.b16 %v1989
      %v2157 = vunpack.c.l.b16 %v1990
      %v2158 = vunpack.c.l.b16 %v1991
      %v2159 = vunpack.c.h.b16 %v1991
      %v2160 = vunpack.c.l.b16 %v1992
      %v2161 = vunpack.c.l.b16 %v1993
      %v2162 = vunpack.c.h.b16 %v1993
      %v2163 = vunpack.c.l.b16 %v1994
      %v2164 = vunpack.c.l.b16 %v1995
      %v2165 = vunpack.c.h.b16 %v1995
      %v2166 = vunpack.c.l.b16 %v1996
      %v2167 = vunpack.c.l.b16 %v1997
      %v2168 = vunpack.c.h.b16 %v1997
      %v2169 = vunpack.c.l.b16 %v1998
      %v2170 = vunpack.c.l.b16 %v1999
      %v2171 = vunpack.c.h.b16 %v1999
      %v2172 = vunpack.c.l.b16 %v2000
      %v2173 = vunpack.c.l.b16 %v2001
      %v2174 = vunpack.c.h.b16 %v2001
      %v2175 = vunpack.c.l.b16 %v2002
      %v2176 = vunpack.c.l.b16 %v2003
      %v2177 = vunpack.c.h.b16 %v2003
      %v2178 = vunpack.c.l.b16 %v2004
      %v2179 = vunpack.c.l.b16 %v2005
      %v2180 = vunpack.c.h.b16 %v2005
      %v2181 = vunpack.c.l.b16 %v2006
      %v2182 = vunpack.c.l.b16 %v2007
      %v2183 = vunpack.c.h.b16 %v2007
      %v2184 = vunpack.c.l.b16 %v2008
      %v2185 = vunpack.c.l.b16 %v2009
      %v2186 = vunpack.c.h.b16 %v2009
      %v2187 = vunpack.c.l.b16 %v2010
      %v2188 = vunpack.c.l.b16 %v2011
      %v2189 = vunpack.c.h.b16 %v2011
      %v2190 = vunpack.c.l.b16 %v2012
      %v2191 = vunpack.c.l.b16 %v2013
      %v2192 = vunpack.c.h.b16 %v2013
      %v2193 = vunpack.c.l.b16 %v2014
      %v2194 = vunpack.c.l.b16 %v2015
      %v2195 = vunpack.c.h.b16 %v2015
      %v2196 = vunpack.c.l.b16 %v2016
      %v2197 = vunpack.c.l.b16 %v2017
      %v2198 = vunpack.c.h.b16 %v2017
      %v2199 = vunpack.c.l.b16 %v2018
      %v2200 = vunpack.c.l.b16 %v2019
      %v2201 = vunpack.c.h.b16 %v2019
      %v2202 = vunpack.c.l.b16 %v2020
      %v2203 = vunpack.c.l.b16 %v2021
      %v2204 = vunpack.c.h.b16 %v2021
      %v2205 = vunpack.c.l.b16 %v2022
      %v2206 = vunpack.c.l.b16 %v2023
      %v2207 = vunpack.c.h.b16 %v2023
      %v2208 = vunpack.c.l.b16 %v2024
      %v2209 = vunpack.c.l.b16 %v2025
      %v2210 = vunpack.c.h.b16 %v2025
      %v2211 = vunpack.c.l.b16 %v2026
      %v2212 = vunpack.c.l.b16 %v2027
      %v2213 = vunpack.c.h.b16 %v2027
      %v2214 = vunpack.c.l.b16 %v2028
      %v2215 = vunpack.c.l.b16 %v2029
      %v2216 = vunpack.c.h.b16 %v2029
      %v2217 = vunpack.c.l.b16 %v2030
      %v2218 = vunpack.c.l.b16 %v2031
      %v2219 = vunpack.c.h.b16 %v2031
      %v2220 = vunpack.c.l.b16 %v2032
      %v2221 = vunpack.c.l.b16 %v2033
      %v2222 = vunpack.c.h.b16 %v2033
      %v2223 = vunpack.c.l.b16 %v2034
      %v2224 = vunpack.c.l.b16 %v2035
      %v2225 = vunpack.c.h.b16 %v2035
      %v2226 = vunpack.c.l.b16 %v2036
      %v2227 = vunpack.c.l.b16 %v2037
      %v2228 = vunpack.c.h.b16 %v2037
      %v2229 = vunpack.c.l.b16 %v2038
      %v2230 = vunpack.c.l.b16 %v2039
      %v2231 = vunpack.c.h.b16 %v2039
      %v2232 = vunpack.c.l.b16 %v2040
      %v2233 = vunpack.c.l.b16 %v2041
      %v2234 = vunpack.c.h.b16 %v2041
      %v2235 = vunpack.c.l.b16 %v2042
      %v2236 = vunpack.c.l.b16 %v2043
      %v2237 = vunpack.c.h.b16 %v2043
      %v2238 = vunpack.c.l.b16 %v2044
      %v2239 = vunpack.c.l.b16 %v2045
      %v2240 = vunpack.c.h.b16 %v2045
      %v2241 = vunpack.c.l.b16 %v2046
      %v2242 = vunpack.c.l.b16 %v2047
      %v2243 = vunpack.c.h.b16 %v2047
      %v2244 = vunpack.c.l.b16 %v2048
      %v2245 = vunpack.c.l.b16 %v2049
      %v2246 = vunpack.c.h.b16 %v2049
      %v2247 = vunpack.c.l.b16 %v2050
      %v2248 = vunpack.c.l.b16 %v2051
      %v2249 = vunpack.c.h.b16 %v2051
      %v2250 = vunpack.c.l.b16 %v2052
      %v2251 = vunpack.c.l.b16 %v2053
      %v2252 = vunpack.c.h.b16 %v2053
      %v2253 = vunpack.c.l.b16 %v2054
      %v2254 = vunpack.c.l.b16 %v2055
      %v2255 = vunpack.c.h.b16 %v2055
      %v2256 = vunpack.c.l.b16 %v2056
      %v2257 = vunpack.c.l.b16 %v2057
      %v2258 = vunpack.c.h.b16 %v2057
      %v2259 = vunpack.c.l.b16 %v2058
      %v2260 = vunpack.c.l.b16 %v2059
      %v2261 = vunpack.c.h.b16 %v2059
      %v2262 = vunpack.c.l.b16 %v2060
      %v2263 = vunpack.c.l.b16 %v2061
      %v2264 = vunpack.c.h.b16 %v2061
      %v2265 = vunpack.c.l.b16 %v2062
      %v2266 = vpack.c.b16 %v2149, %v2146
      %v2267 = vpack.c.b16 %v2150, %v2147
      %v2268 = vpack.c.b16 %v2151, %v2148
      %v2269 = vpack.c.b16 %v2155, %v2152
      %v2270 = vpack.c.b16 %v2156, %v2153
      %v2271 = vpack.c.b16 %v2157, %v2154
      %v2272 = vpack.c.b16 %v2161, %v2158
      %v2273 = vpack.c.b16 %v2162, %v2159
      %v2274 = vpack.c.b16 %v2163, %v2160
      %v2275 = vpack.c.b16 %v2167, %v2164
      %v2276 = vpack.c.b16 %v2168, %v2165
      %v2277 = vpack.c.b16 %v2169, %v2166
      %v2278 = vpack.c.b16 %v2173, %v2170
      %v2279 = vpack.c.b16 %v2174, %v2171
      %v2280 = vpack.c.b16 %v2175, %v2172
      %v2281 = vpack.c.b16 %v2179, %v2176
      %v2282 = vpack.c.b16 %v2180, %v2177
      %v2283 = vpack.c.b16 %v2181, %v2178
      %v2284 = vpack.c.b16 %v2185, %v2182
      %v2285 = vpack.c.b16 %v2186, %v2183
      %v2286 = vpack.c.b16 %v2187, %v2184
      %v2287 = vpack.c.b16 %v2191, %v2188
      %v2288 = vpack.c.b16 %v2192, %v2189
      %v2289 = vpack.c.b16 %v2193, %v2190
      %v2290 = vpack.c.b16 %v2197, %v2194
      %v2291 = vpack.c.b16 %v2198, %v2195
      %v2292 = vpack.c.b16 %v2199, %v2196
      %v2293 = vpack.c.b16 %v2203, %v2200
      %v2294 = vpack.c.b16 %v2204, %v2201
      %v2295 = vpack.c.b16 %v2205, %v2202
      %v2296 = vpack.c.b16 %v2209, %v2206
      %v2297 = vpack.c.b16 %v2210, %v2207
      %v2298 = vpack.c.b16 %v2211, %v2208
      %v2299 = vpack.c.b16 %v2215, %v2212
      %v2300 = vpack.c.b16 %v2216, %v2213
      %v2301 = vpack.c.b16 %v2217, %v2214
      %v2302 = vpack.c.b16 %v2221, %v2218
      %v2303 = vpack.c.b16 %v2222, %v2219
      %v2304 = vpack.c.b16 %v2223, %v2220
      %v2305 = vpack.c.b16 %v2227, %v2224
      %v2306 = vpack.c.b16 %v2228, %v2225
      %v2307 = vpack.c.b16 %v2229, %v2226
      %v2308 = vpack.c.b16 %v2233, %v2230
      %v2309 = vpack.c.b16 %v2234, %v2231
      %v2310 = vpack.c.b16 %v2235, %v2232
      %v2311 = vpack.c.b16 %v2239, %v2236
      %v2312 = vpack.c.b16 %v2240, %v2237
      %v2313 = vpack.c.b16 %v2241, %v2238
      %v2314 = vpack.c.b16 %v2245, %v2242
      %v2315 = vpack.c.b16 %v2246, %v2243
      %v2316 = vpack.c.b16 %v2247, %v2244
      %v2317 = vpack.c.b16 %v2251, %v2248
      %v2318 = vpack.c.b16 %v2252, %v2249
      %v2319 = vpack.c.b16 %v2253, %v2250
      %v2320 = vpack.c.b16 %v2257, %v2254
      %v2321 = vpack.c.b16 %v2258, %v2255
      %v2322 = vpack.c.b16 %v2259, %v2256
      %v2323 = vpack.c.b16 %v2263, %v2260
      %v2324 = vpack.c.b16 %v2264, %v2261
      %v2325 = vpack.c.b16 %v2265, %v2262
      %vm2386 = vcmask 523264
      %v2388 = vsel %vm2386, %v2065, 0
      %2390 = vmatprep.subr.bf16.mxu0 %v2288
      %2391 = vmatpush1.bf16.msra.mxu0 %v2287
      %2392 = vmatprep.subr.bf16.mxu0 %v2285
      %2393 = vmatpush1.bf16.msra.mxu0 %v2284
      %2394 = vmatprep.subr.bf16.mxu0 %v2282
      %2395 = vmatpush1.bf16.msra.mxu0 %v2281
      %2396 = vmatprep.subr.bf16.mxu0 %v2279
      %2397 = vmatpush1.bf16.msra.mxu0 %v2278
      %2398 = vmatprep.subr.bf16.mxu0 %v2276
      %2399 = vmatpush1.bf16.msra.mxu0 %v2275
      %2400 = vmatprep.subr.bf16.mxu0 %v2273
      %2401 = vmatpush1.bf16.msra.mxu0 %v2272
      %2402 = vmatprep.subr.bf16.mxu0 %v2270
      %2403 = vmatpush1.bf16.msra.mxu0 %v2269
      %2404 = vmatprep.subr.bf16.mxu0 %v2267
      %2405 = vmatpush1.bf16.msra.mxu0 %v2266
      %2406 = vmatprep.subr.bf16.mxu0 %v2312
      %2407 = vmatpush2.bf16.msra.mxu0 %v2311
      %2408 = vmatprep.subr.bf16.mxu0 %v2309
      %2409 = vmatpush2.bf16.msra.mxu0 %v2308
      %2410 = vmatprep.subr.bf16.mxu0 %v2306
      %2411 = vmatpush2.bf16.msra.mxu0 %v2305
      %2412 = vmatprep.subr.bf16.mxu0 %v2303
      %2413 = vmatpush2.bf16.msra.mxu0 %v2302
      %2414 = vmatprep.subr.bf16.mxu0 %v2300
      %2415 = vmatpush2.bf16.msra.mxu0 %v2299
      %2416 = vmatprep.subr.bf16.mxu0 %v2297
      %2417 = vmatpush2.bf16.msra.mxu0 %v2296
      %2418 = vmatprep.subr.bf16.mxu0 %v2294
      %2419 = vmatpush2.bf16.msra.mxu0 %v2293
      %2420 = vmatprep.subr.bf16.mxu0 %v2291
      %2421 = vmatpush2.bf16.msra.mxu0 %v2290
      %2422 = vmatprep.mubr.bf16.mxu0 %v2064
      %2423 = vmatmul.mubr.bf16.gmra.mxu0 %v2063
      %v2424 = vpop.f32.mrf.mxu0
      %v2425 = vadd.f32 0.0, %v2424
      %v2426 = vpop.f32.mrf.mxu0
      %v2427 = vadd.f32 0.0, %v2426
      %v2428 = vpop.f32.mrf.mxu0
      %v2429 = vpop.f32.mrf.mxu0
      %2430 = vdwg.mxu0
      %2431 = vmatprep.subr.bf16.mxu0 0
      %2432 = vmatpush1.bf16.msra.mxu0 0
      %2433 = vmatprep.subr.bf16.mxu0 0
      %2434 = vmatpush1.bf16.msra.mxu0 0
      %2435 = vmatprep.subr.bf16.mxu0 0
      %2436 = vmatpush1.bf16.msra.mxu0 0
      %2437 = vmatprep.subr.bf16.mxu0 0
      %2438 = vmatpush1.bf16.msra.mxu0 0
      %2439 = vmatprep.subr.bf16.mxu0 %v2324
      %2440 = vmatpush1.bf16.msra.mxu0 %v2323
      %2441 = vmatprep.subr.bf16.mxu0 %v2321
      %2442 = vmatpush1.bf16.msra.mxu0 %v2320
      %2443 = vmatprep.subr.bf16.mxu0 %v2318
      %2444 = vmatpush1.bf16.msra.mxu0 %v2317
      %2445 = vmatprep.subr.bf16.mxu0 %v2315
      %2446 = vmatpush1.bf16.msra.mxu0 %v2314
      %2447 = vmatprep.subr.bf16.mxu0 0
      %2448 = vmatpush2.bf16.msra.mxu0 0
      %2449 = vmatprep.subr.bf16.mxu0 0
      %2450 = vmatpush2.bf16.msra.mxu0 0
      %2451 = vmatprep.subr.bf16.mxu0 0
      %2452 = vmatpush2.bf16.msra.mxu0 0
      %2453 = vmatprep.subr.bf16.mxu0 0
      %2454 = vmatpush2.bf16.msra.mxu0 0
      %2455 = vmatprep.subr.bf16.mxu0 0
      %2456 = vmatpush2.bf16.msra.mxu0 0
      %2457 = vmatprep.subr.bf16.mxu0 0
      %2458 = vmatpush2.bf16.msra.mxu0 0
      %2459 = vmatprep.subr.bf16.mxu0 0
      %2460 = vmatpush2.bf16.msra.mxu0 0
      %2461 = vmatprep.subr.bf16.mxu0 0
      %2462 = vmatpush2.bf16.msra.mxu0 0
      %2463 = vmatprep.mubr.bf16.mxu0 0
      %2464 = vmatmul.mubr.bf16.gmra.mxu0 %v2388
      %v2465 = vpop.f32.mrf.mxu0
      %v2466 = vadd.f32 %v2425, %v2465
      %v2467 = vpop.f32.mrf.mxu0
      %v2468 = vadd.f32 %v2427, %v2467
      %v2469 = vpop.f32.mrf.mxu0
      %v2470 = vpop.f32.mrf.mxu0
      %2471 = vdwg.mxu0
      %2472 = vmatprep.subr.bf16.mxu0 0
      %2473 = vmatpush1.bf16.msra.mxu0 %v2289
      %2474 = vmatprep.subr.bf16.mxu0 0
      %2475 = vmatpush1.bf16.msra.mxu0 %v2286
      %2476 = vmatprep.subr.bf16.mxu0 0
      %2477 = vmatpush1.bf16.msra.mxu0 %v2283
      %2478 = vmatprep.subr.bf16.mxu0 0
      %2479 = vmatpush1.bf16.msra.mxu0 %v2280
      %2480 = vmatprep.subr.bf16.mxu0 0
      %2481 = vmatpush1.bf16.msra.mxu0 %v2277
      %2482 = vmatprep.subr.bf16.mxu0 0
      %2483 = vmatpush1.bf16.msra.mxu0 %v2274
      %2484 = vmatprep.subr.bf16.mxu0 0
      %2485 = vmatpush1.bf16.msra.mxu0 %v2271
      %2486 = vmatprep.subr.bf16.mxu0 0
      %2487 = vmatpush1.bf16.msra.mxu0 %v2268
      %2488 = vmatprep.subr.bf16.mxu0 0
      %2489 = vmatpush2.bf16.msra.mxu0 %v2313
      %2490 = vmatprep.subr.bf16.mxu0 0
      %2491 = vmatpush2.bf16.msra.mxu0 %v2310
      %2492 = vmatprep.subr.bf16.mxu0 0
      %2493 = vmatpush2.bf16.msra.mxu0 %v2307
      %2494 = vmatprep.subr.bf16.mxu0 0
      %2495 = vmatpush2.bf16.msra.mxu0 %v2304
      %2496 = vmatprep.subr.bf16.mxu0 0
      %2497 = vmatpush2.bf16.msra.mxu0 %v2301
      %2498 = vmatprep.subr.bf16.mxu0 0
      %2499 = vmatpush2.bf16.msra.mxu0 %v2298
      %2500 = vmatprep.subr.bf16.mxu0 0
      %2501 = vmatpush2.bf16.msra.mxu0 %v2295
      %2502 = vmatprep.subr.bf16.mxu0 0
      %2503 = vmatpush2.bf16.msra.mxu0 %v2292
      %2504 = vmatprep.mubr.bf16.mxu0 %v2064
      %2505 = vmatmul.mubr.bf16.gmra.mxu0 %v2063
      %v2506 = vpop.f32.mrf.mxu0
      %v2507 = vadd.f32 0.0, %v2506
      %v2508 = vpop.f32.mrf.mxu0
      %v2509 = vpop.f32.mrf.mxu0
      %v2510 = vpop.f32.mrf.mxu0
      %2511 = vdwg.mxu0
      %2512 = vmatprep.subr.bf16.mxu0 0
      %2513 = vmatpush1.bf16.msra.mxu0 0
      %2514 = vmatprep.subr.bf16.mxu0 0
      %2515 = vmatpush1.bf16.msra.mxu0 0
      %2516 = vmatprep.subr.bf16.mxu0 0
      %2517 = vmatpush1.bf16.msra.mxu0 0
      %2518 = vmatprep.subr.bf16.mxu0 0
      %2519 = vmatpush1.bf16.msra.mxu0 0
      %2520 = vmatprep.subr.bf16.mxu0 0
      %2521 = vmatpush1.bf16.msra.mxu0 %v2325
      %2522 = vmatprep.subr.bf16.mxu0 0
      %2523 = vmatpush1.bf16.msra.mxu0 %v2322
      %2524 = vmatprep.subr.bf16.mxu0 0
      %2525 = vmatpush1.bf16.msra.mxu0 %v2319
      %2526 = vmatprep.subr.bf16.mxu0 0
      %2527 = vmatpush1.bf16.msra.mxu0 %v2316
      %2528 = vmatprep.subr.bf16.mxu0 0
      %2529 = vmatpush2.bf16.msra.mxu0 0
      %2530 = vmatprep.subr.bf16.mxu0 0
      %2531 = vmatpush2.bf16.msra.mxu0 0
      %2532 = vmatprep.subr.bf16.mxu0 0
      %2533 = vmatpush2.bf16.msra.mxu0 0
      %2534 = vmatprep.subr.bf16.mxu0 0
      %2535 = vmatpush2.bf16.msra.mxu0 0
      %2536 = vmatprep.subr.bf16.mxu0 0
      %2537 = vmatpush2.bf16.msra.mxu0 0
      %2538 = vmatprep.subr.bf16.mxu0 0
      %2539 = vmatpush2.bf16.msra.mxu0 0
      %2540 = vmatprep.subr.bf16.mxu0 0
      %2541 = vmatpush2.bf16.msra.mxu0 0
      %2542 = vmatprep.subr.bf16.mxu0 0
      %2543 = vmatpush2.bf16.msra.mxu0 0
      %2544 = vmatprep.mubr.bf16.mxu0 0
      %2545 = vmatmul.mubr.bf16.gmra.mxu0 %v2388
      %v2546 = vpop.f32.mrf.mxu0
      %v2547 = vadd.f32 %v2507, %v2546
      %v2548 = vpop.f32.mrf.mxu0
      %v2549 = vpop.f32.mrf.mxu0
      %v2550 = vpop.f32.mrf.mxu0
      %2551 = vdwg.mxu0
      %v2632 = vunpack.c.l.b16 %v1899
      %v2633 = vunpack.c.h.b16 %v1899
      %v2634 = vunpack.c.l.b16 %v1900
      %v2635 = vunpack.c.l.b16 %v1901
      %v2636 = vunpack.c.h.b16 %v1901
      %v2637 = vunpack.c.l.b16 %v1902
      %v2638 = vunpack.c.l.b16 %v1903
      %v2639 = vunpack.c.h.b16 %v1903
      %v2640 = vunpack.c.l.b16 %v1904
      %v2641 = vunpack.c.l.b16 %v1905
      %v2642 = vunpack.c.h.b16 %v1905
      %v2643 = vunpack.c.l.b16 %v1906
      %v2644 = vunpack.c.l.b16 %v1907
      %v2645 = vunpack.c.h.b16 %v1907
      %v2646 = vunpack.c.l.b16 %v1908
      %v2647 = vunpack.c.l.b16 %v1909
      %v2648 = vunpack.c.h.b16 %v1909
      %v2649 = vunpack.c.l.b16 %v1910
      %v2650 = vunpack.c.l.b16 %v1911
      %v2651 = vunpack.c.h.b16 %v1911
      %v2652 = vunpack.c.l.b16 %v1912
      %v2653 = vunpack.c.l.b16 %v1913
      %v2654 = vunpack.c.h.b16 %v1913
      %v2655 = vunpack.c.l.b16 %v1914
      %v2656 = vunpack.c.l.b16 %v1915
      %v2657 = vunpack.c.h.b16 %v1915
      %v2658 = vunpack.c.l.b16 %v1916
      %v2659 = vunpack.c.l.b16 %v1917
      %v2660 = vunpack.c.h.b16 %v1917
      %v2661 = vunpack.c.l.b16 %v1918
      %v2662 = vunpack.c.l.b16 %v1919
      %v2663 = vunpack.c.h.b16 %v1919
      %v2664 = vunpack.c.l.b16 %v1920
      %v2665 = vunpack.c.l.b16 %v1921
      %v2666 = vunpack.c.h.b16 %v1921
      %v2667 = vunpack.c.l.b16 %v1922
      %v2668 = vunpack.c.l.b16 %v1923
      %v2669 = vunpack.c.h.b16 %v1923
      %v2670 = vunpack.c.l.b16 %v1924
      %v2671 = vunpack.c.l.b16 %v1925
      %v2672 = vunpack.c.h.b16 %v1925
      %v2673 = vunpack.c.l.b16 %v1926
      %v2674 = vunpack.c.l.b16 %v1927
      %v2675 = vunpack.c.h.b16 %v1927
      %v2676 = vunpack.c.l.b16 %v1928
      %v2677 = vunpack.c.l.b16 %v1929
      %v2678 = vunpack.c.h.b16 %v1929
      %v2679 = vunpack.c.l.b16 %v1930
      %v2680 = vunpack.c.l.b16 %v1931
      %v2681 = vunpack.c.h.b16 %v1931
      %v2682 = vunpack.c.l.b16 %v1932
      %v2683 = vunpack.c.l.b16 %v1933
      %v2684 = vunpack.c.h.b16 %v1933
      %v2685 = vunpack.c.l.b16 %v1934
      %v2686 = vunpack.c.l.b16 %v1935
      %v2687 = vunpack.c.h.b16 %v1935
      %v2688 = vunpack.c.l.b16 %v1936
      %v2689 = vunpack.c.l.b16 %v1937
      %v2690 = vunpack.c.h.b16 %v1937
      %v2691 = vunpack.c.l.b16 %v1938
      %v2692 = vunpack.c.l.b16 %v1939
      %v2693 = vunpack.c.h.b16 %v1939
      %v2694 = vunpack.c.l.b16 %v1940
      %v2695 = vunpack.c.l.b16 %v1941
      %v2696 = vunpack.c.h.b16 %v1941
      %v2697 = vunpack.c.l.b16 %v1942
      %v2698 = vunpack.c.l.b16 %v1943
      %v2699 = vunpack.c.h.b16 %v1943
      %v2700 = vunpack.c.l.b16 %v1944
      %v2701 = vunpack.c.l.b16 %v1945
      %v2702 = vunpack.c.h.b16 %v1945
      %v2703 = vunpack.c.l.b16 %v1946
      %v2704 = vunpack.c.l.b16 %v1947
      %v2705 = vunpack.c.h.b16 %v1947
      %v2706 = vunpack.c.l.b16 %v1948
      %v2707 = vunpack.c.l.b16 %v1949
      %v2708 = vunpack.c.h.b16 %v1949
      %v2709 = vunpack.c.l.b16 %v1950
      %v2710 = vunpack.c.l.b16 %v1951
      %v2711 = vunpack.c.h.b16 %v1951
      %v2712 = vunpack.c.l.b16 %v1952
      %v2713 = vunpack.c.l.b16 %v1953
      %v2714 = vunpack.c.h.b16 %v1953
      %v2715 = vunpack.c.l.b16 %v1954
      %v2716 = vunpack.c.l.b16 %v1955
      %v2717 = vunpack.c.h.b16 %v1955
      %v2718 = vunpack.c.l.b16 %v1956
      %v2719 = vunpack.c.l.b16 %v1957
      %v2720 = vunpack.c.h.b16 %v1957
      %v2721 = vunpack.c.l.b16 %v1958
      %v2722 = vunpack.c.l.b16 %v1959
      %v2723 = vunpack.c.h.b16 %v1959
      %v2724 = vunpack.c.l.b16 %v1960
      %v2725 = vunpack.c.l.b16 %v1961
      %v2726 = vunpack.c.h.b16 %v1961
      %v2727 = vunpack.c.l.b16 %v1962
      %v2728 = vunpack.c.l.b16 %v1963
      %v2729 = vunpack.c.h.b16 %v1963
      %v2730 = vunpack.c.l.b16 %v1964
      %v2731 = vunpack.c.l.b16 %v1965
      %v2732 = vunpack.c.h.b16 %v1965
      %v2733 = vunpack.c.l.b16 %v1966
      %v2734 = vunpack.c.l.b16 %v1967
      %v2735 = vunpack.c.h.b16 %v1967
      %v2736 = vunpack.c.l.b16 %v1968
      %v2737 = vunpack.c.l.b16 %v1969
      %v2738 = vunpack.c.h.b16 %v1969
      %v2739 = vunpack.c.l.b16 %v1970
      %v2740 = vunpack.c.l.b16 %v1971
      %v2741 = vunpack.c.h.b16 %v1971
      %v2742 = vunpack.c.l.b16 %v1972
      %v2743 = vunpack.c.l.b16 %v1973
      %v2744 = vunpack.c.h.b16 %v1973
      %v2745 = vunpack.c.l.b16 %v1974
      %v2746 = vunpack.c.l.b16 %v1975
      %v2747 = vunpack.c.h.b16 %v1975
      %v2748 = vunpack.c.l.b16 %v1976
      %v2749 = vunpack.c.l.b16 %v1977
      %v2750 = vunpack.c.h.b16 %v1977
      %v2751 = vunpack.c.l.b16 %v1978
      %v2752 = vpack.c.b16 %v2635, %v2632
      %v2753 = vpack.c.b16 %v2636, %v2633
      %v2754 = vpack.c.b16 %v2637, %v2634
      %v2755 = vpack.c.b16 %v2641, %v2638
      %v2756 = vpack.c.b16 %v2642, %v2639
      %v2757 = vpack.c.b16 %v2643, %v2640
      %v2758 = vpack.c.b16 %v2647, %v2644
      %v2759 = vpack.c.b16 %v2648, %v2645
      %v2760 = vpack.c.b16 %v2649, %v2646
      %v2761 = vpack.c.b16 %v2653, %v2650
      %v2762 = vpack.c.b16 %v2654, %v2651
      %v2763 = vpack.c.b16 %v2655, %v2652
      %v2764 = vpack.c.b16 %v2659, %v2656
      %v2765 = vpack.c.b16 %v2660, %v2657
      %v2766 = vpack.c.b16 %v2661, %v2658
      %v2767 = vpack.c.b16 %v2665, %v2662
      %v2768 = vpack.c.b16 %v2666, %v2663
      %v2769 = vpack.c.b16 %v2667, %v2664
      %v2770 = vpack.c.b16 %v2671, %v2668
      %v2771 = vpack.c.b16 %v2672, %v2669
      %v2772 = vpack.c.b16 %v2673, %v2670
      %v2773 = vpack.c.b16 %v2677, %v2674
      %v2774 = vpack.c.b16 %v2678, %v2675
      %v2775 = vpack.c.b16 %v2679, %v2676
      %v2776 = vpack.c.b16 %v2683, %v2680
      %v2777 = vpack.c.b16 %v2684, %v2681
      %v2778 = vpack.c.b16 %v2685, %v2682
      %v2779 = vpack.c.b16 %v2689, %v2686
      %v2780 = vpack.c.b16 %v2690, %v2687
      %v2781 = vpack.c.b16 %v2691, %v2688
      %v2782 = vpack.c.b16 %v2695, %v2692
      %v2783 = vpack.c.b16 %v2696, %v2693
      %v2784 = vpack.c.b16 %v2697, %v2694
      %v2785 = vpack.c.b16 %v2701, %v2698
      %v2786 = vpack.c.b16 %v2702, %v2699
      %v2787 = vpack.c.b16 %v2703, %v2700
      %v2788 = vpack.c.b16 %v2707, %v2704
      %v2789 = vpack.c.b16 %v2708, %v2705
      %v2790 = vpack.c.b16 %v2709, %v2706
      %v2791 = vpack.c.b16 %v2713, %v2710
      %v2792 = vpack.c.b16 %v2714, %v2711
      %v2793 = vpack.c.b16 %v2715, %v2712
      %v2794 = vpack.c.b16 %v2719, %v2716
      %v2795 = vpack.c.b16 %v2720, %v2717
      %v2796 = vpack.c.b16 %v2721, %v2718
      %v2797 = vpack.c.b16 %v2725, %v2722
      %v2798 = vpack.c.b16 %v2726, %v2723
      %v2799 = vpack.c.b16 %v2727, %v2724
      %v2800 = vpack.c.b16 %v2731, %v2728
      %v2801 = vpack.c.b16 %v2732, %v2729
      %v2802 = vpack.c.b16 %v2733, %v2730
      %v2803 = vpack.c.b16 %v2737, %v2734
      %v2804 = vpack.c.b16 %v2738, %v2735
      %v2805 = vpack.c.b16 %v2739, %v2736
      %v2806 = vpack.c.b16 %v2743, %v2740
      %v2807 = vpack.c.b16 %v2744, %v2741
      %v2808 = vpack.c.b16 %v2745, %v2742
      %v2809 = vpack.c.b16 %v2749, %v2746
      %v2810 = vpack.c.b16 %v2750, %v2747
      %v2811 = vpack.c.b16 %v2751, %v2748
      %v2873 = vsel %vm2386, %v1981, 0
      %2875 = vmatprep.subr.bf16.mxu0 %v2774
      %2876 = vmatpush1.bf16.msra.mxu0 %v2773
      %2877 = vmatprep.subr.bf16.mxu0 %v2771
      %2878 = vmatpush1.bf16.msra.mxu0 %v2770
      %2879 = vmatprep.subr.bf16.mxu0 %v2768
      %2880 = vmatpush1.bf16.msra.mxu0 %v2767
      %2881 = vmatprep.subr.bf16.mxu0 %v2765
      %2882 = vmatpush1.bf16.msra.mxu0 %v2764
      %2883 = vmatprep.subr.bf16.mxu0 %v2762
      %2884 = vmatpush1.bf16.msra.mxu0 %v2761
      %2885 = vmatprep.subr.bf16.mxu0 %v2759
      %2886 = vmatpush1.bf16.msra.mxu0 %v2758
      %2887 = vmatprep.subr.bf16.mxu0 %v2756
      %2888 = vmatpush1.bf16.msra.mxu0 %v2755
      %2889 = vmatprep.subr.bf16.mxu0 %v2753
      %2890 = vmatpush1.bf16.msra.mxu0 %v2752
      %2891 = vmatprep.subr.bf16.mxu0 %v2798
      %2892 = vmatpush2.bf16.msra.mxu0 %v2797
      %2893 = vmatprep.subr.bf16.mxu0 %v2795
      %2894 = vmatpush2.bf16.msra.mxu0 %v2794
      %2895 = vmatprep.subr.bf16.mxu0 %v2792
      %2896 = vmatpush2.bf16.msra.mxu0 %v2791
      %2897 = vmatprep.subr.bf16.mxu0 %v2789
      %2898 = vmatpush2.bf16.msra.mxu0 %v2788
      %2899 = vmatprep.subr.bf16.mxu0 %v2786
      %2900 = vmatpush2.bf16.msra.mxu0 %v2785
      %2901 = vmatprep.subr.bf16.mxu0 %v2783
      %2902 = vmatpush2.bf16.msra.mxu0 %v2782
      %2903 = vmatprep.subr.bf16.mxu0 %v2780
      %2904 = vmatpush2.bf16.msra.mxu0 %v2779
      %2905 = vmatprep.subr.bf16.mxu0 %v2777
      %2906 = vmatpush2.bf16.msra.mxu0 %v2776
      %2907 = vmatprep.mubr.bf16.mxu0 %v1980
      %2908 = vmatmul.mubr.bf16.gmra.mxu0 %v1979
      %v2909 = vpop.f32.mrf.mxu0
      %v2910 = vadd.f32 %v2466, %v2909
      %v2911 = vpop.f32.mrf.mxu0
      %v2912 = vadd.f32 %v2468, %v2911
      %v2913 = vpop.f32.mrf.mxu0
      %v2914 = vpop.f32.mrf.mxu0
      %2915 = vdwg.mxu0
      %2916 = vmatprep.subr.bf16.mxu0 0
      %2917 = vmatpush1.bf16.msra.mxu0 0
      %2918 = vmatprep.subr.bf16.mxu0 0
      %2919 = vmatpush1.bf16.msra.mxu0 0
      %2920 = vmatprep.subr.bf16.mxu0 0
      %2921 = vmatpush1.bf16.msra.mxu0 0
      %2922 = vmatprep.subr.bf16.mxu0 0
      %2923 = vmatpush1.bf16.msra.mxu0 0
      %2924 = vmatprep.subr.bf16.mxu0 %v2810
      %2925 = vmatpush1.bf16.msra.mxu0 %v2809
      %2926 = vmatprep.subr.bf16.mxu0 %v2807
      %2927 = vmatpush1.bf16.msra.mxu0 %v2806
      %2928 = vmatprep.subr.bf16.mxu0 %v2804
      %2929 = vmatpush1.bf16.msra.mxu0 %v2803
      %2930 = vmatprep.subr.bf16.mxu0 %v2801
      %2931 = vmatpush1.bf16.msra.mxu0 %v2800
      %2932 = vmatprep.subr.bf16.mxu0 0
      %2933 = vmatpush2.bf16.msra.mxu0 0
      %2934 = vmatprep.subr.bf16.mxu0 0
      %2935 = vmatpush2.bf16.msra.mxu0 0
      %2936 = vmatprep.subr.bf16.mxu0 0
      %2937 = vmatpush2.bf16.msra.mxu0 0
      %2938 = vmatprep.subr.bf16.mxu0 0
      %2939 = vmatpush2.bf16.msra.mxu0 0
      %2940 = vmatprep.subr.bf16.mxu0 0
      %2941 = vmatpush2.bf16.msra.mxu0 0
      %2942 = vmatprep.subr.bf16.mxu0 0
      %2943 = vmatpush2.bf16.msra.mxu0 0
      %2944 = vmatprep.subr.bf16.mxu0 0
      %2945 = vmatpush2.bf16.msra.mxu0 0
      %2946 = vmatprep.subr.bf16.mxu0 0
      %2947 = vmatpush2.bf16.msra.mxu0 0
      %2948 = vmatprep.mubr.bf16.mxu0 0
      %2949 = vmatmul.mubr.bf16.gmra.mxu0 %v2873
      %v2950 = vpop.f32.mrf.mxu0
      %v2951 = vadd.f32 %v2910, %v2950
      %v2952 = vpop.f32.mrf.mxu0
      %v2953 = vadd.f32 %v2912, %v2952
      %v2954 = vpop.f32.mrf.mxu0
      %v2955 = vpop.f32.mrf.mxu0
      %2956 = vdwg.mxu0
      %2957 = vmatprep.subr.bf16.mxu0 0
      %2958 = vmatpush1.bf16.msra.mxu0 %v2775
      %2959 = vmatprep.subr.bf16.mxu0 0
      %2960 = vmatpush1.bf16.msra.mxu0 %v2772
      %2961 = vmatprep.subr.bf16.mxu0 0
      %2962 = vmatpush1.bf16.msra.mxu0 %v2769
      %2963 = vmatprep.subr.bf16.mxu0 0
      %2964 = vmatpush1.bf16.msra.mxu0 %v2766
      %2965 = vmatprep.subr.bf16.mxu0 0
      %2966 = vmatpush1.bf16.msra.mxu0 %v2763
      %2967 = vmatprep.subr.bf16.mxu0 0
      %2968 = vmatpush1.bf16.msra.mxu0 %v2760
      %2969 = vmatprep.subr.bf16.mxu0 0
      %2970 = vmatpush1.bf16.msra.mxu0 %v2757
      %2971 = vmatprep.subr.bf16.mxu0 0
      %2972 = vmatpush1.bf16.msra.mxu0 %v2754
      %2973 = vmatprep.subr.bf16.mxu0 0
      %2974 = vmatpush2.bf16.msra.mxu0 %v2799
      %2975 = vmatprep.subr.bf16.mxu0 0
      %2976 = vmatpush2.bf16.msra.mxu0 %v2796
      %2977 = vmatprep.subr.bf16.mxu0 0
      %2978 = vmatpush2.bf16.msra.mxu0 %v2793
      %2979 = vmatprep.subr.bf16.mxu0 0
      %2980 = vmatpush2.bf16.msra.mxu0 %v2790
      %2981 = vmatprep.subr.bf16.mxu0 0
      %2982 = vmatpush2.bf16.msra.mxu0 %v2787
      %2983 = vmatprep.subr.bf16.mxu0 0
      %2984 = vmatpush2.bf16.msra.mxu0 %v2784
      %2985 = vmatprep.subr.bf16.mxu0 0
      %2986 = vmatpush2.bf16.msra.mxu0 %v2781
      %2987 = vmatprep.subr.bf16.mxu0 0
      %2988 = vmatpush2.bf16.msra.mxu0 %v2778
      %2989 = vmatprep.mubr.bf16.mxu0 %v1980
      %2990 = vmatmul.mubr.bf16.gmra.mxu0 %v1979
      %v2991 = vpop.f32.mrf.mxu0
      %v2992 = vadd.f32 %v2547, %v2991
      %v2993 = vpop.f32.mrf.mxu0
      %v2994 = vpop.f32.mrf.mxu0
      %v2995 = vpop.f32.mrf.mxu0
      %2996 = vdwg.mxu0
      %2997 = vmatprep.subr.bf16.mxu0 0
      %2998 = vmatpush1.bf16.msra.mxu0 0
      %2999 = vmatprep.subr.bf16.mxu0 0
      %3000 = vmatpush1.bf16.msra.mxu0 0
      %3001 = vmatprep.subr.bf16.mxu0 0
      %3002 = vmatpush1.bf16.msra.mxu0 0
      %3003 = vmatprep.subr.bf16.mxu0 0
      %3004 = vmatpush1.bf16.msra.mxu0 0
      %3005 = vmatprep.subr.bf16.mxu0 0
      %3006 = vmatpush1.bf16.msra.mxu0 %v2811
      %3007 = vmatprep.subr.bf16.mxu0 0
      %3008 = vmatpush1.bf16.msra.mxu0 %v2808
      %3009 = vmatprep.subr.bf16.mxu0 0
      %3010 = vmatpush1.bf16.msra.mxu0 %v2805
      %3011 = vmatprep.subr.bf16.mxu0 0
      %3012 = vmatpush1.bf16.msra.mxu0 %v2802
      %3013 = vmatprep.subr.bf16.mxu0 0
      %3014 = vmatpush2.bf16.msra.mxu0 0
      %3015 = vmatprep.subr.bf16.mxu0 0
      %3016 = vmatpush2.bf16.msra.mxu0 0
      %3017 = vmatprep.subr.bf16.mxu0 0
      %3018 = vmatpush2.bf16.msra.mxu0 0
      %3019 = vmatprep.subr.bf16.mxu0 0
      %3020 = vmatpush2.bf16.msra.mxu0 0
      %3021 = vmatprep.subr.bf16.mxu0 0
      %3022 = vmatpush2.bf16.msra.mxu0 0
      %3023 = vmatprep.subr.bf16.mxu0 0
      %3024 = vmatpush2.bf16.msra.mxu0 0
      %3025 = vmatprep.subr.bf16.mxu0 0
      %3026 = vmatpush2.bf16.msra.mxu0 0
      %3027 = vmatprep.subr.bf16.mxu0 0
      %3028 = vmatpush2.bf16.msra.mxu0 0
      %3029 = vmatprep.mubr.bf16.mxu0 0
      %3030 = vmatmul.mubr.bf16.gmra.mxu0 %v2873
      %v3031 = vpop.f32.mrf.mxu0
      %v3032 = vadd.f32 %v2992, %v3031
      %v3033 = vpop.f32.mrf.mxu0
      %v3034 = vpop.f32.mrf.mxu0
      %v3035 = vpop.f32.mrf.mxu0
      %3036 = vdwg.mxu0
      %s3037 = scalar_lea.vmem %s4, 960
      %v3038 = vld [vmem:[%s3037] sm:$0xff]
      %v3039 = vld [vmem:[%s3037 + $0x8] sm:$0xf]
      %v3040 = vld [vmem:[%s3037 + $0xc] sm:$0xff]
      %v3041 = vld [vmem:[%s3037 + $0x14] sm:$0xf]
      %v3042 = vld [vmem:[%s3037 + $0x18] sm:$0xff]
      %v3043 = vld [vmem:[%s3037 + $0x20] sm:$0xf]
      %v3044 = vld [vmem:[%s3037 + $0x24] sm:$0xff]
      %v3045 = vld [vmem:[%s3037 + $0x2c] sm:$0xf]
      %v3046 = vld [vmem:[%s3037 + $0x30] sm:$0xff]
      %v3047 = vld [vmem:[%s3037 + $0x38] sm:$0xf]
      %v3048 = vld [vmem:[%s3037 + $0x3c] sm:$0xff]
      %v3049 = vld [vmem:[%s3037 + $0x44] sm:$0xf]
      %v3050 = vld [vmem:[%s3037 + $0x48] sm:$0xff]
      %v3051 = vld [vmem:[%s3037 + $0x50] sm:$0xf]
      %v3052 = vld [vmem:[%s3037 + $0x54] sm:$0xff]
      %v3053 = vld [vmem:[%s3037 + $0x5c] sm:$0xf]
      %v3054 = vld [vmem:[%s3037 + $0x60] sm:$0xff]
      %v3055 = vld [vmem:[%s3037 + $0x68] sm:$0xf]
      %v3056 = vld [vmem:[%s3037 + $0x6c] sm:$0xff]
      %v3057 = vld [vmem:[%s3037 + $0x74] sm:$0xf]
      %v3058 = vld [vmem:[%s3037 + $0x78] sm:$0xff]
      %v3059 = vld [vmem:[%s3037 + $0x80] sm:$0xf]
      %v3060 = vld [vmem:[%s3037 + $0x84] sm:$0xff]
      %v3061 = vld [vmem:[%s3037 + $0x8c] sm:$0xf]
      %v3062 = vld [vmem:[%s3037 + $0x90] sm:$0xff]
      %v3063 = vld [vmem:[%s3037 + $0x98] sm:$0xf]
      %v3064 = vld [vmem:[%s3037 + $0x9c] sm:$0xff]
      %v3065 = vld [vmem:[%s3037 + $0xa4] sm:$0xf]
      %v3066 = vld [vmem:[%s3037 + $0xa8] sm:$0xff]
      %v3067 = vld [vmem:[%s3037 + $0xb0] sm:$0xf]
      %v3068 = vld [vmem:[%s3037 + $0xb4] sm:$0xff]
      %v3069 = vld [vmem:[%s3037 + $0xbc] sm:$0xf]
      %v3070 = vld [vmem:[%s3037 + $0xc0] sm:$0xff]
      %v3071 = vld [vmem:[%s3037 + $0xc8] sm:$0xf]
      %v3072 = vld [vmem:[%s3037 + $0xcc] sm:$0xff]
      %v3073 = vld [vmem:[%s3037 + $0xd4] sm:$0xf]
      %v3074 = vld [vmem:[%s3037 + $0xd8] sm:$0xff]
      %v3075 = vld [vmem:[%s3037 + $0xe0] sm:$0xf]
      %v3076 = vld [vmem:[%s3037 + $0xe4] sm:$0xff]
      %v3077 = vld [vmem:[%s3037 + $0xec] sm:$0xf]
      %v3078 = vld [vmem:[%s3037 + $0xf0] sm:$0xff]
      %v3079 = vld [vmem:[%s3037 + $0xf8] sm:$0xf]
      %v3080 = vld [vmem:[%s3037 + $0xfc] sm:$0xff]
      %v3081 = vld [vmem:[%s3037 + $0x104] sm:$0xf]
      %v3082 = vld [vmem:[%s3037 + $0x108] sm:$0xff]
      %v3083 = vld [vmem:[%s3037 + $0x110] sm:$0xf]
      %v3084 = vld [vmem:[%s3037 + $0x114] sm:$0xff]
      %v3085 = vld [vmem:[%s3037 + $0x11c] sm:$0xf]
      %v3086 = vld [vmem:[%s3037 + $0x120] sm:$0xff]
      %v3087 = vld [vmem:[%s3037 + $0x128] sm:$0xf]
      %v3088 = vld [vmem:[%s3037 + $0x12c] sm:$0xff]
      %v3089 = vld [vmem:[%s3037 + $0x134] sm:$0xf]
      %v3090 = vld [vmem:[%s3037 + $0x138] sm:$0xff]
      %v3091 = vld [vmem:[%s3037 + $0x140] sm:$0xf]
      %v3092 = vld [vmem:[%s3037 + $0x144] sm:$0xff]
      %v3093 = vld [vmem:[%s3037 + $0x14c] sm:$0xf]
      %v3094 = vld [vmem:[%s3037 + $0x150] sm:$0xff]
      %v3095 = vld [vmem:[%s3037 + $0x158] sm:$0xf]
      %v3096 = vld [vmem:[%s3037 + $0x15c] sm:$0xff]
      %v3097 = vld [vmem:[%s3037 + $0x164] sm:$0xf]
      %v3098 = vld [vmem:[%s3037 + $0x168] sm:$0xff]
      %v3099 = vld [vmem:[%s3037 + $0x170] sm:$0xf]
      %v3100 = vld [vmem:[%s3037 + $0x174] sm:$0xff]
      %v3101 = vld [vmem:[%s3037 + $0x17c] sm:$0xf]
      %v3102 = vld [vmem:[%s3037 + $0x180] sm:$0xff]
      %v3103 = vld [vmem:[%s3037 + $0x188] sm:$0xf]
      %v3104 = vld [vmem:[%s3037 + $0x18c] sm:$0xff]
      %v3105 = vld [vmem:[%s3037 + $0x194] sm:$0xf]
      %v3106 = vld [vmem:[%s3037 + $0x198] sm:$0xff]
      %v3107 = vld [vmem:[%s3037 + $0x1a0] sm:$0xf]
      %v3108 = vld [vmem:[%s3037 + $0x1a4] sm:$0xff]
      %v3109 = vld [vmem:[%s3037 + $0x1ac] sm:$0xf]
      %v3110 = vld [vmem:[%s3037 + $0x1b0] sm:$0xff]
      %v3111 = vld [vmem:[%s3037 + $0x1b8] sm:$0xf]
      %v3112 = vld [vmem:[%s3037 + $0x1bc] sm:$0xff]
      %v3113 = vld [vmem:[%s3037 + $0x1c4] sm:$0xf]
      %v3114 = vld [vmem:[%s3037 + $0x1c8] sm:$0xff]
      %v3115 = vld [vmem:[%s3037 + $0x1d0] sm:$0xf]
      %v3116 = vld [vmem:[%s3037 + $0x1d4] sm:$0xff]
      %v3117 = vld [vmem:[%s3037 + $0x1dc] sm:$0xf]
      %v3119 = vshrl.u32 %v1979, 16
      %v3121 = vshll.u32 %v1979, 16
      %v3123 = vrot.slane %v3121, 1
      %v3124 = vor.u32 %v3119, %v3123
      %v3126 = vshrl.u32 %v1980, 16
      %v3128 = vshll.u32 %v1980, 16
      %v3130 = vrot.slane %v3128, 1
      %v3131 = vor.u32 %v3126, %v3130
      %v3132 = vshrl.u32 %v1981, 16
      %v3134 = vshll.u32 %v1981, 16
      %v3136 = vrot.slane %v3134, 1
      %v3137 = vor.u32 %v3132, %v3136
      %v3220 = vunpack.c.l.b16 %v3038
      %v3221 = vunpack.c.h.b16 %v3038
      %v3222 = vunpack.c.l.b16 %v3039
      %v3223 = vunpack.c.l.b16 %v3040
      %v3224 = vunpack.c.h.b16 %v3040
      %v3225 = vunpack.c.l.b16 %v3041
      %v3226 = vunpack.c.l.b16 %v3042
      %v3227 = vunpack.c.h.b16 %v3042
      %v3228 = vunpack.c.l.b16 %v3043
      %v3229 = vunpack.c.l.b16 %v3044
      %v3230 = vunpack.c.h.b16 %v3044
      %v3231 = vunpack.c.l.b16 %v3045
      %v3232 = vunpack.c.l.b16 %v3046
      %v3233 = vunpack.c.h.b16 %v3046
      %v3234 = vunpack.c.l.b16 %v3047
      %v3235 = vunpack.c.l.b16 %v3048
      %v3236 = vunpack.c.h.b16 %v3048
      %v3237 = vunpack.c.l.b16 %v3049
      %v3238 = vunpack.c.l.b16 %v3050
      %v3239 = vunpack.c.h.b16 %v3050
      %v3240 = vunpack.c.l.b16 %v3051
      %v3241 = vunpack.c.l.b16 %v3052
      %v3242 = vunpack.c.h.b16 %v3052
      %v3243 = vunpack.c.l.b16 %v3053
      %v3244 = vunpack.c.l.b16 %v3054
      %v3245 = vunpack.c.h.b16 %v3054
      %v3246 = vunpack.c.l.b16 %v3055
      %v3247 = vunpack.c.l.b16 %v3056
      %v3248 = vunpack.c.h.b16 %v3056
      %v3249 = vunpack.c.l.b16 %v3057
      %v3250 = vunpack.c.l.b16 %v3058
      %v3251 = vunpack.c.h.b16 %v3058
      %v3252 = vunpack.c.l.b16 %v3059
      %v3253 = vunpack.c.l.b16 %v3060
      %v3254 = vunpack.c.h.b16 %v3060
      %v3255 = vunpack.c.l.b16 %v3061
      %v3256 = vunpack.c.l.b16 %v3062
      %v3257 = vunpack.c.h.b16 %v3062
      %v3258 = vunpack.c.l.b16 %v3063
      %v3259 = vunpack.c.l.b16 %v3064
      %v3260 = vunpack.c.h.b16 %v3064
      %v3261 = vunpack.c.l.b16 %v3065
      %v3262 = vunpack.c.l.b16 %v3066
      %v3263 = vunpack.c.h.b16 %v3066
      %v3264 = vunpack.c.l.b16 %v3067
      %v3265 = vunpack.c.l.b16 %v3068
      %v3266 = vunpack.c.h.b16 %v3068
      %v3267 = vunpack.c.l.b16 %v3069
      %v3268 = vunpack.c.l.b16 %v3070
      %v3269 = vunpack.c.h.b16 %v3070
      %v3270 = vunpack.c.l.b16 %v3071
      %v3271 = vunpack.c.l.b16 %v3072
      %v3272 = vunpack.c.h.b16 %v3072
      %v3273 = vunpack.c.l.b16 %v3073
      %v3274 = vunpack.c.l.b16 %v3074
      %v3275 = vunpack.c.h.b16 %v3074
      %v3276 = vunpack.c.l.b16 %v3075
      %v3277 = vunpack.c.l.b16 %v3076
      %v3278 = vunpack.c.h.b16 %v3076
      %v3279 = vunpack.c.l.b16 %v3077
      %v3280 = vunpack.c.l.b16 %v3078
      %v3281 = vunpack.c.h.b16 %v3078
      %v3282 = vunpack.c.l.b16 %v3079
      %v3283 = vunpack.c.l.b16 %v3080
      %v3284 = vunpack.c.h.b16 %v3080
      %v3285 = vunpack.c.l.b16 %v3081
      %v3286 = vunpack.c.l.b16 %v3082
      %v3287 = vunpack.c.h.b16 %v3082
      %v3288 = vunpack.c.l.b16 %v3083
      %v3289 = vunpack.c.l.b16 %v3084
      %v3290 = vunpack.c.h.b16 %v3084
      %v3291 = vunpack.c.l.b16 %v3085
      %v3292 = vunpack.c.l.b16 %v3086
      %v3293 = vunpack.c.h.b16 %v3086
      %v3294 = vunpack.c.l.b16 %v3087
      %v3295 = vunpack.c.l.b16 %v3088
      %v3296 = vunpack.c.h.b16 %v3088
      %v3297 = vunpack.c.l.b16 %v3089
      %v3298 = vunpack.c.l.b16 %v3090
      %v3299 = vunpack.c.h.b16 %v3090
      %v3300 = vunpack.c.l.b16 %v3091
      %v3301 = vunpack.c.l.b16 %v3092
      %v3302 = vunpack.c.h.b16 %v3092
      %v3303 = vunpack.c.l.b16 %v3093
      %v3304 = vunpack.c.l.b16 %v3094
      %v3305 = vunpack.c.h.b16 %v3094
      %v3306 = vunpack.c.l.b16 %v3095
      %v3307 = vunpack.c.l.b16 %v3096
      %v3308 = vunpack.c.h.b16 %v3096
      %v3309 = vunpack.c.l.b16 %v3097
      %v3310 = vunpack.c.l.b16 %v3098
      %v3311 = vunpack.c.h.b16 %v3098
      %v3312 = vunpack.c.l.b16 %v3099
      %v3313 = vunpack.c.l.b16 %v3100
      %v3314 = vunpack.c.h.b16 %v3100
      %v3315 = vunpack.c.l.b16 %v3101
      %v3316 = vunpack.c.l.b16 %v3102
      %v3317 = vunpack.c.h.b16 %v3102
      %v3318 = vunpack.c.l.b16 %v3103
      %v3319 = vunpack.c.l.b16 %v3104
      %v3320 = vunpack.c.h.b16 %v3104
      %v3321 = vunpack.c.l.b16 %v3105
      %v3322 = vunpack.c.l.b16 %v3106
      %v3323 = vunpack.c.h.b16 %v3106
      %v3324 = vunpack.c.l.b16 %v3107
      %v3325 = vunpack.c.l.b16 %v3108
      %v3326 = vunpack.c.h.b16 %v3108
      %v3327 = vunpack.c.l.b16 %v3109
      %v3328 = vunpack.c.l.b16 %v3110
      %v3329 = vunpack.c.h.b16 %v3110
      %v3330 = vunpack.c.l.b16 %v3111
      %v3331 = vunpack.c.l.b16 %v3112
      %v3332 = vunpack.c.h.b16 %v3112
      %v3333 = vunpack.c.l.b16 %v3113
      %v3334 = vunpack.c.l.b16 %v3114
      %v3335 = vunpack.c.h.b16 %v3114
      %v3336 = vunpack.c.l.b16 %v3115
      %v3337 = vunpack.c.l.b16 %v3116
      %v3338 = vunpack.c.h.b16 %v3116
      %v3339 = vunpack.c.l.b16 %v3117
      %v3340 = vpack.c.b16 %v3223, %v3220
      %v3341 = vpack.c.b16 %v3224, %v3221
      %v3342 = vpack.c.b16 %v3225, %v3222
      %v3343 = vpack.c.b16 %v3229, %v3226
      %v3344 = vpack.c.b16 %v3230, %v3227
      %v3345 = vpack.c.b16 %v3231, %v3228
      %v3346 = vpack.c.b16 %v3235, %v3232
      %v3347 = vpack.c.b16 %v3236, %v3233
      %v3348 = vpack.c.b16 %v3237, %v3234
      %v3349 = vpack.c.b16 %v3241, %v3238
      %v3350 = vpack.c.b16 %v3242, %v3239
      %v3351 = vpack.c.b16 %v3243, %v3240
      %v3352 = vpack.c.b16 %v3247, %v3244
      %v3353 = vpack.c.b16 %v3248, %v3245
      %v3354 = vpack.c.b16 %v3249, %v3246
      %v3355 = vpack.c.b16 %v3253, %v3250
      %v3356 = vpack.c.b16 %v3254, %v3251
      %v3357 = vpack.c.b16 %v3255, %v3252
      %v3358 = vpack.c.b16 %v3259, %v3256
      %v3359 = vpack.c.b16 %v3260, %v3257
      %v3360 = vpack.c.b16 %v3261, %v3258
      %v3361 = vpack.c.b16 %v3265, %v3262
      %v3362 = vpack.c.b16 %v3266, %v3263
      %v3363 = vpack.c.b16 %v3267, %v3264
      %v3364 = vpack.c.b16 %v3271, %v3268
      %v3365 = vpack.c.b16 %v3272, %v3269
      %v3366 = vpack.c.b16 %v3273, %v3270
      %v3367 = vpack.c.b16 %v3277, %v3274
      %v3368 = vpack.c.b16 %v3278, %v3275
      %v3369 = vpack.c.b16 %v3279, %v3276
      %v3370 = vpack.c.b16 %v3283, %v3280
      %v3371 = vpack.c.b16 %v3284, %v3281
      %v3372 = vpack.c.b16 %v3285, %v3282
      %v3373 = vpack.c.b16 %v3289, %v3286
      %v3374 = vpack.c.b16 %v3290, %v3287
      %v3375 = vpack.c.b16 %v3291, %v3288
      %v3376 = vpack.c.b16 %v3295, %v3292
      %v3377 = vpack.c.b16 %v3296, %v3293
      %v3378 = vpack.c.b16 %v3297, %v3294
      %v3379 = vpack.c.b16 %v3301, %v3298
      %v3380 = vpack.c.b16 %v3302, %v3299
      %v3381 = vpack.c.b16 %v3303, %v3300
      %v3382 = vpack.c.b16 %v3307, %v3304
      %v3383 = vpack.c.b16 %v3308, %v3305
      %v3384 = vpack.c.b16 %v3309, %v3306
      %v3385 = vpack.c.b16 %v3313, %v3310
      %v3386 = vpack.c.b16 %v3314, %v3311
      %v3387 = vpack.c.b16 %v3315, %v3312
      %v3388 = vpack.c.b16 %v3319, %v3316
      %v3389 = vpack.c.b16 %v3320, %v3317
      %v3390 = vpack.c.b16 %v3321, %v3318
      %v3391 = vpack.c.b16 %v3325, %v3322
      %v3392 = vpack.c.b16 %v3326, %v3323
      %v3393 = vpack.c.b16 %v3327, %v3324
      %v3394 = vpack.c.b16 %v3331, %v3328
      %v3395 = vpack.c.b16 %v3332, %v3329
      %v3396 = vpack.c.b16 %v3333, %v3330
      %v3397 = vpack.c.b16 %v3337, %v3334
      %v3398 = vpack.c.b16 %v3338, %v3335
      %v3399 = vpack.c.b16 %v3339, %v3336
      %v3461 = vsel %vm2386, %v3137, 0
      %3463 = vmatprep.subr.bf16.mxu0 %v3362
      %3464 = vmatpush1.bf16.msra.mxu0 %v3361
      %3465 = vmatprep.subr.bf16.mxu0 %v3359
      %3466 = vmatpush1.bf16.msra.mxu0 %v3358
      %3467 = vmatprep.subr.bf16.mxu0 %v3356
      %3468 = vmatpush1.bf16.msra.mxu0 %v3355
      %3469 = vmatprep.subr.bf16.mxu0 %v3353
      %3470 = vmatpush1.bf16.msra.mxu0 %v3352
      %3471 = vmatprep.subr.bf16.mxu0 %v3350
      %3472 = vmatpush1.bf16.msra.mxu0 %v3349
      %3473 = vmatprep.subr.bf16.mxu0 %v3347
      %3474 = vmatpush1.bf16.msra.mxu0 %v3346
      %3475 = vmatprep.subr.bf16.mxu0 %v3344
      %3476 = vmatpush1.bf16.msra.mxu0 %v3343
      %3477 = vmatprep.subr.bf16.mxu0 %v3341
      %3478 = vmatpush1.bf16.msra.mxu0 %v3340
      %3479 = vmatprep.subr.bf16.mxu0 %v3386
      %3480 = vmatpush2.bf16.msra.mxu0 %v3385
      %3481 = vmatprep.subr.bf16.mxu0 %v3383
      %3482 = vmatpush2.bf16.msra.mxu0 %v3382
      %3483 = vmatprep.subr.bf16.mxu0 %v3380
      %3484 = vmatpush2.bf16.msra.mxu0 %v3379
      %3485 = vmatprep.subr.bf16.mxu0 %v3377
      %3486 = vmatpush2.bf16.msra.mxu0 %v3376
      %3487 = vmatprep.subr.bf16.mxu0 %v3374
      %3488 = vmatpush2.bf16.msra.mxu0 %v3373
      %3489 = vmatprep.subr.bf16.mxu0 %v3371
      %3490 = vmatpush2.bf16.msra.mxu0 %v3370
      %3491 = vmatprep.subr.bf16.mxu0 %v3368
      %3492 = vmatpush2.bf16.msra.mxu0 %v3367
      %3493 = vmatprep.subr.bf16.mxu0 %v3365
      %3494 = vmatpush2.bf16.msra.mxu0 %v3364
      %3495 = vmatprep.mubr.bf16.mxu0 %v3131
      %3496 = vmatmul.mubr.bf16.gmra.mxu0 %v3124
      %v3497 = vpop.f32.mrf.mxu0
      %v3498 = vadd.f32 0.0, %v3497
      %v3499 = vpop.f32.mrf.mxu0
      %v3500 = vadd.f32 0.0, %v3499
      %v3501 = vpop.f32.mrf.mxu0
      %v3502 = vpop.f32.mrf.mxu0
      %3503 = vdwg.mxu0
      %3504 = vmatprep.subr.bf16.mxu0 0
      %3505 = vmatpush1.bf16.msra.mxu0 0
      %3506 = vmatprep.subr.bf16.mxu0 0
      %3507 = vmatpush1.bf16.msra.mxu0 0
      %3508 = vmatprep.subr.bf16.mxu0 0
      %3509 = vmatpush1.bf16.msra.mxu0 0
      %3510 = vmatprep.subr.bf16.mxu0 0
      %3511 = vmatpush1.bf16.msra.mxu0 0
      %3512 = vmatprep.subr.bf16.mxu0 %v3398
      %3513 = vmatpush1.bf16.msra.mxu0 %v3397
      %3514 = vmatprep.subr.bf16.mxu0 %v3395
      %3515 = vmatpush1.bf16.msra.mxu0 %v3394
      %3516 = vmatprep.subr.bf16.mxu0 %v3392
      %3517 = vmatpush1.bf16.msra.mxu0 %v3391
      %3518 = vmatprep.subr.bf16.mxu0 %v3389
      %3519 = vmatpush1.bf16.msra.mxu0 %v3388
      %3520 = vmatprep.subr.bf16.mxu0 0
      %3521 = vmatpush2.bf16.msra.mxu0 0
      %3522 = vmatprep.subr.bf16.mxu0 0
      %3523 = vmatpush2.bf16.msra.mxu0 0
      %3524 = vmatprep.subr.bf16.mxu0 0
      %3525 = vmatpush2.bf16.msra.mxu0 0
      %3526 = vmatprep.subr.bf16.mxu0 0
      %3527 = vmatpush2.bf16.msra.mxu0 0
      %3528 = vmatprep.subr.bf16.mxu0 0
      %3529 = vmatpush2.bf16.msra.mxu0 0
      %3530 = vmatprep.subr.bf16.mxu0 0
      %3531 = vmatpush2.bf16.msra.mxu0 0
      %3532 = vmatprep.subr.bf16.mxu0 0
      %3533 = vmatpush2.bf16.msra.mxu0 0
      %3534 = vmatprep.subr.bf16.mxu0 0
      %3535 = vmatpush2.bf16.msra.mxu0 0
      %3536 = vmatprep.mubr.bf16.mxu0 0
      %3537 = vmatmul.mubr.bf16.gmra.mxu0 %v3461
      %v3538 = vpop.f32.mrf.mxu0
      %v3539 = vadd.f32 %v3498, %v3538
      %v3540 = vpop.f32.mrf.mxu0
      %v3541 = vadd.f32 %v3500, %v3540
      %v3542 = vpop.f32.mrf.mxu0
      %v3543 = vpop.f32.mrf.mxu0
      %3544 = vdwg.mxu0
      %3545 = vmatprep.subr.bf16.mxu0 0
      %3546 = vmatpush1.bf16.msra.mxu0 %v3363
      %3547 = vmatprep.subr.bf16.mxu0 0
      %3548 = vmatpush1.bf16.msra.mxu0 %v3360
      %3549 = vmatprep.subr.bf16.mxu0 0
      %3550 = vmatpush1.bf16.msra.mxu0 %v3357
      %3551 = vmatprep.subr.bf16.mxu0 0
      %3552 = vmatpush1.bf16.msra.mxu0 %v3354
      %3553 = vmatprep.subr.bf16.mxu0 0
      %3554 = vmatpush1.bf16.msra.mxu0 %v3351
      %3555 = vmatprep.subr.bf16.mxu0 0
      %3556 = vmatpush1.bf16.msra.mxu0 %v3348
      %3557 = vmatprep.subr.bf16.mxu0 0
      %3558 = vmatpush1.bf16.msra.mxu0 %v3345
      %3559 = vmatprep.subr.bf16.mxu0 0
      %3560 = vmatpush1.bf16.msra.mxu0 %v3342
      %3561 = vmatprep.subr.bf16.mxu0 0
      %3562 = vmatpush2.bf16.msra.mxu0 %v3387
      %3563 = vmatprep.subr.bf16.mxu0 0
      %3564 = vmatpush2.bf16.msra.mxu0 %v3384
      %3565 = vmatprep.subr.bf16.mxu0 0
      %3566 = vmatpush2.bf16.msra.mxu0 %v3381
      %3567 = vmatprep.subr.bf16.mxu0 0
      %3568 = vmatpush2.bf16.msra.mxu0 %v3378
      %3569 = vmatprep.subr.bf16.mxu0 0
      %3570 = vmatpush2.bf16.msra.mxu0 %v3375
      %3571 = vmatprep.subr.bf16.mxu0 0
      %3572 = vmatpush2.bf16.msra.mxu0 %v3372
      %3573 = vmatprep.subr.bf16.mxu0 0
      %3574 = vmatpush2.bf16.msra.mxu0 %v3369
      %3575 = vmatprep.subr.bf16.mxu0 0
      %3576 = vmatpush2.bf16.msra.mxu0 %v3366
      %3577 = vmatprep.mubr.bf16.mxu0 %v3131
      %3578 = vmatmul.mubr.bf16.gmra.mxu0 %v3124
      %v3579 = vpop.f32.mrf.mxu0
      %v3580 = vadd.f32 0.0, %v3579
      %v3581 = vpop.f32.mrf.mxu0
      %v3582 = vpop.f32.mrf.mxu0
      %v3583 = vpop.f32.mrf.mxu0
      %3584 = vdwg.mxu0
      %3585 = vmatprep.subr.bf16.mxu0 0
      %3586 = vmatpush1.bf16.msra.mxu0 0
      %3587 = vmatprep.subr.bf16.mxu0 0
      %3588 = vmatpush1.bf16.msra.mxu0 0
      %3589 = vmatprep.subr.bf16.mxu0 0
      %3590 = vmatpush1.bf16.msra.mxu0 0
      %3591 = vmatprep.subr.bf16.mxu0 0
      %3592 = vmatpush1.bf16.msra.mxu0 0
      %3593 = vmatprep.subr.bf16.mxu0 0
      %3594 = vmatpush1.bf16.msra.mxu0 %v3399
      %3595 = vmatprep.subr.bf16.mxu0 0
      %3596 = vmatpush1.bf16.msra.mxu0 %v3396
      %3597 = vmatprep.subr.bf16.mxu0 0
      %3598 = vmatpush1.bf16.msra.mxu0 %v3393
      %3599 = vmatprep.subr.bf16.mxu0 0
      %3600 = vmatpush1.bf16.msra.mxu0 %v3390
      %3601 = vmatprep.subr.bf16.mxu0 0
      %3602 = vmatpush2.bf16.msra.mxu0 0
      %3603 = vmatprep.subr.bf16.mxu0 0
      %3604 = vmatpush2.bf16.msra.mxu0 0
      %3605 = vmatprep.subr.bf16.mxu0 0
      %3606 = vmatpush2.bf16.msra.mxu0 0
      %3607 = vmatprep.subr.bf16.mxu0 0
      %3608 = vmatpush2.bf16.msra.mxu0 0
      %3609 = vmatprep.subr.bf16.mxu0 0
      %3610 = vmatpush2.bf16.msra.mxu0 0
      %3611 = vmatprep.subr.bf16.mxu0 0
      %3612 = vmatpush2.bf16.msra.mxu0 0
      %3613 = vmatprep.subr.bf16.mxu0 0
      %3614 = vmatpush2.bf16.msra.mxu0 0
      %3615 = vmatprep.subr.bf16.mxu0 0
      %3616 = vmatpush2.bf16.msra.mxu0 0
      %3617 = vmatprep.mubr.bf16.mxu0 0
      %3618 = vmatmul.mubr.bf16.gmra.mxu0 %v3461
      %v3619 = vpop.f32.mrf.mxu0
      %v3620 = vadd.f32 %v3580, %v3619
      %v3621 = vpop.f32.mrf.mxu0
      %v3622 = vpop.f32.mrf.mxu0
      %v3623 = vpop.f32.mrf.mxu0
      %3624 = vdwg.mxu0
      %v3625 = vadd.f32 %v2951, %v3539
      %v3626 = vadd.f32 %v2953, %v3541
      %v3627 = vadd.f32 %v3032, %v3620
      %s3628 = scalar_lea.vmem %s4, 1440
      %v3629 = vld [vmem:[%s3628] sm:$0xff]
      %v3630 = vld [vmem:[%s3628 + $0x8] sm:$0xf]
      %v3631 = vld [vmem:[%s3628 + $0xc] sm:$0xff]
      %v3632 = vld [vmem:[%s3628 + $0x14] sm:$0xf]
      %v3633 = vld [vmem:[%s3628 + $0x18] sm:$0xff]
      %v3634 = vld [vmem:[%s3628 + $0x20] sm:$0xf]
      %v3635 = vld [vmem:[%s3628 + $0x24] sm:$0xff]
      %v3636 = vld [vmem:[%s3628 + $0x2c] sm:$0xf]
      %v3637 = vld [vmem:[%s3628 + $0x30] sm:$0xff]
      %v3638 = vld [vmem:[%s3628 + $0x38] sm:$0xf]
      %v3639 = vld [vmem:[%s3628 + $0x3c] sm:$0xff]
      %v3640 = vld [vmem:[%s3628 + $0x44] sm:$0xf]
      %v3641 = vld [vmem:[%s3628 + $0x48] sm:$0xff]
      %v3642 = vld [vmem:[%s3628 + $0x50] sm:$0xf]
      %v3643 = vld [vmem:[%s3628 + $0x54] sm:$0xff]
      %v3644 = vld [vmem:[%s3628 + $0x5c] sm:$0xf]
      %v3645 = vld [vmem:[%s3628 + $0x60] sm:$0xff]
      %v3646 = vld [vmem:[%s3628 + $0x68] sm:$0xf]
      %v3647 = vld [vmem:[%s3628 + $0x6c] sm:$0xff]
      %v3648 = vld [vmem:[%s3628 + $0x74] sm:$0xf]
      %v3649 = vld [vmem:[%s3628 + $0x78] sm:$0xff]
      %v3650 = vld [vmem:[%s3628 + $0x80] sm:$0xf]
      %v3651 = vld [vmem:[%s3628 + $0x84] sm:$0xff]
      %v3652 = vld [vmem:[%s3628 + $0x8c] sm:$0xf]
      %v3653 = vld [vmem:[%s3628 + $0x90] sm:$0xff]
      %v3654 = vld [vmem:[%s3628 + $0x98] sm:$0xf]
      %v3655 = vld [vmem:[%s3628 + $0x9c] sm:$0xff]
      %v3656 = vld [vmem:[%s3628 + $0xa4] sm:$0xf]
      %v3657 = vld [vmem:[%s3628 + $0xa8] sm:$0xff]
      %v3658 = vld [vmem:[%s3628 + $0xb0] sm:$0xf]
      %v3659 = vld [vmem:[%s3628 + $0xb4] sm:$0xff]
      %v3660 = vld [vmem:[%s3628 + $0xbc] sm:$0xf]
      %v3661 = vld [vmem:[%s3628 + $0xc0] sm:$0xff]
      %v3662 = vld [vmem:[%s3628 + $0xc8] sm:$0xf]
      %v3663 = vld [vmem:[%s3628 + $0xcc] sm:$0xff]
      %v3664 = vld [vmem:[%s3628 + $0xd4] sm:$0xf]
      %v3665 = vld [vmem:[%s3628 + $0xd8] sm:$0xff]
      %v3666 = vld [vmem:[%s3628 + $0xe0] sm:$0xf]
      %v3667 = vld [vmem:[%s3628 + $0xe4] sm:$0xff]
      %v3668 = vld [vmem:[%s3628 + $0xec] sm:$0xf]
      %v3669 = vld [vmem:[%s3628 + $0xf0] sm:$0xff]
      %v3670 = vld [vmem:[%s3628 + $0xf8] sm:$0xf]
      %v3671 = vld [vmem:[%s3628 + $0xfc] sm:$0xff]
      %v3672 = vld [vmem:[%s3628 + $0x104] sm:$0xf]
      %v3673 = vld [vmem:[%s3628 + $0x108] sm:$0xff]
      %v3674 = vld [vmem:[%s3628 + $0x110] sm:$0xf]
      %v3675 = vld [vmem:[%s3628 + $0x114] sm:$0xff]
      %v3676 = vld [vmem:[%s3628 + $0x11c] sm:$0xf]
      %v3677 = vld [vmem:[%s3628 + $0x120] sm:$0xff]
      %v3678 = vld [vmem:[%s3628 + $0x128] sm:$0xf]
      %v3679 = vld [vmem:[%s3628 + $0x12c] sm:$0xff]
      %v3680 = vld [vmem:[%s3628 + $0x134] sm:$0xf]
      %v3681 = vld [vmem:[%s3628 + $0x138] sm:$0xff]
      %v3682 = vld [vmem:[%s3628 + $0x140] sm:$0xf]
      %v3683 = vld [vmem:[%s3628 + $0x144] sm:$0xff]
      %v3684 = vld [vmem:[%s3628 + $0x14c] sm:$0xf]
      %v3685 = vld [vmem:[%s3628 + $0x150] sm:$0xff]
      %v3686 = vld [vmem:[%s3628 + $0x158] sm:$0xf]
      %v3687 = vld [vmem:[%s3628 + $0x15c] sm:$0xff]
      %v3688 = vld [vmem:[%s3628 + $0x164] sm:$0xf]
      %v3689 = vld [vmem:[%s3628 + $0x168] sm:$0xff]
      %v3690 = vld [vmem:[%s3628 + $0x170] sm:$0xf]
      %v3691 = vld [vmem:[%s3628 + $0x174] sm:$0xff]
      %v3692 = vld [vmem:[%s3628 + $0x17c] sm:$0xf]
      %v3693 = vld [vmem:[%s3628 + $0x180] sm:$0xff]
      %v3694 = vld [vmem:[%s3628 + $0x188] sm:$0xf]
      %v3695 = vld [vmem:[%s3628 + $0x18c] sm:$0xff]
      %v3696 = vld [vmem:[%s3628 + $0x194] sm:$0xf]
      %v3697 = vld [vmem:[%s3628 + $0x198] sm:$0xff]
      %v3698 = vld [vmem:[%s3628 + $0x1a0] sm:$0xf]
      %v3699 = vld [vmem:[%s3628 + $0x1a4] sm:$0xff]
      %v3700 = vld [vmem:[%s3628 + $0x1ac] sm:$0xf]
      %v3701 = vld [vmem:[%s3628 + $0x1b0] sm:$0xff]
      %v3702 = vld [vmem:[%s3628 + $0x1b8] sm:$0xf]
      %v3703 = vld [vmem:[%s3628 + $0x1bc] sm:$0xff]
      %v3704 = vld [vmem:[%s3628 + $0x1c4] sm:$0xf]
      %v3705 = vld [vmem:[%s3628 + $0x1c8] sm:$0xff]
      %v3706 = vld [vmem:[%s3628 + $0x1d0] sm:$0xf]
      %v3707 = vld [vmem:[%s3628 + $0x1d4] sm:$0xff]
      %v3708 = vld [vmem:[%s3628 + $0x1dc] sm:$0xf]
      %v3710 = vshrl.u32 %v2063, 16
      %v3712 = vshll.u32 %v2063, 16
      %v3714 = vrot.slane %v3712, 1
      %v3715 = vor.u32 %v3710, %v3714
      %v3717 = vshrl.u32 %v2064, 16
      %v3719 = vshll.u32 %v2064, 16
      %v3721 = vrot.slane %v3719, 1
      %v3722 = vor.u32 %v3717, %v3721
      %v3723 = vshrl.u32 %v2065, 16
      %v3725 = vshll.u32 %v2065, 16
      %v3727 = vrot.slane %v3725, 1
      %v3728 = vor.u32 %v3723, %v3727
      %v3811 = vunpack.c.l.b16 %v3629
      %v3812 = vunpack.c.h.b16 %v3629
      %v3813 = vunpack.c.l.b16 %v3630
      %v3814 = vunpack.c.l.b16 %v3631
      %v3815 = vunpack.c.h.b16 %v3631
      %v3816 = vunpack.c.l.b16 %v3632
      %v3817 = vunpack.c.l.b16 %v3633
      %v3818 = vunpack.c.h.b16 %v3633
      %v3819 = vunpack.c.l.b16 %v3634
      %v3820 = vunpack.c.l.b16 %v3635
      %v3821 = vunpack.c.h.b16 %v3635
      %v3822 = vunpack.c.l.b16 %v3636
      %v3823 = vunpack.c.l.b16 %v3637
      %v3824 = vunpack.c.h.b16 %v3637
      %v3825 = vunpack.c.l.b16 %v3638
      %v3826 = vunpack.c.l.b16 %v3639
      %v3827 = vunpack.c.h.b16 %v3639
      %v3828 = vunpack.c.l.b16 %v3640
      %v3829 = vunpack.c.l.b16 %v3641
      %v3830 = vunpack.c.h.b16 %v3641
      %v3831 = vunpack.c.l.b16 %v3642
      %v3832 = vunpack.c.l.b16 %v3643
      %v3833 = vunpack.c.h.b16 %v3643
      %v3834 = vunpack.c.l.b16 %v3644
      %v3835 = vunpack.c.l.b16 %v3645
      %v3836 = vunpack.c.h.b16 %v3645
      %v3837 = vunpack.c.l.b16 %v3646
      %v3838 = vunpack.c.l.b16 %v3647
      %v3839 = vunpack.c.h.b16 %v3647
      %v3840 = vunpack.c.l.b16 %v3648
      %v3841 = vunpack.c.l.b16 %v3649
      %v3842 = vunpack.c.h.b16 %v3649
      %v3843 = vunpack.c.l.b16 %v3650
      %v3844 = vunpack.c.l.b16 %v3651
      %v3845 = vunpack.c.h.b16 %v3651
      %v3846 = vunpack.c.l.b16 %v3652
      %v3847 = vunpack.c.l.b16 %v3653
      %v3848 = vunpack.c.h.b16 %v3653
      %v3849 = vunpack.c.l.b16 %v3654
      %v3850 = vunpack.c.l.b16 %v3655
      %v3851 = vunpack.c.h.b16 %v3655
      %v3852 = vunpack.c.l.b16 %v3656
      %v3853 = vunpack.c.l.b16 %v3657
      %v3854 = vunpack.c.h.b16 %v3657
      %v3855 = vunpack.c.l.b16 %v3658
      %v3856 = vunpack.c.l.b16 %v3659
      %v3857 = vunpack.c.h.b16 %v3659
      %v3858 = vunpack.c.l.b16 %v3660
      %v3859 = vunpack.c.l.b16 %v3661
      %v3860 = vunpack.c.h.b16 %v3661
      %v3861 = vunpack.c.l.b16 %v3662
      %v3862 = vunpack.c.l.b16 %v3663
      %v3863 = vunpack.c.h.b16 %v3663
      %v3864 = vunpack.c.l.b16 %v3664
      %v3865 = vunpack.c.l.b16 %v3665
      %v3866 = vunpack.c.h.b16 %v3665
      %v3867 = vunpack.c.l.b16 %v3666
      %v3868 = vunpack.c.l.b16 %v3667
      %v3869 = vunpack.c.h.b16 %v3667
      %v3870 = vunpack.c.l.b16 %v3668
      %v3871 = vunpack.c.l.b16 %v3669
      %v3872 = vunpack.c.h.b16 %v3669
      %v3873 = vunpack.c.l.b16 %v3670
      %v3874 = vunpack.c.l.b16 %v3671
      %v3875 = vunpack.c.h.b16 %v3671
      %v3876 = vunpack.c.l.b16 %v3672
      %v3877 = vunpack.c.l.b16 %v3673
      %v3878 = vunpack.c.h.b16 %v3673
      %v3879 = vunpack.c.l.b16 %v3674
      %v3880 = vunpack.c.l.b16 %v3675
      %v3881 = vunpack.c.h.b16 %v3675
      %v3882 = vunpack.c.l.b16 %v3676
      %v3883 = vunpack.c.l.b16 %v3677
      %v3884 = vunpack.c.h.b16 %v3677
      %v3885 = vunpack.c.l.b16 %v3678
      %v3886 = vunpack.c.l.b16 %v3679
      %v3887 = vunpack.c.h.b16 %v3679
      %v3888 = vunpack.c.l.b16 %v3680
      %v3889 = vunpack.c.l.b16 %v3681
      %v3890 = vunpack.c.h.b16 %v3681
      %v3891 = vunpack.c.l.b16 %v3682
      %v3892 = vunpack.c.l.b16 %v3683
      %v3893 = vunpack.c.h.b16 %v3683
      %v3894 = vunpack.c.l.b16 %v3684
      %v3895 = vunpack.c.l.b16 %v3685
      %v3896 = vunpack.c.h.b16 %v3685
      %v3897 = vunpack.c.l.b16 %v3686
      %v3898 = vunpack.c.l.b16 %v3687
      %v3899 = vunpack.c.h.b16 %v3687
      %v3900 = vunpack.c.l.b16 %v3688
      %v3901 = vunpack.c.l.b16 %v3689
      %v3902 = vunpack.c.h.b16 %v3689
      %v3903 = vunpack.c.l.b16 %v3690
      %v3904 = vunpack.c.l.b16 %v3691
      %v3905 = vunpack.c.h.b16 %v3691
      %v3906 = vunpack.c.l.b16 %v3692
      %v3907 = vunpack.c.l.b16 %v3693
      %v3908 = vunpack.c.h.b16 %v3693
      %v3909 = vunpack.c.l.b16 %v3694
      %v3910 = vunpack.c.l.b16 %v3695
      %v3911 = vunpack.c.h.b16 %v3695
      %v3912 = vunpack.c.l.b16 %v3696
      %v3913 = vunpack.c.l.b16 %v3697
      %v3914 = vunpack.c.h.b16 %v3697
      %v3915 = vunpack.c.l.b16 %v3698
      %v3916 = vunpack.c.l.b16 %v3699
      %v3917 = vunpack.c.h.b16 %v3699
      %v3918 = vunpack.c.l.b16 %v3700
      %v3919 = vunpack.c.l.b16 %v3701
      %v3920 = vunpack.c.h.b16 %v3701
      %v3921 = vunpack.c.l.b16 %v3702
      %v3922 = vunpack.c.l.b16 %v3703
      %v3923 = vunpack.c.h.b16 %v3703
      %v3924 = vunpack.c.l.b16 %v3704
      %v3925 = vunpack.c.l.b16 %v3705
      %v3926 = vunpack.c.h.b16 %v3705
      %v3927 = vunpack.c.l.b16 %v3706
      %v3928 = vunpack.c.l.b16 %v3707
      %v3929 = vunpack.c.h.b16 %v3707
      %v3930 = vunpack.c.l.b16 %v3708
      %v3931 = vpack.c.b16 %v3814, %v3811
      %v3932 = vpack.c.b16 %v3815, %v3812
      %v3933 = vpack.c.b16 %v3816, %v3813
      %v3934 = vpack.c.b16 %v3820, %v3817
      %v3935 = vpack.c.b16 %v3821, %v3818
      %v3936 = vpack.c.b16 %v3822, %v3819
      %v3937 = vpack.c.b16 %v3826, %v3823
      %v3938 = vpack.c.b16 %v3827, %v3824
      %v3939 = vpack.c.b16 %v3828, %v3825
      %v3940 = vpack.c.b16 %v3832, %v3829
      %v3941 = vpack.c.b16 %v3833, %v3830
      %v3942 = vpack.c.b16 %v3834, %v3831
      %v3943 = vpack.c.b16 %v3838, %v3835
      %v3944 = vpack.c.b16 %v3839, %v3836
      %v3945 = vpack.c.b16 %v3840, %v3837
      %v3946 = vpack.c.b16 %v3844, %v3841
      %v3947 = vpack.c.b16 %v3845, %v3842
      %v3948 = vpack.c.b16 %v3846, %v3843
      %v3949 = vpack.c.b16 %v3850, %v3847
      %v3950 = vpack.c.b16 %v3851, %v3848
      %v3951 = vpack.c.b16 %v3852, %v3849
      %v3952 = vpack.c.b16 %v3856, %v3853
      %v3953 = vpack.c.b16 %v3857, %v3854
      %v3954 = vpack.c.b16 %v3858, %v3855
      %v3955 = vpack.c.b16 %v3862, %v3859
      %v3956 = vpack.c.b16 %v3863, %v3860
      %v3957 = vpack.c.b16 %v3864, %v3861
      %v3958 = vpack.c.b16 %v3868, %v3865
      %v3959 = vpack.c.b16 %v3869, %v3866
      %v3960 = vpack.c.b16 %v3870, %v3867
      %v3961 = vpack.c.b16 %v3874, %v3871
      %v3962 = vpack.c.b16 %v3875, %v3872
      %v3963 = vpack.c.b16 %v3876, %v3873
      %v3964 = vpack.c.b16 %v3880, %v3877
      %v3965 = vpack.c.b16 %v3881, %v3878
      %v3966 = vpack.c.b16 %v3882, %v3879
      %v3967 = vpack.c.b16 %v3886, %v3883
      %v3968 = vpack.c.b16 %v3887, %v3884
      %v3969 = vpack.c.b16 %v3888, %v3885
      %v3970 = vpack.c.b16 %v3892, %v3889
      %v3971 = vpack.c.b16 %v3893, %v3890
      %v3972 = vpack.c.b16 %v3894, %v3891
      %v3973 = vpack.c.b16 %v3898, %v3895
      %v3974 = vpack.c.b16 %v3899, %v3896
      %v3975 = vpack.c.b16 %v3900, %v3897
      %v3976 = vpack.c.b16 %v3904, %v3901
      %v3977 = vpack.c.b16 %v3905, %v3902
      %v3978 = vpack.c.b16 %v3906, %v3903
      %v3979 = vpack.c.b16 %v3910, %v3907
      %v3980 = vpack.c.b16 %v3911, %v3908
      %v3981 = vpack.c.b16 %v3912, %v3909
      %v3982 = vpack.c.b16 %v3916, %v3913
      %v3983 = vpack.c.b16 %v3917, %v3914
      %v3984 = vpack.c.b16 %v3918, %v3915
      %v3985 = vpack.c.b16 %v3922, %v3919
      %v3986 = vpack.c.b16 %v3923, %v3920
      %v3987 = vpack.c.b16 %v3924, %v3921
      %v3988 = vpack.c.b16 %v3928, %v3925
      %v3989 = vpack.c.b16 %v3929, %v3926
      %v3990 = vpack.c.b16 %v3930, %v3927
      %v4052 = vsel %vm2386, %v3728, 0
      %4054 = vmatprep.subr.bf16.mxu0 %v3953
      %4055 = vmatpush1.bf16.msra.mxu0 %v3952
      %4056 = vmatprep.subr.bf16.mxu0 %v3950
      %4057 = vmatpush1.bf16.msra.mxu0 %v3949
      %4058 = vmatprep.subr.bf16.mxu0 %v3947
      %4059 = vmatpush1.bf16.msra.mxu0 %v3946
      %4060 = vmatprep.subr.bf16.mxu0 %v3944
      %4061 = vmatpush1.bf16.msra.mxu0 %v3943
      %4062 = vmatprep.subr.bf16.mxu0 %v3941
      %4063 = vmatpush1.bf16.msra.mxu0 %v3940
      %4064 = vmatprep.subr.bf16.mxu0 %v3938
      %4065 = vmatpush1.bf16.msra.mxu0 %v3937
      %4066 = vmatprep.subr.bf16.mxu0 %v3935
      %4067 = vmatpush1.bf16.msra.mxu0 %v3934
      %4068 = vmatprep.subr.bf16.mxu0 %v3932
      %4069 = vmatpush1.bf16.msra.mxu0 %v3931
      %4070 = vmatprep.subr.bf16.mxu0 %v3977
      %4071 = vmatpush2.bf16.msra.mxu0 %v3976
      %4072 = vmatprep.subr.bf16.mxu0 %v3974
      %4073 = vmatpush2.bf16.msra.mxu0 %v3973
      %4074 = vmatprep.subr.bf16.mxu0 %v3971
      %4075 = vmatpush2.bf16.msra.mxu0 %v3970
      %4076 = vmatprep.subr.bf16.mxu0 %v3968
      %4077 = vmatpush2.bf16.msra.mxu0 %v3967
      %4078 = vmatprep.subr.bf16.mxu0 %v3965
      %4079 = vmatpush2.bf16.msra.mxu0 %v3964
      %4080 = vmatprep.subr.bf16.mxu0 %v3962
      %4081 = vmatpush2.bf16.msra.mxu0 %v3961
      %4082 = vmatprep.subr.bf16.mxu0 %v3959
      %4083 = vmatpush2.bf16.msra.mxu0 %v3958
      %4084 = vmatprep.subr.bf16.mxu0 %v3956
      %4085 = vmatpush2.bf16.msra.mxu0 %v3955
      %4086 = vmatprep.mubr.bf16.mxu0 %v3722
      %4087 = vmatmul.mubr.bf16.gmra.mxu0 %v3715
      %v4088 = vpop.f32.mrf.mxu0
      %v4089 = vadd.f32 0.0, %v4088
      %v4090 = vpop.f32.mrf.mxu0
      %v4091 = vadd.f32 0.0, %v4090
      %v4092 = vpop.f32.mrf.mxu0
      %v4093 = vpop.f32.mrf.mxu0
      %4094 = vdwg.mxu0
      %4095 = vmatprep.subr.bf16.mxu0 0
      %4096 = vmatpush1.bf16.msra.mxu0 0
      %4097 = vmatprep.subr.bf16.mxu0 0
      %4098 = vmatpush1.bf16.msra.mxu0 0
      %4099 = vmatprep.subr.bf16.mxu0 0
      %4100 = vmatpush1.bf16.msra.mxu0 0
      %4101 = vmatprep.subr.bf16.mxu0 0
      %4102 = vmatpush1.bf16.msra.mxu0 0
      %4103 = vmatprep.subr.bf16.mxu0 %v3989
      %4104 = vmatpush1.bf16.msra.mxu0 %v3988
      %4105 = vmatprep.subr.bf16.mxu0 %v3986
      %4106 = vmatpush1.bf16.msra.mxu0 %v3985
      %4107 = vmatprep.subr.bf16.mxu0 %v3983
      %4108 = vmatpush1.bf16.msra.mxu0 %v3982
      %4109 = vmatprep.subr.bf16.mxu0 %v3980
      %4110 = vmatpush1.bf16.msra.mxu0 %v3979
      %4111 = vmatprep.subr.bf16.mxu0 0
      %4112 = vmatpush2.bf16.msra.mxu0 0
      %4113 = vmatprep.subr.bf16.mxu0 0
      %4114 = vmatpush2.bf16.msra.mxu0 0
      %4115 = vmatprep.subr.bf16.mxu0 0
      %4116 = vmatpush2.bf16.msra.mxu0 0
      %4117 = vmatprep.subr.bf16.mxu0 0
      %4118 = vmatpush2.bf16.msra.mxu0 0
      %4119 = vmatprep.subr.bf16.mxu0 0
      %4120 = vmatpush2.bf16.msra.mxu0 0
      %4121 = vmatprep.subr.bf16.mxu0 0
      %4122 = vmatpush2.bf16.msra.mxu0 0
      %4123 = vmatprep.subr.bf16.mxu0 0
      %4124 = vmatpush2.bf16.msra.mxu0 0
      %4125 = vmatprep.subr.bf16.mxu0 0
      %4126 = vmatpush2.bf16.msra.mxu0 0
      %4127 = vmatprep.mubr.bf16.mxu0 0
      %4128 = vmatmul.mubr.bf16.gmra.mxu0 %v4052
      %v4129 = vpop.f32.mrf.mxu0
      %v4130 = vadd.f32 %v4089, %v4129
      %v4131 = vpop.f32.mrf.mxu0
      %v4132 = vadd.f32 %v4091, %v4131
      %v4133 = vpop.f32.mrf.mxu0
      %v4134 = vpop.f32.mrf.mxu0
      %4135 = vdwg.mxu0
      %4136 = vmatprep.subr.bf16.mxu0 0
      %4137 = vmatpush1.bf16.msra.mxu0 %v3954
      %4138 = vmatprep.subr.bf16.mxu0 0
      %4139 = vmatpush1.bf16.msra.mxu0 %v3951
      %4140 = vmatprep.subr.bf16.mxu0 0
      %4141 = vmatpush1.bf16.msra.mxu0 %v3948
      %4142 = vmatprep.subr.bf16.mxu0 0
      %4143 = vmatpush1.bf16.msra.mxu0 %v3945
      %4144 = vmatprep.subr.bf16.mxu0 0
      %4145 = vmatpush1.bf16.msra.mxu0 %v3942
      %4146 = vmatprep.subr.bf16.mxu0 0
      %4147 = vmatpush1.bf16.msra.mxu0 %v3939
      %4148 = vmatprep.subr.bf16.mxu0 0
      %4149 = vmatpush1.bf16.msra.mxu0 %v3936
      %4150 = vmatprep.subr.bf16.mxu0 0
      %4151 = vmatpush1.bf16.msra.mxu0 %v3933
      %4152 = vmatprep.subr.bf16.mxu0 0
      %4153 = vmatpush2.bf16.msra.mxu0 %v3978
      %4154 = vmatprep.subr.bf16.mxu0 0
      %4155 = vmatpush2.bf16.msra.mxu0 %v3975
      %4156 = vmatprep.subr.bf16.mxu0 0
      %4157 = vmatpush2.bf16.msra.mxu0 %v3972
      %4158 = vmatprep.subr.bf16.mxu0 0
      %4159 = vmatpush2.bf16.msra.mxu0 %v3969
      %4160 = vmatprep.subr.bf16.mxu0 0
      %4161 = vmatpush2.bf16.msra.mxu0 %v3966
      %4162 = vmatprep.subr.bf16.mxu0 0
      %4163 = vmatpush2.bf16.msra.mxu0 %v3963
      %4164 = vmatprep.subr.bf16.mxu0 0
      %4165 = vmatpush2.bf16.msra.mxu0 %v3960
      %4166 = vmatprep.subr.bf16.mxu0 0
      %4167 = vmatpush2.bf16.msra.mxu0 %v3957
      %4168 = vmatprep.mubr.bf16.mxu0 %v3722
      %4169 = vmatmul.mubr.bf16.gmra.mxu0 %v3715
      %v4170 = vpop.f32.mrf.mxu0
      %v4171 = vadd.f32 0.0, %v4170
      %v4172 = vpop.f32.mrf.mxu0
      %v4173 = vpop.f32.mrf.mxu0
      %v4174 = vpop.f32.mrf.mxu0
      %4175 = vdwg.mxu0
      %4176 = vmatprep.subr.bf16.mxu0 0
      %4177 = vmatpush1.bf16.msra.mxu0 0
      %4178 = vmatprep.subr.bf16.mxu0 0
      %4179 = vmatpush1.bf16.msra.mxu0 0
      %4180 = vmatprep.subr.bf16.mxu0 0
      %4181 = vmatpush1.bf16.msra.mxu0 0
      %4182 = vmatprep.subr.bf16.mxu0 0
      %4183 = vmatpush1.bf16.msra.mxu0 0
      %4184 = vmatprep.subr.bf16.mxu0 0
      %4185 = vmatpush1.bf16.msra.mxu0 %v3990
      %4186 = vmatprep.subr.bf16.mxu0 0
      %4187 = vmatpush1.bf16.msra.mxu0 %v3987
      %4188 = vmatprep.subr.bf16.mxu0 0
      %4189 = vmatpush1.bf16.msra.mxu0 %v3984
      %4190 = vmatprep.subr.bf16.mxu0 0
      %4191 = vmatpush1.bf16.msra.mxu0 %v3981
      %4192 = vmatprep.subr.bf16.mxu0 0
      %4193 = vmatpush2.bf16.msra.mxu0 0
      %4194 = vmatprep.subr.bf16.mxu0 0
      %4195 = vmatpush2.bf16.msra.mxu0 0
      %4196 = vmatprep.subr.bf16.mxu0 0
      %4197 = vmatpush2.bf16.msra.mxu0 0
      %4198 = vmatprep.subr.bf16.mxu0 0
      %4199 = vmatpush2.bf16.msra.mxu0 0
      %4200 = vmatprep.subr.bf16.mxu0 0
      %4201 = vmatpush2.bf16.msra.mxu0 0
      %4202 = vmatprep.subr.bf16.mxu0 0
      %4203 = vmatpush2.bf16.msra.mxu0 0
      %4204 = vmatprep.subr.bf16.mxu0 0
      %4205 = vmatpush2.bf16.msra.mxu0 0
      %4206 = vmatprep.subr.bf16.mxu0 0
      %4207 = vmatpush2.bf16.msra.mxu0 0
      %4208 = vmatprep.mubr.bf16.mxu0 0
      %4209 = vmatmul.mubr.bf16.gmra.mxu0 %v4052
      %v4210 = vpop.f32.mrf.mxu0
      %v4211 = vadd.f32 %v4171, %v4210
      %v4212 = vpop.f32.mrf.mxu0
      %v4213 = vpop.f32.mrf.mxu0
      %v4214 = vpop.f32.mrf.mxu0
      %4215 = vdwg.mxu0
      %v4216 = vadd.f32 %v3625, %v4130
      %v4217 = vadd.f32 %v3626, %v4132
      %v4218 = vadd.f32 %v3627, %v4211
      %v4219 = vld [vmem:[%s12] sm:$0x7]
      %v4221 = vlaneseq
      %v4222 = vshrl.u32 %v4221, 7
      %v4223 = vsub.s32 0, %v4222
      %v4224 = vrot.slane %v4219, %v4223
      %v4225 = vlaneseq
      %v4226 = vshrl.u32 %v4225, 7
      %v4227 = vsub.s32 1, %v4226
      %v4228 = vrot.slane %v4219, %v4227
      %v4229 = vlaneseq
      %v4230 = vshrl.u32 %v4229, 7
      %v4231 = vsub.s32 2, %v4230
      %v4232 = vrot.slane %v4219, %v4231
      %v4236 = vadd.f32 %v4216, %v4224
      %v4237 = vadd.f32 %v4217, %v4228
      %v4238 = vadd.f32 %v4218, %v4232
      %vm4239 = vcmp.gt.f32.partialorder %v4236, 0.0
      %vm4240 = vcmp.gt.f32.partialorder %v4237, 0.0
      %vm4241 = vcmp.gt.f32.partialorder %v4238, 0.0
      %v4242 = vmin.f32 %v4236, 0.0
      %v4243 = vmin.f32 %v4237, 0.0
      %v4244 = vmin.f32 %v4238, 0.0
      %v4245 = vmul.f32 %v4242, 1.442695
      %v4246 = vpow.pop %v4245
      %v4247 = vmul.f32 %v4243, 1.442695
      %v4248 = vpow.pop %v4247
      %v4249 = vmul.f32 %v4244, 1.442695
      %v4250 = vpow.pop %v4249
      %v4251 = vsub.f32 %v4246, 1.0
      %v4252 = vsub.f32 %v4248, 1.0
      %v4253 = vsub.f32 %v4250, 1.0
      %v4254 = vsel %vm4239, %v4236, %v4251
      %v4255 = vsel %vm4240, %v4237, %v4252
      %v4256 = vsel %vm4241, %v4238, %v4253
      %v4257 = vld [vmem:[%s13] sm:$0x3]
      %v4258 = vld [vmem:[%s5] sm:$0xff]
      %v4259 = vld [vmem:[%s5 + $0x8] sm:$0xff]
      %v4260 = vld [vmem:[%s5 + $0x10] sm:$0xff]
      %v4261 = vld [vmem:[%s5 + $0x18] sm:$0xff]
      %v4262 = vld [vmem:[%s5 + $0x20] sm:$0xff]
      %v4263 = vld [vmem:[%s5 + $0x28] sm:$0xff]
      %v4264 = vld [vmem:[%s5 + $0x30] sm:$0xff]
      %v4265 = vld [vmem:[%s5 + $0x38] sm:$0xff]
      %v4266 = vld [vmem:[%s5 + $0x40] sm:$0xff]
      %v4267 = vld [vmem:[%s5 + $0x48] sm:$0xff]
      %v4268 = vld [vmem:[%s5 + $0x50] sm:$0xff]
      %v4269 = vld [vmem:[%s5 + $0x58] sm:$0xff]
      %v4270 = vld [vmem:[%s5 + $0x60] sm:$0xff]
      %v4271 = vld [vmem:[%s5 + $0x68] sm:$0xff]
      %v4272 = vld [vmem:[%s5 + $0x70] sm:$0xff]
      %v4273 = vld [vmem:[%s5 + $0x78] sm:$0xff]
      %v4274 = vld [vmem:[%s5 + $0x80] sm:$0xff]
      %v4275 = vld [vmem:[%s5 + $0x88] sm:$0xff]
      %v4276 = vld [vmem:[%s5 + $0x90] sm:$0xff]
      %v4277 = vld [vmem:[%s5 + $0x98] sm:$0xff]
      %v4278 = vld [vmem:[%s5 + $0xa0] sm:$0xff]
      %v4279 = vld [vmem:[%s5 + $0xa8] sm:$0xff]
      %v4280 = vld [vmem:[%s5 + $0xb0] sm:$0xff]
      %v4281 = vld [vmem:[%s5 + $0xb8] sm:$0xff]
      %v4282 = vld [vmem:[%s5 + $0xc0] sm:$0xff]
      %v4283 = vld [vmem:[%s5 + $0xc8] sm:$0xff]
      %v4284 = vld [vmem:[%s5 + $0xd0] sm:$0xff]
      %v4285 = vld [vmem:[%s5 + $0xd8] sm:$0xff]
      %v4286 = vld [vmem:[%s5 + $0xe0] sm:$0xff]
      %v4287 = vld [vmem:[%s5 + $0xe8] sm:$0xff]
      %v4288 = vld [vmem:[%s5 + $0xf0] sm:$0xff]
      %v4289 = vld [vmem:[%s5 + $0xf8] sm:$0xff]
      %v4290 = vld [vmem:[%s5 + $0x100] sm:$0xff]
      %v4291 = vld [vmem:[%s5 + $0x108] sm:$0xff]
      %v4292 = vld [vmem:[%s5 + $0x110] sm:$0xff]
      %v4293 = vld [vmem:[%s5 + $0x118] sm:$0xff]
      %v4294 = vld [vmem:[%s5 + $0x120] sm:$0xff]
      %v4295 = vld [vmem:[%s5 + $0x128] sm:$0xff]
      %v4296 = vld [vmem:[%s5 + $0x130] sm:$0xff]
      %v4297 = vld [vmem:[%s5 + $0x138] sm:$0xff]
      %v4298 = vpack.c.bf16 %v4254, %v4254
      %v4299 = vpack.c.bf16 %v4255, %v4255
      %v4300 = vpack.c.bf16 %v4256, %v4256
      %v4341 = vunpack.c.l.b16 %v4258
      %v4342 = vunpack.c.h.b16 %v4258
      %v4343 = vunpack.c.l.b16 %v4259
      %v4344 = vunpack.c.h.b16 %v4259
      %v4345 = vunpack.c.l.b16 %v4260
      %v4346 = vunpack.c.h.b16 %v4260
      %v4347 = vunpack.c.l.b16 %v4261
      %v4348 = vunpack.c.h.b16 %v4261
      %v4349 = vunpack.c.l.b16 %v4262
      %v4350 = vunpack.c.h.b16 %v4262
      %v4351 = vunpack.c.l.b16 %v4263
      %v4352 = vunpack.c.h.b16 %v4263
      %v4353 = vunpack.c.l.b16 %v4264
      %v4354 = vunpack.c.h.b16 %v4264
      %v4355 = vunpack.c.l.b16 %v4265
      %v4356 = vunpack.c.h.b16 %v4265
      %v4357 = vunpack.c.l.b16 %v4266
      %v4358 = vunpack.c.h.b16 %v4266
      %v4359 = vunpack.c.l.b16 %v4267
      %v4360 = vunpack.c.h.b16 %v4267
      %v4361 = vunpack.c.l.b16 %v4268
      %v4362 = vunpack.c.h.b16 %v4268
      %v4363 = vunpack.c.l.b16 %v4269
      %v4364 = vunpack.c.h.b16 %v4269
      %v4365 = vunpack.c.l.b16 %v4270
      %v4366 = vunpack.c.h.b16 %v4270
      %v4367 = vunpack.c.l.b16 %v4271
      %v4368 = vunpack.c.h.b16 %v4271
      %v4369 = vunpack.c.l.b16 %v4272
      %v4370 = vunpack.c.h.b16 %v4272
      %v4371 = vunpack.c.l.b16 %v4273
      %v4372 = vunpack.c.h.b16 %v4273
      %v4373 = vunpack.c.l.b16 %v4274
      %v4374 = vunpack.c.h.b16 %v4274
      %v4375 = vunpack.c.l.b16 %v4275
      %v4376 = vunpack.c.h.b16 %v4275
      %v4377 = vunpack.c.l.b16 %v4276
      %v4378 = vunpack.c.h.b16 %v4276
      %v4379 = vunpack.c.l.b16 %v4277
      %v4380 = vunpack.c.h.b16 %v4277
      %v4381 = vunpack.c.l.b16 %v4278
      %v4382 = vunpack.c.h.b16 %v4278
      %v4383 = vunpack.c.l.b16 %v4279
      %v4384 = vunpack.c.h.b16 %v4279
      %v4385 = vunpack.c.l.b16 %v4280
      %v4386 = vunpack.c.h.b16 %v4280
      %v4387 = vunpack.c.l.b16 %v4281
      %v4388 = vunpack.c.h.b16 %v4281
      %v4389 = vunpack.c.l.b16 %v4282
      %v4390 = vunpack.c.h.b16 %v4282
      %v4391 = vunpack.c.l.b16 %v4283
      %v4392 = vunpack.c.h.b16 %v4283
      %v4393 = vunpack.c.l.b16 %v4284
      %v4394 = vunpack.c.h.b16 %v4284
      %v4395 = vunpack.c.l.b16 %v4285
      %v4396 = vunpack.c.h.b16 %v4285
      %v4397 = vunpack.c.l.b16 %v4286
      %v4398 = vunpack.c.h.b16 %v4286
      %v4399 = vunpack.c.l.b16 %v4287
      %v4400 = vunpack.c.h.b16 %v4287
      %v4401 = vunpack.c.l.b16 %v4288
      %v4402 = vunpack.c.h.b16 %v4288
      %v4403 = vunpack.c.l.b16 %v4289
      %v4404 = vunpack.c.h.b16 %v4289
      %v4405 = vunpack.c.l.b16 %v4290
      %v4406 = vunpack.c.h.b16 %v4290
      %v4407 = vunpack.c.l.b16 %v4291
      %v4408 = vunpack.c.h.b16 %v4291
      %v4409 = vunpack.c.l.b16 %v4292
      %v4410 = vunpack.c.h.b16 %v4292
      %v4411 = vunpack.c.l.b16 %v4293
      %v4412 = vunpack.c.h.b16 %v4293
      %v4413 = vunpack.c.l.b16 %v4294
      %v4414 = vunpack.c.h.b16 %v4294
      %v4415 = vunpack.c.l.b16 %v4295
      %v4416 = vunpack.c.h.b16 %v4295
      %v4417 = vunpack.c.l.b16 %v4296
      %v4418 = vunpack.c.h.b16 %v4296
      %v4419 = vunpack.c.l.b16 %v4297
      %v4420 = vunpack.c.h.b16 %v4297
      %v4421 = vpack.c.b16 %v4343, %v4341
      %v4422 = vpack.c.b16 %v4344, %v4342
      %v4423 = vpack.c.b16 %v4347, %v4345
      %v4424 = vpack.c.b16 %v4348, %v4346
      %v4425 = vpack.c.b16 %v4351, %v4349
      %v4426 = vpack.c.b16 %v4352, %v4350
      %v4427 = vpack.c.b16 %v4355, %v4353
      %v4428 = vpack.c.b16 %v4356, %v4354
      %v4429 = vpack.c.b16 %v4359, %v4357
      %v4430 = vpack.c.b16 %v4360, %v4358
      %v4431 = vpack.c.b16 %v4363, %v4361
      %v4432 = vpack.c.b16 %v4364, %v4362
      %v4433 = vpack.c.b16 %v4367, %v4365
      %v4434 = vpack.c.b16 %v4368, %v4366
      %v4435 = vpack.c.b16 %v4371, %v4369
      %v4436 = vpack.c.b16 %v4372, %v4370
      %v4437 = vpack.c.b16 %v4375, %v4373
      %v4438 = vpack.c.b16 %v4376, %v4374
      %v4439 = vpack.c.b16 %v4379, %v4377
      %v4440 = vpack.c.b16 %v4380, %v4378
      %v4441 = vpack.c.b16 %v4383, %v4381
      %v4442 = vpack.c.b16 %v4384, %v4382
      %v4443 = vpack.c.b16 %v4387, %v4385
      %v4444 = vpack.c.b16 %v4388, %v4386
      %v4445 = vpack.c.b16 %v4391, %v4389
      %v4446 = vpack.c.b16 %v4392, %v4390
      %v4447 = vpack.c.b16 %v4395, %v4393
      %v4448 = vpack.c.b16 %v4396, %v4394
      %v4449 = vpack.c.b16 %v4399, %v4397
      %v4450 = vpack.c.b16 %v4400, %v4398
      %v4451 = vpack.c.b16 %v4403, %v4401
      %v4452 = vpack.c.b16 %v4404, %v4402
      %v4453 = vpack.c.b16 %v4407, %v4405
      %v4454 = vpack.c.b16 %v4408, %v4406
      %v4455 = vpack.c.b16 %v4411, %v4409
      %v4456 = vpack.c.b16 %v4412, %v4410
      %v4457 = vpack.c.b16 %v4415, %v4413
      %v4458 = vpack.c.b16 %v4416, %v4414
      %v4459 = vpack.c.b16 %v4419, %v4417
      %v4460 = vpack.c.b16 %v4420, %v4418
      %v4502 = vsel %vm2386, %v4300, 0
      %4504 = vmatprep.subr.bf16.mxu0 %v4436
      %4505 = vmatpush1.bf16.msra.mxu0 %v4435
      %4506 = vmatprep.subr.bf16.mxu0 %v4434
      %4507 = vmatpush1.bf16.msra.mxu0 %v4433
      %4508 = vmatprep.subr.bf16.mxu0 %v4432
      %4509 = vmatpush1.bf16.msra.mxu0 %v4431
      %4510 = vmatprep.subr.bf16.mxu0 %v4430
      %4511 = vmatpush1.bf16.msra.mxu0 %v4429
      %4512 = vmatprep.subr.bf16.mxu0 %v4428
      %4513 = vmatpush1.bf16.msra.mxu0 %v4427
      %4514 = vmatprep.subr.bf16.mxu0 %v4426
      %4515 = vmatpush1.bf16.msra.mxu0 %v4425
      %4516 = vmatprep.subr.bf16.mxu0 %v4424
      %4517 = vmatpush1.bf16.msra.mxu0 %v4423
      %4518 = vmatprep.subr.bf16.mxu0 %v4422
      %4519 = vmatpush1.bf16.msra.mxu0 %v4421
      %4520 = vmatprep.subr.bf16.mxu0 %v4452
      %4521 = vmatpush2.bf16.msra.mxu0 %v4451
      %4522 = vmatprep.subr.bf16.mxu0 %v4450
      %4523 = vmatpush2.bf16.msra.mxu0 %v4449
      %4524 = vmatprep.subr.bf16.mxu0 %v4448
      %4525 = vmatpush2.bf16.msra.mxu0 %v4447
      %4526 = vmatprep.subr.bf16.mxu0 %v4446
      %4527 = vmatpush2.bf16.msra.mxu0 %v4445
      %4528 = vmatprep.subr.bf16.mxu0 %v4444
      %4529 = vmatpush2.bf16.msra.mxu0 %v4443
      %4530 = vmatprep.subr.bf16.mxu0 %v4442
      %4531 = vmatpush2.bf16.msra.mxu0 %v4441
      %4532 = vmatprep.subr.bf16.mxu0 %v4440
      %4533 = vmatpush2.bf16.msra.mxu0 %v4439
      %4534 = vmatprep.subr.bf16.mxu0 %v4438
      %4535 = vmatpush2.bf16.msra.mxu0 %v4437
      %4536 = vmatprep.mubr.bf16.mxu0 %v4299
      %4537 = vmatmul.mubr.bf16.gmra.mxu0 %v4298
      %v4538 = vpop.f32.mrf.mxu0
      %v4539 = vadd.f32 0.0, %v4538
      %v4540 = vpop.f32.mrf.mxu0
      %v4541 = vadd.f32 0.0, %v4540
      %v4542 = vpop.f32.mrf.mxu0
      %v4543 = vpop.f32.mrf.mxu0
      %4544 = vdwg.mxu0
      %4545 = vmatprep.subr.bf16.mxu0 0
      %4546 = vmatpush1.bf16.msra.mxu0 0
      %4547 = vmatprep.subr.bf16.mxu0 0
      %4548 = vmatpush1.bf16.msra.mxu0 0
      %4549 = vmatprep.subr.bf16.mxu0 0
      %4550 = vmatpush1.bf16.msra.mxu0 0
      %4551 = vmatprep.subr.bf16.mxu0 0
      %4552 = vmatpush1.bf16.msra.mxu0 0
      %4553 = vmatprep.subr.bf16.mxu0 %v4460
      %4554 = vmatpush1.bf16.msra.mxu0 %v4459
      %4555 = vmatprep.subr.bf16.mxu0 %v4458
      %4556 = vmatpush1.bf16.msra.mxu0 %v4457
      %4557 = vmatprep.subr.bf16.mxu0 %v4456
      %4558 = vmatpush1.bf16.msra.mxu0 %v4455
      %4559 = vmatprep.subr.bf16.mxu0 %v4454
      %4560 = vmatpush1.bf16.msra.mxu0 %v4453
      %4561 = vmatprep.subr.bf16.mxu0 0
      %4562 = vmatpush2.bf16.msra.mxu0 0
      %4563 = vmatprep.subr.bf16.mxu0 0
      %4564 = vmatpush2.bf16.msra.mxu0 0
      %4565 = vmatprep.subr.bf16.mxu0 0
      %4566 = vmatpush2.bf16.msra.mxu0 0
      %4567 = vmatprep.subr.bf16.mxu0 0
      %4568 = vmatpush2.bf16.msra.mxu0 0
      %4569 = vmatprep.subr.bf16.mxu0 0
      %4570 = vmatpush2.bf16.msra.mxu0 0
      %4571 = vmatprep.subr.bf16.mxu0 0
      %4572 = vmatpush2.bf16.msra.mxu0 0
      %4573 = vmatprep.subr.bf16.mxu0 0
      %4574 = vmatpush2.bf16.msra.mxu0 0
      %4575 = vmatprep.subr.bf16.mxu0 0
      %4576 = vmatpush2.bf16.msra.mxu0 0
      %4577 = vmatprep.mubr.bf16.mxu0 0
      %4578 = vmatmul.mubr.bf16.gmra.mxu0 %v4502
      %v4579 = vpop.f32.mrf.mxu0
      %v4580 = vadd.f32 %v4539, %v4579
      %v4581 = vpop.f32.mrf.mxu0
      %v4582 = vadd.f32 %v4541, %v4581
      %v4583 = vpop.f32.mrf.mxu0
      %v4584 = vpop.f32.mrf.mxu0
      %4585 = vdwg.mxu0
      %v4588 = vcombine.low %v4580, %v4582
      %v4590 = vunpack.c.l.s4 1966171168
      %v4591 = vunpack.c.0.s8 %v4590
      %v4592 = vlaneseq
      %v4593 = vshrl.u32 %v4592, 7
      %v4594 = vsub.s32 %v4591, %v4593
      %v4595 = vrot.slane %v4588, %v4594
      %v4597 = vunpack.c.l.s4 1966171168
      %v4598 = vunpack.c.0.s8 %v4597
      %v4599 = vlaneseq
      %v4600 = vshrl.u32 %v4599, 7
      %v4601 = vsub.s32 %v4598, %v4600
      %v4602 = vrot.slane %v4595, %v4601
      %v4604 = vadd.f32 %v4257, %v4602
      %s4605 = scalar_lea.vmem %s5, 320
      %v4606 = vld [vmem:[%s4605] sm:$0xff]
      %v4607 = vld [vmem:[%s4605 + $0x8] sm:$0xff]
      %v4608 = vld [vmem:[%s4605 + $0x10] sm:$0xff]
      %v4609 = vld [vmem:[%s4605 + $0x18] sm:$0xff]
      %v4610 = vld [vmem:[%s4605 + $0x20] sm:$0xff]
      %v4611 = vld [vmem:[%s4605 + $0x28] sm:$0xff]
      %v4612 = vld [vmem:[%s4605 + $0x30] sm:$0xff]
      %v4613 = vld [vmem:[%s4605 + $0x38] sm:$0xff]
      %v4614 = vld [vmem:[%s4605 + $0x40] sm:$0xff]
      %v4615 = vld [vmem:[%s4605 + $0x48] sm:$0xff]
      %v4616 = vld [vmem:[%s4605 + $0x50] sm:$0xff]
      %v4617 = vld [vmem:[%s4605 + $0x58] sm:$0xff]
      %v4618 = vld [vmem:[%s4605 + $0x60] sm:$0xff]
      %v4619 = vld [vmem:[%s4605 + $0x68] sm:$0xff]
      %v4620 = vld [vmem:[%s4605 + $0x70] sm:$0xff]
      %v4621 = vld [vmem:[%s4605 + $0x78] sm:$0xff]
      %v4622 = vld [vmem:[%s4605 + $0x80] sm:$0xff]
      %v4623 = vld [vmem:[%s4605 + $0x88] sm:$0xff]
      %v4624 = vld [vmem:[%s4605 + $0x90] sm:$0xff]
      %v4625 = vld [vmem:[%s4605 + $0x98] sm:$0xff]
      %v4626 = vld [vmem:[%s4605 + $0xa0] sm:$0xff]
      %v4627 = vld [vmem:[%s4605 + $0xa8] sm:$0xff]
      %v4628 = vld [vmem:[%s4605 + $0xb0] sm:$0xff]
      %v4629 = vld [vmem:[%s4605 + $0xb8] sm:$0xff]
      %v4630 = vld [vmem:[%s4605 + $0xc0] sm:$0xff]
      %v4631 = vld [vmem:[%s4605 + $0xc8] sm:$0xff]
      %v4632 = vld [vmem:[%s4605 + $0xd0] sm:$0xff]
      %v4633 = vld [vmem:[%s4605 + $0xd8] sm:$0xff]
      %v4634 = vld [vmem:[%s4605 + $0xe0] sm:$0xff]
      %v4635 = vld [vmem:[%s4605 + $0xe8] sm:$0xff]
      %v4636 = vld [vmem:[%s4605 + $0xf0] sm:$0xff]
      %v4637 = vld [vmem:[%s4605 + $0xf8] sm:$0xff]
      %v4638 = vld [vmem:[%s4605 + $0x100] sm:$0xff]
      %v4639 = vld [vmem:[%s4605 + $0x108] sm:$0xff]
      %v4640 = vld [vmem:[%s4605 + $0x110] sm:$0xff]
      %v4641 = vld [vmem:[%s4605 + $0x118] sm:$0xff]
      %v4642 = vld [vmem:[%s4605 + $0x120] sm:$0xff]
      %v4643 = vld [vmem:[%s4605 + $0x128] sm:$0xff]
      %v4644 = vld [vmem:[%s4605 + $0x130] sm:$0xff]
      %v4645 = vld [vmem:[%s4605 + $0x138] sm:$0xff]
      %v4647 = vshrl.u32 %v4298, 16
      %v4650 = vshrl.u32 %v4299, 16
      %v4652 = vshrl.u32 %v4300, 16
      %v4696 = vunpack.c.l.b16 %v4606
      %v4697 = vunpack.c.h.b16 %v4606
      %v4698 = vunpack.c.l.b16 %v4607
      %v4699 = vunpack.c.h.b16 %v4607
      %v4700 = vunpack.c.l.b16 %v4608
      %v4701 = vunpack.c.h.b16 %v4608
      %v4702 = vunpack.c.l.b16 %v4609
      %v4703 = vunpack.c.h.b16 %v4609
      %v4704 = vunpack.c.l.b16 %v4610
      %v4705 = vunpack.c.h.b16 %v4610
      %v4706 = vunpack.c.l.b16 %v4611
      %v4707 = vunpack.c.h.b16 %v4611
      %v4708 = vunpack.c.l.b16 %v4612
      %v4709 = vunpack.c.h.b16 %v4612
      %v4710 = vunpack.c.l.b16 %v4613
      %v4711 = vunpack.c.h.b16 %v4613
      %v4712 = vunpack.c.l.b16 %v4614
      %v4713 = vunpack.c.h.b16 %v4614
      %v4714 = vunpack.c.l.b16 %v4615
      %v4715 = vunpack.c.h.b16 %v4615
      %v4716 = vunpack.c.l.b16 %v4616
      %v4717 = vunpack.c.h.b16 %v4616
      %v4718 = vunpack.c.l.b16 %v4617
      %v4719 = vunpack.c.h.b16 %v4617
      %v4720 = vunpack.c.l.b16 %v4618
      %v4721 = vunpack.c.h.b16 %v4618
      %v4722 = vunpack.c.l.b16 %v4619
      %v4723 = vunpack.c.h.b16 %v4619
      %v4724 = vunpack.c.l.b16 %v4620
      %v4725 = vunpack.c.h.b16 %v4620
      %v4726 = vunpack.c.l.b16 %v4621
      %v4727 = vunpack.c.h.b16 %v4621
      %v4728 = vunpack.c.l.b16 %v4622
      %v4729 = vunpack.c.h.b16 %v4622
      %v4730 = vunpack.c.l.b16 %v4623
      %v4731 = vunpack.c.h.b16 %v4623
      %v4732 = vunpack.c.l.b16 %v4624
      %v4733 = vunpack.c.h.b16 %v4624
      %v4734 = vunpack.c.l.b16 %v4625
      %v4735 = vunpack.c.h.b16 %v4625
      %v4736 = vunpack.c.l.b16 %v4626
      %v4737 = vunpack.c.h.b16 %v4626
      %v4738 = vunpack.c.l.b16 %v4627
      %v4739 = vunpack.c.h.b16 %v4627
      %v4740 = vunpack.c.l.b16 %v4628
      %v4741 = vunpack.c.h.b16 %v4628
      %v4742 = vunpack.c.l.b16 %v4629
      %v4743 = vunpack.c.h.b16 %v4629
      %v4744 = vunpack.c.l.b16 %v4630
      %v4745 = vunpack.c.h.b16 %v4630
      %v4746 = vunpack.c.l.b16 %v4631
      %v4747 = vunpack.c.h.b16 %v4631
      %v4748 = vunpack.c.l.b16 %v4632
      %v4749 = vunpack.c.h.b16 %v4632
      %v4750 = vunpack.c.l.b16 %v4633
      %v4751 = vunpack.c.h.b16 %v4633
      %v4752 = vunpack.c.l.b16 %v4634
      %v4753 = vunpack.c.h.b16 %v4634
      %v4754 = vunpack.c.l.b16 %v4635
      %v4755 = vunpack.c.h.b16 %v4635
      %v4756 = vunpack.c.l.b16 %v4636
      %v4757 = vunpack.c.h.b16 %v4636
      %v4758 = vunpack.c.l.b16 %v4637
      %v4759 = vunpack.c.h.b16 %v4637
      %v4760 = vunpack.c.l.b16 %v4638
      %v4761 = vunpack.c.h.b16 %v4638
      %v4762 = vunpack.c.l.b16 %v4639
      %v4763 = vunpack.c.h.b16 %v4639
      %v4764 = vunpack.c.l.b16 %v4640
      %v4765 = vunpack.c.h.b16 %v4640
      %v4766 = vunpack.c.l.b16 %v4641
      %v4767 = vunpack.c.h.b16 %v4641
      %v4768 = vunpack.c.l.b16 %v4642
      %v4769 = vunpack.c.h.b16 %v4642
      %v4770 = vunpack.c.l.b16 %v4643
      %v4771 = vunpack.c.h.b16 %v4643
      %v4772 = vunpack.c.l.b16 %v4644
      %v4773 = vunpack.c.h.b16 %v4644
      %v4774 = vunpack.c.l.b16 %v4645
      %v4775 = vunpack.c.h.b16 %v4645
      %v4776 = vpack.c.b16 %v4698, %v4696
      %v4777 = vpack.c.b16 %v4699, %v4697
      %v4778 = vpack.c.b16 %v4702, %v4700
      %v4779 = vpack.c.b16 %v4703, %v4701
      %v4780 = vpack.c.b16 %v4706, %v4704
      %v4781 = vpack.c.b16 %v4707, %v4705
      %v4782 = vpack.c.b16 %v4710, %v4708
      %v4783 = vpack.c.b16 %v4711, %v4709
      %v4784 = vpack.c.b16 %v4714, %v4712
      %v4785 = vpack.c.b16 %v4715, %v4713
      %v4786 = vpack.c.b16 %v4718, %v4716
      %v4787 = vpack.c.b16 %v4719, %v4717
      %v4788 = vpack.c.b16 %v4722, %v4720
      %v4789 = vpack.c.b16 %v4723, %v4721
      %v4790 = vpack.c.b16 %v4726, %v4724
      %v4791 = vpack.c.b16 %v4727, %v4725
      %v4792 = vpack.c.b16 %v4730, %v4728
      %v4793 = vpack.c.b16 %v4731, %v4729
      %v4794 = vpack.c.b16 %v4734, %v4732
      %v4795 = vpack.c.b16 %v4735, %v4733
      %v4796 = vpack.c.b16 %v4738, %v4736
      %v4797 = vpack.c.b16 %v4739, %v4737
      %v4798 = vpack.c.b16 %v4742, %v4740
      %v4799 = vpack.c.b16 %v4743, %v4741
      %v4800 = vpack.c.b16 %v4746, %v4744
      %v4801 = vpack.c.b16 %v4747, %v4745
      %v4802 = vpack.c.b16 %v4750, %v4748
      %v4803 = vpack.c.b16 %v4751, %v4749
      %v4804 = vpack.c.b16 %v4754, %v4752
      %v4805 = vpack.c.b16 %v4755, %v4753
      %v4806 = vpack.c.b16 %v4758, %v4756
      %v4807 = vpack.c.b16 %v4759, %v4757
      %v4808 = vpack.c.b16 %v4762, %v4760
      %v4809 = vpack.c.b16 %v4763, %v4761
      %v4810 = vpack.c.b16 %v4766, %v4764
      %v4811 = vpack.c.b16 %v4767, %v4765
      %v4812 = vpack.c.b16 %v4770, %v4768
      %v4813 = vpack.c.b16 %v4771, %v4769
      %v4814 = vpack.c.b16 %v4774, %v4772
      %v4815 = vpack.c.b16 %v4775, %v4773
      %v4857 = vsel %vm2386, %v4652, 0
      %4859 = vmatprep.subr.bf16.mxu0 %v4791
      %4860 = vmatpush1.bf16.msra.mxu0 %v4790
      %4861 = vmatprep.subr.bf16.mxu0 %v4789
      %4862 = vmatpush1.bf16.msra.mxu0 %v4788
      %4863 = vmatprep.subr.bf16.mxu0 %v4787
      %4864 = vmatpush1.bf16.msra.mxu0 %v4786
      %4865 = vmatprep.subr.bf16.mxu0 %v4785
      %4866 = vmatpush1.bf16.msra.mxu0 %v4784
      %4867 = vmatprep.subr.bf16.mxu0 %v4783
      %4868 = vmatpush1.bf16.msra.mxu0 %v4782
      %4869 = vmatprep.subr.bf16.mxu0 %v4781
      %4870 = vmatpush1.bf16.msra.mxu0 %v4780
      %4871 = vmatprep.subr.bf16.mxu0 %v4779
      %4872 = vmatpush1.bf16.msra.mxu0 %v4778
      %4873 = vmatprep.subr.bf16.mxu0 %v4777
      %4874 = vmatpush1.bf16.msra.mxu0 %v4776
      %4875 = vmatprep.subr.bf16.mxu0 %v4807
      %4876 = vmatpush2.bf16.msra.mxu0 %v4806
      %4877 = vmatprep.subr.bf16.mxu0 %v4805
      %4878 = vmatpush2.bf16.msra.mxu0 %v4804
      %4879 = vmatprep.subr.bf16.mxu0 %v4803
      %4880 = vmatpush2.bf16.msra.mxu0 %v4802
      %4881 = vmatprep.subr.bf16.mxu0 %v4801
      %4882 = vmatpush2.bf16.msra.mxu0 %v4800
      %4883 = vmatprep.subr.bf16.mxu0 %v4799
      %4884 = vmatpush2.bf16.msra.mxu0 %v4798
      %4885 = vmatprep.subr.bf16.mxu0 %v4797
      %4886 = vmatpush2.bf16.msra.mxu0 %v4796
      %4887 = vmatprep.subr.bf16.mxu0 %v4795
      %4888 = vmatpush2.bf16.msra.mxu0 %v4794
      %4889 = vmatprep.subr.bf16.mxu0 %v4793
      %4890 = vmatpush2.bf16.msra.mxu0 %v4792
      %4891 = vmatprep.mubr.bf16.mxu0 %v4650
      %4892 = vmatmul.mubr.bf16.gmra.mxu0 %v4647
      %v4893 = vpop.f32.mrf.mxu0
      %v4894 = vadd.f32 0.0, %v4893
      %v4895 = vpop.f32.mrf.mxu0
      %v4896 = vadd.f32 0.0, %v4895
      %v4897 = vpop.f32.mrf.mxu0
      %v4898 = vpop.f32.mrf.mxu0
      %4899 = vdwg.mxu0
      %4900 = vmatprep.subr.bf16.mxu0 0
      %4901 = vmatpush1.bf16.msra.mxu0 0
      %4902 = vmatprep.subr.bf16.mxu0 0
      %4903 = vmatpush1.bf16.msra.mxu0 0
      %4904 = vmatprep.subr.bf16.mxu0 0
      %4905 = vmatpush1.bf16.msra.mxu0 0
      %4906 = vmatprep.subr.bf16.mxu0 0
      %4907 = vmatpush1.bf16.msra.mxu0 0
      %4908 = vmatprep.subr.bf16.mxu0 %v4815
      %4909 = vmatpush1.bf16.msra.mxu0 %v4814
      %4910 = vmatprep.subr.bf16.mxu0 %v4813
      %4911 = vmatpush1.bf16.msra.mxu0 %v4812
      %4912 = vmatprep.subr.bf16.mxu0 %v4811
      %4913 = vmatpush1.bf16.msra.mxu0 %v4810
      %4914 = vmatprep.subr.bf16.mxu0 %v4809
      %4915 = vmatpush1.bf16.msra.mxu0 %v4808
      %4916 = vmatprep.subr.bf16.mxu0 0
      %4917 = vmatpush2.bf16.msra.mxu0 0
      %4918 = vmatprep.subr.bf16.mxu0 0
      %4919 = vmatpush2.bf16.msra.mxu0 0
      %4920 = vmatprep.subr.bf16.mxu0 0
      %4921 = vmatpush2.bf16.msra.mxu0 0
      %4922 = vmatprep.subr.bf16.mxu0 0
      %4923 = vmatpush2.bf16.msra.mxu0 0
      %4924 = vmatprep.subr.bf16.mxu0 0
      %4925 = vmatpush2.bf16.msra.mxu0 0
      %4926 = vmatprep.subr.bf16.mxu0 0
      %4927 = vmatpush2.bf16.msra.mxu0 0
      %4928 = vmatprep.subr.bf16.mxu0 0
      %4929 = vmatpush2.bf16.msra.mxu0 0
      %4930 = vmatprep.subr.bf16.mxu0 0
      %4931 = vmatpush2.bf16.msra.mxu0 0
      %4932 = vmatprep.mubr.bf16.mxu0 0
      %4933 = vmatmul.mubr.bf16.gmra.mxu0 %v4857
      %v4934 = vpop.f32.mrf.mxu0
      %v4935 = vadd.f32 %v4894, %v4934
      %v4936 = vpop.f32.mrf.mxu0
      %v4937 = vadd.f32 %v4896, %v4936
      %v4938 = vpop.f32.mrf.mxu0
      %v4939 = vpop.f32.mrf.mxu0
      %4940 = vdwg.mxu0
      %v4943 = vcombine.low %v4935, %v4937
      %v4945 = vunpack.c.l.s4 1966171168
      %v4946 = vunpack.c.0.s8 %v4945
      %v4947 = vlaneseq
      %v4948 = vshrl.u32 %v4947, 7
      %v4949 = vsub.s32 %v4946, %v4948
      %v4950 = vrot.slane %v4943, %v4949
      %v4952 = vunpack.c.l.s4 1966171168
      %v4953 = vunpack.c.0.s8 %v4952
      %v4954 = vlaneseq
      %v4955 = vshrl.u32 %v4954, 7
      %v4956 = vsub.s32 %v4953, %v4955
      %v4957 = vrot.slane %v4950, %v4956
      %v4959 = vadd.f32 %v4604, %v4957
      %s4960 = scalar_lea.vmem %s5, 640
      %v4961 = vld [vmem:[%s4960] sm:$0xff]
      %v4962 = vld [vmem:[%s4960 + $0x8] sm:$0xff]
      %v4963 = vld [vmem:[%s4960 + $0x10] sm:$0xff]
      %v4964 = vld [vmem:[%s4960 + $0x18] sm:$0xff]
      %v4965 = vld [vmem:[%s4960 + $0x20] sm:$0xff]
      %v4966 = vld [vmem:[%s4960 + $0x28] sm:$0xff]
      %v4967 = vld [vmem:[%s4960 + $0x30] sm:$0xff]
      %v4968 = vld [vmem:[%s4960 + $0x38] sm:$0xff]
      %v4969 = vld [vmem:[%s4960 + $0x40] sm:$0xff]
      %v4970 = vld [vmem:[%s4960 + $0x48] sm:$0xff]
      %v4971 = vld [vmem:[%s4960 + $0x50] sm:$0xff]
      %v4972 = vld [vmem:[%s4960 + $0x58] sm:$0xff]
      %v4973 = vld [vmem:[%s4960 + $0x60] sm:$0xff]
      %v4974 = vld [vmem:[%s4960 + $0x68] sm:$0xff]
      %v4975 = vld [vmem:[%s4960 + $0x70] sm:$0xff]
      %v4976 = vld [vmem:[%s4960 + $0x78] sm:$0xff]
      %v4977 = vld [vmem:[%s4960 + $0x80] sm:$0xff]
      %v4978 = vld [vmem:[%s4960 + $0x88] sm:$0xff]
      %v4979 = vld [vmem:[%s4960 + $0x90] sm:$0xff]
      %v4980 = vld [vmem:[%s4960 + $0x98] sm:$0xff]
      %v4981 = vld [vmem:[%s4960 + $0xa0] sm:$0xff]
      %v4982 = vld [vmem:[%s4960 + $0xa8] sm:$0xff]
      %v4983 = vld [vmem:[%s4960 + $0xb0] sm:$0xff]
      %v4984 = vld [vmem:[%s4960 + $0xb8] sm:$0xff]
      %v4985 = vld [vmem:[%s4960 + $0xc0] sm:$0xff]
      %v4986 = vld [vmem:[%s4960 + $0xc8] sm:$0xff]
      %v4987 = vld [vmem:[%s4960 + $0xd0] sm:$0xff]
      %v4988 = vld [vmem:[%s4960 + $0xd8] sm:$0xff]
      %v4989 = vld [vmem:[%s4960 + $0xe0] sm:$0xff]
      %v4990 = vld [vmem:[%s4960 + $0xe8] sm:$0xff]
      %v4991 = vld [vmem:[%s4960 + $0xf0] sm:$0xff]
      %v4992 = vld [vmem:[%s4960 + $0xf8] sm:$0xff]
      %v4993 = vld [vmem:[%s4960 + $0x100] sm:$0xff]
      %v4994 = vld [vmem:[%s4960 + $0x108] sm:$0xff]
      %v4995 = vld [vmem:[%s4960 + $0x110] sm:$0xff]
      %v4996 = vld [vmem:[%s4960 + $0x118] sm:$0xff]
      %v4997 = vld [vmem:[%s4960 + $0x120] sm:$0xff]
      %v4998 = vld [vmem:[%s4960 + $0x128] sm:$0xff]
      %v4999 = vld [vmem:[%s4960 + $0x130] sm:$0xff]
      %v5000 = vld [vmem:[%s4960 + $0x138] sm:$0xff]
      %v5004 = vrot.slane %v4298, 1
      %v5005 = vrot.slane %v4299, 1
      %v5006 = vrot.slane %v4300, 1
      %v5049 = vunpack.c.l.b16 %v4961
      %v5050 = vunpack.c.h.b16 %v4961
      %v5051 = vunpack.c.l.b16 %v4962
      %v5052 = vunpack.c.h.b16 %v4962
      %v5053 = vunpack.c.l.b16 %v4963
      %v5054 = vunpack.c.h.b16 %v4963
      %v5055 = vunpack.c.l.b16 %v4964
      %v5056 = vunpack.c.h.b16 %v4964
      %v5057 = vunpack.c.l.b16 %v4965
      %v5058 = vunpack.c.h.b16 %v4965
      %v5059 = vunpack.c.l.b16 %v4966
      %v5060 = vunpack.c.h.b16 %v4966
      %v5061 = vunpack.c.l.b16 %v4967
      %v5062 = vunpack.c.h.b16 %v4967
      %v5063 = vunpack.c.l.b16 %v4968
      %v5064 = vunpack.c.h.b16 %v4968
      %v5065 = vunpack.c.l.b16 %v4969
      %v5066 = vunpack.c.h.b16 %v4969
      %v5067 = vunpack.c.l.b16 %v4970
      %v5068 = vunpack.c.h.b16 %v4970
      %v5069 = vunpack.c.l.b16 %v4971
      %v5070 = vunpack.c.h.b16 %v4971
      %v5071 = vunpack.c.l.b16 %v4972
      %v5072 = vunpack.c.h.b16 %v4972
      %v5073 = vunpack.c.l.b16 %v4973
      %v5074 = vunpack.c.h.b16 %v4973
      %v5075 = vunpack.c.l.b16 %v4974
      %v5076 = vunpack.c.h.b16 %v4974
      %v5077 = vunpack.c.l.b16 %v4975
      %v5078 = vunpack.c.h.b16 %v4975
      %v5079 = vunpack.c.l.b16 %v4976
      %v5080 = vunpack.c.h.b16 %v4976
      %v5081 = vunpack.c.l.b16 %v4977
      %v5082 = vunpack.c.h.b16 %v4977
      %v5083 = vunpack.c.l.b16 %v4978
      %v5084 = vunpack.c.h.b16 %v4978
      %v5085 = vunpack.c.l.b16 %v4979
      %v5086 = vunpack.c.h.b16 %v4979
      %v5087 = vunpack.c.l.b16 %v4980
      %v5088 = vunpack.c.h.b16 %v4980
      %v5089 = vunpack.c.l.b16 %v4981
      %v5090 = vunpack.c.h.b16 %v4981
      %v5091 = vunpack.c.l.b16 %v4982
      %v5092 = vunpack.c.h.b16 %v4982
      %v5093 = vunpack.c.l.b16 %v4983
      %v5094 = vunpack.c.h.b16 %v4983
      %v5095 = vunpack.c.l.b16 %v4984
      %v5096 = vunpack.c.h.b16 %v4984
      %v5097 = vunpack.c.l.b16 %v4985
      %v5098 = vunpack.c.h.b16 %v4985
      %v5099 = vunpack.c.l.b16 %v4986
      %v5100 = vunpack.c.h.b16 %v4986
      %v5101 = vunpack.c.l.b16 %v4987
      %v5102 = vunpack.c.h.b16 %v4987
      %v5103 = vunpack.c.l.b16 %v4988
      %v5104 = vunpack.c.h.b16 %v4988
      %v5105 = vunpack.c.l.b16 %v4989
      %v5106 = vunpack.c.h.b16 %v4989
      %v5107 = vunpack.c.l.b16 %v4990
      %v5108 = vunpack.c.h.b16 %v4990
      %v5109 = vunpack.c.l.b16 %v4991
      %v5110 = vunpack.c.h.b16 %v4991
      %v5111 = vunpack.c.l.b16 %v4992
      %v5112 = vunpack.c.h.b16 %v4992
      %v5113 = vunpack.c.l.b16 %v4993
      %v5114 = vunpack.c.h.b16 %v4993
      %v5115 = vunpack.c.l.b16 %v4994
      %v5116 = vunpack.c.h.b16 %v4994
      %v5117 = vunpack.c.l.b16 %v4995
      %v5118 = vunpack.c.h.b16 %v4995
      %v5119 = vunpack.c.l.b16 %v4996
      %v5120 = vunpack.c.h.b16 %v4996
      %v5121 = vunpack.c.l.b16 %v4997
      %v5122 = vunpack.c.h.b16 %v4997
      %v5123 = vunpack.c.l.b16 %v4998
      %v5124 = vunpack.c.h.b16 %v4998
      %v5125 = vunpack.c.l.b16 %v4999
      %v5126 = vunpack.c.h.b16 %v4999
      %v5127 = vunpack.c.l.b16 %v5000
      %v5128 = vunpack.c.h.b16 %v5000
      %v5129 = vpack.c.b16 %v5051, %v5049
      %v5130 = vpack.c.b16 %v5052, %v5050
      %v5131 = vpack.c.b16 %v5055, %v5053
      %v5132 = vpack.c.b16 %v5056, %v5054
      %v5133 = vpack.c.b16 %v5059, %v5057
      %v5134 = vpack.c.b16 %v5060, %v5058
      %v5135 = vpack.c.b16 %v5063, %v5061
      %v5136 = vpack.c.b16 %v5064, %v5062
      %v5137 = vpack.c.b16 %v5067, %v5065
      %v5138 = vpack.c.b16 %v5068, %v5066
      %v5139 = vpack.c.b16 %v5071, %v5069
      %v5140 = vpack.c.b16 %v5072, %v5070
      %v5141 = vpack.c.b16 %v5075, %v5073
      %v5142 = vpack.c.b16 %v5076, %v5074
      %v5143 = vpack.c.b16 %v5079, %v5077
      %v5144 = vpack.c.b16 %v5080, %v5078
      %v5145 = vpack.c.b16 %v5083, %v5081
      %v5146 = vpack.c.b16 %v5084, %v5082
      %v5147 = vpack.c.b16 %v5087, %v5085
      %v5148 = vpack.c.b16 %v5088, %v5086
      %v5149 = vpack.c.b16 %v5091, %v5089
      %v5150 = vpack.c.b16 %v5092, %v5090
      %v5151 = vpack.c.b16 %v5095, %v5093
      %v5152 = vpack.c.b16 %v5096, %v5094
      %v5153 = vpack.c.b16 %v5099, %v5097
      %v5154 = vpack.c.b16 %v5100, %v5098
      %v5155 = vpack.c.b16 %v5103, %v5101
      %v5156 = vpack.c.b16 %v5104, %v5102
      %v5157 = vpack.c.b16 %v5107, %v5105
      %v5158 = vpack.c.b16 %v5108, %v5106
      %v5159 = vpack.c.b16 %v5111, %v5109
      %v5160 = vpack.c.b16 %v5112, %v5110
      %v5161 = vpack.c.b16 %v5115, %v5113
      %v5162 = vpack.c.b16 %v5116, %v5114
      %v5163 = vpack.c.b16 %v5119, %v5117
      %v5164 = vpack.c.b16 %v5120, %v5118
      %v5165 = vpack.c.b16 %v5123, %v5121
      %v5166 = vpack.c.b16 %v5124, %v5122
      %v5167 = vpack.c.b16 %v5127, %v5125
      %v5168 = vpack.c.b16 %v5128, %v5126
      %v5210 = vsel %vm2386, %v5006, 0
      %5212 = vmatprep.subr.bf16.mxu0 %v5144
      %5213 = vmatpush1.bf16.msra.mxu0 %v5143
      %5214 = vmatprep.subr.bf16.mxu0 %v5142
      %5215 = vmatpush1.bf16.msra.mxu0 %v5141
      %5216 = vmatprep.subr.bf16.mxu0 %v5140
      %5217 = vmatpush1.bf16.msra.mxu0 %v5139
      %5218 = vmatprep.subr.bf16.mxu0 %v5138
      %5219 = vmatpush1.bf16.msra.mxu0 %v5137
      %5220 = vmatprep.subr.bf16.mxu0 %v5136
      %5221 = vmatpush1.bf16.msra.mxu0 %v5135
      %5222 = vmatprep.subr.bf16.mxu0 %v5134
      %5223 = vmatpush1.bf16.msra.mxu0 %v5133
      %5224 = vmatprep.subr.bf16.mxu0 %v5132
      %5225 = vmatpush1.bf16.msra.mxu0 %v5131
      %5226 = vmatprep.subr.bf16.mxu0 %v5130
      %5227 = vmatpush1.bf16.msra.mxu0 %v5129
      %5228 = vmatprep.subr.bf16.mxu0 %v5160
      %5229 = vmatpush2.bf16.msra.mxu0 %v5159
      %5230 = vmatprep.subr.bf16.mxu0 %v5158
      %5231 = vmatpush2.bf16.msra.mxu0 %v5157
      %5232 = vmatprep.subr.bf16.mxu0 %v5156
      %5233 = vmatpush2.bf16.msra.mxu0 %v5155
      %5234 = vmatprep.subr.bf16.mxu0 %v5154
      %5235 = vmatpush2.bf16.msra.mxu0 %v5153
      %5236 = vmatprep.subr.bf16.mxu0 %v5152
      %5237 = vmatpush2.bf16.msra.mxu0 %v5151
      %5238 = vmatprep.subr.bf16.mxu0 %v5150
      %5239 = vmatpush2.bf16.msra.mxu0 %v5149
      %5240 = vmatprep.subr.bf16.mxu0 %v5148
      %5241 = vmatpush2.bf16.msra.mxu0 %v5147
      %5242 = vmatprep.subr.bf16.mxu0 %v5146
      %5243 = vmatpush2.bf16.msra.mxu0 %v5145
      %5244 = vmatprep.mubr.bf16.mxu0 %v5005
      %5245 = vmatmul.mubr.bf16.gmra.mxu0 %v5004
      %v5246 = vpop.f32.mrf.mxu0
      %v5247 = vadd.f32 0.0, %v5246
      %v5248 = vpop.f32.mrf.mxu0
      %v5249 = vadd.f32 0.0, %v5248
      %v5250 = vpop.f32.mrf.mxu0
      %v5251 = vpop.f32.mrf.mxu0
      %5252 = vdwg.mxu0
      %5253 = vmatprep.subr.bf16.mxu0 0
      %5254 = vmatpush1.bf16.msra.mxu0 0
      %5255 = vmatprep.subr.bf16.mxu0 0
      %5256 = vmatpush1.bf16.msra.mxu0 0
      %5257 = vmatprep.subr.bf16.mxu0 0
      %5258 = vmatpush1.bf16.msra.mxu0 0
      %5259 = vmatprep.subr.bf16.mxu0 0
      %5260 = vmatpush1.bf16.msra.mxu0 0
      %5261 = vmatprep.subr.bf16.mxu0 %v5168
      %5262 = vmatpush1.bf16.msra.mxu0 %v5167
      %5263 = vmatprep.subr.bf16.mxu0 %v5166
      %5264 = vmatpush1.bf16.msra.mxu0 %v5165
      %5265 = vmatprep.subr.bf16.mxu0 %v5164
      %5266 = vmatpush1.bf16.msra.mxu0 %v5163
      %5267 = vmatprep.subr.bf16.mxu0 %v5162
      %5268 = vmatpush1.bf16.msra.mxu0 %v5161
      %5269 = vmatprep.subr.bf16.mxu0 0
      %5270 = vmatpush2.bf16.msra.mxu0 0
      %5271 = vmatprep.subr.bf16.mxu0 0
      %5272 = vmatpush2.bf16.msra.mxu0 0
      %5273 = vmatprep.subr.bf16.mxu0 0
      %5274 = vmatpush2.bf16.msra.mxu0 0
      %5275 = vmatprep.subr.bf16.mxu0 0
      %5276 = vmatpush2.bf16.msra.mxu0 0
      %5277 = vmatprep.subr.bf16.mxu0 0
      %5278 = vmatpush2.bf16.msra.mxu0 0
      %5279 = vmatprep.subr.bf16.mxu0 0
      %5280 = vmatpush2.bf16.msra.mxu0 0
      %5281 = vmatprep.subr.bf16.mxu0 0
      %5282 = vmatpush2.bf16.msra.mxu0 0
      %5283 = vmatprep.subr.bf16.mxu0 0
      %5284 = vmatpush2.bf16.msra.mxu0 0
      %5285 = vmatprep.mubr.bf16.mxu0 0
      %5286 = vmatmul.mubr.bf16.gmra.mxu0 %v5210
      %v5287 = vpop.f32.mrf.mxu0
      %v5288 = vadd.f32 %v5247, %v5287
      %v5289 = vpop.f32.mrf.mxu0
      %v5290 = vadd.f32 %v5249, %v5289
      %v5291 = vpop.f32.mrf.mxu0
      %v5292 = vpop.f32.mrf.mxu0
      %5293 = vdwg.mxu0
      %v5296 = vcombine.low %v5288, %v5290
      %v5298 = vunpack.c.l.s4 1966171168
      %v5299 = vunpack.c.0.s8 %v5298
      %v5300 = vlaneseq
      %v5301 = vshrl.u32 %v5300, 7
      %v5302 = vsub.s32 %v5299, %v5301
      %v5303 = vrot.slane %v5296, %v5302
      %v5305 = vunpack.c.l.s4 1966171168
      %v5306 = vunpack.c.0.s8 %v5305
      %v5307 = vlaneseq
      %v5308 = vshrl.u32 %v5307, 7
      %v5309 = vsub.s32 %v5306, %v5308
      %v5310 = vrot.slane %v5303, %v5309
      %v5312 = vadd.f32 %v4959, %v5310
      %s5313 = scalar_lea.vmem %s5, 960
      %v5314 = vld [vmem:[%s5313] sm:$0xff]
      %v5315 = vld [vmem:[%s5313 + $0x8] sm:$0xff]
      %v5316 = vld [vmem:[%s5313 + $0x10] sm:$0xff]
      %v5317 = vld [vmem:[%s5313 + $0x18] sm:$0xff]
      %v5318 = vld [vmem:[%s5313 + $0x20] sm:$0xff]
      %v5319 = vld [vmem:[%s5313 + $0x28] sm:$0xff]
      %v5320 = vld [vmem:[%s5313 + $0x30] sm:$0xff]
      %v5321 = vld [vmem:[%s5313 + $0x38] sm:$0xff]
      %v5322 = vld [vmem:[%s5313 + $0x40] sm:$0xff]
      %v5323 = vld [vmem:[%s5313 + $0x48] sm:$0xff]
      %v5324 = vld [vmem:[%s5313 + $0x50] sm:$0xff]
      %v5325 = vld [vmem:[%s5313 + $0x58] sm:$0xff]
      %v5326 = vld [vmem:[%s5313 + $0x60] sm:$0xff]
      %v5327 = vld [vmem:[%s5313 + $0x68] sm:$0xff]
      %v5328 = vld [vmem:[%s5313 + $0x70] sm:$0xff]
      %v5329 = vld [vmem:[%s5313 + $0x78] sm:$0xff]
      %v5330 = vld [vmem:[%s5313 + $0x80] sm:$0xff]
      %v5331 = vld [vmem:[%s5313 + $0x88] sm:$0xff]
      %v5332 = vld [vmem:[%s5313 + $0x90] sm:$0xff]
      %v5333 = vld [vmem:[%s5313 + $0x98] sm:$0xff]
      %v5334 = vld [vmem:[%s5313 + $0xa0] sm:$0xff]
      %v5335 = vld [vmem:[%s5313 + $0xa8] sm:$0xff]
      %v5336 = vld [vmem:[%s5313 + $0xb0] sm:$0xff]
      %v5337 = vld [vmem:[%s5313 + $0xb8] sm:$0xff]
      %v5338 = vld [vmem:[%s5313 + $0xc0] sm:$0xff]
      %v5339 = vld [vmem:[%s5313 + $0xc8] sm:$0xff]
      %v5340 = vld [vmem:[%s5313 + $0xd0] sm:$0xff]
      %v5341 = vld [vmem:[%s5313 + $0xd8] sm:$0xff]
      %v5342 = vld [vmem:[%s5313 + $0xe0] sm:$0xff]
      %v5343 = vld [vmem:[%s5313 + $0xe8] sm:$0xff]
      %v5344 = vld [vmem:[%s5313 + $0xf0] sm:$0xff]
      %v5345 = vld [vmem:[%s5313 + $0xf8] sm:$0xff]
      %v5346 = vld [vmem:[%s5313 + $0x100] sm:$0xff]
      %v5347 = vld [vmem:[%s5313 + $0x108] sm:$0xff]
      %v5348 = vld [vmem:[%s5313 + $0x110] sm:$0xff]
      %v5349 = vld [vmem:[%s5313 + $0x118] sm:$0xff]
      %v5350 = vld [vmem:[%s5313 + $0x120] sm:$0xff]
      %v5351 = vld [vmem:[%s5313 + $0x128] sm:$0xff]
      %v5352 = vld [vmem:[%s5313 + $0x130] sm:$0xff]
      %v5353 = vld [vmem:[%s5313 + $0x138] sm:$0xff]
      %v5354 = vrot.slane %v4647, 1
      %v5355 = vrot.slane %v4650, 1
      %v5356 = vrot.slane %v4652, 1
      %v5399 = vunpack.c.l.b16 %v5314
      %v5400 = vunpack.c.h.b16 %v5314
      %v5401 = vunpack.c.l.b16 %v5315
      %v5402 = vunpack.c.h.b16 %v5315
      %v5403 = vunpack.c.l.b16 %v5316
      %v5404 = vunpack.c.h.b16 %v5316
      %v5405 = vunpack.c.l.b16 %v5317
      %v5406 = vunpack.c.h.b16 %v5317
      %v5407 = vunpack.c.l.b16 %v5318
      %v5408 = vunpack.c.h.b16 %v5318
      %v5409 = vunpack.c.l.b16 %v5319
      %v5410 = vunpack.c.h.b16 %v5319
      %v5411 = vunpack.c.l.b16 %v5320
      %v5412 = vunpack.c.h.b16 %v5320
      %v5413 = vunpack.c.l.b16 %v5321
      %v5414 = vunpack.c.h.b16 %v5321
      %v5415 = vunpack.c.l.b16 %v5322
      %v5416 = vunpack.c.h.b16 %v5322
      %v5417 = vunpack.c.l.b16 %v5323
      %v5418 = vunpack.c.h.b16 %v5323
      %v5419 = vunpack.c.l.b16 %v5324
      %v5420 = vunpack.c.h.b16 %v5324
      %v5421 = vunpack.c.l.b16 %v5325
      %v5422 = vunpack.c.h.b16 %v5325
      %v5423 = vunpack.c.l.b16 %v5326
      %v5424 = vunpack.c.h.b16 %v5326
      %v5425 = vunpack.c.l.b16 %v5327
      %v5426 = vunpack.c.h.b16 %v5327
      %v5427 = vunpack.c.l.b16 %v5328
      %v5428 = vunpack.c.h.b16 %v5328
      %v5429 = vunpack.c.l.b16 %v5329
      %v5430 = vunpack.c.h.b16 %v5329
      %v5431 = vunpack.c.l.b16 %v5330
      %v5432 = vunpack.c.h.b16 %v5330
      %v5433 = vunpack.c.l.b16 %v5331
      %v5434 = vunpack.c.h.b16 %v5331
      %v5435 = vunpack.c.l.b16 %v5332
      %v5436 = vunpack.c.h.b16 %v5332
      %v5437 = vunpack.c.l.b16 %v5333
      %v5438 = vunpack.c.h.b16 %v5333
      %v5439 = vunpack.c.l.b16 %v5334
      %v5440 = vunpack.c.h.b16 %v5334
      %v5441 = vunpack.c.l.b16 %v5335
      %v5442 = vunpack.c.h.b16 %v5335
      %v5443 = vunpack.c.l.b16 %v5336
      %v5444 = vunpack.c.h.b16 %v5336
      %v5445 = vunpack.c.l.b16 %v5337
      %v5446 = vunpack.c.h.b16 %v5337
      %v5447 = vunpack.c.l.b16 %v5338
      %v5448 = vunpack.c.h.b16 %v5338
      %v5449 = vunpack.c.l.b16 %v5339
      %v5450 = vunpack.c.h.b16 %v5339
      %v5451 = vunpack.c.l.b16 %v5340
      %v5452 = vunpack.c.h.b16 %v5340
      %v5453 = vunpack.c.l.b16 %v5341
      %v5454 = vunpack.c.h.b16 %v5341
      %v5455 = vunpack.c.l.b16 %v5342
      %v5456 = vunpack.c.h.b16 %v5342
      %v5457 = vunpack.c.l.b16 %v5343
      %v5458 = vunpack.c.h.b16 %v5343
      %v5459 = vunpack.c.l.b16 %v5344
      %v5460 = vunpack.c.h.b16 %v5344
      %v5461 = vunpack.c.l.b16 %v5345
      %v5462 = vunpack.c.h.b16 %v5345
      %v5463 = vunpack.c.l.b16 %v5346
      %v5464 = vunpack.c.h.b16 %v5346
      %v5465 = vunpack.c.l.b16 %v5347
      %v5466 = vunpack.c.h.b16 %v5347
      %v5467 = vunpack.c.l.b16 %v5348
      %v5468 = vunpack.c.h.b16 %v5348
      %v5469 = vunpack.c.l.b16 %v5349
      %v5470 = vunpack.c.h.b16 %v5349
      %v5471 = vunpack.c.l.b16 %v5350
      %v5472 = vunpack.c.h.b16 %v5350
      %v5473 = vunpack.c.l.b16 %v5351
      %v5474 = vunpack.c.h.b16 %v5351
      %v5475 = vunpack.c.l.b16 %v5352
      %v5476 = vunpack.c.h.b16 %v5352
      %v5477 = vunpack.c.l.b16 %v5353
      %v5478 = vunpack.c.h.b16 %v5353
      %v5479 = vpack.c.b16 %v5401, %v5399
      %v5480 = vpack.c.b16 %v5402, %v5400
      %v5481 = vpack.c.b16 %v5405, %v5403
      %v5482 = vpack.c.b16 %v5406, %v5404
      %v5483 = vpack.c.b16 %v5409, %v5407
      %v5484 = vpack.c.b16 %v5410, %v5408
      %v5485 = vpack.c.b16 %v5413, %v5411
      %v5486 = vpack.c.b16 %v5414, %v5412
      %v5487 = vpack.c.b16 %v5417, %v5415
      %v5488 = vpack.c.b16 %v5418, %v5416
      %v5489 = vpack.c.b16 %v5421, %v5419
      %v5490 = vpack.c.b16 %v5422, %v5420
      %v5491 = vpack.c.b16 %v5425, %v5423
      %v5492 = vpack.c.b16 %v5426, %v5424
      %v5493 = vpack.c.b16 %v5429, %v5427
      %v5494 = vpack.c.b16 %v5430, %v5428
      %v5495 = vpack.c.b16 %v5433, %v5431
      %v5496 = vpack.c.b16 %v5434, %v5432
      %v5497 = vpack.c.b16 %v5437, %v5435
      %v5498 = vpack.c.b16 %v5438, %v5436
      %v5499 = vpack.c.b16 %v5441, %v5439
      %v5500 = vpack.c.b16 %v5442, %v5440
      %v5501 = vpack.c.b16 %v5445, %v5443
      %v5502 = vpack.c.b16 %v5446, %v5444
      %v5503 = vpack.c.b16 %v5449, %v5447
      %v5504 = vpack.c.b16 %v5450, %v5448
      %v5505 = vpack.c.b16 %v5453, %v5451
      %v5506 = vpack.c.b16 %v5454, %v5452
      %v5507 = vpack.c.b16 %v5457, %v5455
      %v5508 = vpack.c.b16 %v5458, %v5456
      %v5509 = vpack.c.b16 %v5461, %v5459
      %v5510 = vpack.c.b16 %v5462, %v5460
      %v5511 = vpack.c.b16 %v5465, %v5463
      %v5512 = vpack.c.b16 %v5466, %v5464
      %v5513 = vpack.c.b16 %v5469, %v5467
      %v5514 = vpack.c.b16 %v5470, %v5468
      %v5515 = vpack.c.b16 %v5473, %v5471
      %v5516 = vpack.c.b16 %v5474, %v5472
      %v5517 = vpack.c.b16 %v5477, %v5475
      %v5518 = vpack.c.b16 %v5478, %v5476
      %v5560 = vsel %vm2386, %v5356, 0
      %5562 = vmatprep.subr.bf16.mxu0 %v5494
      %5563 = vmatpush1.bf16.msra.mxu0 %v5493
      %5564 = vmatprep.subr.bf16.mxu0 %v5492
      %5565 = vmatpush1.bf16.msra.mxu0 %v5491
      %5566 = vmatprep.subr.bf16.mxu0 %v5490
      %5567 = vmatpush1.bf16.msra.mxu0 %v5489
      %5568 = vmatprep.subr.bf16.mxu0 %v5488
      %5569 = vmatpush1.bf16.msra.mxu0 %v5487
      %5570 = vmatprep.subr.bf16.mxu0 %v5486
      %5571 = vmatpush1.bf16.msra.mxu0 %v5485
      %5572 = vmatprep.subr.bf16.mxu0 %v5484
      %5573 = vmatpush1.bf16.msra.mxu0 %v5483
      %5574 = vmatprep.subr.bf16.mxu0 %v5482
      %5575 = vmatpush1.bf16.msra.mxu0 %v5481
      %5576 = vmatprep.subr.bf16.mxu0 %v5480
      %5577 = vmatpush1.bf16.msra.mxu0 %v5479
      %5578 = vmatprep.subr.bf16.mxu0 %v5510
      %5579 = vmatpush2.bf16.msra.mxu0 %v5509
      %5580 = vmatprep.subr.bf16.mxu0 %v5508
      %5581 = vmatpush2.bf16.msra.mxu0 %v5507
      %5582 = vmatprep.subr.bf16.mxu0 %v5506
      %5583 = vmatpush2.bf16.msra.mxu0 %v5505
      %5584 = vmatprep.subr.bf16.mxu0 %v5504
      %5585 = vmatpush2.bf16.msra.mxu0 %v5503
      %5586 = vmatprep.subr.bf16.mxu0 %v5502
      %5587 = vmatpush2.bf16.msra.mxu0 %v5501
      %5588 = vmatprep.subr.bf16.mxu0 %v5500
      %5589 = vmatpush2.bf16.msra.mxu0 %v5499
      %5590 = vmatprep.subr.bf16.mxu0 %v5498
      %5591 = vmatpush2.bf16.msra.mxu0 %v5497
      %5592 = vmatprep.subr.bf16.mxu0 %v5496
      %5593 = vmatpush2.bf16.msra.mxu0 %v5495
      %5594 = vmatprep.mubr.bf16.mxu0 %v5355
      %5595 = vmatmul.mubr.bf16.gmra.mxu0 %v5354
      %v5596 = vpop.f32.mrf.mxu0
      %v5597 = vadd.f32 0.0, %v5596
      %v5598 = vpop.f32.mrf.mxu0
      %v5599 = vadd.f32 0.0, %v5598
      %v5600 = vpop.f32.mrf.mxu0
      %v5601 = vpop.f32.mrf.mxu0
      %5602 = vdwg.mxu0
      %5603 = vmatprep.subr.bf16.mxu0 0
      %5604 = vmatpush1.bf16.msra.mxu0 0
      %5605 = vmatprep.subr.bf16.mxu0 0
      %5606 = vmatpush1.bf16.msra.mxu0 0
      %5607 = vmatprep.subr.bf16.mxu0 0
      %5608 = vmatpush1.bf16.msra.mxu0 0
      %5609 = vmatprep.subr.bf16.mxu0 0
      %5610 = vmatpush1.bf16.msra.mxu0 0
      %5611 = vmatprep.subr.bf16.mxu0 %v5518
      %5612 = vmatpush1.bf16.msra.mxu0 %v5517
      %5613 = vmatprep.subr.bf16.mxu0 %v5516
      %5614 = vmatpush1.bf16.msra.mxu0 %v5515
      %5615 = vmatprep.subr.bf16.mxu0 %v5514
      %5616 = vmatpush1.bf16.msra.mxu0 %v5513
      %5617 = vmatprep.subr.bf16.mxu0 %v5512
      %5618 = vmatpush1.bf16.msra.mxu0 %v5511
      %5619 = vmatprep.subr.bf16.mxu0 0
      %5620 = vmatpush2.bf16.msra.mxu0 0
      %5621 = vmatprep.subr.bf16.mxu0 0
      %5622 = vmatpush2.bf16.msra.mxu0 0
      %5623 = vmatprep.subr.bf16.mxu0 0
      %5624 = vmatpush2.bf16.msra.mxu0 0
      %5625 = vmatprep.subr.bf16.mxu0 0
      %5626 = vmatpush2.bf16.msra.mxu0 0
      %5627 = vmatprep.subr.bf16.mxu0 0
      %5628 = vmatpush2.bf16.msra.mxu0 0
      %5629 = vmatprep.subr.bf16.mxu0 0
      %5630 = vmatpush2.bf16.msra.mxu0 0
      %5631 = vmatprep.subr.bf16.mxu0 0
      %5632 = vmatpush2.bf16.msra.mxu0 0
      %5633 = vmatprep.subr.bf16.mxu0 0
      %5634 = vmatpush2.bf16.msra.mxu0 0
      %5635 = vmatprep.mubr.bf16.mxu0 0
      %5636 = vmatmul.mubr.bf16.gmra.mxu0 %v5560
      %v5637 = vpop.f32.mrf.mxu0
      %v5638 = vadd.f32 %v5597, %v5637
      %v5639 = vpop.f32.mrf.mxu0
      %v5640 = vadd.f32 %v5599, %v5639
      %v5641 = vpop.f32.mrf.mxu0
      %v5642 = vpop.f32.mrf.mxu0
      %5643 = vdwg.mxu0
      %v5646 = vcombine.low %v5638, %v5640
      %v5648 = vunpack.c.l.s4 1966171168
      %v5649 = vunpack.c.0.s8 %v5648
      %v5650 = vlaneseq
      %v5651 = vshrl.u32 %v5650, 7
      %v5652 = vsub.s32 %v5649, %v5651
      %v5653 = vrot.slane %v5646, %v5652
      %v5655 = vunpack.c.l.s4 1966171168
      %v5656 = vunpack.c.0.s8 %v5655
      %v5657 = vlaneseq
      %v5658 = vshrl.u32 %v5657, 7
      %v5659 = vsub.s32 %v5656, %v5658
      %v5660 = vrot.slane %v5653, %v5659
      %v5662 = vadd.f32 %v5312, %v5660
      %s5663 = scalar_lea.vmem %s5, 1280
      %v5664 = vld [vmem:[%s5663] sm:$0xff]
      %v5665 = vld [vmem:[%s5663 + $0x8] sm:$0xff]
      %v5666 = vld [vmem:[%s5663 + $0x10] sm:$0xff]
      %v5667 = vld [vmem:[%s5663 + $0x18] sm:$0xff]
      %v5668 = vld [vmem:[%s5663 + $0x20] sm:$0xff]
      %v5669 = vld [vmem:[%s5663 + $0x28] sm:$0xff]
      %v5670 = vld [vmem:[%s5663 + $0x30] sm:$0xff]
      %v5671 = vld [vmem:[%s5663 + $0x38] sm:$0xff]
      %v5672 = vld [vmem:[%s5663 + $0x40] sm:$0xff]
      %v5673 = vld [vmem:[%s5663 + $0x48] sm:$0xff]
      %v5674 = vld [vmem:[%s5663 + $0x50] sm:$0xff]
      %v5675 = vld [vmem:[%s5663 + $0x58] sm:$0xff]
      %v5676 = vld [vmem:[%s5663 + $0x60] sm:$0xff]
      %v5677 = vld [vmem:[%s5663 + $0x68] sm:$0xff]
      %v5678 = vld [vmem:[%s5663 + $0x70] sm:$0xff]
      %v5679 = vld [vmem:[%s5663 + $0x78] sm:$0xff]
      %v5680 = vld [vmem:[%s5663 + $0x80] sm:$0xff]
      %v5681 = vld [vmem:[%s5663 + $0x88] sm:$0xff]
      %v5682 = vld [vmem:[%s5663 + $0x90] sm:$0xff]
      %v5683 = vld [vmem:[%s5663 + $0x98] sm:$0xff]
      %v5684 = vld [vmem:[%s5663 + $0xa0] sm:$0xff]
      %v5685 = vld [vmem:[%s5663 + $0xa8] sm:$0xff]
      %v5686 = vld [vmem:[%s5663 + $0xb0] sm:$0xff]
      %v5687 = vld [vmem:[%s5663 + $0xb8] sm:$0xff]
      %v5688 = vld [vmem:[%s5663 + $0xc0] sm:$0xff]
      %v5689 = vld [vmem:[%s5663 + $0xc8] sm:$0xff]
      %v5690 = vld [vmem:[%s5663 + $0xd0] sm:$0xff]
      %v5691 = vld [vmem:[%s5663 + $0xd8] sm:$0xff]
      %v5692 = vld [vmem:[%s5663 + $0xe0] sm:$0xff]
      %v5693 = vld [vmem:[%s5663 + $0xe8] sm:$0xff]
      %v5694 = vld [vmem:[%s5663 + $0xf0] sm:$0xff]
      %v5695 = vld [vmem:[%s5663 + $0xf8] sm:$0xff]
      %v5696 = vld [vmem:[%s5663 + $0x100] sm:$0xff]
      %v5697 = vld [vmem:[%s5663 + $0x108] sm:$0xff]
      %v5698 = vld [vmem:[%s5663 + $0x110] sm:$0xff]
      %v5699 = vld [vmem:[%s5663 + $0x118] sm:$0xff]
      %v5700 = vld [vmem:[%s5663 + $0x120] sm:$0xff]
      %v5701 = vld [vmem:[%s5663 + $0x128] sm:$0xff]
      %v5702 = vld [vmem:[%s5663 + $0x130] sm:$0xff]
      %v5703 = vld [vmem:[%s5663 + $0x138] sm:$0xff]
      %v5704 = vrot.slane %v4298, 2
      %v5705 = vrot.slane %v4299, 2
      %v5706 = vrot.slane %v4300, 2
      %v5749 = vunpack.c.l.b16 %v5664
      %v5750 = vunpack.c.h.b16 %v5664
      %v5751 = vunpack.c.l.b16 %v5665
      %v5752 = vunpack.c.h.b16 %v5665
      %v5753 = vunpack.c.l.b16 %v5666
      %v5754 = vunpack.c.h.b16 %v5666
      %v5755 = vunpack.c.l.b16 %v5667
      %v5756 = vunpack.c.h.b16 %v5667
      %v5757 = vunpack.c.l.b16 %v5668
      %v5758 = vunpack.c.h.b16 %v5668
      %v5759 = vunpack.c.l.b16 %v5669
      %v5760 = vunpack.c.h.b16 %v5669
      %v5761 = vunpack.c.l.b16 %v5670
      %v5762 = vunpack.c.h.b16 %v5670
      %v5763 = vunpack.c.l.b16 %v5671
      %v5764 = vunpack.c.h.b16 %v5671
      %v5765 = vunpack.c.l.b16 %v5672
      %v5766 = vunpack.c.h.b16 %v5672
      %v5767 = vunpack.c.l.b16 %v5673
      %v5768 = vunpack.c.h.b16 %v5673
      %v5769 = vunpack.c.l.b16 %v5674
      %v5770 = vunpack.c.h.b16 %v5674
      %v5771 = vunpack.c.l.b16 %v5675
      %v5772 = vunpack.c.h.b16 %v5675
      %v5773 = vunpack.c.l.b16 %v5676
      %v5774 = vunpack.c.h.b16 %v5676
      %v5775 = vunpack.c.l.b16 %v5677
      %v5776 = vunpack.c.h.b16 %v5677
      %v5777 = vunpack.c.l.b16 %v5678
      %v5778 = vunpack.c.h.b16 %v5678
      %v5779 = vunpack.c.l.b16 %v5679
      %v5780 = vunpack.c.h.b16 %v5679
      %v5781 = vunpack.c.l.b16 %v5680
      %v5782 = vunpack.c.h.b16 %v5680
      %v5783 = vunpack.c.l.b16 %v5681
      %v5784 = vunpack.c.h.b16 %v5681
      %v5785 = vunpack.c.l.b16 %v5682
      %v5786 = vunpack.c.h.b16 %v5682
      %v5787 = vunpack.c.l.b16 %v5683
      %v5788 = vunpack.c.h.b16 %v5683
      %v5789 = vunpack.c.l.b16 %v5684
      %v5790 = vunpack.c.h.b16 %v5684
      %v5791 = vunpack.c.l.b16 %v5685
      %v5792 = vunpack.c.h.b16 %v5685
      %v5793 = vunpack.c.l.b16 %v5686
      %v5794 = vunpack.c.h.b16 %v5686
      %v5795 = vunpack.c.l.b16 %v5687
      %v5796 = vunpack.c.h.b16 %v5687
      %v5797 = vunpack.c.l.b16 %v5688
      %v5798 = vunpack.c.h.b16 %v5688
      %v5799 = vunpack.c.l.b16 %v5689
      %v5800 = vunpack.c.h.b16 %v5689
      %v5801 = vunpack.c.l.b16 %v5690
      %v5802 = vunpack.c.h.b16 %v5690
      %v5803 = vunpack.c.l.b16 %v5691
      %v5804 = vunpack.c.h.b16 %v5691
      %v5805 = vunpack.c.l.b16 %v5692
      %v5806 = vunpack.c.h.b16 %v5692
      %v5807 = vunpack.c.l.b16 %v5693
      %v5808 = vunpack.c.h.b16 %v5693
      %v5809 = vunpack.c.l.b16 %v5694
      %v5810 = vunpack.c.h.b16 %v5694
      %v5811 = vunpack.c.l.b16 %v5695
      %v5812 = vunpack.c.h.b16 %v5695
      %v5813 = vunpack.c.l.b16 %v5696
      %v5814 = vunpack.c.h.b16 %v5696
      %v5815 = vunpack.c.l.b16 %v5697
      %v5816 = vunpack.c.h.b16 %v5697
      %v5817 = vunpack.c.l.b16 %v5698
      %v5818 = vunpack.c.h.b16 %v5698
      %v5819 = vunpack.c.l.b16 %v5699
      %v5820 = vunpack.c.h.b16 %v5699
      %v5821 = vunpack.c.l.b16 %v5700
      %v5822 = vunpack.c.h.b16 %v5700
      %v5823 = vunpack.c.l.b16 %v5701
      %v5824 = vunpack.c.h.b16 %v5701
      %v5825 = vunpack.c.l.b16 %v5702
      %v5826 = vunpack.c.h.b16 %v5702
      %v5827 = vunpack.c.l.b16 %v5703
      %v5828 = vunpack.c.h.b16 %v5703
      %v5829 = vpack.c.b16 %v5751, %v5749
      %v5830 = vpack.c.b16 %v5752, %v5750
      %v5831 = vpack.c.b16 %v5755, %v5753
      %v5832 = vpack.c.b16 %v5756, %v5754
      %v5833 = vpack.c.b16 %v5759, %v5757
      %v5834 = vpack.c.b16 %v5760, %v5758
      %v5835 = vpack.c.b16 %v5763, %v5761
      %v5836 = vpack.c.b16 %v5764, %v5762
      %v5837 = vpack.c.b16 %v5767, %v5765
      %v5838 = vpack.c.b16 %v5768, %v5766
      %v5839 = vpack.c.b16 %v5771, %v5769
      %v5840 = vpack.c.b16 %v5772, %v5770
      %v5841 = vpack.c.b16 %v5775, %v5773
      %v5842 = vpack.c.b16 %v5776, %v5774
      %v5843 = vpack.c.b16 %v5779, %v5777
      %v5844 = vpack.c.b16 %v5780, %v5778
      %v5845 = vpack.c.b16 %v5783, %v5781
      %v5846 = vpack.c.b16 %v5784, %v5782
      %v5847 = vpack.c.b16 %v5787, %v5785
      %v5848 = vpack.c.b16 %v5788, %v5786
      %v5849 = vpack.c.b16 %v5791, %v5789
      %v5850 = vpack.c.b16 %v5792, %v5790
      %v5851 = vpack.c.b16 %v5795, %v5793
      %v5852 = vpack.c.b16 %v5796, %v5794
      %v5853 = vpack.c.b16 %v5799, %v5797
      %v5854 = vpack.c.b16 %v5800, %v5798
      %v5855 = vpack.c.b16 %v5803, %v5801
      %v5856 = vpack.c.b16 %v5804, %v5802
      %v5857 = vpack.c.b16 %v5807, %v5805
      %v5858 = vpack.c.b16 %v5808, %v5806
      %v5859 = vpack.c.b16 %v5811, %v5809
      %v5860 = vpack.c.b16 %v5812, %v5810
      %v5861 = vpack.c.b16 %v5815, %v5813
      %v5862 = vpack.c.b16 %v5816, %v5814
      %v5863 = vpack.c.b16 %v5819, %v5817
      %v5864 = vpack.c.b16 %v5820, %v5818
      %v5865 = vpack.c.b16 %v5823, %v5821
      %v5866 = vpack.c.b16 %v5824, %v5822
      %v5867 = vpack.c.b16 %v5827, %v5825
      %v5868 = vpack.c.b16 %v5828, %v5826
      %v5910 = vsel %vm2386, %v5706, 0
      %5912 = vmatprep.subr.bf16.mxu0 %v5844
      %5913 = vmatpush1.bf16.msra.mxu0 %v5843
      %5914 = vmatprep.subr.bf16.mxu0 %v5842
      %5915 = vmatpush1.bf16.msra.mxu0 %v5841
      %5916 = vmatprep.subr.bf16.mxu0 %v5840
      %5917 = vmatpush1.bf16.msra.mxu0 %v5839
      %5918 = vmatprep.subr.bf16.mxu0 %v5838
      %5919 = vmatpush1.bf16.msra.mxu0 %v5837
      %5920 = vmatprep.subr.bf16.mxu0 %v5836
      %5921 = vmatpush1.bf16.msra.mxu0 %v5835
      %5922 = vmatprep.subr.bf16.mxu0 %v5834
      %5923 = vmatpush1.bf16.msra.mxu0 %v5833
      %5924 = vmatprep.subr.bf16.mxu0 %v5832
      %5925 = vmatpush1.bf16.msra.mxu0 %v5831
      %5926 = vmatprep.subr.bf16.mxu0 %v5830
      %5927 = vmatpush1.bf16.msra.mxu0 %v5829
      %5928 = vmatprep.subr.bf16.mxu0 %v5860
      %5929 = vmatpush2.bf16.msra.mxu0 %v5859
      %5930 = vmatprep.subr.bf16.mxu0 %v5858
      %5931 = vmatpush2.bf16.msra.mxu0 %v5857
      %5932 = vmatprep.subr.bf16.mxu0 %v5856
      %5933 = vmatpush2.bf16.msra.mxu0 %v5855
      %5934 = vmatprep.subr.bf16.mxu0 %v5854
      %5935 = vmatpush2.bf16.msra.mxu0 %v5853
      %5936 = vmatprep.subr.bf16.mxu0 %v5852
      %5937 = vmatpush2.bf16.msra.mxu0 %v5851
      %5938 = vmatprep.subr.bf16.mxu0 %v5850
      %5939 = vmatpush2.bf16.msra.mxu0 %v5849
      %5940 = vmatprep.subr.bf16.mxu0 %v5848
      %5941 = vmatpush2.bf16.msra.mxu0 %v5847
      %5942 = vmatprep.subr.bf16.mxu0 %v5846
      %5943 = vmatpush2.bf16.msra.mxu0 %v5845
      %5944 = vmatprep.mubr.bf16.mxu0 %v5705
      %5945 = vmatmul.mubr.bf16.gmra.mxu0 %v5704
      %v5946 = vpop.f32.mrf.mxu0
      %v5947 = vadd.f32 0.0, %v5946
      %v5948 = vpop.f32.mrf.mxu0
      %v5949 = vadd.f32 0.0, %v5948
      %v5950 = vpop.f32.mrf.mxu0
      %v5951 = vpop.f32.mrf.mxu0
      %5952 = vdwg.mxu0
      %5953 = vmatprep.subr.bf16.mxu0 0
      %5954 = vmatpush1.bf16.msra.mxu0 0
      %5955 = vmatprep.subr.bf16.mxu0 0
      %5956 = vmatpush1.bf16.msra.mxu0 0
      %5957 = vmatprep.subr.bf16.mxu0 0
      %5958 = vmatpush1.bf16.msra.mxu0 0
      %5959 = vmatprep.subr.bf16.mxu0 0
      %5960 = vmatpush1.bf16.msra.mxu0 0
      %5961 = vmatprep.subr.bf16.mxu0 %v5868
      %5962 = vmatpush1.bf16.msra.mxu0 %v5867
      %5963 = vmatprep.subr.bf16.mxu0 %v5866
      %5964 = vmatpush1.bf16.msra.mxu0 %v5865
      %5965 = vmatprep.subr.bf16.mxu0 %v5864
      %5966 = vmatpush1.bf16.msra.mxu0 %v5863
      %5967 = vmatprep.subr.bf16.mxu0 %v5862
      %5968 = vmatpush1.bf16.msra.mxu0 %v5861
      %5969 = vmatprep.subr.bf16.mxu0 0
      %5970 = vmatpush2.bf16.msra.mxu0 0
      %5971 = vmatprep.subr.bf16.mxu0 0
      %5972 = vmatpush2.bf16.msra.mxu0 0
      %5973 = vmatprep.subr.bf16.mxu0 0
      %5974 = vmatpush2.bf16.msra.mxu0 0
      %5975 = vmatprep.subr.bf16.mxu0 0
      %5976 = vmatpush2.bf16.msra.mxu0 0
      %5977 = vmatprep.subr.bf16.mxu0 0
      %5978 = vmatpush2.bf16.msra.mxu0 0
      %5979 = vmatprep.subr.bf16.mxu0 0
      %5980 = vmatpush2.bf16.msra.mxu0 0
      %5981 = vmatprep.subr.bf16.mxu0 0
      %5982 = vmatpush2.bf16.msra.mxu0 0
      %5983 = vmatprep.subr.bf16.mxu0 0
      %5984 = vmatpush2.bf16.msra.mxu0 0
      %5985 = vmatprep.mubr.bf16.mxu0 0
      %5986 = vmatmul.mubr.bf16.gmra.mxu0 %v5910
      %v5987 = vpop.f32.mrf.mxu0
      %v5988 = vadd.f32 %v5947, %v5987
      %v5989 = vpop.f32.mrf.mxu0
      %v5990 = vadd.f32 %v5949, %v5989
      %v5991 = vpop.f32.mrf.mxu0
      %v5992 = vpop.f32.mrf.mxu0
      %5993 = vdwg.mxu0
      %v5996 = vcombine.low %v5988, %v5990
      %v5998 = vunpack.c.l.s4 1966171168
      %v5999 = vunpack.c.0.s8 %v5998
      %v6000 = vlaneseq
      %v6001 = vshrl.u32 %v6000, 7
      %v6002 = vsub.s32 %v5999, %v6001
      %v6003 = vrot.slane %v5996, %v6002
      %v6005 = vunpack.c.l.s4 1966171168
      %v6006 = vunpack.c.0.s8 %v6005
      %v6007 = vlaneseq
      %v6008 = vshrl.u32 %v6007, 7
      %v6009 = vsub.s32 %v6006, %v6008
      %v6010 = vrot.slane %v6003, %v6009
      %v6012 = vadd.f32 %v5662, %v6010
      %v6013 = vmax.f32 %v6012, 0.0
      %v6014 = vld [vmem:[%s6] sm:$0xf]
      %v6015 = vld [vmem:[%s6 + $0x4] sm:$0xf]
      %v6016 = vld [vmem:[%s6 + $0x8] sm:$0xf]
      %v6017 = vld [vmem:[%s6 + $0xc] sm:$0xf]
      %v6018 = vld [vmem:[%s6 + $0x10] sm:$0xf]
      %v6019 = vld [vmem:[%s6 + $0x14] sm:$0xf]
      %v6020 = vld [vmem:[%s6 + $0x18] sm:$0xf]
      %v6021 = vld [vmem:[%s6 + $0x1c] sm:$0xf]
      %v6022 = vld [vmem:[%s6 + $0x20] sm:$0xf]
      %v6023 = vld [vmem:[%s6 + $0x24] sm:$0xf]
      %v6024 = vld [vmem:[%s6 + $0x28] sm:$0xf]
      %v6025 = vld [vmem:[%s6 + $0x2c] sm:$0xf]
      %v6026 = vld [vmem:[%s6 + $0x30] sm:$0xf]
      %v6027 = vld [vmem:[%s6 + $0x34] sm:$0xf]
      %v6028 = vld [vmem:[%s6 + $0x38] sm:$0xf]
      %v6029 = vld [vmem:[%s6 + $0x3c] sm:$0xf]
      %v6030 = vld [vmem:[%s6 + $0x40] sm:$0xf]
      %v6031 = vld [vmem:[%s6 + $0x44] sm:$0xf]
      %v6032 = vld [vmem:[%s6 + $0x48] sm:$0xf]
      %v6033 = vld [vmem:[%s6 + $0x4c] sm:$0xf]
      %v6034 = vld [vmem:[%s6 + $0x50] sm:$0xf]
      %v6035 = vld [vmem:[%s6 + $0x54] sm:$0xf]
      %v6036 = vld [vmem:[%s6 + $0x58] sm:$0xf]
      %v6037 = vld [vmem:[%s6 + $0x5c] sm:$0xf]
      %v6038 = vld [vmem:[%s6 + $0x60] sm:$0xf]
      %v6039 = vld [vmem:[%s6 + $0x64] sm:$0xf]
      %v6040 = vld [vmem:[%s6 + $0x68] sm:$0xf]
      %v6041 = vld [vmem:[%s6 + $0x6c] sm:$0xf]
      %v6042 = vld [vmem:[%s6 + $0x70] sm:$0xf]
      %v6043 = vld [vmem:[%s6 + $0x74] sm:$0xf]
      %v6044 = vld [vmem:[%s6 + $0x78] sm:$0xf]
      %v6045 = vld [vmem:[%s6 + $0x7c] sm:$0xf]
      %v6047 = vlaneseq
      %v6048 = vshrl.u32 %v6047, 7
      %v6049 = vsub.s32 0, %v6048
      %v6050 = vrot.slane %v6013, %v6049
      %v6051 = vlaneseq
      %v6052 = vshrl.u32 %v6051, 7
      %v6053 = vsub.s32 1, %v6052
      %v6054 = vrot.slane %v6013, %v6053
      %v6057 = vpack.c.bf16 %v6050, %v6050
      %v6058 = vpack.c.bf16 %v6054, %v6054
      %v6059 = vld [vmem:[%s14] sm:$0x1]
      %v6092 = vunpack.c.l.b16 %v6014
      %v6093 = vunpack.c.l.b16 %v6015
      %v6094 = vunpack.c.l.b16 %v6016
      %v6095 = vunpack.c.l.b16 %v6017
      %v6096 = vunpack.c.l.b16 %v6018
      %v6097 = vunpack.c.l.b16 %v6019
      %v6098 = vunpack.c.l.b16 %v6020
      %v6099 = vunpack.c.l.b16 %v6021
      %v6100 = vunpack.c.l.b16 %v6022
      %v6101 = vunpack.c.l.b16 %v6023
      %v6102 = vunpack.c.l.b16 %v6024
      %v6103 = vunpack.c.l.b16 %v6025
      %v6104 = vunpack.c.l.b16 %v6026
      %v6105 = vunpack.c.l.b16 %v6027
      %v6106 = vunpack.c.l.b16 %v6028
      %v6107 = vunpack.c.l.b16 %v6029
      %v6108 = vunpack.c.l.b16 %v6030
      %v6109 = vunpack.c.l.b16 %v6031
      %v6110 = vunpack.c.l.b16 %v6032
      %v6111 = vunpack.c.l.b16 %v6033
      %v6112 = vunpack.c.l.b16 %v6034
      %v6113 = vunpack.c.l.b16 %v6035
      %v6114 = vunpack.c.l.b16 %v6036
      %v6115 = vunpack.c.l.b16 %v6037
      %v6116 = vunpack.c.l.b16 %v6038
      %v6117 = vunpack.c.l.b16 %v6039
      %v6118 = vunpack.c.l.b16 %v6040
      %v6119 = vunpack.c.l.b16 %v6041
      %v6120 = vunpack.c.l.b16 %v6042
      %v6121 = vunpack.c.l.b16 %v6043
      %v6122 = vunpack.c.l.b16 %v6044
      %v6123 = vunpack.c.l.b16 %v6045
      %v6124 = vpack.c.b16 %v6093, %v6092
      %v6125 = vpack.c.b16 %v6095, %v6094
      %v6126 = vpack.c.b16 %v6097, %v6096
      %v6127 = vpack.c.b16 %v6099, %v6098
      %v6128 = vpack.c.b16 %v6101, %v6100
      %v6129 = vpack.c.b16 %v6103, %v6102
      %v6130 = vpack.c.b16 %v6105, %v6104
      %v6131 = vpack.c.b16 %v6107, %v6106
      %v6132 = vpack.c.b16 %v6109, %v6108
      %v6133 = vpack.c.b16 %v6111, %v6110
      %v6134 = vpack.c.b16 %v6113, %v6112
      %v6135 = vpack.c.b16 %v6115, %v6114
      %v6136 = vpack.c.b16 %v6117, %v6116
      %v6137 = vpack.c.b16 %v6119, %v6118
      %v6138 = vpack.c.b16 %v6121, %v6120
      %v6139 = vpack.c.b16 %v6123, %v6122
      %6156 = vmatprep.subr.bf16.mxu0 0
      %6157 = vmatpush1.bf16.msra.mxu0 %v6131
      %6158 = vmatprep.subr.bf16.mxu0 0
      %6159 = vmatpush1.bf16.msra.mxu0 %v6130
      %6160 = vmatprep.subr.bf16.mxu0 0
      %6161 = vmatpush1.bf16.msra.mxu0 %v6129
      %6162 = vmatprep.subr.bf16.mxu0 0
      %6163 = vmatpush1.bf16.msra.mxu0 %v6128
      %6164 = vmatprep.subr.bf16.mxu0 0
      %6165 = vmatpush1.bf16.msra.mxu0 %v6127
      %6166 = vmatprep.subr.bf16.mxu0 0
      %6167 = vmatpush1.bf16.msra.mxu0 %v6126
      %6168 = vmatprep.subr.bf16.mxu0 0
      %6169 = vmatpush1.bf16.msra.mxu0 %v6125
      %6170 = vmatprep.subr.bf16.mxu0 0
      %6171 = vmatpush1.bf16.msra.mxu0 %v6124
      %6172 = vmatprep.subr.bf16.mxu0 0
      %6173 = vmatpush2.bf16.msra.mxu0 %v6139
      %6174 = vmatprep.subr.bf16.mxu0 0
      %6175 = vmatpush2.bf16.msra.mxu0 %v6138
      %6176 = vmatprep.subr.bf16.mxu0 0
      %6177 = vmatpush2.bf16.msra.mxu0 %v6137
      %6178 = vmatprep.subr.bf16.mxu0 0
      %6179 = vmatpush2.bf16.msra.mxu0 %v6136
      %6180 = vmatprep.subr.bf16.mxu0 0
      %6181 = vmatpush2.bf16.msra.mxu0 %v6135
      %6182 = vmatprep.subr.bf16.mxu0 0
      %6183 = vmatpush2.bf16.msra.mxu0 %v6134
      %6184 = vmatprep.subr.bf16.mxu0 0
      %6185 = vmatpush2.bf16.msra.mxu0 %v6133
      %6186 = vmatprep.subr.bf16.mxu0 0
      %6187 = vmatpush2.bf16.msra.mxu0 %v6132
      %6188 = vmatprep.mubr.bf16.mxu0 %v6058
      %6189 = vmatmul.mubr.bf16.gmra.mxu0 %v6057
      %v6190 = vpop.f32.mrf.mxu0
      %v6191 = vadd.f32 %v6059, %v6190
      %v6192 = vpop.f32.mrf.mxu0
      %v6193 = vpop.f32.mrf.mxu0
      %v6194 = vpop.f32.mrf.mxu0
      %6195 = vdwg.mxu0
      %6196 = vst [vmem:[%s647] sm:$0x1] %v6191
      %v6197 = vlaneseq
      %v6198 = vand.u32 %v6197, 127
      %vm6199 = vcmp.lt.s32.totalorder %v6198, 8
      %v6200 = vsel %vm6199, %v6191, 0.0
      %v6201 = vmul.f32 %v6191, 0.5
      %v6202 = vmul.f32 %v6201, 1.442695
      %v6203 = vpow.pop %v6202
      %v6204 = vld [vmem:[%s644] sm:$0x1]
      %v6205 = vmul.f32 %v6203, %v6204
      %v6206 = vadd.f32 %v6200, %v6205
      %v6207 = vld [vmem:[%s7] sm:$0xff]
      %v6208 = vld [vmem:[%s7 + $0x8] sm:$0xff]
      %v6209 = vld [vmem:[%s7 + $0x10] sm:$0xff]
      %v6210 = vld [vmem:[%s7 + $0x18] sm:$0xff]
      %v6211 = vld [vmem:[%s7 + $0x20] sm:$0xff]
      %v6212 = vld [vmem:[%s7 + $0x28] sm:$0xff]
      %v6213 = vld [vmem:[%s7 + $0x30] sm:$0xff]
      %v6214 = vld [vmem:[%s7 + $0x38] sm:$0xff]
      %v6215 = vld [vmem:[%s7 + $0x40] sm:$0xff]
      %v6216 = vld [vmem:[%s7 + $0x48] sm:$0xff]
      %v6217 = vld [vmem:[%s7 + $0x50] sm:$0xff]
      %v6218 = vld [vmem:[%s7 + $0x58] sm:$0xff]
      %v6219 = vld [vmem:[%s7 + $0x60] sm:$0xff]
      %v6220 = vld [vmem:[%s7 + $0x68] sm:$0xff]
      %v6221 = vld [vmem:[%s7 + $0x70] sm:$0xff]
      %v6222 = vld [vmem:[%s7 + $0x78] sm:$0xff]
      %v6223 = vpack.c.bf16 %v6206, %v6206
      %v6224 = vld [vmem:[%s15] sm:$0x3]
      %v6241 = vunpack.c.l.b16 %v6207
      %v6242 = vunpack.c.h.b16 %v6207
      %v6243 = vunpack.c.l.b16 %v6208
      %v6244 = vunpack.c.h.b16 %v6208
      %v6245 = vunpack.c.l.b16 %v6209
      %v6246 = vunpack.c.h.b16 %v6209
      %v6247 = vunpack.c.l.b16 %v6210
      %v6248 = vunpack.c.h.b16 %v6210
      %v6249 = vunpack.c.l.b16 %v6211
      %v6250 = vunpack.c.h.b16 %v6211
      %v6251 = vunpack.c.l.b16 %v6212
      %v6252 = vunpack.c.h.b16 %v6212
      %v6253 = vunpack.c.l.b16 %v6213
      %v6254 = vunpack.c.h.b16 %v6213
      %v6255 = vunpack.c.l.b16 %v6214
      %v6256 = vunpack.c.h.b16 %v6214
      %v6257 = vunpack.c.l.b16 %v6215
      %v6258 = vunpack.c.h.b16 %v6215
      %v6259 = vunpack.c.l.b16 %v6216
      %v6260 = vunpack.c.h.b16 %v6216
      %v6261 = vunpack.c.l.b16 %v6217
      %v6262 = vunpack.c.h.b16 %v6217
      %v6263 = vunpack.c.l.b16 %v6218
      %v6264 = vunpack.c.h.b16 %v6218
      %v6265 = vunpack.c.l.b16 %v6219
      %v6266 = vunpack.c.h.b16 %v6219
      %v6267 = vunpack.c.l.b16 %v6220
      %v6268 = vunpack.c.h.b16 %v6220
      %v6269 = vunpack.c.l.b16 %v6221
      %v6270 = vunpack.c.h.b16 %v6221
      %v6271 = vunpack.c.l.b16 %v6222
      %v6272 = vunpack.c.h.b16 %v6222
      %v6273 = vpack.c.b16 %v6243, %v6241
      %v6274 = vpack.c.b16 %v6244, %v6242
      %v6275 = vpack.c.b16 %v6247, %v6245
      %v6276 = vpack.c.b16 %v6248, %v6246
      %v6277 = vpack.c.b16 %v6251, %v6249
      %v6278 = vpack.c.b16 %v6252, %v6250
      %v6279 = vpack.c.b16 %v6255, %v6253
      %v6280 = vpack.c.b16 %v6256, %v6254
      %v6281 = vpack.c.b16 %v6259, %v6257
      %v6282 = vpack.c.b16 %v6260, %v6258
      %v6283 = vpack.c.b16 %v6263, %v6261
      %v6284 = vpack.c.b16 %v6264, %v6262
      %v6285 = vpack.c.b16 %v6267, %v6265
      %v6286 = vpack.c.b16 %v6268, %v6266
      %v6287 = vpack.c.b16 %v6271, %v6269
      %v6288 = vpack.c.b16 %v6272, %v6270
      %v6306 = vlaneseq
      %v6307 = vshrl.u32 %v6306, 7
      %v6308 = vsub.s32 0, %v6307
      %v6309 = vrot.slane %v6224, %v6308
      %v6310 = vlaneseq
      %v6311 = vshrl.u32 %v6310, 7
      %v6312 = vsub.s32 1, %v6311
      %v6313 = vrot.slane %v6224, %v6312
      %6316 = vmatprep.subr.bf16.mxu0 %v6288
      %6317 = vmatpush1.bf16.msra.mxu0 %v6287
      %6318 = vmatprep.subr.bf16.mxu0 %v6286
      %6319 = vmatpush1.bf16.msra.mxu0 %v6285
      %6320 = vmatprep.subr.bf16.mxu0 %v6284
      %6321 = vmatpush1.bf16.msra.mxu0 %v6283
      %6322 = vmatprep.subr.bf16.mxu0 %v6282
      %6323 = vmatpush1.bf16.msra.mxu0 %v6281
      %6324 = vmatprep.subr.bf16.mxu0 %v6280
      %6325 = vmatpush1.bf16.msra.mxu0 %v6279
      %6326 = vmatprep.subr.bf16.mxu0 %v6278
      %6327 = vmatpush1.bf16.msra.mxu0 %v6277
      %6328 = vmatprep.subr.bf16.mxu0 %v6276
      %6329 = vmatpush1.bf16.msra.mxu0 %v6275
      %6330 = vmatprep.subr.bf16.mxu0 %v6274
      %6331 = vmatpush1.bf16.msra.mxu0 %v6273
      %6332 = vmatprep.subr.bf16.mxu0 0
      %6333 = vmatpush2.bf16.msra.mxu0 0
      %6334 = vmatprep.subr.bf16.mxu0 0
      %6335 = vmatpush2.bf16.msra.mxu0 0
      %6336 = vmatprep.subr.bf16.mxu0 0
      %6337 = vmatpush2.bf16.msra.mxu0 0
      %6338 = vmatprep.subr.bf16.mxu0 0
      %6339 = vmatpush2.bf16.msra.mxu0 0
      %6340 = vmatprep.subr.bf16.mxu0 0
      %6341 = vmatpush2.bf16.msra.mxu0 0
      %6342 = vmatprep.subr.bf16.mxu0 0
      %6343 = vmatpush2.bf16.msra.mxu0 0
      %6344 = vmatprep.subr.bf16.mxu0 0
      %6345 = vmatpush2.bf16.msra.mxu0 0
      %6346 = vmatprep.subr.bf16.mxu0 0
      %6347 = vmatpush2.bf16.msra.mxu0 0
      %6348 = vmatprep.mubr.bf16.mxu0 0
      %6349 = vmatmul.mubr.bf16.gmra.mxu0 %v6223
      %v6350 = vpop.f32.mrf.mxu0
      %v6351 = vadd.f32 %v6309, %v6350
      %v6352 = vpop.f32.mrf.mxu0
      %v6353 = vadd.f32 %v6313, %v6352
      %v6354 = vpop.f32.mrf.mxu0
      %v6355 = vpop.f32.mrf.mxu0
      %6356 = vdwg.mxu0
      %v6357 = vmax.f32 %v6351, 0.0
      %v6358 = vmax.f32 %v6353, 0.0
      %v6359 = vld [vmem:[%s8] sm:$0xff]
      %v6360 = vld [vmem:[%s8 + $0x8] sm:$0xf]
      %v6361 = vld [vmem:[%s8 + $0xc] sm:$0xff]
      %v6362 = vld [vmem:[%s8 + $0x14] sm:$0xf]
      %v6363 = vld [vmem:[%s8 + $0x18] sm:$0xff]
      %v6364 = vld [vmem:[%s8 + $0x20] sm:$0xf]
      %v6365 = vld [vmem:[%s8 + $0x24] sm:$0xff]
      %v6366 = vld [vmem:[%s8 + $0x2c] sm:$0xf]
      %v6367 = vld [vmem:[%s8 + $0x30] sm:$0xff]
      %v6368 = vld [vmem:[%s8 + $0x38] sm:$0xf]
      %v6369 = vld [vmem:[%s8 + $0x3c] sm:$0xff]
      %v6370 = vld [vmem:[%s8 + $0x44] sm:$0xf]
      %v6371 = vld [vmem:[%s8 + $0x48] sm:$0xff]
      %v6372 = vld [vmem:[%s8 + $0x50] sm:$0xf]
      %v6373 = vld [vmem:[%s8 + $0x54] sm:$0xff]
      %v6374 = vld [vmem:[%s8 + $0x5c] sm:$0xf]
      %v6375 = vld [vmem:[%s8 + $0x60] sm:$0xff]
      %v6376 = vld [vmem:[%s8 + $0x68] sm:$0xf]
      %v6377 = vld [vmem:[%s8 + $0x6c] sm:$0xff]
      %v6378 = vld [vmem:[%s8 + $0x74] sm:$0xf]
      %v6379 = vld [vmem:[%s8 + $0x78] sm:$0xff]
      %v6380 = vld [vmem:[%s8 + $0x80] sm:$0xf]
      %v6381 = vld [vmem:[%s8 + $0x84] sm:$0xff]
      %v6382 = vld [vmem:[%s8 + $0x8c] sm:$0xf]
      %v6383 = vld [vmem:[%s8 + $0x90] sm:$0xff]
      %v6384 = vld [vmem:[%s8 + $0x98] sm:$0xf]
      %v6385 = vld [vmem:[%s8 + $0x9c] sm:$0xff]
      %v6386 = vld [vmem:[%s8 + $0xa4] sm:$0xf]
      %v6387 = vld [vmem:[%s8 + $0xa8] sm:$0xff]
      %v6388 = vld [vmem:[%s8 + $0xb0] sm:$0xf]
      %v6389 = vld [vmem:[%s8 + $0xb4] sm:$0xff]
      %v6390 = vld [vmem:[%s8 + $0xbc] sm:$0xf]
      %v6391 = vld [vmem:[%s8 + $0xc0] sm:$0xff]
      %v6392 = vld [vmem:[%s8 + $0xc8] sm:$0xf]
      %v6393 = vld [vmem:[%s8 + $0xcc] sm:$0xff]
      %v6394 = vld [vmem:[%s8 + $0xd4] sm:$0xf]
      %v6395 = vld [vmem:[%s8 + $0xd8] sm:$0xff]
      %v6396 = vld [vmem:[%s8 + $0xe0] sm:$0xf]
      %v6397 = vld [vmem:[%s8 + $0xe4] sm:$0xff]
      %v6398 = vld [vmem:[%s8 + $0xec] sm:$0xf]
      %v6399 = vld [vmem:[%s8 + $0xf0] sm:$0xff]
      %v6400 = vld [vmem:[%s8 + $0xf8] sm:$0xf]
      %v6401 = vld [vmem:[%s8 + $0xfc] sm:$0xff]
      %v6402 = vld [vmem:[%s8 + $0x104] sm:$0xf]
      %v6403 = vld [vmem:[%s8 + $0x108] sm:$0xff]
      %v6404 = vld [vmem:[%s8 + $0x110] sm:$0xf]
      %v6405 = vld [vmem:[%s8 + $0x114] sm:$0xff]
      %v6406 = vld [vmem:[%s8 + $0x11c] sm:$0xf]
      %v6407 = vld [vmem:[%s8 + $0x120] sm:$0xff]
      %v6408 = vld [vmem:[%s8 + $0x128] sm:$0xf]
      %v6409 = vld [vmem:[%s8 + $0x12c] sm:$0xff]
      %v6410 = vld [vmem:[%s8 + $0x134] sm:$0xf]
      %v6411 = vld [vmem:[%s8 + $0x138] sm:$0xff]
      %v6412 = vld [vmem:[%s8 + $0x140] sm:$0xf]
      %v6413 = vld [vmem:[%s8 + $0x144] sm:$0xff]
      %v6414 = vld [vmem:[%s8 + $0x14c] sm:$0xf]
      %v6415 = vld [vmem:[%s8 + $0x150] sm:$0xff]
      %v6416 = vld [vmem:[%s8 + $0x158] sm:$0xf]
      %v6417 = vld [vmem:[%s8 + $0x15c] sm:$0xff]
      %v6418 = vld [vmem:[%s8 + $0x164] sm:$0xf]
      %v6419 = vld [vmem:[%s8 + $0x168] sm:$0xff]
      %v6420 = vld [vmem:[%s8 + $0x170] sm:$0xf]
      %v6421 = vld [vmem:[%s8 + $0x174] sm:$0xff]
      %v6422 = vld [vmem:[%s8 + $0x17c] sm:$0xf]
      %v6423 = vpack.c.bf16 %v6357, %v6357
      %v6424 = vpack.c.bf16 %v6358, %v6358
      %v6425 = vld [vmem:[%s16] sm:$0x7]
      %v6490 = vunpack.c.l.b16 %v6359
      %v6491 = vunpack.c.h.b16 %v6359
      %v6492 = vunpack.c.l.b16 %v6360
      %v6493 = vunpack.c.l.b16 %v6361
      %v6494 = vunpack.c.h.b16 %v6361
      %v6495 = vunpack.c.l.b16 %v6362
      %v6496 = vunpack.c.l.b16 %v6363
      %v6497 = vunpack.c.h.b16 %v6363
      %v6498 = vunpack.c.l.b16 %v6364
      %v6499 = vunpack.c.l.b16 %v6365
      %v6500 = vunpack.c.h.b16 %v6365
      %v6501 = vunpack.c.l.b16 %v6366
      %v6502 = vunpack.c.l.b16 %v6367
      %v6503 = vunpack.c.h.b16 %v6367
      %v6504 = vunpack.c.l.b16 %v6368
      %v6505 = vunpack.c.l.b16 %v6369
      %v6506 = vunpack.c.h.b16 %v6369
      %v6507 = vunpack.c.l.b16 %v6370
      %v6508 = vunpack.c.l.b16 %v6371
      %v6509 = vunpack.c.h.b16 %v6371
      %v6510 = vunpack.c.l.b16 %v6372
      %v6511 = vunpack.c.l.b16 %v6373
      %v6512 = vunpack.c.h.b16 %v6373
      %v6513 = vunpack.c.l.b16 %v6374
      %v6514 = vunpack.c.l.b16 %v6375
      %v6515 = vunpack.c.h.b16 %v6375
      %v6516 = vunpack.c.l.b16 %v6376
      %v6517 = vunpack.c.l.b16 %v6377
      %v6518 = vunpack.c.h.b16 %v6377
      %v6519 = vunpack.c.l.b16 %v6378
      %v6520 = vunpack.c.l.b16 %v6379
      %v6521 = vunpack.c.h.b16 %v6379
      %v6522 = vunpack.c.l.b16 %v6380
      %v6523 = vunpack.c.l.b16 %v6381
      %v6524 = vunpack.c.h.b16 %v6381
      %v6525 = vunpack.c.l.b16 %v6382
      %v6526 = vunpack.c.l.b16 %v6383
      %v6527 = vunpack.c.h.b16 %v6383
      %v6528 = vunpack.c.l.b16 %v6384
      %v6529 = vunpack.c.l.b16 %v6385
      %v6530 = vunpack.c.h.b16 %v6385
      %v6531 = vunpack.c.l.b16 %v6386
      %v6532 = vunpack.c.l.b16 %v6387
      %v6533 = vunpack.c.h.b16 %v6387
      %v6534 = vunpack.c.l.b16 %v6388
      %v6535 = vunpack.c.l.b16 %v6389
      %v6536 = vunpack.c.h.b16 %v6389
      %v6537 = vunpack.c.l.b16 %v6390
      %v6538 = vunpack.c.l.b16 %v6391
      %v6539 = vunpack.c.h.b16 %v6391
      %v6540 = vunpack.c.l.b16 %v6392
      %v6541 = vunpack.c.l.b16 %v6393
      %v6542 = vunpack.c.h.b16 %v6393
      %v6543 = vunpack.c.l.b16 %v6394
      %v6544 = vunpack.c.l.b16 %v6395
      %v6545 = vunpack.c.h.b16 %v6395
      %v6546 = vunpack.c.l.b16 %v6396
      %v6547 = vunpack.c.l.b16 %v6397
      %v6548 = vunpack.c.h.b16 %v6397
      %v6549 = vunpack.c.l.b16 %v6398
      %v6550 = vunpack.c.l.b16 %v6399
      %v6551 = vunpack.c.h.b16 %v6399
      %v6552 = vunpack.c.l.b16 %v6400
      %v6553 = vunpack.c.l.b16 %v6401
      %v6554 = vunpack.c.h.b16 %v6401
      %v6555 = vunpack.c.l.b16 %v6402
      %v6556 = vunpack.c.l.b16 %v6403
      %v6557 = vunpack.c.h.b16 %v6403
      %v6558 = vunpack.c.l.b16 %v6404
      %v6559 = vunpack.c.l.b16 %v6405
      %v6560 = vunpack.c.h.b16 %v6405
      %v6561 = vunpack.c.l.b16 %v6406
      %v6562 = vunpack.c.l.b16 %v6407
      %v6563 = vunpack.c.h.b16 %v6407
      %v6564 = vunpack.c.l.b16 %v6408
      %v6565 = vunpack.c.l.b16 %v6409
      %v6566 = vunpack.c.h.b16 %v6409
      %v6567 = vunpack.c.l.b16 %v6410
      %v6568 = vunpack.c.l.b16 %v6411
      %v6569 = vunpack.c.h.b16 %v6411
      %v6570 = vunpack.c.l.b16 %v6412
      %v6571 = vunpack.c.l.b16 %v6413
      %v6572 = vunpack.c.h.b16 %v6413
      %v6573 = vunpack.c.l.b16 %v6414
      %v6574 = vunpack.c.l.b16 %v6415
      %v6575 = vunpack.c.h.b16 %v6415
      %v6576 = vunpack.c.l.b16 %v6416
      %v6577 = vunpack.c.l.b16 %v6417
      %v6578 = vunpack.c.h.b16 %v6417
      %v6579 = vunpack.c.l.b16 %v6418
      %v6580 = vunpack.c.l.b16 %v6419
      %v6581 = vunpack.c.h.b16 %v6419
      %v6582 = vunpack.c.l.b16 %v6420
      %v6583 = vunpack.c.l.b16 %v6421
      %v6584 = vunpack.c.h.b16 %v6421
      %v6585 = vunpack.c.l.b16 %v6422
      %v6586 = vpack.c.b16 %v6493, %v6490
      %v6587 = vpack.c.b16 %v6494, %v6491
      %v6588 = vpack.c.b16 %v6495, %v6492
      %v6589 = vpack.c.b16 %v6499, %v6496
      %v6590 = vpack.c.b16 %v6500, %v6497
      %v6591 = vpack.c.b16 %v6501, %v6498
      %v6592 = vpack.c.b16 %v6505, %v6502
      %v6593 = vpack.c.b16 %v6506, %v6503
      %v6594 = vpack.c.b16 %v6507, %v6504
      %v6595 = vpack.c.b16 %v6511, %v6508
      %v6596 = vpack.c.b16 %v6512, %v6509
      %v6597 = vpack.c.b16 %v6513, %v6510
      %v6598 = vpack.c.b16 %v6517, %v6514
      %v6599 = vpack.c.b16 %v6518, %v6515
      %v6600 = vpack.c.b16 %v6519, %v6516
      %v6601 = vpack.c.b16 %v6523, %v6520
      %v6602 = vpack.c.b16 %v6524, %v6521
      %v6603 = vpack.c.b16 %v6525, %v6522
      %v6604 = vpack.c.b16 %v6529, %v6526
      %v6605 = vpack.c.b16 %v6530, %v6527
      %v6606 = vpack.c.b16 %v6531, %v6528
      %v6607 = vpack.c.b16 %v6535, %v6532
      %v6608 = vpack.c.b16 %v6536, %v6533
      %v6609 = vpack.c.b16 %v6537, %v6534
      %v6610 = vpack.c.b16 %v6541, %v6538
      %v6611 = vpack.c.b16 %v6542, %v6539
      %v6612 = vpack.c.b16 %v6543, %v6540
      %v6613 = vpack.c.b16 %v6547, %v6544
      %v6614 = vpack.c.b16 %v6548, %v6545
      %v6615 = vpack.c.b16 %v6549, %v6546
      %v6616 = vpack.c.b16 %v6553, %v6550
      %v6617 = vpack.c.b16 %v6554, %v6551
      %v6618 = vpack.c.b16 %v6555, %v6552
      %v6619 = vpack.c.b16 %v6559, %v6556
      %v6620 = vpack.c.b16 %v6560, %v6557
      %v6621 = vpack.c.b16 %v6561, %v6558
      %v6622 = vpack.c.b16 %v6565, %v6562
      %v6623 = vpack.c.b16 %v6566, %v6563
      %v6624 = vpack.c.b16 %v6567, %v6564
      %v6625 = vpack.c.b16 %v6571, %v6568
      %v6626 = vpack.c.b16 %v6572, %v6569
      %v6627 = vpack.c.b16 %v6573, %v6570
      %v6628 = vpack.c.b16 %v6577, %v6574
      %v6629 = vpack.c.b16 %v6578, %v6575
      %v6630 = vpack.c.b16 %v6579, %v6576
      %v6631 = vpack.c.b16 %v6583, %v6580
      %v6632 = vpack.c.b16 %v6584, %v6581
      %v6633 = vpack.c.b16 %v6585, %v6582
      %v6683 = vlaneseq
      %v6684 = vshrl.u32 %v6683, 7
      %v6685 = vsub.s32 0, %v6684
      %v6686 = vrot.slane %v6425, %v6685
      %v6687 = vlaneseq
      %v6688 = vshrl.u32 %v6687, 7
      %v6689 = vsub.s32 1, %v6688
      %v6690 = vrot.slane %v6425, %v6689
      %v6691 = vlaneseq
      %v6692 = vshrl.u32 %v6691, 7
      %v6693 = vsub.s32 2, %v6692
      %v6694 = vrot.slane %v6425, %v6693
      %6698 = vmatprep.subr.bf16.mxu0 %v6608
      %6699 = vmatpush1.bf16.msra.mxu0 %v6607
      %6700 = vmatprep.subr.bf16.mxu0 %v6605
      %6701 = vmatpush1.bf16.msra.mxu0 %v6604
      %6702 = vmatprep.subr.bf16.mxu0 %v6602
      %6703 = vmatpush1.bf16.msra.mxu0 %v6601
      %6704 = vmatprep.subr.bf16.mxu0 %v6599
      %6705 = vmatpush1.bf16.msra.mxu0 %v6598
      %6706 = vmatprep.subr.bf16.mxu0 %v6596
      %6707 = vmatpush1.bf16.msra.mxu0 %v6595
      %6708 = vmatprep.subr.bf16.mxu0 %v6593
      %6709 = vmatpush1.bf16.msra.mxu0 %v6592
      %6710 = vmatprep.subr.bf16.mxu0 %v6590
      %6711 = vmatpush1.bf16.msra.mxu0 %v6589
      %6712 = vmatprep.subr.bf16.mxu0 %v6587
      %6713 = vmatpush1.bf16.msra.mxu0 %v6586
      %6714 = vmatprep.subr.bf16.mxu0 %v6632
      %6715 = vmatpush2.bf16.msra.mxu0 %v6631
      %6716 = vmatprep.subr.bf16.mxu0 %v6629
      %6717 = vmatpush2.bf16.msra.mxu0 %v6628
      %6718 = vmatprep.subr.bf16.mxu0 %v6626
      %6719 = vmatpush2.bf16.msra.mxu0 %v6625
      %6720 = vmatprep.subr.bf16.mxu0 %v6623
      %6721 = vmatpush2.bf16.msra.mxu0 %v6622
      %6722 = vmatprep.subr.bf16.mxu0 %v6620
      %6723 = vmatpush2.bf16.msra.mxu0 %v6619
      %6724 = vmatprep.subr.bf16.mxu0 %v6617
      %6725 = vmatpush2.bf16.msra.mxu0 %v6616
      %6726 = vmatprep.subr.bf16.mxu0 %v6614
      %6727 = vmatpush2.bf16.msra.mxu0 %v6613
      %6728 = vmatprep.subr.bf16.mxu0 %v6611
      %6729 = vmatpush2.bf16.msra.mxu0 %v6610
      %6730 = vmatprep.mubr.bf16.mxu0 %v6424
      %6731 = vmatmul.mubr.bf16.gmra.mxu0 %v6423
      %v6732 = vpop.f32.mrf.mxu0
      %v6733 = vadd.f32 %v6686, %v6732
      %v6734 = vpop.f32.mrf.mxu0
      %v6735 = vadd.f32 %v6690, %v6734
      %v6736 = vpop.f32.mrf.mxu0
      %v6737 = vpop.f32.mrf.mxu0
      %6738 = vdwg.mxu0
      %6739 = vmatprep.subr.bf16.mxu0 0
      %6740 = vmatpush1.bf16.msra.mxu0 %v6609
      %6741 = vmatprep.subr.bf16.mxu0 0
      %6742 = vmatpush1.bf16.msra.mxu0 %v6606
      %6743 = vmatprep.subr.bf16.mxu0 0
      %6744 = vmatpush1.bf16.msra.mxu0 %v6603
      %6745 = vmatprep.subr.bf16.mxu0 0
      %6746 = vmatpush1.bf16.msra.mxu0 %v6600
      %6747 = vmatprep.subr.bf16.mxu0 0
      %6748 = vmatpush1.bf16.msra.mxu0 %v6597
      %6749 = vmatprep.subr.bf16.mxu0 0
      %6750 = vmatpush1.bf16.msra.mxu0 %v6594
      %6751 = vmatprep.subr.bf16.mxu0 0
      %6752 = vmatpush1.bf16.msra.mxu0 %v6591
      %6753 = vmatprep.subr.bf16.mxu0 0
      %6754 = vmatpush1.bf16.msra.mxu0 %v6588
      %6755 = vmatprep.subr.bf16.mxu0 0
      %6756 = vmatpush2.bf16.msra.mxu0 %v6633
      %6757 = vmatprep.subr.bf16.mxu0 0
      %6758 = vmatpush2.bf16.msra.mxu0 %v6630
      %6759 = vmatprep.subr.bf16.mxu0 0
      %6760 = vmatpush2.bf16.msra.mxu0 %v6627
      %6761 = vmatprep.subr.bf16.mxu0 0
      %6762 = vmatpush2.bf16.msra.mxu0 %v6624
      %6763 = vmatprep.subr.bf16.mxu0 0
      %6764 = vmatpush2.bf16.msra.mxu0 %v6621
      %6765 = vmatprep.subr.bf16.mxu0 0
      %6766 = vmatpush2.bf16.msra.mxu0 %v6618
      %6767 = vmatprep.subr.bf16.mxu0 0
      %6768 = vmatpush2.bf16.msra.mxu0 %v6615
      %6769 = vmatprep.subr.bf16.mxu0 0
      %6770 = vmatpush2.bf16.msra.mxu0 %v6612
      %6771 = vmatprep.mubr.bf16.mxu0 %v6424
      %6772 = vmatmul.mubr.bf16.gmra.mxu0 %v6423
      %v6773 = vpop.f32.mrf.mxu0
      %v6774 = vadd.f32 %v6694, %v6773
      %v6775 = vpop.f32.mrf.mxu0
      %v6776 = vpop.f32.mrf.mxu0
      %v6777 = vpop.f32.mrf.mxu0
      %6778 = vdwg.mxu0
      %v6779 = vmax.f32 %v6733, 0.0
      %v6780 = vmax.f32 %v6735, 0.0
      %v6781 = vmax.f32 %v6774, 0.0
      %s6782 = scalar_lea.vmem %s8, 384
      %v6783 = vld [vmem:[%s6782] sm:$0xff]
      %v6784 = vld [vmem:[%s6782 + $0x8] sm:$0xf]
      %v6785 = vld [vmem:[%s6782 + $0xc] sm:$0xff]
      %v6786 = vld [vmem:[%s6782 + $0x14] sm:$0xf]
      %v6787 = vld [vmem:[%s6782 + $0x18] sm:$0xff]
      %v6788 = vld [vmem:[%s6782 + $0x20] sm:$0xf]
      %v6789 = vld [vmem:[%s6782 + $0x24] sm:$0xff]
      %v6790 = vld [vmem:[%s6782 + $0x2c] sm:$0xf]
      %v6791 = vld [vmem:[%s6782 + $0x30] sm:$0xff]
      %v6792 = vld [vmem:[%s6782 + $0x38] sm:$0xf]
      %v6793 = vld [vmem:[%s6782 + $0x3c] sm:$0xff]
      %v6794 = vld [vmem:[%s6782 + $0x44] sm:$0xf]
      %v6795 = vld [vmem:[%s6782 + $0x48] sm:$0xff]
      %v6796 = vld [vmem:[%s6782 + $0x50] sm:$0xf]
      %v6797 = vld [vmem:[%s6782 + $0x54] sm:$0xff]
      %v6798 = vld [vmem:[%s6782 + $0x5c] sm:$0xf]
      %v6799 = vld [vmem:[%s6782 + $0x60] sm:$0xff]
      %v6800 = vld [vmem:[%s6782 + $0x68] sm:$0xf]
      %v6801 = vld [vmem:[%s6782 + $0x6c] sm:$0xff]
      %v6802 = vld [vmem:[%s6782 + $0x74] sm:$0xf]
      %v6803 = vld [vmem:[%s6782 + $0x78] sm:$0xff]
      %v6804 = vld [vmem:[%s6782 + $0x80] sm:$0xf]
      %v6805 = vld [vmem:[%s6782 + $0x84] sm:$0xff]
      %v6806 = vld [vmem:[%s6782 + $0x8c] sm:$0xf]
      %v6807 = vld [vmem:[%s6782 + $0x90] sm:$0xff]
      %v6808 = vld [vmem:[%s6782 + $0x98] sm:$0xf]
      %v6809 = vld [vmem:[%s6782 + $0x9c] sm:$0xff]
      %v6810 = vld [vmem:[%s6782 + $0xa4] sm:$0xf]
      %v6811 = vld [vmem:[%s6782 + $0xa8] sm:$0xff]
      %v6812 = vld [vmem:[%s6782 + $0xb0] sm:$0xf]
      %v6813 = vld [vmem:[%s6782 + $0xb4] sm:$0xff]
      %v6814 = vld [vmem:[%s6782 + $0xbc] sm:$0xf]
      %v6815 = vld [vmem:[%s6782 + $0xc0] sm:$0xff]
      %v6816 = vld [vmem:[%s6782 + $0xc8] sm:$0xf]
      %v6817 = vld [vmem:[%s6782 + $0xcc] sm:$0xff]
      %v6818 = vld [vmem:[%s6782 + $0xd4] sm:$0xf]
      %v6819 = vld [vmem:[%s6782 + $0xd8] sm:$0xff]
      %v6820 = vld [vmem:[%s6782 + $0xe0] sm:$0xf]
      %v6821 = vld [vmem:[%s6782 + $0xe4] sm:$0xff]
      %v6822 = vld [vmem:[%s6782 + $0xec] sm:$0xf]
      %v6823 = vld [vmem:[%s6782 + $0xf0] sm:$0xff]
      %v6824 = vld [vmem:[%s6782 + $0xf8] sm:$0xf]
      %v6825 = vld [vmem:[%s6782 + $0xfc] sm:$0xff]
      %v6826 = vld [vmem:[%s6782 + $0x104] sm:$0xf]
      %v6827 = vld [vmem:[%s6782 + $0x108] sm:$0xff]
      %v6828 = vld [vmem:[%s6782 + $0x110] sm:$0xf]
      %v6829 = vld [vmem:[%s6782 + $0x114] sm:$0xff]
      %v6830 = vld [vmem:[%s6782 + $0x11c] sm:$0xf]
      %v6831 = vld [vmem:[%s6782 + $0x120] sm:$0xff]
      %v6832 = vld [vmem:[%s6782 + $0x128] sm:$0xf]
      %v6833 = vld [vmem:[%s6782 + $0x12c] sm:$0xff]
      %v6834 = vld [vmem:[%s6782 + $0x134] sm:$0xf]
      %v6835 = vld [vmem:[%s6782 + $0x138] sm:$0xff]
      %v6836 = vld [vmem:[%s6782 + $0x140] sm:$0xf]
      %v6837 = vld [vmem:[%s6782 + $0x144] sm:$0xff]
      %v6838 = vld [vmem:[%s6782 + $0x14c] sm:$0xf]
      %v6839 = vld [vmem:[%s6782 + $0x150] sm:$0xff]
      %v6840 = vld [vmem:[%s6782 + $0x158] sm:$0xf]
      %v6841 = vld [vmem:[%s6782 + $0x15c] sm:$0xff]
      %v6842 = vld [vmem:[%s6782 + $0x164] sm:$0xf]
      %v6843 = vld [vmem:[%s6782 + $0x168] sm:$0xff]
      %v6844 = vld [vmem:[%s6782 + $0x170] sm:$0xf]
      %v6845 = vld [vmem:[%s6782 + $0x174] sm:$0xff]
      %v6846 = vld [vmem:[%s6782 + $0x17c] sm:$0xf]
      %s6847 = scalar_lea.vmem %s16, 3
      %v6848 = vld [vmem:[%s6847] sm:$0x7]
      %v6913 = vunpack.c.l.b16 %v6783
      %v6914 = vunpack.c.h.b16 %v6783
      %v6915 = vunpack.c.l.b16 %v6784
      %v6916 = vunpack.c.l.b16 %v6785
      %v6917 = vunpack.c.h.b16 %v6785
      %v6918 = vunpack.c.l.b16 %v6786
      %v6919 = vunpack.c.l.b16 %v6787
      %v6920 = vunpack.c.h.b16 %v6787
      %v6921 = vunpack.c.l.b16 %v6788
      %v6922 = vunpack.c.l.b16 %v6789
      %v6923 = vunpack.c.h.b16 %v6789
      %v6924 = vunpack.c.l.b16 %v6790
      %v6925 = vunpack.c.l.b16 %v6791
      %v6926 = vunpack.c.h.b16 %v6791
      %v6927 = vunpack.c.l.b16 %v6792
      %v6928 = vunpack.c.l.b16 %v6793
      %v6929 = vunpack.c.h.b16 %v6793
      %v6930 = vunpack.c.l.b16 %v6794
      %v6931 = vunpack.c.l.b16 %v6795
      %v6932 = vunpack.c.h.b16 %v6795
      %v6933 = vunpack.c.l.b16 %v6796
      %v6934 = vunpack.c.l.b16 %v6797
      %v6935 = vunpack.c.h.b16 %v6797
      %v6936 = vunpack.c.l.b16 %v6798
      %v6937 = vunpack.c.l.b16 %v6799
      %v6938 = vunpack.c.h.b16 %v6799
      %v6939 = vunpack.c.l.b16 %v6800
      %v6940 = vunpack.c.l.b16 %v6801
      %v6941 = vunpack.c.h.b16 %v6801
      %v6942 = vunpack.c.l.b16 %v6802
      %v6943 = vunpack.c.l.b16 %v6803
      %v6944 = vunpack.c.h.b16 %v6803
      %v6945 = vunpack.c.l.b16 %v6804
      %v6946 = vunpack.c.l.b16 %v6805
      %v6947 = vunpack.c.h.b16 %v6805
      %v6948 = vunpack.c.l.b16 %v6806
      %v6949 = vunpack.c.l.b16 %v6807
      %v6950 = vunpack.c.h.b16 %v6807
      %v6951 = vunpack.c.l.b16 %v6808
      %v6952 = vunpack.c.l.b16 %v6809
      %v6953 = vunpack.c.h.b16 %v6809
      %v6954 = vunpack.c.l.b16 %v6810
      %v6955 = vunpack.c.l.b16 %v6811
      %v6956 = vunpack.c.h.b16 %v6811
      %v6957 = vunpack.c.l.b16 %v6812
      %v6958 = vunpack.c.l.b16 %v6813
      %v6959 = vunpack.c.h.b16 %v6813
      %v6960 = vunpack.c.l.b16 %v6814
      %v6961 = vunpack.c.l.b16 %v6815
      %v6962 = vunpack.c.h.b16 %v6815
      %v6963 = vunpack.c.l.b16 %v6816
      %v6964 = vunpack.c.l.b16 %v6817
      %v6965 = vunpack.c.h.b16 %v6817
      %v6966 = vunpack.c.l.b16 %v6818
      %v6967 = vunpack.c.l.b16 %v6819
      %v6968 = vunpack.c.h.b16 %v6819
      %v6969 = vunpack.c.l.b16 %v6820
      %v6970 = vunpack.c.l.b16 %v6821
      %v6971 = vunpack.c.h.b16 %v6821
      %v6972 = vunpack.c.l.b16 %v6822
      %v6973 = vunpack.c.l.b16 %v6823
      %v6974 = vunpack.c.h.b16 %v6823
      %v6975 = vunpack.c.l.b16 %v6824
      %v6976 = vunpack.c.l.b16 %v6825
      %v6977 = vunpack.c.h.b16 %v6825
      %v6978 = vunpack.c.l.b16 %v6826
      %v6979 = vunpack.c.l.b16 %v6827
      %v6980 = vunpack.c.h.b16 %v6827
      %v6981 = vunpack.c.l.b16 %v6828
      %v6982 = vunpack.c.l.b16 %v6829
      %v6983 = vunpack.c.h.b16 %v6829
      %v6984 = vunpack.c.l.b16 %v6830
      %v6985 = vunpack.c.l.b16 %v6831
      %v6986 = vunpack.c.h.b16 %v6831
      %v6987 = vunpack.c.l.b16 %v6832
      %v6988 = vunpack.c.l.b16 %v6833
      %v6989 = vunpack.c.h.b16 %v6833
      %v6990 = vunpack.c.l.b16 %v6834
      %v6991 = vunpack.c.l.b16 %v6835
      %v6992 = vunpack.c.h.b16 %v6835
      %v6993 = vunpack.c.l.b16 %v6836
      %v6994 = vunpack.c.l.b16 %v6837
      %v6995 = vunpack.c.h.b16 %v6837
      %v6996 = vunpack.c.l.b16 %v6838
      %v6997 = vunpack.c.l.b16 %v6839
      %v6998 = vunpack.c.h.b16 %v6839
      %v6999 = vunpack.c.l.b16 %v6840
      %v7000 = vunpack.c.l.b16 %v6841
      %v7001 = vunpack.c.h.b16 %v6841
      %v7002 = vunpack.c.l.b16 %v6842
      %v7003 = vunpack.c.l.b16 %v6843
      %v7004 = vunpack.c.h.b16 %v6843
      %v7005 = vunpack.c.l.b16 %v6844
      %v7006 = vunpack.c.l.b16 %v6845
      %v7007 = vunpack.c.h.b16 %v6845
      %v7008 = vunpack.c.l.b16 %v6846
      %v7009 = vpack.c.b16 %v6916, %v6913
      %v7010 = vpack.c.b16 %v6917, %v6914
      %v7011 = vpack.c.b16 %v6918, %v6915
      %v7012 = vpack.c.b16 %v6922, %v6919
      %v7013 = vpack.c.b16 %v6923, %v6920
      %v7014 = vpack.c.b16 %v6924, %v6921
      %v7015 = vpack.c.b16 %v6928, %v6925
      %v7016 = vpack.c.b16 %v6929, %v6926
      %v7017 = vpack.c.b16 %v6930, %v6927
      %v7018 = vpack.c.b16 %v6934, %v6931
      %v7019 = vpack.c.b16 %v6935, %v6932
      %v7020 = vpack.c.b16 %v6936, %v6933
      %v7021 = vpack.c.b16 %v6940, %v6937
      %v7022 = vpack.c.b16 %v6941, %v6938
      %v7023 = vpack.c.b16 %v6942, %v6939
      %v7024 = vpack.c.b16 %v6946, %v6943
      %v7025 = vpack.c.b16 %v6947, %v6944
      %v7026 = vpack.c.b16 %v6948, %v6945
      %v7027 = vpack.c.b16 %v6952, %v6949
      %v7028 = vpack.c.b16 %v6953, %v6950
      %v7029 = vpack.c.b16 %v6954, %v6951
      %v7030 = vpack.c.b16 %v6958, %v6955
      %v7031 = vpack.c.b16 %v6959, %v6956
      %v7032 = vpack.c.b16 %v6960, %v6957
      %v7033 = vpack.c.b16 %v6964, %v6961
      %v7034 = vpack.c.b16 %v6965, %v6962
      %v7035 = vpack.c.b16 %v6966, %v6963
      %v7036 = vpack.c.b16 %v6970, %v6967
      %v7037 = vpack.c.b16 %v6971, %v6968
      %v7038 = vpack.c.b16 %v6972, %v6969
      %v7039 = vpack.c.b16 %v6976, %v6973
      %v7040 = vpack.c.b16 %v6977, %v6974
      %v7041 = vpack.c.b16 %v6978, %v6975
      %v7042 = vpack.c.b16 %v6982, %v6979
      %v7043 = vpack.c.b16 %v6983, %v6980
      %v7044 = vpack.c.b16 %v6984, %v6981
      %v7045 = vpack.c.b16 %v6988, %v6985
      %v7046 = vpack.c.b16 %v6989, %v6986
      %v7047 = vpack.c.b16 %v6990, %v6987
      %v7048 = vpack.c.b16 %v6994, %v6991
      %v7049 = vpack.c.b16 %v6995, %v6992
      %v7050 = vpack.c.b16 %v6996, %v6993
      %v7051 = vpack.c.b16 %v7000, %v6997
      %v7052 = vpack.c.b16 %v7001, %v6998
      %v7053 = vpack.c.b16 %v7002, %v6999
      %v7054 = vpack.c.b16 %v7006, %v7003
      %v7055 = vpack.c.b16 %v7007, %v7004
      %v7056 = vpack.c.b16 %v7008, %v7005
      %v7106 = vlaneseq
      %v7107 = vshrl.u32 %v7106, 7
      %v7108 = vsub.s32 0, %v7107
      %v7109 = vrot.slane %v6848, %v7108
      %v7110 = vlaneseq
      %v7111 = vshrl.u32 %v7110, 7
      %v7112 = vsub.s32 1, %v7111
      %v7113 = vrot.slane %v6848, %v7112
      %v7114 = vlaneseq
      %v7115 = vshrl.u32 %v7114, 7
      %v7116 = vsub.s32 2, %v7115
      %v7117 = vrot.slane %v6848, %v7116
      %7121 = vmatprep.subr.bf16.mxu0 %v7031
      %7122 = vmatpush1.bf16.msra.mxu0 %v7030
      %7123 = vmatprep.subr.bf16.mxu0 %v7028
      %7124 = vmatpush1.bf16.msra.mxu0 %v7027
      %7125 = vmatprep.subr.bf16.mxu0 %v7025
      %7126 = vmatpush1.bf16.msra.mxu0 %v7024
      %7127 = vmatprep.subr.bf16.mxu0 %v7022
      %7128 = vmatpush1.bf16.msra.mxu0 %v7021
      %7129 = vmatprep.subr.bf16.mxu0 %v7019
      %7130 = vmatpush1.bf16.msra.mxu0 %v7018
      %7131 = vmatprep.subr.bf16.mxu0 %v7016
      %7132 = vmatpush1.bf16.msra.mxu0 %v7015
      %7133 = vmatprep.subr.bf16.mxu0 %v7013
      %7134 = vmatpush1.bf16.msra.mxu0 %v7012
      %7135 = vmatprep.subr.bf16.mxu0 %v7010
      %7136 = vmatpush1.bf16.msra.mxu0 %v7009
      %7137 = vmatprep.subr.bf16.mxu0 %v7055
      %7138 = vmatpush2.bf16.msra.mxu0 %v7054
      %7139 = vmatprep.subr.bf16.mxu0 %v7052
      %7140 = vmatpush2.bf16.msra.mxu0 %v7051
      %7141 = vmatprep.subr.bf16.mxu0 %v7049
      %7142 = vmatpush2.bf16.msra.mxu0 %v7048
      %7143 = vmatprep.subr.bf16.mxu0 %v7046
      %7144 = vmatpush2.bf16.msra.mxu0 %v7045
      %7145 = vmatprep.subr.bf16.mxu0 %v7043
      %7146 = vmatpush2.bf16.msra.mxu0 %v7042
      %7147 = vmatprep.subr.bf16.mxu0 %v7040
      %7148 = vmatpush2.bf16.msra.mxu0 %v7039
      %7149 = vmatprep.subr.bf16.mxu0 %v7037
      %7150 = vmatpush2.bf16.msra.mxu0 %v7036
      %7151 = vmatprep.subr.bf16.mxu0 %v7034
      %7152 = vmatpush2.bf16.msra.mxu0 %v7033
      %7153 = vmatprep.mubr.bf16.mxu0 %v6424
      %7154 = vmatmul.mubr.bf16.gmra.mxu0 %v6423
      %v7155 = vpop.f32.mrf.mxu0
      %v7156 = vadd.f32 %v7109, %v7155
      %v7157 = vpop.f32.mrf.mxu0
      %v7158 = vadd.f32 %v7113, %v7157
      %v7159 = vpop.f32.mrf.mxu0
      %v7160 = vpop.f32.mrf.mxu0
      %7161 = vdwg.mxu0
      %7162 = vmatprep.subr.bf16.mxu0 0
      %7163 = vmatpush1.bf16.msra.mxu0 %v7032
      %7164 = vmatprep.subr.bf16.mxu0 0
      %7165 = vmatpush1.bf16.msra.mxu0 %v7029
      %7166 = vmatprep.subr.bf16.mxu0 0
      %7167 = vmatpush1.bf16.msra.mxu0 %v7026
      %7168 = vmatprep.subr.bf16.mxu0 0
      %7169 = vmatpush1.bf16.msra.mxu0 %v7023
      %7170 = vmatprep.subr.bf16.mxu0 0
      %7171 = vmatpush1.bf16.msra.mxu0 %v7020
      %7172 = vmatprep.subr.bf16.mxu0 0
      %7173 = vmatpush1.bf16.msra.mxu0 %v7017
      %7174 = vmatprep.subr.bf16.mxu0 0
      %7175 = vmatpush1.bf16.msra.mxu0 %v7014
      %7176 = vmatprep.subr.bf16.mxu0 0
      %7177 = vmatpush1.bf16.msra.mxu0 %v7011
      %7178 = vmatprep.subr.bf16.mxu0 0
      %7179 = vmatpush2.bf16.msra.mxu0 %v7056
      %7180 = vmatprep.subr.bf16.mxu0 0
      %7181 = vmatpush2.bf16.msra.mxu0 %v7053
      %7182 = vmatprep.subr.bf16.mxu0 0
      %7183 = vmatpush2.bf16.msra.mxu0 %v7050
      %7184 = vmatprep.subr.bf16.mxu0 0
      %7185 = vmatpush2.bf16.msra.mxu0 %v7047
      %7186 = vmatprep.subr.bf16.mxu0 0
      %7187 = vmatpush2.bf16.msra.mxu0 %v7044
      %7188 = vmatprep.subr.bf16.mxu0 0
      %7189 = vmatpush2.bf16.msra.mxu0 %v7041
      %7190 = vmatprep.subr.bf16.mxu0 0
      %7191 = vmatpush2.bf16.msra.mxu0 %v7038
      %7192 = vmatprep.subr.bf16.mxu0 0
      %7193 = vmatpush2.bf16.msra.mxu0 %v7035
      %7194 = vmatprep.mubr.bf16.mxu0 %v6424
      %7195 = vmatmul.mubr.bf16.gmra.mxu0 %v6423
      %v7196 = vpop.f32.mrf.mxu0
      %v7197 = vadd.f32 %v7117, %v7196
      %v7198 = vpop.f32.mrf.mxu0
      %v7199 = vpop.f32.mrf.mxu0
      %v7200 = vpop.f32.mrf.mxu0
      %7201 = vdwg.mxu0
      %v7202 = vmax.f32 %v7156, 0.0
      %v7203 = vmax.f32 %v7158, 0.0
      %v7204 = vmax.f32 %v7197, 0.0
      %s7205 = scalar_lea.vmem %s8, 768
      %v7206 = vld [vmem:[%s7205] sm:$0xff]
      %v7207 = vld [vmem:[%s7205 + $0x8] sm:$0xf]
      %v7208 = vld [vmem:[%s7205 + $0xc] sm:$0xff]
      %v7209 = vld [vmem:[%s7205 + $0x14] sm:$0xf]
      %v7210 = vld [vmem:[%s7205 + $0x18] sm:$0xff]
      %v7211 = vld [vmem:[%s7205 + $0x20] sm:$0xf]
      %v7212 = vld [vmem:[%s7205 + $0x24] sm:$0xff]
      %v7213 = vld [vmem:[%s7205 + $0x2c] sm:$0xf]
      %v7214 = vld [vmem:[%s7205 + $0x30] sm:$0xff]
      %v7215 = vld [vmem:[%s7205 + $0x38] sm:$0xf]
      %v7216 = vld [vmem:[%s7205 + $0x3c] sm:$0xff]
      %v7217 = vld [vmem:[%s7205 + $0x44] sm:$0xf]
      %v7218 = vld [vmem:[%s7205 + $0x48] sm:$0xff]
      %v7219 = vld [vmem:[%s7205 + $0x50] sm:$0xf]
      %v7220 = vld [vmem:[%s7205 + $0x54] sm:$0xff]
      %v7221 = vld [vmem:[%s7205 + $0x5c] sm:$0xf]
      %v7222 = vld [vmem:[%s7205 + $0x60] sm:$0xff]
      %v7223 = vld [vmem:[%s7205 + $0x68] sm:$0xf]
      %v7224 = vld [vmem:[%s7205 + $0x6c] sm:$0xff]
      %v7225 = vld [vmem:[%s7205 + $0x74] sm:$0xf]
      %v7226 = vld [vmem:[%s7205 + $0x78] sm:$0xff]
      %v7227 = vld [vmem:[%s7205 + $0x80] sm:$0xf]
      %v7228 = vld [vmem:[%s7205 + $0x84] sm:$0xff]
      %v7229 = vld [vmem:[%s7205 + $0x8c] sm:$0xf]
      %v7230 = vld [vmem:[%s7205 + $0x90] sm:$0xff]
      %v7231 = vld [vmem:[%s7205 + $0x98] sm:$0xf]
      %v7232 = vld [vmem:[%s7205 + $0x9c] sm:$0xff]
      %v7233 = vld [vmem:[%s7205 + $0xa4] sm:$0xf]
      %v7234 = vld [vmem:[%s7205 + $0xa8] sm:$0xff]
      %v7235 = vld [vmem:[%s7205 + $0xb0] sm:$0xf]
      %v7236 = vld [vmem:[%s7205 + $0xb4] sm:$0xff]
      %v7237 = vld [vmem:[%s7205 + $0xbc] sm:$0xf]
      %v7238 = vld [vmem:[%s7205 + $0xc0] sm:$0xff]
      %v7239 = vld [vmem:[%s7205 + $0xc8] sm:$0xf]
      %v7240 = vld [vmem:[%s7205 + $0xcc] sm:$0xff]
      %v7241 = vld [vmem:[%s7205 + $0xd4] sm:$0xf]
      %v7242 = vld [vmem:[%s7205 + $0xd8] sm:$0xff]
      %v7243 = vld [vmem:[%s7205 + $0xe0] sm:$0xf]
      %v7244 = vld [vmem:[%s7205 + $0xe4] sm:$0xff]
      %v7245 = vld [vmem:[%s7205 + $0xec] sm:$0xf]
      %v7246 = vld [vmem:[%s7205 + $0xf0] sm:$0xff]
      %v7247 = vld [vmem:[%s7205 + $0xf8] sm:$0xf]
      %v7248 = vld [vmem:[%s7205 + $0xfc] sm:$0xff]
      %v7249 = vld [vmem:[%s7205 + $0x104] sm:$0xf]
      %v7250 = vld [vmem:[%s7205 + $0x108] sm:$0xff]
      %v7251 = vld [vmem:[%s7205 + $0x110] sm:$0xf]
      %v7252 = vld [vmem:[%s7205 + $0x114] sm:$0xff]
      %v7253 = vld [vmem:[%s7205 + $0x11c] sm:$0xf]
      %v7254 = vld [vmem:[%s7205 + $0x120] sm:$0xff]
      %v7255 = vld [vmem:[%s7205 + $0x128] sm:$0xf]
      %v7256 = vld [vmem:[%s7205 + $0x12c] sm:$0xff]
      %v7257 = vld [vmem:[%s7205 + $0x134] sm:$0xf]
      %v7258 = vld [vmem:[%s7205 + $0x138] sm:$0xff]
      %v7259 = vld [vmem:[%s7205 + $0x140] sm:$0xf]
      %v7260 = vld [vmem:[%s7205 + $0x144] sm:$0xff]
      %v7261 = vld [vmem:[%s7205 + $0x14c] sm:$0xf]
      %v7262 = vld [vmem:[%s7205 + $0x150] sm:$0xff]
      %v7263 = vld [vmem:[%s7205 + $0x158] sm:$0xf]
      %v7264 = vld [vmem:[%s7205 + $0x15c] sm:$0xff]
      %v7265 = vld [vmem:[%s7205 + $0x164] sm:$0xf]
      %v7266 = vld [vmem:[%s7205 + $0x168] sm:$0xff]
      %v7267 = vld [vmem:[%s7205 + $0x170] sm:$0xf]
      %v7268 = vld [vmem:[%s7205 + $0x174] sm:$0xff]
      %v7269 = vld [vmem:[%s7205 + $0x17c] sm:$0xf]
      %s7270 = scalar_lea.vmem %s16, 6
      %v7271 = vld [vmem:[%s7270] sm:$0x7]
      %v7336 = vunpack.c.l.b16 %v7206
      %v7337 = vunpack.c.h.b16 %v7206
      %v7338 = vunpack.c.l.b16 %v7207
      %v7339 = vunpack.c.l.b16 %v7208
      %v7340 = vunpack.c.h.b16 %v7208
      %v7341 = vunpack.c.l.b16 %v7209
      %v7342 = vunpack.c.l.b16 %v7210
      %v7343 = vunpack.c.h.b16 %v7210
      %v7344 = vunpack.c.l.b16 %v7211
      %v7345 = vunpack.c.l.b16 %v7212
      %v7346 = vunpack.c.h.b16 %v7212
      %v7347 = vunpack.c.l.b16 %v7213
      %v7348 = vunpack.c.l.b16 %v7214
      %v7349 = vunpack.c.h.b16 %v7214
      %v7350 = vunpack.c.l.b16 %v7215
      %v7351 = vunpack.c.l.b16 %v7216
      %v7352 = vunpack.c.h.b16 %v7216
      %v7353 = vunpack.c.l.b16 %v7217
      %v7354 = vunpack.c.l.b16 %v7218
      %v7355 = vunpack.c.h.b16 %v7218
      %v7356 = vunpack.c.l.b16 %v7219
      %v7357 = vunpack.c.l.b16 %v7220
      %v7358 = vunpack.c.h.b16 %v7220
      %v7359 = vunpack.c.l.b16 %v7221
      %v7360 = vunpack.c.l.b16 %v7222
      %v7361 = vunpack.c.h.b16 %v7222
      %v7362 = vunpack.c.l.b16 %v7223
      %v7363 = vunpack.c.l.b16 %v7224
      %v7364 = vunpack.c.h.b16 %v7224
      %v7365 = vunpack.c.l.b16 %v7225
      %v7366 = vunpack.c.l.b16 %v7226
      %v7367 = vunpack.c.h.b16 %v7226
      %v7368 = vunpack.c.l.b16 %v7227
      %v7369 = vunpack.c.l.b16 %v7228
      %v7370 = vunpack.c.h.b16 %v7228
      %v7371 = vunpack.c.l.b16 %v7229
      %v7372 = vunpack.c.l.b16 %v7230
      %v7373 = vunpack.c.h.b16 %v7230
      %v7374 = vunpack.c.l.b16 %v7231
      %v7375 = vunpack.c.l.b16 %v7232
      %v7376 = vunpack.c.h.b16 %v7232
      %v7377 = vunpack.c.l.b16 %v7233
      %v7378 = vunpack.c.l.b16 %v7234
      %v7379 = vunpack.c.h.b16 %v7234
      %v7380 = vunpack.c.l.b16 %v7235
      %v7381 = vunpack.c.l.b16 %v7236
      %v7382 = vunpack.c.h.b16 %v7236
      %v7383 = vunpack.c.l.b16 %v7237
      %v7384 = vunpack.c.l.b16 %v7238
      %v7385 = vunpack.c.h.b16 %v7238
      %v7386 = vunpack.c.l.b16 %v7239
      %v7387 = vunpack.c.l.b16 %v7240
      %v7388 = vunpack.c.h.b16 %v7240
      %v7389 = vunpack.c.l.b16 %v7241
      %v7390 = vunpack.c.l.b16 %v7242
      %v7391 = vunpack.c.h.b16 %v7242
      %v7392 = vunpack.c.l.b16 %v7243
      %v7393 = vunpack.c.l.b16 %v7244
      %v7394 = vunpack.c.h.b16 %v7244
      %v7395 = vunpack.c.l.b16 %v7245
      %v7396 = vunpack.c.l.b16 %v7246
      %v7397 = vunpack.c.h.b16 %v7246
      %v7398 = vunpack.c.l.b16 %v7247
      %v7399 = vunpack.c.l.b16 %v7248
      %v7400 = vunpack.c.h.b16 %v7248
      %v7401 = vunpack.c.l.b16 %v7249
      %v7402 = vunpack.c.l.b16 %v7250
      %v7403 = vunpack.c.h.b16 %v7250
      %v7404 = vunpack.c.l.b16 %v7251
      %v7405 = vunpack.c.l.b16 %v7252
      %v7406 = vunpack.c.h.b16 %v7252
      %v7407 = vunpack.c.l.b16 %v7253
      %v7408 = vunpack.c.l.b16 %v7254
      %v7409 = vunpack.c.h.b16 %v7254
      %v7410 = vunpack.c.l.b16 %v7255
      %v7411 = vunpack.c.l.b16 %v7256
      %v7412 = vunpack.c.h.b16 %v7256
      %v7413 = vunpack.c.l.b16 %v7257
      %v7414 = vunpack.c.l.b16 %v7258
      %v7415 = vunpack.c.h.b16 %v7258
      %v7416 = vunpack.c.l.b16 %v7259
      %v7417 = vunpack.c.l.b16 %v7260
      %v7418 = vunpack.c.h.b16 %v7260
      %v7419 = vunpack.c.l.b16 %v7261
      %v7420 = vunpack.c.l.b16 %v7262
      %v7421 = vunpack.c.h.b16 %v7262
      %v7422 = vunpack.c.l.b16 %v7263
      %v7423 = vunpack.c.l.b16 %v7264
      %v7424 = vunpack.c.h.b16 %v7264
      %v7425 = vunpack.c.l.b16 %v7265
      %v7426 = vunpack.c.l.b16 %v7266
      %v7427 = vunpack.c.h.b16 %v7266
      %v7428 = vunpack.c.l.b16 %v7267
      %v7429 = vunpack.c.l.b16 %v7268
      %v7430 = vunpack.c.h.b16 %v7268
      %v7431 = vunpack.c.l.b16 %v7269
      %v7432 = vpack.c.b16 %v7339, %v7336
      %v7433 = vpack.c.b16 %v7340, %v7337
      %v7434 = vpack.c.b16 %v7341, %v7338
      %v7435 = vpack.c.b16 %v7345, %v7342
      %v7436 = vpack.c.b16 %v7346, %v7343
      %v7437 = vpack.c.b16 %v7347, %v7344
      %v7438 = vpack.c.b16 %v7351, %v7348
      %v7439 = vpack.c.b16 %v7352, %v7349
      %v7440 = vpack.c.b16 %v7353, %v7350
      %v7441 = vpack.c.b16 %v7357, %v7354
      %v7442 = vpack.c.b16 %v7358, %v7355
      %v7443 = vpack.c.b16 %v7359, %v7356
      %v7444 = vpack.c.b16 %v7363, %v7360
      %v7445 = vpack.c.b16 %v7364, %v7361
      %v7446 = vpack.c.b16 %v7365, %v7362
      %v7447 = vpack.c.b16 %v7369, %v7366
      %v7448 = vpack.c.b16 %v7370, %v7367
      %v7449 = vpack.c.b16 %v7371, %v7368
      %v7450 = vpack.c.b16 %v7375, %v7372
      %v7451 = vpack.c.b16 %v7376, %v7373
      %v7452 = vpack.c.b16 %v7377, %v7374
      %v7453 = vpack.c.b16 %v7381, %v7378
      %v7454 = vpack.c.b16 %v7382, %v7379
      %v7455 = vpack.c.b16 %v7383, %v7380
      %v7456 = vpack.c.b16 %v7387, %v7384
      %v7457 = vpack.c.b16 %v7388, %v7385
      %v7458 = vpack.c.b16 %v7389, %v7386
      %v7459 = vpack.c.b16 %v7393, %v7390
      %v7460 = vpack.c.b16 %v7394, %v7391
      %v7461 = vpack.c.b16 %v7395, %v7392
      %v7462 = vpack.c.b16 %v7399, %v7396
      %v7463 = vpack.c.b16 %v7400, %v7397
      %v7464 = vpack.c.b16 %v7401, %v7398
      %v7465 = vpack.c.b16 %v7405, %v7402
      %v7466 = vpack.c.b16 %v7406, %v7403
      %v7467 = vpack.c.b16 %v7407, %v7404
      %v7468 = vpack.c.b16 %v7411, %v7408
      %v7469 = vpack.c.b16 %v7412, %v7409
      %v7470 = vpack.c.b16 %v7413, %v7410
      %v7471 = vpack.c.b16 %v7417, %v7414
      %v7472 = vpack.c.b16 %v7418, %v7415
      %v7473 = vpack.c.b16 %v7419, %v7416
      %v7474 = vpack.c.b16 %v7423, %v7420
      %v7475 = vpack.c.b16 %v7424, %v7421
      %v7476 = vpack.c.b16 %v7425, %v7422
      %v7477 = vpack.c.b16 %v7429, %v7426
      %v7478 = vpack.c.b16 %v7430, %v7427
      %v7479 = vpack.c.b16 %v7431, %v7428
      %v7529 = vlaneseq
      %v7530 = vshrl.u32 %v7529, 7
      %v7531 = vsub.s32 0, %v7530
      %v7532 = vrot.slane %v7271, %v7531
      %v7533 = vlaneseq
      %v7534 = vshrl.u32 %v7533, 7
      %v7535 = vsub.s32 1, %v7534
      %v7536 = vrot.slane %v7271, %v7535
      %v7537 = vlaneseq
      %v7538 = vshrl.u32 %v7537, 7
      %v7539 = vsub.s32 2, %v7538
      %v7540 = vrot.slane %v7271, %v7539
      %7544 = vmatprep.subr.bf16.mxu0 %v7454
      %7545 = vmatpush1.bf16.msra.mxu0 %v7453
      %7546 = vmatprep.subr.bf16.mxu0 %v7451
      %7547 = vmatpush1.bf16.msra.mxu0 %v7450
      %7548 = vmatprep.subr.bf16.mxu0 %v7448
      %7549 = vmatpush1.bf16.msra.mxu0 %v7447
      %7550 = vmatprep.subr.bf16.mxu0 %v7445
      %7551 = vmatpush1.bf16.msra.mxu0 %v7444
      %7552 = vmatprep.subr.bf16.mxu0 %v7442
      %7553 = vmatpush1.bf16.msra.mxu0 %v7441
      %7554 = vmatprep.subr.bf16.mxu0 %v7439
      %7555 = vmatpush1.bf16.msra.mxu0 %v7438
      %7556 = vmatprep.subr.bf16.mxu0 %v7436
      %7557 = vmatpush1.bf16.msra.mxu0 %v7435
      %7558 = vmatprep.subr.bf16.mxu0 %v7433
      %7559 = vmatpush1.bf16.msra.mxu0 %v7432
      %7560 = vmatprep.subr.bf16.mxu0 %v7478
      %7561 = vmatpush2.bf16.msra.mxu0 %v7477
      %7562 = vmatprep.subr.bf16.mxu0 %v7475
      %7563 = vmatpush2.bf16.msra.mxu0 %v7474
      %7564 = vmatprep.subr.bf16.mxu0 %v7472
      %7565 = vmatpush2.bf16.msra.mxu0 %v7471
      %7566 = vmatprep.subr.bf16.mxu0 %v7469
      %7567 = vmatpush2.bf16.msra.mxu0 %v7468
      %7568 = vmatprep.subr.bf16.mxu0 %v7466
      %7569 = vmatpush2.bf16.msra.mxu0 %v7465
      %7570 = vmatprep.subr.bf16.mxu0 %v7463
      %7571 = vmatpush2.bf16.msra.mxu0 %v7462
      %7572 = vmatprep.subr.bf16.mxu0 %v7460
      %7573 = vmatpush2.bf16.msra.mxu0 %v7459
      %7574 = vmatprep.subr.bf16.mxu0 %v7457
      %7575 = vmatpush2.bf16.msra.mxu0 %v7456
      %7576 = vmatprep.mubr.bf16.mxu0 %v6424
      %7577 = vmatmul.mubr.bf16.gmra.mxu0 %v6423
      %v7578 = vpop.f32.mrf.mxu0
      %v7579 = vadd.f32 %v7532, %v7578
      %v7580 = vpop.f32.mrf.mxu0
      %v7581 = vadd.f32 %v7536, %v7580
      %v7582 = vpop.f32.mrf.mxu0
      %v7583 = vpop.f32.mrf.mxu0
      %7584 = vdwg.mxu0
      %7585 = vmatprep.subr.bf16.mxu0 0
      %7586 = vmatpush1.bf16.msra.mxu0 %v7455
      %7587 = vmatprep.subr.bf16.mxu0 0
      %7588 = vmatpush1.bf16.msra.mxu0 %v7452
      %7589 = vmatprep.subr.bf16.mxu0 0
      %7590 = vmatpush1.bf16.msra.mxu0 %v7449
      %7591 = vmatprep.subr.bf16.mxu0 0
      %7592 = vmatpush1.bf16.msra.mxu0 %v7446
      %7593 = vmatprep.subr.bf16.mxu0 0
      %7594 = vmatpush1.bf16.msra.mxu0 %v7443
      %7595 = vmatprep.subr.bf16.mxu0 0
      %7596 = vmatpush1.bf16.msra.mxu0 %v7440
      %7597 = vmatprep.subr.bf16.mxu0 0
      %7598 = vmatpush1.bf16.msra.mxu0 %v7437
      %7599 = vmatprep.subr.bf16.mxu0 0
      %7600 = vmatpush1.bf16.msra.mxu0 %v7434
      %7601 = vmatprep.subr.bf16.mxu0 0
      %7602 = vmatpush2.bf16.msra.mxu0 %v7479
      %7603 = vmatprep.subr.bf16.mxu0 0
      %7604 = vmatpush2.bf16.msra.mxu0 %v7476
      %7605 = vmatprep.subr.bf16.mxu0 0
      %7606 = vmatpush2.bf16.msra.mxu0 %v7473
      %7607 = vmatprep.subr.bf16.mxu0 0
      %7608 = vmatpush2.bf16.msra.mxu0 %v7470
      %7609 = vmatprep.subr.bf16.mxu0 0
      %7610 = vmatpush2.bf16.msra.mxu0 %v7467
      %7611 = vmatprep.subr.bf16.mxu0 0
      %7612 = vmatpush2.bf16.msra.mxu0 %v7464
      %7613 = vmatprep.subr.bf16.mxu0 0
      %7614 = vmatpush2.bf16.msra.mxu0 %v7461
      %7615 = vmatprep.subr.bf16.mxu0 0
      %7616 = vmatpush2.bf16.msra.mxu0 %v7458
      %7617 = vmatprep.mubr.bf16.mxu0 %v6424
      %7618 = vmatmul.mubr.bf16.gmra.mxu0 %v6423
      %v7619 = vpop.f32.mrf.mxu0
      %v7620 = vadd.f32 %v7540, %v7619
      %v7621 = vpop.f32.mrf.mxu0
      %v7622 = vpop.f32.mrf.mxu0
      %v7623 = vpop.f32.mrf.mxu0
      %7624 = vdwg.mxu0
      %v7625 = vmax.f32 %v7579, 0.0
      %v7626 = vmax.f32 %v7581, 0.0
      %v7627 = vmax.f32 %v7620, 0.0
      %s7628 = scalar_lea.vmem %s8, 1152
      %v7629 = vld [vmem:[%s7628] sm:$0xff]
      %v7630 = vld [vmem:[%s7628 + $0x8] sm:$0xf]
      %v7631 = vld [vmem:[%s7628 + $0xc] sm:$0xff]
      %v7632 = vld [vmem:[%s7628 + $0x14] sm:$0xf]
      %v7633 = vld [vmem:[%s7628 + $0x18] sm:$0xff]
      %v7634 = vld [vmem:[%s7628 + $0x20] sm:$0xf]
      %v7635 = vld [vmem:[%s7628 + $0x24] sm:$0xff]
      %v7636 = vld [vmem:[%s7628 + $0x2c] sm:$0xf]
      %v7637 = vld [vmem:[%s7628 + $0x30] sm:$0xff]
      %v7638 = vld [vmem:[%s7628 + $0x38] sm:$0xf]
      %v7639 = vld [vmem:[%s7628 + $0x3c] sm:$0xff]
      %v7640 = vld [vmem:[%s7628 + $0x44] sm:$0xf]
      %v7641 = vld [vmem:[%s7628 + $0x48] sm:$0xff]
      %v7642 = vld [vmem:[%s7628 + $0x50] sm:$0xf]
      %v7643 = vld [vmem:[%s7628 + $0x54] sm:$0xff]
      %v7644 = vld [vmem:[%s7628 + $0x5c] sm:$0xf]
      %v7645 = vld [vmem:[%s7628 + $0x60] sm:$0xff]
      %v7646 = vld [vmem:[%s7628 + $0x68] sm:$0xf]
      %v7647 = vld [vmem:[%s7628 + $0x6c] sm:$0xff]
      %v7648 = vld [vmem:[%s7628 + $0x74] sm:$0xf]
      %v7649 = vld [vmem:[%s7628 + $0x78] sm:$0xff]
      %v7650 = vld [vmem:[%s7628 + $0x80] sm:$0xf]
      %v7651 = vld [vmem:[%s7628 + $0x84] sm:$0xff]
      %v7652 = vld [vmem:[%s7628 + $0x8c] sm:$0xf]
      %v7653 = vld [vmem:[%s7628 + $0x90] sm:$0xff]
      %v7654 = vld [vmem:[%s7628 + $0x98] sm:$0xf]
      %v7655 = vld [vmem:[%s7628 + $0x9c] sm:$0xff]
      %v7656 = vld [vmem:[%s7628 + $0xa4] sm:$0xf]
      %v7657 = vld [vmem:[%s7628 + $0xa8] sm:$0xff]
      %v7658 = vld [vmem:[%s7628 + $0xb0] sm:$0xf]
      %v7659 = vld [vmem:[%s7628 + $0xb4] sm:$0xff]
      %v7660 = vld [vmem:[%s7628 + $0xbc] sm:$0xf]
      %v7661 = vld [vmem:[%s7628 + $0xc0] sm:$0xff]
      %v7662 = vld [vmem:[%s7628 + $0xc8] sm:$0xf]
      %v7663 = vld [vmem:[%s7628 + $0xcc] sm:$0xff]
      %v7664 = vld [vmem:[%s7628 + $0xd4] sm:$0xf]
      %v7665 = vld [vmem:[%s7628 + $0xd8] sm:$0xff]
      %v7666 = vld [vmem:[%s7628 + $0xe0] sm:$0xf]
      %v7667 = vld [vmem:[%s7628 + $0xe4] sm:$0xff]
      %v7668 = vld [vmem:[%s7628 + $0xec] sm:$0xf]
      %v7669 = vld [vmem:[%s7628 + $0xf0] sm:$0xff]
      %v7670 = vld [vmem:[%s7628 + $0xf8] sm:$0xf]
      %v7671 = vld [vmem:[%s7628 + $0xfc] sm:$0xff]
      %v7672 = vld [vmem:[%s7628 + $0x104] sm:$0xf]
      %v7673 = vld [vmem:[%s7628 + $0x108] sm:$0xff]
      %v7674 = vld [vmem:[%s7628 + $0x110] sm:$0xf]
      %v7675 = vld [vmem:[%s7628 + $0x114] sm:$0xff]
      %v7676 = vld [vmem:[%s7628 + $0x11c] sm:$0xf]
      %v7677 = vld [vmem:[%s7628 + $0x120] sm:$0xff]
      %v7678 = vld [vmem:[%s7628 + $0x128] sm:$0xf]
      %v7679 = vld [vmem:[%s7628 + $0x12c] sm:$0xff]
      %v7680 = vld [vmem:[%s7628 + $0x134] sm:$0xf]
      %v7681 = vld [vmem:[%s7628 + $0x138] sm:$0xff]
      %v7682 = vld [vmem:[%s7628 + $0x140] sm:$0xf]
      %v7683 = vld [vmem:[%s7628 + $0x144] sm:$0xff]
      %v7684 = vld [vmem:[%s7628 + $0x14c] sm:$0xf]
      %v7685 = vld [vmem:[%s7628 + $0x150] sm:$0xff]
      %v7686 = vld [vmem:[%s7628 + $0x158] sm:$0xf]
      %v7687 = vld [vmem:[%s7628 + $0x15c] sm:$0xff]
      %v7688 = vld [vmem:[%s7628 + $0x164] sm:$0xf]
      %v7689 = vld [vmem:[%s7628 + $0x168] sm:$0xff]
      %v7690 = vld [vmem:[%s7628 + $0x170] sm:$0xf]
      %v7691 = vld [vmem:[%s7628 + $0x174] sm:$0xff]
      %v7692 = vld [vmem:[%s7628 + $0x17c] sm:$0xf]
      %s7693 = scalar_lea.vmem %s16, 9
      %v7694 = vld [vmem:[%s7693] sm:$0x7]
      %v7759 = vunpack.c.l.b16 %v7629
      %v7760 = vunpack.c.h.b16 %v7629
      %v7761 = vunpack.c.l.b16 %v7630
      %v7762 = vunpack.c.l.b16 %v7631
      %v7763 = vunpack.c.h.b16 %v7631
      %v7764 = vunpack.c.l.b16 %v7632
      %v7765 = vunpack.c.l.b16 %v7633
      %v7766 = vunpack.c.h.b16 %v7633
      %v7767 = vunpack.c.l.b16 %v7634
      %v7768 = vunpack.c.l.b16 %v7635
      %v7769 = vunpack.c.h.b16 %v7635
      %v7770 = vunpack.c.l.b16 %v7636
      %v7771 = vunpack.c.l.b16 %v7637
      %v7772 = vunpack.c.h.b16 %v7637
      %v7773 = vunpack.c.l.b16 %v7638
      %v7774 = vunpack.c.l.b16 %v7639
      %v7775 = vunpack.c.h.b16 %v7639
      %v7776 = vunpack.c.l.b16 %v7640
      %v7777 = vunpack.c.l.b16 %v7641
      %v7778 = vunpack.c.h.b16 %v7641
      %v7779 = vunpack.c.l.b16 %v7642
      %v7780 = vunpack.c.l.b16 %v7643
      %v7781 = vunpack.c.h.b16 %v7643
      %v7782 = vunpack.c.l.b16 %v7644
      %v7783 = vunpack.c.l.b16 %v7645
      %v7784 = vunpack.c.h.b16 %v7645
      %v7785 = vunpack.c.l.b16 %v7646
      %v7786 = vunpack.c.l.b16 %v7647
      %v7787 = vunpack.c.h.b16 %v7647
      %v7788 = vunpack.c.l.b16 %v7648
      %v7789 = vunpack.c.l.b16 %v7649
      %v7790 = vunpack.c.h.b16 %v7649
      %v7791 = vunpack.c.l.b16 %v7650
      %v7792 = vunpack.c.l.b16 %v7651
      %v7793 = vunpack.c.h.b16 %v7651
      %v7794 = vunpack.c.l.b16 %v7652
      %v7795 = vunpack.c.l.b16 %v7653
      %v7796 = vunpack.c.h.b16 %v7653
      %v7797 = vunpack.c.l.b16 %v7654
      %v7798 = vunpack.c.l.b16 %v7655
      %v7799 = vunpack.c.h.b16 %v7655
      %v7800 = vunpack.c.l.b16 %v7656
      %v7801 = vunpack.c.l.b16 %v7657
      %v7802 = vunpack.c.h.b16 %v7657
      %v7803 = vunpack.c.l.b16 %v7658
      %v7804 = vunpack.c.l.b16 %v7659
      %v7805 = vunpack.c.h.b16 %v7659
      %v7806 = vunpack.c.l.b16 %v7660
      %v7807 = vunpack.c.l.b16 %v7661
      %v7808 = vunpack.c.h.b16 %v7661
      %v7809 = vunpack.c.l.b16 %v7662
      %v7810 = vunpack.c.l.b16 %v7663
      %v7811 = vunpack.c.h.b16 %v7663
      %v7812 = vunpack.c.l.b16 %v7664
      %v7813 = vunpack.c.l.b16 %v7665
      %v7814 = vunpack.c.h.b16 %v7665
      %v7815 = vunpack.c.l.b16 %v7666
      %v7816 = vunpack.c.l.b16 %v7667
      %v7817 = vunpack.c.h.b16 %v7667
      %v7818 = vunpack.c.l.b16 %v7668
      %v7819 = vunpack.c.l.b16 %v7669
      %v7820 = vunpack.c.h.b16 %v7669
      %v7821 = vunpack.c.l.b16 %v7670
      %v7822 = vunpack.c.l.b16 %v7671
      %v7823 = vunpack.c.h.b16 %v7671
      %v7824 = vunpack.c.l.b16 %v7672
      %v7825 = vunpack.c.l.b16 %v7673
      %v7826 = vunpack.c.h.b16 %v7673
      %v7827 = vunpack.c.l.b16 %v7674
      %v7828 = vunpack.c.l.b16 %v7675
      %v7829 = vunpack.c.h.b16 %v7675
      %v7830 = vunpack.c.l.b16 %v7676
      %v7831 = vunpack.c.l.b16 %v7677
      %v7832 = vunpack.c.h.b16 %v7677
      %v7833 = vunpack.c.l.b16 %v7678
      %v7834 = vunpack.c.l.b16 %v7679
      %v7835 = vunpack.c.h.b16 %v7679
      %v7836 = vunpack.c.l.b16 %v7680
      %v7837 = vunpack.c.l.b16 %v7681
      %v7838 = vunpack.c.h.b16 %v7681
      %v7839 = vunpack.c.l.b16 %v7682
      %v7840 = vunpack.c.l.b16 %v7683
      %v7841 = vunpack.c.h.b16 %v7683
      %v7842 = vunpack.c.l.b16 %v7684
      %v7843 = vunpack.c.l.b16 %v7685
      %v7844 = vunpack.c.h.b16 %v7685
      %v7845 = vunpack.c.l.b16 %v7686
      %v7846 = vunpack.c.l.b16 %v7687
      %v7847 = vunpack.c.h.b16 %v7687
      %v7848 = vunpack.c.l.b16 %v7688
      %v7849 = vunpack.c.l.b16 %v7689
      %v7850 = vunpack.c.h.b16 %v7689
      %v7851 = vunpack.c.l.b16 %v7690
      %v7852 = vunpack.c.l.b16 %v7691
      %v7853 = vunpack.c.h.b16 %v7691
      %v7854 = vunpack.c.l.b16 %v7692
      %v7855 = vpack.c.b16 %v7762, %v7759
      %v7856 = vpack.c.b16 %v7763, %v7760
      %v7857 = vpack.c.b16 %v7764, %v7761
      %v7858 = vpack.c.b16 %v7768, %v7765
      %v7859 = vpack.c.b16 %v7769, %v7766
      %v7860 = vpack.c.b16 %v7770, %v7767
      %v7861 = vpack.c.b16 %v7774, %v7771
      %v7862 = vpack.c.b16 %v7775, %v7772
      %v7863 = vpack.c.b16 %v7776, %v7773
      %v7864 = vpack.c.b16 %v7780, %v7777
      %v7865 = vpack.c.b16 %v7781, %v7778
      %v7866 = vpack.c.b16 %v7782, %v7779
      %v7867 = vpack.c.b16 %v7786, %v7783
      %v7868 = vpack.c.b16 %v7787, %v7784
      %v7869 = vpack.c.b16 %v7788, %v7785
      %v7870 = vpack.c.b16 %v7792, %v7789
      %v7871 = vpack.c.b16 %v7793, %v7790
      %v7872 = vpack.c.b16 %v7794, %v7791
      %v7873 = vpack.c.b16 %v7798, %v7795
      %v7874 = vpack.c.b16 %v7799, %v7796
      %v7875 = vpack.c.b16 %v7800, %v7797
      %v7876 = vpack.c.b16 %v7804, %v7801
      %v7877 = vpack.c.b16 %v7805, %v7802
      %v7878 = vpack.c.b16 %v7806, %v7803
      %v7879 = vpack.c.b16 %v7810, %v7807
      %v7880 = vpack.c.b16 %v7811, %v7808
      %v7881 = vpack.c.b16 %v7812, %v7809
      %v7882 = vpack.c.b16 %v7816, %v7813
      %v7883 = vpack.c.b16 %v7817, %v7814
      %v7884 = vpack.c.b16 %v7818, %v7815
      %v7885 = vpack.c.b16 %v7822, %v7819
      %v7886 = vpack.c.b16 %v7823, %v7820
      %v7887 = vpack.c.b16 %v7824, %v7821
      %v7888 = vpack.c.b16 %v7828, %v7825
      %v7889 = vpack.c.b16 %v7829, %v7826
      %v7890 = vpack.c.b16 %v7830, %v7827
      %v7891 = vpack.c.b16 %v7834, %v7831
      %v7892 = vpack.c.b16 %v7835, %v7832
      %v7893 = vpack.c.b16 %v7836, %v7833
      %v7894 = vpack.c.b16 %v7840, %v7837
      %v7895 = vpack.c.b16 %v7841, %v7838
      %v7896 = vpack.c.b16 %v7842, %v7839
      %v7897 = vpack.c.b16 %v7846, %v7843
      %v7898 = vpack.c.b16 %v7847, %v7844
      %v7899 = vpack.c.b16 %v7848, %v7845
      %v7900 = vpack.c.b16 %v7852, %v7849
      %v7901 = vpack.c.b16 %v7853, %v7850
      %v7902 = vpack.c.b16 %v7854, %v7851
      %v7952 = vlaneseq
      %v7953 = vshrl.u32 %v7952, 7
      %v7954 = vsub.s32 0, %v7953
      %v7955 = vrot.slane %v7694, %v7954
      %v7956 = vlaneseq
      %v7957 = vshrl.u32 %v7956, 7
      %v7958 = vsub.s32 1, %v7957
      %v7959 = vrot.slane %v7694, %v7958
      %v7960 = vlaneseq
      %v7961 = vshrl.u32 %v7960, 7
      %v7962 = vsub.s32 2, %v7961
      %v7963 = vrot.slane %v7694, %v7962
      %7967 = vmatprep.subr.bf16.mxu0 %v7877
      %7968 = vmatpush1.bf16.msra.mxu0 %v7876
      %7969 = vmatprep.subr.bf16.mxu0 %v7874
      %7970 = vmatpush1.bf16.msra.mxu0 %v7873
      %7971 = vmatprep.subr.bf16.mxu0 %v7871
      %7972 = vmatpush1.bf16.msra.mxu0 %v7870
      %7973 = vmatprep.subr.bf16.mxu0 %v7868
      %7974 = vmatpush1.bf16.msra.mxu0 %v7867
      %7975 = vmatprep.subr.bf16.mxu0 %v7865
      %7976 = vmatpush1.bf16.msra.mxu0 %v7864
      %7977 = vmatprep.subr.bf16.mxu0 %v7862
      %7978 = vmatpush1.bf16.msra.mxu0 %v7861
      %7979 = vmatprep.subr.bf16.mxu0 %v7859
      %7980 = vmatpush1.bf16.msra.mxu0 %v7858
      %7981 = vmatprep.subr.bf16.mxu0 %v7856
      %7982 = vmatpush1.bf16.msra.mxu0 %v7855
      %7983 = vmatprep.subr.bf16.mxu0 %v7901
      %7984 = vmatpush2.bf16.msra.mxu0 %v7900
      %7985 = vmatprep.subr.bf16.mxu0 %v7898
      %7986 = vmatpush2.bf16.msra.mxu0 %v7897
      %7987 = vmatprep.subr.bf16.mxu0 %v7895
      %7988 = vmatpush2.bf16.msra.mxu0 %v7894
      %7989 = vmatprep.subr.bf16.mxu0 %v7892
      %7990 = vmatpush2.bf16.msra.mxu0 %v7891
      %7991 = vmatprep.subr.bf16.mxu0 %v7889
      %7992 = vmatpush2.bf16.msra.mxu0 %v7888
      %7993 = vmatprep.subr.bf16.mxu0 %v7886
      %7994 = vmatpush2.bf16.msra.mxu0 %v7885
      %7995 = vmatprep.subr.bf16.mxu0 %v7883
      %7996 = vmatpush2.bf16.msra.mxu0 %v7882
      %7997 = vmatprep.subr.bf16.mxu0 %v7880
      %7998 = vmatpush2.bf16.msra.mxu0 %v7879
      %7999 = vmatprep.mubr.bf16.mxu0 %v6424
      %8000 = vmatmul.mubr.bf16.gmra.mxu0 %v6423
      %v8001 = vpop.f32.mrf.mxu0
      %v8002 = vadd.f32 %v7955, %v8001
      %v8003 = vpop.f32.mrf.mxu0
      %v8004 = vadd.f32 %v7959, %v8003
      %v8005 = vpop.f32.mrf.mxu0
      %v8006 = vpop.f32.mrf.mxu0
      %8007 = vdwg.mxu0
      %8008 = vmatprep.subr.bf16.mxu0 0
      %8009 = vmatpush1.bf16.msra.mxu0 %v7878
      %8010 = vmatprep.subr.bf16.mxu0 0
      %8011 = vmatpush1.bf16.msra.mxu0 %v7875
      %8012 = vmatprep.subr.bf16.mxu0 0
      %8013 = vmatpush1.bf16.msra.mxu0 %v7872
      %8014 = vmatprep.subr.bf16.mxu0 0
      %8015 = vmatpush1.bf16.msra.mxu0 %v7869
      %8016 = vmatprep.subr.bf16.mxu0 0
      %8017 = vmatpush1.bf16.msra.mxu0 %v7866
      %8018 = vmatprep.subr.bf16.mxu0 0
      %8019 = vmatpush1.bf16.msra.mxu0 %v7863
      %8020 = vmatprep.subr.bf16.mxu0 0
      %8021 = vmatpush1.bf16.msra.mxu0 %v7860
      %8022 = vmatprep.subr.bf16.mxu0 0
      %8023 = vmatpush1.bf16.msra.mxu0 %v7857
      %8024 = vmatprep.subr.bf16.mxu0 0
      %8025 = vmatpush2.bf16.msra.mxu0 %v7902
      %8026 = vmatprep.subr.bf16.mxu0 0
      %8027 = vmatpush2.bf16.msra.mxu0 %v7899
      %8028 = vmatprep.subr.bf16.mxu0 0
      %8029 = vmatpush2.bf16.msra.mxu0 %v7896
      %8030 = vmatprep.subr.bf16.mxu0 0
      %8031 = vmatpush2.bf16.msra.mxu0 %v7893
      %8032 = vmatprep.subr.bf16.mxu0 0
      %8033 = vmatpush2.bf16.msra.mxu0 %v7890
      %8034 = vmatprep.subr.bf16.mxu0 0
      %8035 = vmatpush2.bf16.msra.mxu0 %v7887
      %8036 = vmatprep.subr.bf16.mxu0 0
      %8037 = vmatpush2.bf16.msra.mxu0 %v7884
      %8038 = vmatprep.subr.bf16.mxu0 0
      %8039 = vmatpush2.bf16.msra.mxu0 %v7881
      %8040 = vmatprep.mubr.bf16.mxu0 %v6424
      %8041 = vmatmul.mubr.bf16.gmra.mxu0 %v6423
      %v8042 = vpop.f32.mrf.mxu0
      %v8043 = vadd.f32 %v7963, %v8042
      %v8044 = vpop.f32.mrf.mxu0
      %v8045 = vpop.f32.mrf.mxu0
      %v8046 = vpop.f32.mrf.mxu0
      %8047 = vdwg.mxu0
      %v8048 = vmax.f32 %v8002, 0.0
      %v8049 = vmax.f32 %v8004, 0.0
      %v8050 = vmax.f32 %v8043, 0.0
      %s8051 = scalar_lea.vmem %s8, 1536
      %v8052 = vld [vmem:[%s8051] sm:$0xff]
      %v8053 = vld [vmem:[%s8051 + $0x8] sm:$0xf]
      %v8054 = vld [vmem:[%s8051 + $0xc] sm:$0xff]
      %v8055 = vld [vmem:[%s8051 + $0x14] sm:$0xf]
      %v8056 = vld [vmem:[%s8051 + $0x18] sm:$0xff]
      %v8057 = vld [vmem:[%s8051 + $0x20] sm:$0xf]
      %v8058 = vld [vmem:[%s8051 + $0x24] sm:$0xff]
      %v8059 = vld [vmem:[%s8051 + $0x2c] sm:$0xf]
      %v8060 = vld [vmem:[%s8051 + $0x30] sm:$0xff]
      %v8061 = vld [vmem:[%s8051 + $0x38] sm:$0xf]
      %v8062 = vld [vmem:[%s8051 + $0x3c] sm:$0xff]
      %v8063 = vld [vmem:[%s8051 + $0x44] sm:$0xf]
      %v8064 = vld [vmem:[%s8051 + $0x48] sm:$0xff]
      %v8065 = vld [vmem:[%s8051 + $0x50] sm:$0xf]
      %v8066 = vld [vmem:[%s8051 + $0x54] sm:$0xff]
      %v8067 = vld [vmem:[%s8051 + $0x5c] sm:$0xf]
      %v8068 = vld [vmem:[%s8051 + $0x60] sm:$0xff]
      %v8069 = vld [vmem:[%s8051 + $0x68] sm:$0xf]
      %v8070 = vld [vmem:[%s8051 + $0x6c] sm:$0xff]
      %v8071 = vld [vmem:[%s8051 + $0x74] sm:$0xf]
      %v8072 = vld [vmem:[%s8051 + $0x78] sm:$0xff]
      %v8073 = vld [vmem:[%s8051 + $0x80] sm:$0xf]
      %v8074 = vld [vmem:[%s8051 + $0x84] sm:$0xff]
      %v8075 = vld [vmem:[%s8051 + $0x8c] sm:$0xf]
      %v8076 = vld [vmem:[%s8051 + $0x90] sm:$0xff]
      %v8077 = vld [vmem:[%s8051 + $0x98] sm:$0xf]
      %v8078 = vld [vmem:[%s8051 + $0x9c] sm:$0xff]
      %v8079 = vld [vmem:[%s8051 + $0xa4] sm:$0xf]
      %v8080 = vld [vmem:[%s8051 + $0xa8] sm:$0xff]
      %v8081 = vld [vmem:[%s8051 + $0xb0] sm:$0xf]
      %v8082 = vld [vmem:[%s8051 + $0xb4] sm:$0xff]
      %v8083 = vld [vmem:[%s8051 + $0xbc] sm:$0xf]
      %v8084 = vld [vmem:[%s8051 + $0xc0] sm:$0xff]
      %v8085 = vld [vmem:[%s8051 + $0xc8] sm:$0xf]
      %v8086 = vld [vmem:[%s8051 + $0xcc] sm:$0xff]
      %v8087 = vld [vmem:[%s8051 + $0xd4] sm:$0xf]
      %v8088 = vld [vmem:[%s8051 + $0xd8] sm:$0xff]
      %v8089 = vld [vmem:[%s8051 + $0xe0] sm:$0xf]
      %v8090 = vld [vmem:[%s8051 + $0xe4] sm:$0xff]
      %v8091 = vld [vmem:[%s8051 + $0xec] sm:$0xf]
      %v8092 = vld [vmem:[%s8051 + $0xf0] sm:$0xff]
      %v8093 = vld [vmem:[%s8051 + $0xf8] sm:$0xf]
      %v8094 = vld [vmem:[%s8051 + $0xfc] sm:$0xff]
      %v8095 = vld [vmem:[%s8051 + $0x104] sm:$0xf]
      %v8096 = vld [vmem:[%s8051 + $0x108] sm:$0xff]
      %v8097 = vld [vmem:[%s8051 + $0x110] sm:$0xf]
      %v8098 = vld [vmem:[%s8051 + $0x114] sm:$0xff]
      %v8099 = vld [vmem:[%s8051 + $0x11c] sm:$0xf]
      %v8100 = vld [vmem:[%s8051 + $0x120] sm:$0xff]
      %v8101 = vld [vmem:[%s8051 + $0x128] sm:$0xf]
      %v8102 = vld [vmem:[%s8051 + $0x12c] sm:$0xff]
      %v8103 = vld [vmem:[%s8051 + $0x134] sm:$0xf]
      %v8104 = vld [vmem:[%s8051 + $0x138] sm:$0xff]
      %v8105 = vld [vmem:[%s8051 + $0x140] sm:$0xf]
      %v8106 = vld [vmem:[%s8051 + $0x144] sm:$0xff]
      %v8107 = vld [vmem:[%s8051 + $0x14c] sm:$0xf]
      %v8108 = vld [vmem:[%s8051 + $0x150] sm:$0xff]
      %v8109 = vld [vmem:[%s8051 + $0x158] sm:$0xf]
      %v8110 = vld [vmem:[%s8051 + $0x15c] sm:$0xff]
      %v8111 = vld [vmem:[%s8051 + $0x164] sm:$0xf]
      %v8112 = vld [vmem:[%s8051 + $0x168] sm:$0xff]
      %v8113 = vld [vmem:[%s8051 + $0x170] sm:$0xf]
      %v8114 = vld [vmem:[%s8051 + $0x174] sm:$0xff]
      %v8115 = vld [vmem:[%s8051 + $0x17c] sm:$0xf]
      %s8116 = scalar_lea.vmem %s16, 12
      %v8117 = vld [vmem:[%s8116] sm:$0x7]
      %v8182 = vunpack.c.l.b16 %v8052
      %v8183 = vunpack.c.h.b16 %v8052
      %v8184 = vunpack.c.l.b16 %v8053
      %v8185 = vunpack.c.l.b16 %v8054
      %v8186 = vunpack.c.h.b16 %v8054
      %v8187 = vunpack.c.l.b16 %v8055
      %v8188 = vunpack.c.l.b16 %v8056
      %v8189 = vunpack.c.h.b16 %v8056
      %v8190 = vunpack.c.l.b16 %v8057
      %v8191 = vunpack.c.l.b16 %v8058
      %v8192 = vunpack.c.h.b16 %v8058
      %v8193 = vunpack.c.l.b16 %v8059
      %v8194 = vunpack.c.l.b16 %v8060
      %v8195 = vunpack.c.h.b16 %v8060
      %v8196 = vunpack.c.l.b16 %v8061
      %v8197 = vunpack.c.l.b16 %v8062
      %v8198 = vunpack.c.h.b16 %v8062
      %v8199 = vunpack.c.l.b16 %v8063
      %v8200 = vunpack.c.l.b16 %v8064
      %v8201 = vunpack.c.h.b16 %v8064
      %v8202 = vunpack.c.l.b16 %v8065
      %v8203 = vunpack.c.l.b16 %v8066
      %v8204 = vunpack.c.h.b16 %v8066
      %v8205 = vunpack.c.l.b16 %v8067
      %v8206 = vunpack.c.l.b16 %v8068
      %v8207 = vunpack.c.h.b16 %v8068
      %v8208 = vunpack.c.l.b16 %v8069
      %v8209 = vunpack.c.l.b16 %v8070
      %v8210 = vunpack.c.h.b16 %v8070
      %v8211 = vunpack.c.l.b16 %v8071
      %v8212 = vunpack.c.l.b16 %v8072
      %v8213 = vunpack.c.h.b16 %v8072
      %v8214 = vunpack.c.l.b16 %v8073
      %v8215 = vunpack.c.l.b16 %v8074
      %v8216 = vunpack.c.h.b16 %v8074
      %v8217 = vunpack.c.l.b16 %v8075
      %v8218 = vunpack.c.l.b16 %v8076
      %v8219 = vunpack.c.h.b16 %v8076
      %v8220 = vunpack.c.l.b16 %v8077
      %v8221 = vunpack.c.l.b16 %v8078
      %v8222 = vunpack.c.h.b16 %v8078
      %v8223 = vunpack.c.l.b16 %v8079
      %v8224 = vunpack.c.l.b16 %v8080
      %v8225 = vunpack.c.h.b16 %v8080
      %v8226 = vunpack.c.l.b16 %v8081
      %v8227 = vunpack.c.l.b16 %v8082
      %v8228 = vunpack.c.h.b16 %v8082
      %v8229 = vunpack.c.l.b16 %v8083
      %v8230 = vunpack.c.l.b16 %v8084
      %v8231 = vunpack.c.h.b16 %v8084
      %v8232 = vunpack.c.l.b16 %v8085
      %v8233 = vunpack.c.l.b16 %v8086
      %v8234 = vunpack.c.h.b16 %v8086
      %v8235 = vunpack.c.l.b16 %v8087
      %v8236 = vunpack.c.l.b16 %v8088
      %v8237 = vunpack.c.h.b16 %v8088
      %v8238 = vunpack.c.l.b16 %v8089
      %v8239 = vunpack.c.l.b16 %v8090
      %v8240 = vunpack.c.h.b16 %v8090
      %v8241 = vunpack.c.l.b16 %v8091
      %v8242 = vunpack.c.l.b16 %v8092
      %v8243 = vunpack.c.h.b16 %v8092
      %v8244 = vunpack.c.l.b16 %v8093
      %v8245 = vunpack.c.l.b16 %v8094
      %v8246 = vunpack.c.h.b16 %v8094
      %v8247 = vunpack.c.l.b16 %v8095
      %v8248 = vunpack.c.l.b16 %v8096
      %v8249 = vunpack.c.h.b16 %v8096
      %v8250 = vunpack.c.l.b16 %v8097
      %v8251 = vunpack.c.l.b16 %v8098
      %v8252 = vunpack.c.h.b16 %v8098
      %v8253 = vunpack.c.l.b16 %v8099
      %v8254 = vunpack.c.l.b16 %v8100
      %v8255 = vunpack.c.h.b16 %v8100
      %v8256 = vunpack.c.l.b16 %v8101
      %v8257 = vunpack.c.l.b16 %v8102
      %v8258 = vunpack.c.h.b16 %v8102
      %v8259 = vunpack.c.l.b16 %v8103
      %v8260 = vunpack.c.l.b16 %v8104
      %v8261 = vunpack.c.h.b16 %v8104
      %v8262 = vunpack.c.l.b16 %v8105
      %v8263 = vunpack.c.l.b16 %v8106
      %v8264 = vunpack.c.h.b16 %v8106
      %v8265 = vunpack.c.l.b16 %v8107
      %v8266 = vunpack.c.l.b16 %v8108
      %v8267 = vunpack.c.h.b16 %v8108
      %v8268 = vunpack.c.l.b16 %v8109
      %v8269 = vunpack.c.l.b16 %v8110
      %v8270 = vunpack.c.h.b16 %v8110
      %v8271 = vunpack.c.l.b16 %v8111
      %v8272 = vunpack.c.l.b16 %v8112
      %v8273 = vunpack.c.h.b16 %v8112
      %v8274 = vunpack.c.l.b16 %v8113
      %v8275 = vunpack.c.l.b16 %v8114
      %v8276 = vunpack.c.h.b16 %v8114
      %v8277 = vunpack.c.l.b16 %v8115
      %v8278 = vpack.c.b16 %v8185, %v8182
      %v8279 = vpack.c.b16 %v8186, %v8183
      %v8280 = vpack.c.b16 %v8187, %v8184
      %v8281 = vpack.c.b16 %v8191, %v8188
      %v8282 = vpack.c.b16 %v8192, %v8189
      %v8283 = vpack.c.b16 %v8193, %v8190
      %v8284 = vpack.c.b16 %v8197, %v8194
      %v8285 = vpack.c.b16 %v8198, %v8195
      %v8286 = vpack.c.b16 %v8199, %v8196
      %v8287 = vpack.c.b16 %v8203, %v8200
      %v8288 = vpack.c.b16 %v8204, %v8201
      %v8289 = vpack.c.b16 %v8205, %v8202
      %v8290 = vpack.c.b16 %v8209, %v8206
      %v8291 = vpack.c.b16 %v8210, %v8207
      %v8292 = vpack.c.b16 %v8211, %v8208
      %v8293 = vpack.c.b16 %v8215, %v8212
      %v8294 = vpack.c.b16 %v8216, %v8213
      %v8295 = vpack.c.b16 %v8217, %v8214
      %v8296 = vpack.c.b16 %v8221, %v8218
      %v8297 = vpack.c.b16 %v8222, %v8219
      %v8298 = vpack.c.b16 %v8223, %v8220
      %v8299 = vpack.c.b16 %v8227, %v8224
      %v8300 = vpack.c.b16 %v8228, %v8225
      %v8301 = vpack.c.b16 %v8229, %v8226
      %v8302 = vpack.c.b16 %v8233, %v8230
      %v8303 = vpack.c.b16 %v8234, %v8231
      %v8304 = vpack.c.b16 %v8235, %v8232
      %v8305 = vpack.c.b16 %v8239, %v8236
      %v8306 = vpack.c.b16 %v8240, %v8237
      %v8307 = vpack.c.b16 %v8241, %v8238
      %v8308 = vpack.c.b16 %v8245, %v8242
      %v8309 = vpack.c.b16 %v8246, %v8243
      %v8310 = vpack.c.b16 %v8247, %v8244
      %v8311 = vpack.c.b16 %v8251, %v8248
      %v8312 = vpack.c.b16 %v8252, %v8249
      %v8313 = vpack.c.b16 %v8253, %v8250
      %v8314 = vpack.c.b16 %v8257, %v8254
      %v8315 = vpack.c.b16 %v8258, %v8255
      %v8316 = vpack.c.b16 %v8259, %v8256
      %v8317 = vpack.c.b16 %v8263, %v8260
      %v8318 = vpack.c.b16 %v8264, %v8261
      %v8319 = vpack.c.b16 %v8265, %v8262
      %v8320 = vpack.c.b16 %v8269, %v8266
      %v8321 = vpack.c.b16 %v8270, %v8267
      %v8322 = vpack.c.b16 %v8271, %v8268
      %v8323 = vpack.c.b16 %v8275, %v8272
      %v8324 = vpack.c.b16 %v8276, %v8273
      %v8325 = vpack.c.b16 %v8277, %v8274
      %v8375 = vlaneseq
      %v8376 = vshrl.u32 %v8375, 7
      %v8377 = vsub.s32 0, %v8376
      %v8378 = vrot.slane %v8117, %v8377
      %v8379 = vlaneseq
      %v8380 = vshrl.u32 %v8379, 7
      %v8381 = vsub.s32 1, %v8380
      %v8382 = vrot.slane %v8117, %v8381
      %v8383 = vlaneseq
      %v8384 = vshrl.u32 %v8383, 7
      %v8385 = vsub.s32 2, %v8384
      %v8386 = vrot.slane %v8117, %v8385
      %8390 = vmatprep.subr.bf16.mxu0 %v8300
      %8391 = vmatpush1.bf16.msra.mxu0 %v8299
      %8392 = vmatprep.subr.bf16.mxu0 %v8297
      %8393 = vmatpush1.bf16.msra.mxu0 %v8296
      %8394 = vmatprep.subr.bf16.mxu0 %v8294
      %8395 = vmatpush1.bf16.msra.mxu0 %v8293
      %8396 = vmatprep.subr.bf16.mxu0 %v8291
      %8397 = vmatpush1.bf16.msra.mxu0 %v8290
      %8398 = vmatprep.subr.bf16.mxu0 %v8288
      %8399 = vmatpush1.bf16.msra.mxu0 %v8287
      %8400 = vmatprep.subr.bf16.mxu0 %v8285
      %8401 = vmatpush1.bf16.msra.mxu0 %v8284
      %8402 = vmatprep.subr.bf16.mxu0 %v8282
      %8403 = vmatpush1.bf16.msra.mxu0 %v8281
      %8404 = vmatprep.subr.bf16.mxu0 %v8279
      %8405 = vmatpush1.bf16.msra.mxu0 %v8278
      %8406 = vmatprep.subr.bf16.mxu0 %v8324
      %8407 = vmatpush2.bf16.msra.mxu0 %v8323
      %8408 = vmatprep.subr.bf16.mxu0 %v8321
      %8409 = vmatpush2.bf16.msra.mxu0 %v8320
      %8410 = vmatprep.subr.bf16.mxu0 %v8318
      %8411 = vmatpush2.bf16.msra.mxu0 %v8317
      %8412 = vmatprep.subr.bf16.mxu0 %v8315
      %8413 = vmatpush2.bf16.msra.mxu0 %v8314
      %8414 = vmatprep.subr.bf16.mxu0 %v8312
      %8415 = vmatpush2.bf16.msra.mxu0 %v8311
      %8416 = vmatprep.subr.bf16.mxu0 %v8309
      %8417 = vmatpush2.bf16.msra.mxu0 %v8308
      %8418 = vmatprep.subr.bf16.mxu0 %v8306
      %8419 = vmatpush2.bf16.msra.mxu0 %v8305
      %8420 = vmatprep.subr.bf16.mxu0 %v8303
      %8421 = vmatpush2.bf16.msra.mxu0 %v8302
      %8422 = vmatprep.mubr.bf16.mxu0 %v6424
      %8423 = vmatmul.mubr.bf16.gmra.mxu0 %v6423
      %v8424 = vpop.f32.mrf.mxu0
      %v8425 = vadd.f32 %v8378, %v8424
      %v8426 = vpop.f32.mrf.mxu0
      %v8427 = vadd.f32 %v8382, %v8426
      %v8428 = vpop.f32.mrf.mxu0
      %v8429 = vpop.f32.mrf.mxu0
      %8430 = vdwg.mxu0
      %8431 = vmatprep.subr.bf16.mxu0 0
      %8432 = vmatpush1.bf16.msra.mxu0 %v8301
      %8433 = vmatprep.subr.bf16.mxu0 0
      %8434 = vmatpush1.bf16.msra.mxu0 %v8298
      %8435 = vmatprep.subr.bf16.mxu0 0
      %8436 = vmatpush1.bf16.msra.mxu0 %v8295
      %8437 = vmatprep.subr.bf16.mxu0 0
      %8438 = vmatpush1.bf16.msra.mxu0 %v8292
      %8439 = vmatprep.subr.bf16.mxu0 0
      %8440 = vmatpush1.bf16.msra.mxu0 %v8289
      %8441 = vmatprep.subr.bf16.mxu0 0
      %8442 = vmatpush1.bf16.msra.mxu0 %v8286
      %8443 = vmatprep.subr.bf16.mxu0 0
      %8444 = vmatpush1.bf16.msra.mxu0 %v8283
      %8445 = vmatprep.subr.bf16.mxu0 0
      %8446 = vmatpush1.bf16.msra.mxu0 %v8280
      %8447 = vmatprep.subr.bf16.mxu0 0
      %8448 = vmatpush2.bf16.msra.mxu0 %v8325
      %8449 = vmatprep.subr.bf16.mxu0 0
      %8450 = vmatpush2.bf16.msra.mxu0 %v8322
      %8451 = vmatprep.subr.bf16.mxu0 0
      %8452 = vmatpush2.bf16.msra.mxu0 %v8319
      %8453 = vmatprep.subr.bf16.mxu0 0
      %8454 = vmatpush2.bf16.msra.mxu0 %v8316
      %8455 = vmatprep.subr.bf16.mxu0 0
      %8456 = vmatpush2.bf16.msra.mxu0 %v8313
      %8457 = vmatprep.subr.bf16.mxu0 0
      %8458 = vmatpush2.bf16.msra.mxu0 %v8310
      %8459 = vmatprep.subr.bf16.mxu0 0
      %8460 = vmatpush2.bf16.msra.mxu0 %v8307
      %8461 = vmatprep.subr.bf16.mxu0 0
      %8462 = vmatpush2.bf16.msra.mxu0 %v8304
      %8463 = vmatprep.mubr.bf16.mxu0 %v6424
      %8464 = vmatmul.mubr.bf16.gmra.mxu0 %v6423
      %v8465 = vpop.f32.mrf.mxu0
      %v8466 = vadd.f32 %v8386, %v8465
      %v8467 = vpop.f32.mrf.mxu0
      %v8468 = vpop.f32.mrf.mxu0
      %v8469 = vpop.f32.mrf.mxu0
      %8470 = vdwg.mxu0
      %v8471 = vmax.f32 %v8425, 0.0
      %v8472 = vmax.f32 %v8427, 0.0
      %v8473 = vmax.f32 %v8466, 0.0
      %v8477 = vrot.slane %v7202, 7
      %v8478 = vrot.slane %v7203, 7
      %v8479 = vrot.slane %v7204, 7
      %v8486 = vrot.slane %v7625, 6
      %v8487 = vrot.slane %v7626, 6
      %v8488 = vrot.slane %v7627, 6
      %v8495 = vrot.slane %v8048, 5
      %v8496 = vrot.slane %v8049, 5
      %v8497 = vrot.slane %v8050, 5
      %v8504 = vrot.slane %v8471, 4
      %v8505 = vrot.slane %v8472, 4
      %v8506 = vrot.slane %v8473, 4
      %v8510 = vsel %vm1895, %v6779, %v8477
      %v8511 = vsel %vm1895, %v6780, %v8478
      %v8512 = vsel %vm1895, %v6781, %v8479
      %vm8513 = vcmask 1041408
      %v8514 = vsel %vm8513, %v8510, %v8486
      %v8515 = vsel %vm8513, %v8511, %v8487
      %v8516 = vsel %vm8513, %v8512, %v8488
      %vm8517 = vcmask 1042432
      %v8518 = vsel %vm8517, %v8514, %v8495
      %v8519 = vsel %vm8517, %v8515, %v8496
      %v8520 = vsel %vm8517, %v8516, %v8497
      %vm8521 = vcmask 1043456
      %v8522 = vsel %vm8521, %v8518, %v8504
      %v8523 = vsel %vm8521, %v8519, %v8505
      %v8524 = vsel %vm8521, %v8520, %v8506
      %v8528 = vrot.slane %v8522, 7
      %v8529 = vrot.slane %v8523, 7
      %v8530 = vrot.slane %v8524, 7
      %v8534 = vsel %vm1895, 0.0, %v8528
      %v8535 = vsel %vm1895, 0.0, %v8529
      %v8536 = vsel %vm1895, 0.0, %v8530
      %vm8537 = vcmask 1045504
      %v8538 = vsel %vm8537, %v8534, 0.0
      %v8539 = vsel %vm8537, %v8535, 0.0
      %v8540 = vsel %vm8537, %v8536, 0.0
      %s8541 = scalar_lea.vmem %s9, 480
      %v8542 = vld [vmem:[%s8541] sm:$0xff]
      %v8543 = vld [vmem:[%s8541 + $0x8] sm:$0xf]
      %v8544 = vld [vmem:[%s8541 + $0xc] sm:$0xff]
      %v8545 = vld [vmem:[%s8541 + $0x14] sm:$0xf]
      %v8546 = vld [vmem:[%s8541 + $0x18] sm:$0xff]
      %v8547 = vld [vmem:[%s8541 + $0x20] sm:$0xf]
      %v8548 = vld [vmem:[%s8541 + $0x24] sm:$0xff]
      %v8549 = vld [vmem:[%s8541 + $0x2c] sm:$0xf]
      %v8550 = vld [vmem:[%s8541 + $0x30] sm:$0xff]
      %v8551 = vld [vmem:[%s8541 + $0x38] sm:$0xf]
      %v8552 = vld [vmem:[%s8541 + $0x3c] sm:$0xff]
      %v8553 = vld [vmem:[%s8541 + $0x44] sm:$0xf]
      %v8554 = vld [vmem:[%s8541 + $0x48] sm:$0xff]
      %v8555 = vld [vmem:[%s8541 + $0x50] sm:$0xf]
      %v8556 = vld [vmem:[%s8541 + $0x54] sm:$0xff]
      %v8557 = vld [vmem:[%s8541 + $0x5c] sm:$0xf]
      %v8558 = vld [vmem:[%s8541 + $0x60] sm:$0xff]
      %v8559 = vld [vmem:[%s8541 + $0x68] sm:$0xf]
      %v8560 = vld [vmem:[%s8541 + $0x6c] sm:$0xff]
      %v8561 = vld [vmem:[%s8541 + $0x74] sm:$0xf]
      %v8562 = vld [vmem:[%s8541 + $0x78] sm:$0xff]
      %v8563 = vld [vmem:[%s8541 + $0x80] sm:$0xf]
      %v8564 = vld [vmem:[%s8541 + $0x84] sm:$0xff]
      %v8565 = vld [vmem:[%s8541 + $0x8c] sm:$0xf]
      %v8566 = vld [vmem:[%s8541 + $0x90] sm:$0xff]
      %v8567 = vld [vmem:[%s8541 + $0x98] sm:$0xf]
      %v8568 = vld [vmem:[%s8541 + $0x9c] sm:$0xff]
      %v8569 = vld [vmem:[%s8541 + $0xa4] sm:$0xf]
      %v8570 = vld [vmem:[%s8541 + $0xa8] sm:$0xff]
      %v8571 = vld [vmem:[%s8541 + $0xb0] sm:$0xf]
      %v8572 = vld [vmem:[%s8541 + $0xb4] sm:$0xff]
      %v8573 = vld [vmem:[%s8541 + $0xbc] sm:$0xf]
      %v8574 = vld [vmem:[%s8541 + $0xc0] sm:$0xff]
      %v8575 = vld [vmem:[%s8541 + $0xc8] sm:$0xf]
      %v8576 = vld [vmem:[%s8541 + $0xcc] sm:$0xff]
      %v8577 = vld [vmem:[%s8541 + $0xd4] sm:$0xf]
      %v8578 = vld [vmem:[%s8541 + $0xd8] sm:$0xff]
      %v8579 = vld [vmem:[%s8541 + $0xe0] sm:$0xf]
      %v8580 = vld [vmem:[%s8541 + $0xe4] sm:$0xff]
      %v8581 = vld [vmem:[%s8541 + $0xec] sm:$0xf]
      %v8582 = vld [vmem:[%s8541 + $0xf0] sm:$0xff]
      %v8583 = vld [vmem:[%s8541 + $0xf8] sm:$0xf]
      %v8584 = vld [vmem:[%s8541 + $0xfc] sm:$0xff]
      %v8585 = vld [vmem:[%s8541 + $0x104] sm:$0xf]
      %v8586 = vld [vmem:[%s8541 + $0x108] sm:$0xff]
      %v8587 = vld [vmem:[%s8541 + $0x110] sm:$0xf]
      %v8588 = vld [vmem:[%s8541 + $0x114] sm:$0xff]
      %v8589 = vld [vmem:[%s8541 + $0x11c] sm:$0xf]
      %v8590 = vld [vmem:[%s8541 + $0x120] sm:$0xff]
      %v8591 = vld [vmem:[%s8541 + $0x128] sm:$0xf]
      %v8592 = vld [vmem:[%s8541 + $0x12c] sm:$0xff]
      %v8593 = vld [vmem:[%s8541 + $0x134] sm:$0xf]
      %v8594 = vld [vmem:[%s8541 + $0x138] sm:$0xff]
      %v8595 = vld [vmem:[%s8541 + $0x140] sm:$0xf]
      %v8596 = vld [vmem:[%s8541 + $0x144] sm:$0xff]
      %v8597 = vld [vmem:[%s8541 + $0x14c] sm:$0xf]
      %v8598 = vld [vmem:[%s8541 + $0x150] sm:$0xff]
      %v8599 = vld [vmem:[%s8541 + $0x158] sm:$0xf]
      %v8600 = vld [vmem:[%s8541 + $0x15c] sm:$0xff]
      %v8601 = vld [vmem:[%s8541 + $0x164] sm:$0xf]
      %v8602 = vld [vmem:[%s8541 + $0x168] sm:$0xff]
      %v8603 = vld [vmem:[%s8541 + $0x170] sm:$0xf]
      %v8604 = vld [vmem:[%s8541 + $0x174] sm:$0xff]
      %v8605 = vld [vmem:[%s8541 + $0x17c] sm:$0xf]
      %v8606 = vld [vmem:[%s8541 + $0x180] sm:$0xff]
      %v8607 = vld [vmem:[%s8541 + $0x188] sm:$0xf]
      %v8608 = vld [vmem:[%s8541 + $0x18c] sm:$0xff]
      %v8609 = vld [vmem:[%s8541 + $0x194] sm:$0xf]
      %v8610 = vld [vmem:[%s8541 + $0x198] sm:$0xff]
      %v8611 = vld [vmem:[%s8541 + $0x1a0] sm:$0xf]
      %v8612 = vld [vmem:[%s8541 + $0x1a4] sm:$0xff]
      %v8613 = vld [vmem:[%s8541 + $0x1ac] sm:$0xf]
      %v8614 = vld [vmem:[%s8541 + $0x1b0] sm:$0xff]
      %v8615 = vld [vmem:[%s8541 + $0x1b8] sm:$0xf]
      %v8616 = vld [vmem:[%s8541 + $0x1bc] sm:$0xff]
      %v8617 = vld [vmem:[%s8541 + $0x1c4] sm:$0xf]
      %v8618 = vld [vmem:[%s8541 + $0x1c8] sm:$0xff]
      %v8619 = vld [vmem:[%s8541 + $0x1d0] sm:$0xf]
      %v8620 = vld [vmem:[%s8541 + $0x1d4] sm:$0xff]
      %v8621 = vld [vmem:[%s8541 + $0x1dc] sm:$0xf]
      %v8622 = vpack.c.bf16 %v8538, %v8538
      %v8623 = vpack.c.bf16 %v8539, %v8539
      %v8624 = vpack.c.bf16 %v8540, %v8540
      %s8625 = scalar_lea.vmem %s9, 1440
      %v8626 = vld [vmem:[%s8625] sm:$0xff]
      %v8627 = vld [vmem:[%s8625 + $0x8] sm:$0xf]
      %v8628 = vld [vmem:[%s8625 + $0xc] sm:$0xff]
      %v8629 = vld [vmem:[%s8625 + $0x14] sm:$0xf]
      %v8630 = vld [vmem:[%s8625 + $0x18] sm:$0xff]
      %v8631 = vld [vmem:[%s8625 + $0x20] sm:$0xf]
      %v8632 = vld [vmem:[%s8625 + $0x24] sm:$0xff]
      %v8633 = vld [vmem:[%s8625 + $0x2c] sm:$0xf]
      %v8634 = vld [vmem:[%s8625 + $0x30] sm:$0xff]
      %v8635 = vld [vmem:[%s8625 + $0x38] sm:$0xf]
      %v8636 = vld [vmem:[%s8625 + $0x3c] sm:$0xff]
      %v8637 = vld [vmem:[%s8625 + $0x44] sm:$0xf]
      %v8638 = vld [vmem:[%s8625 + $0x48] sm:$0xff]
      %v8639 = vld [vmem:[%s8625 + $0x50] sm:$0xf]
      %v8640 = vld [vmem:[%s8625 + $0x54] sm:$0xff]
      %v8641 = vld [vmem:[%s8625 + $0x5c] sm:$0xf]
      %v8642 = vld [vmem:[%s8625 + $0x60] sm:$0xff]
      %v8643 = vld [vmem:[%s8625 + $0x68] sm:$0xf]
      %v8644 = vld [vmem:[%s8625 + $0x6c] sm:$0xff]
      %v8645 = vld [vmem:[%s8625 + $0x74] sm:$0xf]
      %v8646 = vld [vmem:[%s8625 + $0x78] sm:$0xff]
      %v8647 = vld [vmem:[%s8625 + $0x80] sm:$0xf]
      %v8648 = vld [vmem:[%s8625 + $0x84] sm:$0xff]
      %v8649 = vld [vmem:[%s8625 + $0x8c] sm:$0xf]
      %v8650 = vld [vmem:[%s8625 + $0x90] sm:$0xff]
      %v8651 = vld [vmem:[%s8625 + $0x98] sm:$0xf]
      %v8652 = vld [vmem:[%s8625 + $0x9c] sm:$0xff]
      %v8653 = vld [vmem:[%s8625 + $0xa4] sm:$0xf]
      %v8654 = vld [vmem:[%s8625 + $0xa8] sm:$0xff]
      %v8655 = vld [vmem:[%s8625 + $0xb0] sm:$0xf]
      %v8656 = vld [vmem:[%s8625 + $0xb4] sm:$0xff]
      %v8657 = vld [vmem:[%s8625 + $0xbc] sm:$0xf]
      %v8658 = vld [vmem:[%s8625 + $0xc0] sm:$0xff]
      %v8659 = vld [vmem:[%s8625 + $0xc8] sm:$0xf]
      %v8660 = vld [vmem:[%s8625 + $0xcc] sm:$0xff]
      %v8661 = vld [vmem:[%s8625 + $0xd4] sm:$0xf]
      %v8662 = vld [vmem:[%s8625 + $0xd8] sm:$0xff]
      %v8663 = vld [vmem:[%s8625 + $0xe0] sm:$0xf]
      %v8664 = vld [vmem:[%s8625 + $0xe4] sm:$0xff]
      %v8665 = vld [vmem:[%s8625 + $0xec] sm:$0xf]
      %v8666 = vld [vmem:[%s8625 + $0xf0] sm:$0xff]
      %v8667 = vld [vmem:[%s8625 + $0xf8] sm:$0xf]
      %v8668 = vld [vmem:[%s8625 + $0xfc] sm:$0xff]
      %v8669 = vld [vmem:[%s8625 + $0x104] sm:$0xf]
      %v8670 = vld [vmem:[%s8625 + $0x108] sm:$0xff]
      %v8671 = vld [vmem:[%s8625 + $0x110] sm:$0xf]
      %v8672 = vld [vmem:[%s8625 + $0x114] sm:$0xff]
      %v8673 = vld [vmem:[%s8625 + $0x11c] sm:$0xf]
      %v8674 = vld [vmem:[%s8625 + $0x120] sm:$0xff]
      %v8675 = vld [vmem:[%s8625 + $0x128] sm:$0xf]
      %v8676 = vld [vmem:[%s8625 + $0x12c] sm:$0xff]
      %v8677 = vld [vmem:[%s8625 + $0x134] sm:$0xf]
      %v8678 = vld [vmem:[%s8625 + $0x138] sm:$0xff]
      %v8679 = vld [vmem:[%s8625 + $0x140] sm:$0xf]
      %v8680 = vld [vmem:[%s8625 + $0x144] sm:$0xff]
      %v8681 = vld [vmem:[%s8625 + $0x14c] sm:$0xf]
      %v8682 = vld [vmem:[%s8625 + $0x150] sm:$0xff]
      %v8683 = vld [vmem:[%s8625 + $0x158] sm:$0xf]
      %v8684 = vld [vmem:[%s8625 + $0x15c] sm:$0xff]
      %v8685 = vld [vmem:[%s8625 + $0x164] sm:$0xf]
      %v8686 = vld [vmem:[%s8625 + $0x168] sm:$0xff]
      %v8687 = vld [vmem:[%s8625 + $0x170] sm:$0xf]
      %v8688 = vld [vmem:[%s8625 + $0x174] sm:$0xff]
      %v8689 = vld [vmem:[%s8625 + $0x17c] sm:$0xf]
      %v8690 = vld [vmem:[%s8625 + $0x180] sm:$0xff]
      %v8691 = vld [vmem:[%s8625 + $0x188] sm:$0xf]
      %v8692 = vld [vmem:[%s8625 + $0x18c] sm:$0xff]
      %v8693 = vld [vmem:[%s8625 + $0x194] sm:$0xf]
      %v8694 = vld [vmem:[%s8625 + $0x198] sm:$0xff]
      %v8695 = vld [vmem:[%s8625 + $0x1a0] sm:$0xf]
      %v8696 = vld [vmem:[%s8625 + $0x1a4] sm:$0xff]
      %v8697 = vld [vmem:[%s8625 + $0x1ac] sm:$0xf]
      %v8698 = vld [vmem:[%s8625 + $0x1b0] sm:$0xff]
      %v8699 = vld [vmem:[%s8625 + $0x1b8] sm:$0xf]
      %v8700 = vld [vmem:[%s8625 + $0x1bc] sm:$0xff]
      %v8701 = vld [vmem:[%s8625 + $0x1c4] sm:$0xf]
      %v8702 = vld [vmem:[%s8625 + $0x1c8] sm:$0xff]
      %v8703 = vld [vmem:[%s8625 + $0x1d0] sm:$0xf]
      %v8704 = vld [vmem:[%s8625 + $0x1d4] sm:$0xff]
      %v8705 = vld [vmem:[%s8625 + $0x1dc] sm:$0xf]
      %v8786 = vunpack.c.l.b16 %v8626
      %v8787 = vunpack.c.h.b16 %v8626
      %v8788 = vunpack.c.l.b16 %v8627
      %v8789 = vunpack.c.l.b16 %v8628
      %v8790 = vunpack.c.h.b16 %v8628
      %v8791 = vunpack.c.l.b16 %v8629
      %v8792 = vunpack.c.l.b16 %v8630
      %v8793 = vunpack.c.h.b16 %v8630
      %v8794 = vunpack.c.l.b16 %v8631
      %v8795 = vunpack.c.l.b16 %v8632
      %v8796 = vunpack.c.h.b16 %v8632
      %v8797 = vunpack.c.l.b16 %v8633
      %v8798 = vunpack.c.l.b16 %v8634
      %v8799 = vunpack.c.h.b16 %v8634
      %v8800 = vunpack.c.l.b16 %v8635
      %v8801 = vunpack.c.l.b16 %v8636
      %v8802 = vunpack.c.h.b16 %v8636
      %v8803 = vunpack.c.l.b16 %v8637
      %v8804 = vunpack.c.l.b16 %v8638
      %v8805 = vunpack.c.h.b16 %v8638
      %v8806 = vunpack.c.l.b16 %v8639
      %v8807 = vunpack.c.l.b16 %v8640
      %v8808 = vunpack.c.h.b16 %v8640
      %v8809 = vunpack.c.l.b16 %v8641
      %v8810 = vunpack.c.l.b16 %v8642
      %v8811 = vunpack.c.h.b16 %v8642
      %v8812 = vunpack.c.l.b16 %v8643
      %v8813 = vunpack.c.l.b16 %v8644
      %v8814 = vunpack.c.h.b16 %v8644
      %v8815 = vunpack.c.l.b16 %v8645
      %v8816 = vunpack.c.l.b16 %v8646
      %v8817 = vunpack.c.h.b16 %v8646
      %v8818 = vunpack.c.l.b16 %v8647
      %v8819 = vunpack.c.l.b16 %v8648
      %v8820 = vunpack.c.h.b16 %v8648
      %v8821 = vunpack.c.l.b16 %v8649
      %v8822 = vunpack.c.l.b16 %v8650
      %v8823 = vunpack.c.h.b16 %v8650
      %v8824 = vunpack.c.l.b16 %v8651
      %v8825 = vunpack.c.l.b16 %v8652
      %v8826 = vunpack.c.h.b16 %v8652
      %v8827 = vunpack.c.l.b16 %v8653
      %v8828 = vunpack.c.l.b16 %v8654
      %v8829 = vunpack.c.h.b16 %v8654
      %v8830 = vunpack.c.l.b16 %v8655
      %v8831 = vunpack.c.l.b16 %v8656
      %v8832 = vunpack.c.h.b16 %v8656
      %v8833 = vunpack.c.l.b16 %v8657
      %v8834 = vunpack.c.l.b16 %v8658
      %v8835 = vunpack.c.h.b16 %v8658
      %v8836 = vunpack.c.l.b16 %v8659
      %v8837 = vunpack.c.l.b16 %v8660
      %v8838 = vunpack.c.h.b16 %v8660
      %v8839 = vunpack.c.l.b16 %v8661
      %v8840 = vunpack.c.l.b16 %v8662
      %v8841 = vunpack.c.h.b16 %v8662
      %v8842 = vunpack.c.l.b16 %v8663
      %v8843 = vunpack.c.l.b16 %v8664
      %v8844 = vunpack.c.h.b16 %v8664
      %v8845 = vunpack.c.l.b16 %v8665
      %v8846 = vunpack.c.l.b16 %v8666
      %v8847 = vunpack.c.h.b16 %v8666
      %v8848 = vunpack.c.l.b16 %v8667
      %v8849 = vunpack.c.l.b16 %v8668
      %v8850 = vunpack.c.h.b16 %v8668
      %v8851 = vunpack.c.l.b16 %v8669
      %v8852 = vunpack.c.l.b16 %v8670
      %v8853 = vunpack.c.h.b16 %v8670
      %v8854 = vunpack.c.l.b16 %v8671
      %v8855 = vunpack.c.l.b16 %v8672
      %v8856 = vunpack.c.h.b16 %v8672
      %v8857 = vunpack.c.l.b16 %v8673
      %v8858 = vunpack.c.l.b16 %v8674
      %v8859 = vunpack.c.h.b16 %v8674
      %v8860 = vunpack.c.l.b16 %v8675
      %v8861 = vunpack.c.l.b16 %v8676
      %v8862 = vunpack.c.h.b16 %v8676
      %v8863 = vunpack.c.l.b16 %v8677
      %v8864 = vunpack.c.l.b16 %v8678
      %v8865 = vunpack.c.h.b16 %v8678
      %v8866 = vunpack.c.l.b16 %v8679
      %v8867 = vunpack.c.l.b16 %v8680
      %v8868 = vunpack.c.h.b16 %v8680
      %v8869 = vunpack.c.l.b16 %v8681
      %v8870 = vunpack.c.l.b16 %v8682
      %v8871 = vunpack.c.h.b16 %v8682
      %v8872 = vunpack.c.l.b16 %v8683
      %v8873 = vunpack.c.l.b16 %v8684
      %v8874 = vunpack.c.h.b16 %v8684
      %v8875 = vunpack.c.l.b16 %v8685
      %v8876 = vunpack.c.l.b16 %v8686
      %v8877 = vunpack.c.h.b16 %v8686
      %v8878 = vunpack.c.l.b16 %v8687
      %v8879 = vunpack.c.l.b16 %v8688
      %v8880 = vunpack.c.h.b16 %v8688
      %v8881 = vunpack.c.l.b16 %v8689
      %v8882 = vunpack.c.l.b16 %v8690
      %v8883 = vunpack.c.h.b16 %v8690
      %v8884 = vunpack.c.l.b16 %v8691
      %v8885 = vunpack.c.l.b16 %v8692
      %v8886 = vunpack.c.h.b16 %v8692
      %v8887 = vunpack.c.l.b16 %v8693
      %v8888 = vunpack.c.l.b16 %v8694
      %v8889 = vunpack.c.h.b16 %v8694
      %v8890 = vunpack.c.l.b16 %v8695
      %v8891 = vunpack.c.l.b16 %v8696
      %v8892 = vunpack.c.h.b16 %v8696
      %v8893 = vunpack.c.l.b16 %v8697
      %v8894 = vunpack.c.l.b16 %v8698
      %v8895 = vunpack.c.h.b16 %v8698
      %v8896 = vunpack.c.l.b16 %v8699
      %v8897 = vunpack.c.l.b16 %v8700
      %v8898 = vunpack.c.h.b16 %v8700
      %v8899 = vunpack.c.l.b16 %v8701
      %v8900 = vunpack.c.l.b16 %v8702
      %v8901 = vunpack.c.h.b16 %v8702
      %v8902 = vunpack.c.l.b16 %v8703
      %v8903 = vunpack.c.l.b16 %v8704
      %v8904 = vunpack.c.h.b16 %v8704
      %v8905 = vunpack.c.l.b16 %v8705
      %v8906 = vpack.c.b16 %v8789, %v8786
      %v8907 = vpack.c.b16 %v8790, %v8787
      %v8908 = vpack.c.b16 %v8791, %v8788
      %v8909 = vpack.c.b16 %v8795, %v8792
      %v8910 = vpack.c.b16 %v8796, %v8793
      %v8911 = vpack.c.b16 %v8797, %v8794
      %v8912 = vpack.c.b16 %v8801, %v8798
      %v8913 = vpack.c.b16 %v8802, %v8799
      %v8914 = vpack.c.b16 %v8803, %v8800
      %v8915 = vpack.c.b16 %v8807, %v8804
      %v8916 = vpack.c.b16 %v8808, %v8805
      %v8917 = vpack.c.b16 %v8809, %v8806
      %v8918 = vpack.c.b16 %v8813, %v8810
      %v8919 = vpack.c.b16 %v8814, %v8811
      %v8920 = vpack.c.b16 %v8815, %v8812
      %v8921 = vpack.c.b16 %v8819, %v8816
      %v8922 = vpack.c.b16 %v8820, %v8817
      %v8923 = vpack.c.b16 %v8821, %v8818
      %v8924 = vpack.c.b16 %v8825, %v8822
      %v8925 = vpack.c.b16 %v8826, %v8823
      %v8926 = vpack.c.b16 %v8827, %v8824
      %v8927 = vpack.c.b16 %v8831, %v8828
      %v8928 = vpack.c.b16 %v8832, %v8829
      %v8929 = vpack.c.b16 %v8833, %v8830
      %v8930 = vpack.c.b16 %v8837, %v8834
      %v8931 = vpack.c.b16 %v8838, %v8835
      %v8932 = vpack.c.b16 %v8839, %v8836
      %v8933 = vpack.c.b16 %v8843, %v8840
      %v8934 = vpack.c.b16 %v8844, %v8841
      %v8935 = vpack.c.b16 %v8845, %v8842
      %v8936 = vpack.c.b16 %v8849, %v8846
      %v8937 = vpack.c.b16 %v8850, %v8847
      %v8938 = vpack.c.b16 %v8851, %v8848
      %v8939 = vpack.c.b16 %v8855, %v8852
      %v8940 = vpack.c.b16 %v8856, %v8853
      %v8941 = vpack.c.b16 %v8857, %v8854
      %v8942 = vpack.c.b16 %v8861, %v8858
      %v8943 = vpack.c.b16 %v8862, %v8859
      %v8944 = vpack.c.b16 %v8863, %v8860
      %v8945 = vpack.c.b16 %v8867, %v8864
      %v8946 = vpack.c.b16 %v8868, %v8865
      %v8947 = vpack.c.b16 %v8869, %v8866
      %v8948 = vpack.c.b16 %v8873, %v8870
      %v8949 = vpack.c.b16 %v8874, %v8871
      %v8950 = vpack.c.b16 %v8875, %v8872
      %v8951 = vpack.c.b16 %v8879, %v8876
      %v8952 = vpack.c.b16 %v8880, %v8877
      %v8953 = vpack.c.b16 %v8881, %v8878
      %v8954 = vpack.c.b16 %v8885, %v8882
      %v8955 = vpack.c.b16 %v8886, %v8883
      %v8956 = vpack.c.b16 %v8887, %v8884
      %v8957 = vpack.c.b16 %v8891, %v8888
      %v8958 = vpack.c.b16 %v8892, %v8889
      %v8959 = vpack.c.b16 %v8893, %v8890
      %v8960 = vpack.c.b16 %v8897, %v8894
      %v8961 = vpack.c.b16 %v8898, %v8895
      %v8962 = vpack.c.b16 %v8899, %v8896
      %v8963 = vpack.c.b16 %v8903, %v8900
      %v8964 = vpack.c.b16 %v8904, %v8901
      %v8965 = vpack.c.b16 %v8905, %v8902
      %v9027 = vsel %vm2386, %v8624, 0
      %9029 = vmatprep.subr.bf16.mxu0 %v8928
      %9030 = vmatpush1.bf16.msra.mxu0 %v8927
      %9031 = vmatprep.subr.bf16.mxu0 %v8925
      %9032 = vmatpush1.bf16.msra.mxu0 %v8924
      %9033 = vmatprep.subr.bf16.mxu0 %v8922
      %9034 = vmatpush1.bf16.msra.mxu0 %v8921
      %9035 = vmatprep.subr.bf16.mxu0 %v8919
      %9036 = vmatpush1.bf16.msra.mxu0 %v8918
      %9037 = vmatprep.subr.bf16.mxu0 %v8916
      %9038 = vmatpush1.bf16.msra.mxu0 %v8915
      %9039 = vmatprep.subr.bf16.mxu0 %v8913
      %9040 = vmatpush1.bf16.msra.mxu0 %v8912
      %9041 = vmatprep.subr.bf16.mxu0 %v8910
      %9042 = vmatpush1.bf16.msra.mxu0 %v8909
      %9043 = vmatprep.subr.bf16.mxu0 %v8907
      %9044 = vmatpush1.bf16.msra.mxu0 %v8906
      %9045 = vmatprep.subr.bf16.mxu0 %v8952
      %9046 = vmatpush2.bf16.msra.mxu0 %v8951
      %9047 = vmatprep.subr.bf16.mxu0 %v8949
      %9048 = vmatpush2.bf16.msra.mxu0 %v8948
      %9049 = vmatprep.subr.bf16.mxu0 %v8946
      %9050 = vmatpush2.bf16.msra.mxu0 %v8945
      %9051 = vmatprep.subr.bf16.mxu0 %v8943
      %9052 = vmatpush2.bf16.msra.mxu0 %v8942
      %9053 = vmatprep.subr.bf16.mxu0 %v8940
      %9054 = vmatpush2.bf16.msra.mxu0 %v8939
      %9055 = vmatprep.subr.bf16.mxu0 %v8937
      %9056 = vmatpush2.bf16.msra.mxu0 %v8936
      %9057 = vmatprep.subr.bf16.mxu0 %v8934
      %9058 = vmatpush2.bf16.msra.mxu0 %v8933
      %9059 = vmatprep.subr.bf16.mxu0 %v8931
      %9060 = vmatpush2.bf16.msra.mxu0 %v8930
      %9061 = vmatprep.mubr.bf16.mxu0 %v8623
      %9062 = vmatmul.mubr.bf16.gmra.mxu0 %v8622
      %v9063 = vpop.f32.mrf.mxu0
      %v9064 = vadd.f32 0.0, %v9063
      %v9065 = vpop.f32.mrf.mxu0
      %v9066 = vadd.f32 0.0, %v9065
      %v9067 = vpop.f32.mrf.mxu0
      %v9068 = vpop.f32.mrf.mxu0
      %9069 = vdwg.mxu0
      %9070 = vmatprep.subr.bf16.mxu0 0
      %9071 = vmatpush1.bf16.msra.mxu0 0
      %9072 = vmatprep.subr.bf16.mxu0 0
      %9073 = vmatpush1.bf16.msra.mxu0 0
      %9074 = vmatprep.subr.bf16.mxu0 0
      %9075 = vmatpush1.bf16.msra.mxu0 0
      %9076 = vmatprep.subr.bf16.mxu0 0
      %9077 = vmatpush1.bf16.msra.mxu0 0
      %9078 = vmatprep.subr.bf16.mxu0 %v8964
      %9079 = vmatpush1.bf16.msra.mxu0 %v8963
      %9080 = vmatprep.subr.bf16.mxu0 %v8961
      %9081 = vmatpush1.bf16.msra.mxu0 %v8960
      %9082 = vmatprep.subr.bf16.mxu0 %v8958
      %9083 = vmatpush1.bf16.msra.mxu0 %v8957
      %9084 = vmatprep.subr.bf16.mxu0 %v8955
      %9085 = vmatpush1.bf16.msra.mxu0 %v8954
      %9086 = vmatprep.subr.bf16.mxu0 0
      %9087 = vmatpush2.bf16.msra.mxu0 0
      %9088 = vmatprep.subr.bf16.mxu0 0
      %9089 = vmatpush2.bf16.msra.mxu0 0
      %9090 = vmatprep.subr.bf16.mxu0 0
      %9091 = vmatpush2.bf16.msra.mxu0 0
      %9092 = vmatprep.subr.bf16.mxu0 0
      %9093 = vmatpush2.bf16.msra.mxu0 0
      %9094 = vmatprep.subr.bf16.mxu0 0
      %9095 = vmatpush2.bf16.msra.mxu0 0
      %9096 = vmatprep.subr.bf16.mxu0 0
      %9097 = vmatpush2.bf16.msra.mxu0 0
      %9098 = vmatprep.subr.bf16.mxu0 0
      %9099 = vmatpush2.bf16.msra.mxu0 0
      %9100 = vmatprep.subr.bf16.mxu0 0
      %9101 = vmatpush2.bf16.msra.mxu0 0
      %9102 = vmatprep.mubr.bf16.mxu0 0
      %9103 = vmatmul.mubr.bf16.gmra.mxu0 %v9027
      %v9104 = vpop.f32.mrf.mxu0
      %v9105 = vadd.f32 %v9064, %v9104
      %v9106 = vpop.f32.mrf.mxu0
      %v9107 = vadd.f32 %v9066, %v9106
      %v9108 = vpop.f32.mrf.mxu0
      %v9109 = vpop.f32.mrf.mxu0
      %9110 = vdwg.mxu0
      %9111 = vmatprep.subr.bf16.mxu0 0
      %9112 = vmatpush1.bf16.msra.mxu0 %v8929
      %9113 = vmatprep.subr.bf16.mxu0 0
      %9114 = vmatpush1.bf16.msra.mxu0 %v8926
      %9115 = vmatprep.subr.bf16.mxu0 0
      %9116 = vmatpush1.bf16.msra.mxu0 %v8923
      %9117 = vmatprep.subr.bf16.mxu0 0
      %9118 = vmatpush1.bf16.msra.mxu0 %v8920
      %9119 = vmatprep.subr.bf16.mxu0 0
      %9120 = vmatpush1.bf16.msra.mxu0 %v8917
      %9121 = vmatprep.subr.bf16.mxu0 0
      %9122 = vmatpush1.bf16.msra.mxu0 %v8914
      %9123 = vmatprep.subr.bf16.mxu0 0
      %9124 = vmatpush1.bf16.msra.mxu0 %v8911
      %9125 = vmatprep.subr.bf16.mxu0 0
      %9126 = vmatpush1.bf16.msra.mxu0 %v8908
      %9127 = vmatprep.subr.bf16.mxu0 0
      %9128 = vmatpush2.bf16.msra.mxu0 %v8953
      %9129 = vmatprep.subr.bf16.mxu0 0
      %9130 = vmatpush2.bf16.msra.mxu0 %v8950
      %9131 = vmatprep.subr.bf16.mxu0 0
      %9132 = vmatpush2.bf16.msra.mxu0 %v8947
      %9133 = vmatprep.subr.bf16.mxu0 0
      %9134 = vmatpush2.bf16.msra.mxu0 %v8944
      %9135 = vmatprep.subr.bf16.mxu0 0
      %9136 = vmatpush2.bf16.msra.mxu0 %v8941
      %9137 = vmatprep.subr.bf16.mxu0 0
      %9138 = vmatpush2.bf16.msra.mxu0 %v8938
      %9139 = vmatprep.subr.bf16.mxu0 0
      %9140 = vmatpush2.bf16.msra.mxu0 %v8935
      %9141 = vmatprep.subr.bf16.mxu0 0
      %9142 = vmatpush2.bf16.msra.mxu0 %v8932
      %9143 = vmatprep.mubr.bf16.mxu0 %v8623
      %9144 = vmatmul.mubr.bf16.gmra.mxu0 %v8622
      %v9145 = vpop.f32.mrf.mxu0
      %v9146 = vadd.f32 0.0, %v9145
      %v9147 = vpop.f32.mrf.mxu0
      %v9148 = vpop.f32.mrf.mxu0
      %v9149 = vpop.f32.mrf.mxu0
      %9150 = vdwg.mxu0
      %9151 = vmatprep.subr.bf16.mxu0 0
      %9152 = vmatpush1.bf16.msra.mxu0 0
      %9153 = vmatprep.subr.bf16.mxu0 0
      %9154 = vmatpush1.bf16.msra.mxu0 0
      %9155 = vmatprep.subr.bf16.mxu0 0
      %9156 = vmatpush1.bf16.msra.mxu0 0
      %9157 = vmatprep.subr.bf16.mxu0 0
      %9158 = vmatpush1.bf16.msra.mxu0 0
      %9159 = vmatprep.subr.bf16.mxu0 0
      %9160 = vmatpush1.bf16.msra.mxu0 %v8965
      %9161 = vmatprep.subr.bf16.mxu0 0
      %9162 = vmatpush1.bf16.msra.mxu0 %v8962
      %9163 = vmatprep.subr.bf16.mxu0 0
      %9164 = vmatpush1.bf16.msra.mxu0 %v8959
      %9165 = vmatprep.subr.bf16.mxu0 0
      %9166 = vmatpush1.bf16.msra.mxu0 %v8956
      %9167 = vmatprep.subr.bf16.mxu0 0
      %9168 = vmatpush2.bf16.msra.mxu0 0
      %9169 = vmatprep.subr.bf16.mxu0 0
      %9170 = vmatpush2.bf16.msra.mxu0 0
      %9171 = vmatprep.subr.bf16.mxu0 0
      %9172 = vmatpush2.bf16.msra.mxu0 0
      %9173 = vmatprep.subr.bf16.mxu0 0
      %9174 = vmatpush2.bf16.msra.mxu0 0
      %9175 = vmatprep.subr.bf16.mxu0 0
      %9176 = vmatpush2.bf16.msra.mxu0 0
      %9177 = vmatprep.subr.bf16.mxu0 0
      %9178 = vmatpush2.bf16.msra.mxu0 0
      %9179 = vmatprep.subr.bf16.mxu0 0
      %9180 = vmatpush2.bf16.msra.mxu0 0
      %9181 = vmatprep.subr.bf16.mxu0 0
      %9182 = vmatpush2.bf16.msra.mxu0 0
      %9183 = vmatprep.mubr.bf16.mxu0 0
      %9184 = vmatmul.mubr.bf16.gmra.mxu0 %v9027
      %v9185 = vpop.f32.mrf.mxu0
      %v9186 = vadd.f32 %v9146, %v9185
      %v9187 = vpop.f32.mrf.mxu0
      %v9188 = vpop.f32.mrf.mxu0
      %v9189 = vpop.f32.mrf.mxu0
      %9190 = vdwg.mxu0
      %v9192 = vshrl.u32 %v8622, 16
      %v9194 = vshll.u32 %v8622, 16
      %v9196 = vrot.slane %v9194, 1
      %v9197 = vor.u32 %v9192, %v9196
      %v9199 = vshrl.u32 %v8623, 16
      %v9201 = vshll.u32 %v8623, 16
      %v9203 = vrot.slane %v9201, 1
      %v9204 = vor.u32 %v9199, %v9203
      %v9205 = vshrl.u32 %v8624, 16
      %v9207 = vshll.u32 %v8624, 16
      %v9209 = vrot.slane %v9207, 1
      %v9210 = vor.u32 %v9205, %v9209
      %v9293 = vunpack.c.l.b16 %v8542
      %v9294 = vunpack.c.h.b16 %v8542
      %v9295 = vunpack.c.l.b16 %v8543
      %v9296 = vunpack.c.l.b16 %v8544
      %v9297 = vunpack.c.h.b16 %v8544
      %v9298 = vunpack.c.l.b16 %v8545
      %v9299 = vunpack.c.l.b16 %v8546
      %v9300 = vunpack.c.h.b16 %v8546
      %v9301 = vunpack.c.l.b16 %v8547
      %v9302 = vunpack.c.l.b16 %v8548
      %v9303 = vunpack.c.h.b16 %v8548
      %v9304 = vunpack.c.l.b16 %v8549
      %v9305 = vunpack.c.l.b16 %v8550
      %v9306 = vunpack.c.h.b16 %v8550
      %v9307 = vunpack.c.l.b16 %v8551
      %v9308 = vunpack.c.l.b16 %v8552
      %v9309 = vunpack.c.h.b16 %v8552
      %v9310 = vunpack.c.l.b16 %v8553
      %v9311 = vunpack.c.l.b16 %v8554
      %v9312 = vunpack.c.h.b16 %v8554
      %v9313 = vunpack.c.l.b16 %v8555
      %v9314 = vunpack.c.l.b16 %v8556
      %v9315 = vunpack.c.h.b16 %v8556
      %v9316 = vunpack.c.l.b16 %v8557
      %v9317 = vunpack.c.l.b16 %v8558
      %v9318 = vunpack.c.h.b16 %v8558
      %v9319 = vunpack.c.l.b16 %v8559
      %v9320 = vunpack.c.l.b16 %v8560
      %v9321 = vunpack.c.h.b16 %v8560
      %v9322 = vunpack.c.l.b16 %v8561
      %v9323 = vunpack.c.l.b16 %v8562
      %v9324 = vunpack.c.h.b16 %v8562
      %v9325 = vunpack.c.l.b16 %v8563
      %v9326 = vunpack.c.l.b16 %v8564
      %v9327 = vunpack.c.h.b16 %v8564
      %v9328 = vunpack.c.l.b16 %v8565
      %v9329 = vunpack.c.l.b16 %v8566
      %v9330 = vunpack.c.h.b16 %v8566
      %v9331 = vunpack.c.l.b16 %v8567
      %v9332 = vunpack.c.l.b16 %v8568
      %v9333 = vunpack.c.h.b16 %v8568
      %v9334 = vunpack.c.l.b16 %v8569
      %v9335 = vunpack.c.l.b16 %v8570
      %v9336 = vunpack.c.h.b16 %v8570
      %v9337 = vunpack.c.l.b16 %v8571
      %v9338 = vunpack.c.l.b16 %v8572
      %v9339 = vunpack.c.h.b16 %v8572
      %v9340 = vunpack.c.l.b16 %v8573
      %v9341 = vunpack.c.l.b16 %v8574
      %v9342 = vunpack.c.h.b16 %v8574
      %v9343 = vunpack.c.l.b16 %v8575
      %v9344 = vunpack.c.l.b16 %v8576
      %v9345 = vunpack.c.h.b16 %v8576
      %v9346 = vunpack.c.l.b16 %v8577
      %v9347 = vunpack.c.l.b16 %v8578
      %v9348 = vunpack.c.h.b16 %v8578
      %v9349 = vunpack.c.l.b16 %v8579
      %v9350 = vunpack.c.l.b16 %v8580
      %v9351 = vunpack.c.h.b16 %v8580
      %v9352 = vunpack.c.l.b16 %v8581
      %v9353 = vunpack.c.l.b16 %v8582
      %v9354 = vunpack.c.h.b16 %v8582
      %v9355 = vunpack.c.l.b16 %v8583
      %v9356 = vunpack.c.l.b16 %v8584
      %v9357 = vunpack.c.h.b16 %v8584
      %v9358 = vunpack.c.l.b16 %v8585
      %v9359 = vunpack.c.l.b16 %v8586
      %v9360 = vunpack.c.h.b16 %v8586
      %v9361 = vunpack.c.l.b16 %v8587
      %v9362 = vunpack.c.l.b16 %v8588
      %v9363 = vunpack.c.h.b16 %v8588
      %v9364 = vunpack.c.l.b16 %v8589
      %v9365 = vunpack.c.l.b16 %v8590
      %v9366 = vunpack.c.h.b16 %v8590
      %v9367 = vunpack.c.l.b16 %v8591
      %v9368 = vunpack.c.l.b16 %v8592
      %v9369 = vunpack.c.h.b16 %v8592
      %v9370 = vunpack.c.l.b16 %v8593
      %v9371 = vunpack.c.l.b16 %v8594
      %v9372 = vunpack.c.h.b16 %v8594
      %v9373 = vunpack.c.l.b16 %v8595
      %v9374 = vunpack.c.l.b16 %v8596
      %v9375 = vunpack.c.h.b16 %v8596
      %v9376 = vunpack.c.l.b16 %v8597
      %v9377 = vunpack.c.l.b16 %v8598
      %v9378 = vunpack.c.h.b16 %v8598
      %v9379 = vunpack.c.l.b16 %v8599
      %v9380 = vunpack.c.l.b16 %v8600
      %v9381 = vunpack.c.h.b16 %v8600
      %v9382 = vunpack.c.l.b16 %v8601
      %v9383 = vunpack.c.l.b16 %v8602
      %v9384 = vunpack.c.h.b16 %v8602
      %v9385 = vunpack.c.l.b16 %v8603
      %v9386 = vunpack.c.l.b16 %v8604
      %v9387 = vunpack.c.h.b16 %v8604
      %v9388 = vunpack.c.l.b16 %v8605
      %v9389 = vunpack.c.l.b16 %v8606
      %v9390 = vunpack.c.h.b16 %v8606
      %v9391 = vunpack.c.l.b16 %v8607
      %v9392 = vunpack.c.l.b16 %v8608
      %v9393 = vunpack.c.h.b16 %v8608
      %v9394 = vunpack.c.l.b16 %v8609
      %v9395 = vunpack.c.l.b16 %v8610
      %v9396 = vunpack.c.h.b16 %v8610
      %v9397 = vunpack.c.l.b16 %v8611
      %v9398 = vunpack.c.l.b16 %v8612
      %v9399 = vunpack.c.h.b16 %v8612
      %v9400 = vunpack.c.l.b16 %v8613
      %v9401 = vunpack.c.l.b16 %v8614
      %v9402 = vunpack.c.h.b16 %v8614
      %v9403 = vunpack.c.l.b16 %v8615
      %v9404 = vunpack.c.l.b16 %v8616
      %v9405 = vunpack.c.h.b16 %v8616
      %v9406 = vunpack.c.l.b16 %v8617
      %v9407 = vunpack.c.l.b16 %v8618
      %v9408 = vunpack.c.h.b16 %v8618
      %v9409 = vunpack.c.l.b16 %v8619
      %v9410 = vunpack.c.l.b16 %v8620
      %v9411 = vunpack.c.h.b16 %v8620
      %v9412 = vunpack.c.l.b16 %v8621
      %v9413 = vpack.c.b16 %v9296, %v9293
      %v9414 = vpack.c.b16 %v9297, %v9294
      %v9415 = vpack.c.b16 %v9298, %v9295
      %v9416 = vpack.c.b16 %v9302, %v9299
      %v9417 = vpack.c.b16 %v9303, %v9300
      %v9418 = vpack.c.b16 %v9304, %v9301
      %v9419 = vpack.c.b16 %v9308, %v9305
      %v9420 = vpack.c.b16 %v9309, %v9306
      %v9421 = vpack.c.b16 %v9310, %v9307
      %v9422 = vpack.c.b16 %v9314, %v9311
      %v9423 = vpack.c.b16 %v9315, %v9312
      %v9424 = vpack.c.b16 %v9316, %v9313
      %v9425 = vpack.c.b16 %v9320, %v9317
      %v9426 = vpack.c.b16 %v9321, %v9318
      %v9427 = vpack.c.b16 %v9322, %v9319
      %v9428 = vpack.c.b16 %v9326, %v9323
      %v9429 = vpack.c.b16 %v9327, %v9324
      %v9430 = vpack.c.b16 %v9328, %v9325
      %v9431 = vpack.c.b16 %v9332, %v9329
      %v9432 = vpack.c.b16 %v9333, %v9330
      %v9433 = vpack.c.b16 %v9334, %v9331
      %v9434 = vpack.c.b16 %v9338, %v9335
      %v9435 = vpack.c.b16 %v9339, %v9336
      %v9436 = vpack.c.b16 %v9340, %v9337
      %v9437 = vpack.c.b16 %v9344, %v9341
      %v9438 = vpack.c.b16 %v9345, %v9342
      %v9439 = vpack.c.b16 %v9346, %v9343
      %v9440 = vpack.c.b16 %v9350, %v9347
      %v9441 = vpack.c.b16 %v9351, %v9348
      %v9442 = vpack.c.b16 %v9352, %v9349
      %v9443 = vpack.c.b16 %v9356, %v9353
      %v9444 = vpack.c.b16 %v9357, %v9354
      %v9445 = vpack.c.b16 %v9358, %v9355
      %v9446 = vpack.c.b16 %v9362, %v9359
      %v9447 = vpack.c.b16 %v9363, %v9360
      %v9448 = vpack.c.b16 %v9364, %v9361
      %v9449 = vpack.c.b16 %v9368, %v9365
      %v9450 = vpack.c.b16 %v9369, %v9366
      %v9451 = vpack.c.b16 %v9370, %v9367
      %v9452 = vpack.c.b16 %v9374, %v9371
      %v9453 = vpack.c.b16 %v9375, %v9372
      %v9454 = vpack.c.b16 %v9376, %v9373
      %v9455 = vpack.c.b16 %v9380, %v9377
      %v9456 = vpack.c.b16 %v9381, %v9378
      %v9457 = vpack.c.b16 %v9382, %v9379
      %v9458 = vpack.c.b16 %v9386, %v9383
      %v9459 = vpack.c.b16 %v9387, %v9384
      %v9460 = vpack.c.b16 %v9388, %v9385
      %v9461 = vpack.c.b16 %v9392, %v9389
      %v9462 = vpack.c.b16 %v9393, %v9390
      %v9463 = vpack.c.b16 %v9394, %v9391
      %v9464 = vpack.c.b16 %v9398, %v9395
      %v9465 = vpack.c.b16 %v9399, %v9396
      %v9466 = vpack.c.b16 %v9400, %v9397
      %v9467 = vpack.c.b16 %v9404, %v9401
      %v9468 = vpack.c.b16 %v9405, %v9402
      %v9469 = vpack.c.b16 %v9406, %v9403
      %v9470 = vpack.c.b16 %v9410, %v9407
      %v9471 = vpack.c.b16 %v9411, %v9408
      %v9472 = vpack.c.b16 %v9412, %v9409
      %v9534 = vsel %vm2386, %v9210, 0
      %9536 = vmatprep.subr.bf16.mxu0 %v9435
      %9537 = vmatpush1.bf16.msra.mxu0 %v9434
      %9538 = vmatprep.subr.bf16.mxu0 %v9432
      %9539 = vmatpush1.bf16.msra.mxu0 %v9431
      %9540 = vmatprep.subr.bf16.mxu0 %v9429
      %9541 = vmatpush1.bf16.msra.mxu0 %v9428
      %9542 = vmatprep.subr.bf16.mxu0 %v9426
      %9543 = vmatpush1.bf16.msra.mxu0 %v9425
      %9544 = vmatprep.subr.bf16.mxu0 %v9423
      %9545 = vmatpush1.bf16.msra.mxu0 %v9422
      %9546 = vmatprep.subr.bf16.mxu0 %v9420
      %9547 = vmatpush1.bf16.msra.mxu0 %v9419
      %9548 = vmatprep.subr.bf16.mxu0 %v9417
      %9549 = vmatpush1.bf16.msra.mxu0 %v9416
      %9550 = vmatprep.subr.bf16.mxu0 %v9414
      %9551 = vmatpush1.bf16.msra.mxu0 %v9413
      %9552 = vmatprep.subr.bf16.mxu0 %v9459
      %9553 = vmatpush2.bf16.msra.mxu0 %v9458
      %9554 = vmatprep.subr.bf16.mxu0 %v9456
      %9555 = vmatpush2.bf16.msra.mxu0 %v9455
      %9556 = vmatprep.subr.bf16.mxu0 %v9453
      %9557 = vmatpush2.bf16.msra.mxu0 %v9452
      %9558 = vmatprep.subr.bf16.mxu0 %v9450
      %9559 = vmatpush2.bf16.msra.mxu0 %v9449
      %9560 = vmatprep.subr.bf16.mxu0 %v9447
      %9561 = vmatpush2.bf16.msra.mxu0 %v9446
      %9562 = vmatprep.subr.bf16.mxu0 %v9444
      %9563 = vmatpush2.bf16.msra.mxu0 %v9443
      %9564 = vmatprep.subr.bf16.mxu0 %v9441
      %9565 = vmatpush2.bf16.msra.mxu0 %v9440
      %9566 = vmatprep.subr.bf16.mxu0 %v9438
      %9567 = vmatpush2.bf16.msra.mxu0 %v9437
      %9568 = vmatprep.mubr.bf16.mxu0 %v9204
      %9569 = vmatmul.mubr.bf16.gmra.mxu0 %v9197
      %v9570 = vpop.f32.mrf.mxu0
      %v9571 = vadd.f32 %v9105, %v9570
      %v9572 = vpop.f32.mrf.mxu0
      %v9573 = vadd.f32 %v9107, %v9572
      %v9574 = vpop.f32.mrf.mxu0
      %v9575 = vpop.f32.mrf.mxu0
      %9576 = vdwg.mxu0
      %9577 = vmatprep.subr.bf16.mxu0 0
      %9578 = vmatpush1.bf16.msra.mxu0 0
      %9579 = vmatprep.subr.bf16.mxu0 0
      %9580 = vmatpush1.bf16.msra.mxu0 0
      %9581 = vmatprep.subr.bf16.mxu0 0
      %9582 = vmatpush1.bf16.msra.mxu0 0
      %9583 = vmatprep.subr.bf16.mxu0 0
      %9584 = vmatpush1.bf16.msra.mxu0 0
      %9585 = vmatprep.subr.bf16.mxu0 %v9471
      %9586 = vmatpush1.bf16.msra.mxu0 %v9470
      %9587 = vmatprep.subr.bf16.mxu0 %v9468
      %9588 = vmatpush1.bf16.msra.mxu0 %v9467
      %9589 = vmatprep.subr.bf16.mxu0 %v9465
      %9590 = vmatpush1.bf16.msra.mxu0 %v9464
      %9591 = vmatprep.subr.bf16.mxu0 %v9462
      %9592 = vmatpush1.bf16.msra.mxu0 %v9461
      %9593 = vmatprep.subr.bf16.mxu0 0
      %9594 = vmatpush2.bf16.msra.mxu0 0
      %9595 = vmatprep.subr.bf16.mxu0 0
      %9596 = vmatpush2.bf16.msra.mxu0 0
      %9597 = vmatprep.subr.bf16.mxu0 0
      %9598 = vmatpush2.bf16.msra.mxu0 0
      %9599 = vmatprep.subr.bf16.mxu0 0
      %9600 = vmatpush2.bf16.msra.mxu0 0
      %9601 = vmatprep.subr.bf16.mxu0 0
      %9602 = vmatpush2.bf16.msra.mxu0 0
      %9603 = vmatprep.subr.bf16.mxu0 0
      %9604 = vmatpush2.bf16.msra.mxu0 0
      %9605 = vmatprep.subr.bf16.mxu0 0
      %9606 = vmatpush2.bf16.msra.mxu0 0
      %9607 = vmatprep.subr.bf16.mxu0 0
      %9608 = vmatpush2.bf16.msra.mxu0 0
      %9609 = vmatprep.mubr.bf16.mxu0 0
      %9610 = vmatmul.mubr.bf16.gmra.mxu0 %v9534
      %v9611 = vpop.f32.mrf.mxu0
      %v9612 = vadd.f32 %v9571, %v9611
      %v9613 = vpop.f32.mrf.mxu0
      %v9614 = vadd.f32 %v9573, %v9613
      %v9615 = vpop.f32.mrf.mxu0
      %v9616 = vpop.f32.mrf.mxu0
      %9617 = vdwg.mxu0
      %9618 = vmatprep.subr.bf16.mxu0 0
      %9619 = vmatpush1.bf16.msra.mxu0 %v9436
      %9620 = vmatprep.subr.bf16.mxu0 0
      %9621 = vmatpush1.bf16.msra.mxu0 %v9433
      %9622 = vmatprep.subr.bf16.mxu0 0
      %9623 = vmatpush1.bf16.msra.mxu0 %v9430
      %9624 = vmatprep.subr.bf16.mxu0 0
      %9625 = vmatpush1.bf16.msra.mxu0 %v9427
      %9626 = vmatprep.subr.bf16.mxu0 0
      %9627 = vmatpush1.bf16.msra.mxu0 %v9424
      %9628 = vmatprep.subr.bf16.mxu0 0
      %9629 = vmatpush1.bf16.msra.mxu0 %v9421
      %9630 = vmatprep.subr.bf16.mxu0 0
      %9631 = vmatpush1.bf16.msra.mxu0 %v9418
      %9632 = vmatprep.subr.bf16.mxu0 0
      %9633 = vmatpush1.bf16.msra.mxu0 %v9415
      %9634 = vmatprep.subr.bf16.mxu0 0
      %9635 = vmatpush2.bf16.msra.mxu0 %v9460
      %9636 = vmatprep.subr.bf16.mxu0 0
      %9637 = vmatpush2.bf16.msra.mxu0 %v9457
      %9638 = vmatprep.subr.bf16.mxu0 0
      %9639 = vmatpush2.bf16.msra.mxu0 %v9454
      %9640 = vmatprep.subr.bf16.mxu0 0
      %9641 = vmatpush2.bf16.msra.mxu0 %v9451
      %9642 = vmatprep.subr.bf16.mxu0 0
      %9643 = vmatpush2.bf16.msra.mxu0 %v9448
      %9644 = vmatprep.subr.bf16.mxu0 0
      %9645 = vmatpush2.bf16.msra.mxu0 %v9445
      %9646 = vmatprep.subr.bf16.mxu0 0
      %9647 = vmatpush2.bf16.msra.mxu0 %v9442
      %9648 = vmatprep.subr.bf16.mxu0 0
      %9649 = vmatpush2.bf16.msra.mxu0 %v9439
      %9650 = vmatprep.mubr.bf16.mxu0 %v9204
      %9651 = vmatmul.mubr.bf16.gmra.mxu0 %v9197
      %v9652 = vpop.f32.mrf.mxu0
      %v9653 = vadd.f32 %v9186, %v9652
      %v9654 = vpop.f32.mrf.mxu0
      %v9655 = vpop.f32.mrf.mxu0
      %v9656 = vpop.f32.mrf.mxu0
      %9657 = vdwg.mxu0
      %9658 = vmatprep.subr.bf16.mxu0 0
      %9659 = vmatpush1.bf16.msra.mxu0 0
      %9660 = vmatprep.subr.bf16.mxu0 0
      %9661 = vmatpush1.bf16.msra.mxu0 0
      %9662 = vmatprep.subr.bf16.mxu0 0
      %9663 = vmatpush1.bf16.msra.mxu0 0
      %9664 = vmatprep.subr.bf16.mxu0 0
      %9665 = vmatpush1.bf16.msra.mxu0 0
      %9666 = vmatprep.subr.bf16.mxu0 0
      %9667 = vmatpush1.bf16.msra.mxu0 %v9472
      %9668 = vmatprep.subr.bf16.mxu0 0
      %9669 = vmatpush1.bf16.msra.mxu0 %v9469
      %9670 = vmatprep.subr.bf16.mxu0 0
      %9671 = vmatpush1.bf16.msra.mxu0 %v9466
      %9672 = vmatprep.subr.bf16.mxu0 0
      %9673 = vmatpush1.bf16.msra.mxu0 %v9463
      %9674 = vmatprep.subr.bf16.mxu0 0
      %9675 = vmatpush2.bf16.msra.mxu0 0
      %9676 = vmatprep.subr.bf16.mxu0 0
      %9677 = vmatpush2.bf16.msra.mxu0 0
      %9678 = vmatprep.subr.bf16.mxu0 0
      %9679 = vmatpush2.bf16.msra.mxu0 0
      %9680 = vmatprep.subr.bf16.mxu0 0
      %9681 = vmatpush2.bf16.msra.mxu0 0
      %9682 = vmatprep.subr.bf16.mxu0 0
      %9683 = vmatpush2.bf16.msra.mxu0 0
      %9684 = vmatprep.subr.bf16.mxu0 0
      %9685 = vmatpush2.bf16.msra.mxu0 0
      %9686 = vmatprep.subr.bf16.mxu0 0
      %9687 = vmatpush2.bf16.msra.mxu0 0
      %9688 = vmatprep.subr.bf16.mxu0 0
      %9689 = vmatpush2.bf16.msra.mxu0 0
      %9690 = vmatprep.mubr.bf16.mxu0 0
      %9691 = vmatmul.mubr.bf16.gmra.mxu0 %v9534
      %v9692 = vpop.f32.mrf.mxu0
      %v9693 = vadd.f32 %v9653, %v9692
      %v9694 = vpop.f32.mrf.mxu0
      %v9695 = vpop.f32.mrf.mxu0
      %v9696 = vpop.f32.mrf.mxu0
      %9697 = vdwg.mxu0
      %v9698 = vld [vmem:[%s17] sm:$0x7]
      %v9700 = vlaneseq
      %v9701 = vshrl.u32 %v9700, 7
      %v9702 = vsub.s32 0, %v9701
      %v9703 = vrot.slane %v9698, %v9702
      %v9704 = vlaneseq
      %v9705 = vshrl.u32 %v9704, 7
      %v9706 = vsub.s32 1, %v9705
      %v9707 = vrot.slane %v9698, %v9706
      %v9708 = vlaneseq
      %v9709 = vshrl.u32 %v9708, 7
      %v9710 = vsub.s32 2, %v9709
      %v9711 = vrot.slane %v9698, %v9710
      %v9715 = vadd.f32 %v9612, %v9703
      %v9716 = vadd.f32 %v9614, %v9707
      %v9717 = vadd.f32 %v9693, %v9711
      %vm9718 = vcmp.gt.f32.partialorder %v9715, 0.0
      %vm9719 = vcmp.gt.f32.partialorder %v9716, 0.0
      %vm9720 = vcmp.gt.f32.partialorder %v9717, 0.0
      %v9721 = vmin.f32 %v9715, 0.0
      %v9722 = vmin.f32 %v9716, 0.0
      %v9723 = vmin.f32 %v9717, 0.0
      %v9724 = vmul.f32 %v9721, 1.442695
      %v9725 = vpow.pop %v9724
      %v9726 = vmul.f32 %v9722, 1.442695
      %v9727 = vpow.pop %v9726
      %v9728 = vmul.f32 %v9723, 1.442695
      %v9729 = vpow.pop %v9728
      %v9730 = vsub.f32 %v9725, 1.0
      %v9731 = vsub.f32 %v9727, 1.0
      %v9732 = vsub.f32 %v9729, 1.0
      %v9733 = vsel %vm9718, %v9715, %v9730
      %v9734 = vsel %vm9719, %v9716, %v9731
      %v9735 = vsel %vm9720, %v9717, %v9732
      %v9736 = vld [vmem:[%s9] sm:$0xff]
      %v9737 = vld [vmem:[%s9 + $0x8] sm:$0xf]
      %v9738 = vld [vmem:[%s9 + $0xc] sm:$0xff]
      %v9739 = vld [vmem:[%s9 + $0x14] sm:$0xf]
      %v9740 = vld [vmem:[%s9 + $0x18] sm:$0xff]
      %v9741 = vld [vmem:[%s9 + $0x20] sm:$0xf]
      %v9742 = vld [vmem:[%s9 + $0x24] sm:$0xff]
      %v9743 = vld [vmem:[%s9 + $0x2c] sm:$0xf]
      %v9744 = vld [vmem:[%s9 + $0x30] sm:$0xff]
      %v9745 = vld [vmem:[%s9 + $0x38] sm:$0xf]
      %v9746 = vld [vmem:[%s9 + $0x3c] sm:$0xff]
      %v9747 = vld [vmem:[%s9 + $0x44] sm:$0xf]
      %v9748 = vld [vmem:[%s9 + $0x48] sm:$0xff]
      %v9749 = vld [vmem:[%s9 + $0x50] sm:$0xf]
      %v9750 = vld [vmem:[%s9 + $0x54] sm:$0xff]
      %v9751 = vld [vmem:[%s9 + $0x5c] sm:$0xf]
      %v9752 = vld [vmem:[%s9 + $0x60] sm:$0xff]
      %v9753 = vld [vmem:[%s9 + $0x68] sm:$0xf]
      %v9754 = vld [vmem:[%s9 + $0x6c] sm:$0xff]
      %v9755 = vld [vmem:[%s9 + $0x74] sm:$0xf]
      %v9756 = vld [vmem:[%s9 + $0x78] sm:$0xff]
      %v9757 = vld [vmem:[%s9 + $0x80] sm:$0xf]
      %v9758 = vld [vmem:[%s9 + $0x84] sm:$0xff]
      %v9759 = vld [vmem:[%s9 + $0x8c] sm:$0xf]
      %v9760 = vld [vmem:[%s9 + $0x90] sm:$0xff]
      %v9761 = vld [vmem:[%s9 + $0x98] sm:$0xf]
      %v9762 = vld [vmem:[%s9 + $0x9c] sm:$0xff]
      %v9763 = vld [vmem:[%s9 + $0xa4] sm:$0xf]
      %v9764 = vld [vmem:[%s9 + $0xa8] sm:$0xff]
      %v9765 = vld [vmem:[%s9 + $0xb0] sm:$0xf]
      %v9766 = vld [vmem:[%s9 + $0xb4] sm:$0xff]
      %v9767 = vld [vmem:[%s9 + $0xbc] sm:$0xf]
      %v9768 = vld [vmem:[%s9 + $0xc0] sm:$0xff]
      %v9769 = vld [vmem:[%s9 + $0xc8] sm:$0xf]
      %v9770 = vld [vmem:[%s9 + $0xcc] sm:$0xff]
      %v9771 = vld [vmem:[%s9 + $0xd4] sm:$0xf]
      %v9772 = vld [vmem:[%s9 + $0xd8] sm:$0xff]
      %v9773 = vld [vmem:[%s9 + $0xe0] sm:$0xf]
      %v9774 = vld [vmem:[%s9 + $0xe4] sm:$0xff]
      %v9775 = vld [vmem:[%s9 + $0xec] sm:$0xf]
      %v9776 = vld [vmem:[%s9 + $0xf0] sm:$0xff]
      %v9777 = vld [vmem:[%s9 + $0xf8] sm:$0xf]
      %v9778 = vld [vmem:[%s9 + $0xfc] sm:$0xff]
      %v9779 = vld [vmem:[%s9 + $0x104] sm:$0xf]
      %v9780 = vld [vmem:[%s9 + $0x108] sm:$0xff]
      %v9781 = vld [vmem:[%s9 + $0x110] sm:$0xf]
      %v9782 = vld [vmem:[%s9 + $0x114] sm:$0xff]
      %v9783 = vld [vmem:[%s9 + $0x11c] sm:$0xf]
      %v9784 = vld [vmem:[%s9 + $0x120] sm:$0xff]
      %v9785 = vld [vmem:[%s9 + $0x128] sm:$0xf]
      %v9786 = vld [vmem:[%s9 + $0x12c] sm:$0xff]
      %v9787 = vld [vmem:[%s9 + $0x134] sm:$0xf]
      %v9788 = vld [vmem:[%s9 + $0x138] sm:$0xff]
      %v9789 = vld [vmem:[%s9 + $0x140] sm:$0xf]
      %v9790 = vld [vmem:[%s9 + $0x144] sm:$0xff]
      %v9791 = vld [vmem:[%s9 + $0x14c] sm:$0xf]
      %v9792 = vld [vmem:[%s9 + $0x150] sm:$0xff]
      %v9793 = vld [vmem:[%s9 + $0x158] sm:$0xf]
      %v9794 = vld [vmem:[%s9 + $0x15c] sm:$0xff]
      %v9795 = vld [vmem:[%s9 + $0x164] sm:$0xf]
      %v9796 = vld [vmem:[%s9 + $0x168] sm:$0xff]
      %v9797 = vld [vmem:[%s9 + $0x170] sm:$0xf]
      %v9798 = vld [vmem:[%s9 + $0x174] sm:$0xff]
      %v9799 = vld [vmem:[%s9 + $0x17c] sm:$0xf]
      %v9800 = vld [vmem:[%s9 + $0x180] sm:$0xff]
      %v9801 = vld [vmem:[%s9 + $0x188] sm:$0xf]
      %v9802 = vld [vmem:[%s9 + $0x18c] sm:$0xff]
      %v9803 = vld [vmem:[%s9 + $0x194] sm:$0xf]
      %v9804 = vld [vmem:[%s9 + $0x198] sm:$0xff]
      %v9805 = vld [vmem:[%s9 + $0x1a0] sm:$0xf]
      %v9806 = vld [vmem:[%s9 + $0x1a4] sm:$0xff]
      %v9807 = vld [vmem:[%s9 + $0x1ac] sm:$0xf]
      %v9808 = vld [vmem:[%s9 + $0x1b0] sm:$0xff]
      %v9809 = vld [vmem:[%s9 + $0x1b8] sm:$0xf]
      %v9810 = vld [vmem:[%s9 + $0x1bc] sm:$0xff]
      %v9811 = vld [vmem:[%s9 + $0x1c4] sm:$0xf]
      %v9812 = vld [vmem:[%s9 + $0x1c8] sm:$0xff]
      %v9813 = vld [vmem:[%s9 + $0x1d0] sm:$0xf]
      %v9814 = vld [vmem:[%s9 + $0x1d4] sm:$0xff]
      %v9815 = vld [vmem:[%s9 + $0x1dc] sm:$0xf]
      %s9816 = scalar_lea.vmem %s9, 960
      %v9817 = vld [vmem:[%s9816] sm:$0xff]
      %v9818 = vld [vmem:[%s9816 + $0x8] sm:$0xf]
      %v9819 = vld [vmem:[%s9816 + $0xc] sm:$0xff]
      %v9820 = vld [vmem:[%s9816 + $0x14] sm:$0xf]
      %v9821 = vld [vmem:[%s9816 + $0x18] sm:$0xff]
      %v9822 = vld [vmem:[%s9816 + $0x20] sm:$0xf]
      %v9823 = vld [vmem:[%s9816 + $0x24] sm:$0xff]
      %v9824 = vld [vmem:[%s9816 + $0x2c] sm:$0xf]
      %v9825 = vld [vmem:[%s9816 + $0x30] sm:$0xff]
      %v9826 = vld [vmem:[%s9816 + $0x38] sm:$0xf]
      %v9827 = vld [vmem:[%s9816 + $0x3c] sm:$0xff]
      %v9828 = vld [vmem:[%s9816 + $0x44] sm:$0xf]
      %v9829 = vld [vmem:[%s9816 + $0x48] sm:$0xff]
      %v9830 = vld [vmem:[%s9816 + $0x50] sm:$0xf]
      %v9831 = vld [vmem:[%s9816 + $0x54] sm:$0xff]
      %v9832 = vld [vmem:[%s9816 + $0x5c] sm:$0xf]
      %v9833 = vld [vmem:[%s9816 + $0x60] sm:$0xff]
      %v9834 = vld [vmem:[%s9816 + $0x68] sm:$0xf]
      %v9835 = vld [vmem:[%s9816 + $0x6c] sm:$0xff]
      %v9836 = vld [vmem:[%s9816 + $0x74] sm:$0xf]
      %v9837 = vld [vmem:[%s9816 + $0x78] sm:$0xff]
      %v9838 = vld [vmem:[%s9816 + $0x80] sm:$0xf]
      %v9839 = vld [vmem:[%s9816 + $0x84] sm:$0xff]
      %v9840 = vld [vmem:[%s9816 + $0x8c] sm:$0xf]
      %v9841 = vld [vmem:[%s9816 + $0x90] sm:$0xff]
      %v9842 = vld [vmem:[%s9816 + $0x98] sm:$0xf]
      %v9843 = vld [vmem:[%s9816 + $0x9c] sm:$0xff]
      %v9844 = vld [vmem:[%s9816 + $0xa4] sm:$0xf]
      %v9845 = vld [vmem:[%s9816 + $0xa8] sm:$0xff]
      %v9846 = vld [vmem:[%s9816 + $0xb0] sm:$0xf]
      %v9847 = vld [vmem:[%s9816 + $0xb4] sm:$0xff]
      %v9848 = vld [vmem:[%s9816 + $0xbc] sm:$0xf]
      %v9849 = vld [vmem:[%s9816 + $0xc0] sm:$0xff]
      %v9850 = vld [vmem:[%s9816 + $0xc8] sm:$0xf]
      %v9851 = vld [vmem:[%s9816 + $0xcc] sm:$0xff]
      %v9852 = vld [vmem:[%s9816 + $0xd4] sm:$0xf]
      %v9853 = vld [vmem:[%s9816 + $0xd8] sm:$0xff]
      %v9854 = vld [vmem:[%s9816 + $0xe0] sm:$0xf]
      %v9855 = vld [vmem:[%s9816 + $0xe4] sm:$0xff]
      %v9856 = vld [vmem:[%s9816 + $0xec] sm:$0xf]
      %v9857 = vld [vmem:[%s9816 + $0xf0] sm:$0xff]
      %v9858 = vld [vmem:[%s9816 + $0xf8] sm:$0xf]
      %v9859 = vld [vmem:[%s9816 + $0xfc] sm:$0xff]
      %v9860 = vld [vmem:[%s9816 + $0x104] sm:$0xf]
      %v9861 = vld [vmem:[%s9816 + $0x108] sm:$0xff]
      %v9862 = vld [vmem:[%s9816 + $0x110] sm:$0xf]
      %v9863 = vld [vmem:[%s9816 + $0x114] sm:$0xff]
      %v9864 = vld [vmem:[%s9816 + $0x11c] sm:$0xf]
      %v9865 = vld [vmem:[%s9816 + $0x120] sm:$0xff]
      %v9866 = vld [vmem:[%s9816 + $0x128] sm:$0xf]
      %v9867 = vld [vmem:[%s9816 + $0x12c] sm:$0xff]
      %v9868 = vld [vmem:[%s9816 + $0x134] sm:$0xf]
      %v9869 = vld [vmem:[%s9816 + $0x138] sm:$0xff]
      %v9870 = vld [vmem:[%s9816 + $0x140] sm:$0xf]
      %v9871 = vld [vmem:[%s9816 + $0x144] sm:$0xff]
      %v9872 = vld [vmem:[%s9816 + $0x14c] sm:$0xf]
      %v9873 = vld [vmem:[%s9816 + $0x150] sm:$0xff]
      %v9874 = vld [vmem:[%s9816 + $0x158] sm:$0xf]
      %v9875 = vld [vmem:[%s9816 + $0x15c] sm:$0xff]
      %v9876 = vld [vmem:[%s9816 + $0x164] sm:$0xf]
      %v9877 = vld [vmem:[%s9816 + $0x168] sm:$0xff]
      %v9878 = vld [vmem:[%s9816 + $0x170] sm:$0xf]
      %v9879 = vld [vmem:[%s9816 + $0x174] sm:$0xff]
      %v9880 = vld [vmem:[%s9816 + $0x17c] sm:$0xf]
      %v9881 = vld [vmem:[%s9816 + $0x180] sm:$0xff]
      %v9882 = vld [vmem:[%s9816 + $0x188] sm:$0xf]
      %v9883 = vld [vmem:[%s9816 + $0x18c] sm:$0xff]
      %v9884 = vld [vmem:[%s9816 + $0x194] sm:$0xf]
      %v9885 = vld [vmem:[%s9816 + $0x198] sm:$0xff]
      %v9886 = vld [vmem:[%s9816 + $0x1a0] sm:$0xf]
      %v9887 = vld [vmem:[%s9816 + $0x1a4] sm:$0xff]
      %v9888 = vld [vmem:[%s9816 + $0x1ac] sm:$0xf]
      %v9889 = vld [vmem:[%s9816 + $0x1b0] sm:$0xff]
      %v9890 = vld [vmem:[%s9816 + $0x1b8] sm:$0xf]
      %v9891 = vld [vmem:[%s9816 + $0x1bc] sm:$0xff]
      %v9892 = vld [vmem:[%s9816 + $0x1c4] sm:$0xf]
      %v9893 = vld [vmem:[%s9816 + $0x1c8] sm:$0xff]
      %v9894 = vld [vmem:[%s9816 + $0x1d0] sm:$0xf]
      %v9895 = vld [vmem:[%s9816 + $0x1d4] sm:$0xff]
      %v9896 = vld [vmem:[%s9816 + $0x1dc] sm:$0xf]
      %v9977 = vunpack.c.l.b16 %v9817
      %v9978 = vunpack.c.h.b16 %v9817
      %v9979 = vunpack.c.l.b16 %v9818
      %v9980 = vunpack.c.l.b16 %v9819
      %v9981 = vunpack.c.h.b16 %v9819
      %v9982 = vunpack.c.l.b16 %v9820
      %v9983 = vunpack.c.l.b16 %v9821
      %v9984 = vunpack.c.h.b16 %v9821
      %v9985 = vunpack.c.l.b16 %v9822
      %v9986 = vunpack.c.l.b16 %v9823
      %v9987 = vunpack.c.h.b16 %v9823
      %v9988 = vunpack.c.l.b16 %v9824
      %v9989 = vunpack.c.l.b16 %v9825
      %v9990 = vunpack.c.h.b16 %v9825
      %v9991 = vunpack.c.l.b16 %v9826
      %v9992 = vunpack.c.l.b16 %v9827
      %v9993 = vunpack.c.h.b16 %v9827
      %v9994 = vunpack.c.l.b16 %v9828
      %v9995 = vunpack.c.l.b16 %v9829
      %v9996 = vunpack.c.h.b16 %v9829
      %v9997 = vunpack.c.l.b16 %v9830
      %v9998 = vunpack.c.l.b16 %v9831
      %v9999 = vunpack.c.h.b16 %v9831
      %v10000 = vunpack.c.l.b16 %v9832
      %v10001 = vunpack.c.l.b16 %v9833
      %v10002 = vunpack.c.h.b16 %v9833
      %v10003 = vunpack.c.l.b16 %v9834
      %v10004 = vunpack.c.l.b16 %v9835
      %v10005 = vunpack.c.h.b16 %v9835
      %v10006 = vunpack.c.l.b16 %v9836
      %v10007 = vunpack.c.l.b16 %v9837
      %v10008 = vunpack.c.h.b16 %v9837
      %v10009 = vunpack.c.l.b16 %v9838
      %v10010 = vunpack.c.l.b16 %v9839
      %v10011 = vunpack.c.h.b16 %v9839
      %v10012 = vunpack.c.l.b16 %v9840
      %v10013 = vunpack.c.l.b16 %v9841
      %v10014 = vunpack.c.h.b16 %v9841
      %v10015 = vunpack.c.l.b16 %v9842
      %v10016 = vunpack.c.l.b16 %v9843
      %v10017 = vunpack.c.h.b16 %v9843
      %v10018 = vunpack.c.l.b16 %v9844
      %v10019 = vunpack.c.l.b16 %v9845
      %v10020 = vunpack.c.h.b16 %v9845
      %v10021 = vunpack.c.l.b16 %v9846
      %v10022 = vunpack.c.l.b16 %v9847
      %v10023 = vunpack.c.h.b16 %v9847
      %v10024 = vunpack.c.l.b16 %v9848
      %v10025 = vunpack.c.l.b16 %v9849
      %v10026 = vunpack.c.h.b16 %v9849
      %v10027 = vunpack.c.l.b16 %v9850
      %v10028 = vunpack.c.l.b16 %v9851
      %v10029 = vunpack.c.h.b16 %v9851
      %v10030 = vunpack.c.l.b16 %v9852
      %v10031 = vunpack.c.l.b16 %v9853
      %v10032 = vunpack.c.h.b16 %v9853
      %v10033 = vunpack.c.l.b16 %v9854
      %v10034 = vunpack.c.l.b16 %v9855
      %v10035 = vunpack.c.h.b16 %v9855
      %v10036 = vunpack.c.l.b16 %v9856
      %v10037 = vunpack.c.l.b16 %v9857
      %v10038 = vunpack.c.h.b16 %v9857
      %v10039 = vunpack.c.l.b16 %v9858
      %v10040 = vunpack.c.l.b16 %v9859
      %v10041 = vunpack.c.h.b16 %v9859
      %v10042 = vunpack.c.l.b16 %v9860
      %v10043 = vunpack.c.l.b16 %v9861
      %v10044 = vunpack.c.h.b16 %v9861
      %v10045 = vunpack.c.l.b16 %v9862
      %v10046 = vunpack.c.l.b16 %v9863
      %v10047 = vunpack.c.h.b16 %v9863
      %v10048 = vunpack.c.l.b16 %v9864
      %v10049 = vunpack.c.l.b16 %v9865
      %v10050 = vunpack.c.h.b16 %v9865
      %v10051 = vunpack.c.l.b16 %v9866
      %v10052 = vunpack.c.l.b16 %v9867
      %v10053 = vunpack.c.h.b16 %v9867
      %v10054 = vunpack.c.l.b16 %v9868
      %v10055 = vunpack.c.l.b16 %v9869
      %v10056 = vunpack.c.h.b16 %v9869
      %v10057 = vunpack.c.l.b16 %v9870
      %v10058 = vunpack.c.l.b16 %v9871
      %v10059 = vunpack.c.h.b16 %v9871
      %v10060 = vunpack.c.l.b16 %v9872
      %v10061 = vunpack.c.l.b16 %v9873
      %v10062 = vunpack.c.h.b16 %v9873
      %v10063 = vunpack.c.l.b16 %v9874
      %v10064 = vunpack.c.l.b16 %v9875
      %v10065 = vunpack.c.h.b16 %v9875
      %v10066 = vunpack.c.l.b16 %v9876
      %v10067 = vunpack.c.l.b16 %v9877
      %v10068 = vunpack.c.h.b16 %v9877
      %v10069 = vunpack.c.l.b16 %v9878
      %v10070 = vunpack.c.l.b16 %v9879
      %v10071 = vunpack.c.h.b16 %v9879
      %v10072 = vunpack.c.l.b16 %v9880
      %v10073 = vunpack.c.l.b16 %v9881
      %v10074 = vunpack.c.h.b16 %v9881
      %v10075 = vunpack.c.l.b16 %v9882
      %v10076 = vunpack.c.l.b16 %v9883
      %v10077 = vunpack.c.h.b16 %v9883
      %v10078 = vunpack.c.l.b16 %v9884
      %v10079 = vunpack.c.l.b16 %v9885
      %v10080 = vunpack.c.h.b16 %v9885
      %v10081 = vunpack.c.l.b16 %v9886
      %v10082 = vunpack.c.l.b16 %v9887
      %v10083 = vunpack.c.h.b16 %v9887
      %v10084 = vunpack.c.l.b16 %v9888
      %v10085 = vunpack.c.l.b16 %v9889
      %v10086 = vunpack.c.h.b16 %v9889
      %v10087 = vunpack.c.l.b16 %v9890
      %v10088 = vunpack.c.l.b16 %v9891
      %v10089 = vunpack.c.h.b16 %v9891
      %v10090 = vunpack.c.l.b16 %v9892
      %v10091 = vunpack.c.l.b16 %v9893
      %v10092 = vunpack.c.h.b16 %v9893
      %v10093 = vunpack.c.l.b16 %v9894
      %v10094 = vunpack.c.l.b16 %v9895
      %v10095 = vunpack.c.h.b16 %v9895
      %v10096 = vunpack.c.l.b16 %v9896
      %v10097 = vpack.c.b16 %v9980, %v9977
      %v10098 = vpack.c.b16 %v9981, %v9978
      %v10099 = vpack.c.b16 %v9982, %v9979
      %v10100 = vpack.c.b16 %v9986, %v9983
      %v10101 = vpack.c.b16 %v9987, %v9984
      %v10102 = vpack.c.b16 %v9988, %v9985
      %v10103 = vpack.c.b16 %v9992, %v9989
      %v10104 = vpack.c.b16 %v9993, %v9990
      %v10105 = vpack.c.b16 %v9994, %v9991
      %v10106 = vpack.c.b16 %v9998, %v9995
      %v10107 = vpack.c.b16 %v9999, %v9996
      %v10108 = vpack.c.b16 %v10000, %v9997
      %v10109 = vpack.c.b16 %v10004, %v10001
      %v10110 = vpack.c.b16 %v10005, %v10002
      %v10111 = vpack.c.b16 %v10006, %v10003
      %v10112 = vpack.c.b16 %v10010, %v10007
      %v10113 = vpack.c.b16 %v10011, %v10008
      %v10114 = vpack.c.b16 %v10012, %v10009
      %v10115 = vpack.c.b16 %v10016, %v10013
      %v10116 = vpack.c.b16 %v10017, %v10014
      %v10117 = vpack.c.b16 %v10018, %v10015
      %v10118 = vpack.c.b16 %v10022, %v10019
      %v10119 = vpack.c.b16 %v10023, %v10020
      %v10120 = vpack.c.b16 %v10024, %v10021
      %v10121 = vpack.c.b16 %v10028, %v10025
      %v10122 = vpack.c.b16 %v10029, %v10026
      %v10123 = vpack.c.b16 %v10030, %v10027
      %v10124 = vpack.c.b16 %v10034, %v10031
      %v10125 = vpack.c.b16 %v10035, %v10032
      %v10126 = vpack.c.b16 %v10036, %v10033
      %v10127 = vpack.c.b16 %v10040, %v10037
      %v10128 = vpack.c.b16 %v10041, %v10038
      %v10129 = vpack.c.b16 %v10042, %v10039
      %v10130 = vpack.c.b16 %v10046, %v10043
      %v10131 = vpack.c.b16 %v10047, %v10044
      %v10132 = vpack.c.b16 %v10048, %v10045
      %v10133 = vpack.c.b16 %v10052, %v10049
      %v10134 = vpack.c.b16 %v10053, %v10050
      %v10135 = vpack.c.b16 %v10054, %v10051
      %v10136 = vpack.c.b16 %v10058, %v10055
      %v10137 = vpack.c.b16 %v10059, %v10056
      %v10138 = vpack.c.b16 %v10060, %v10057
      %v10139 = vpack.c.b16 %v10064, %v10061
      %v10140 = vpack.c.b16 %v10065, %v10062
      %v10141 = vpack.c.b16 %v10066, %v10063
      %v10142 = vpack.c.b16 %v10070, %v10067
      %v10143 = vpack.c.b16 %v10071, %v10068
      %v10144 = vpack.c.b16 %v10072, %v10069
      %v10145 = vpack.c.b16 %v10076, %v10073
      %v10146 = vpack.c.b16 %v10077, %v10074
      %v10147 = vpack.c.b16 %v10078, %v10075
      %v10148 = vpack.c.b16 %v10082, %v10079
      %v10149 = vpack.c.b16 %v10083, %v10080
      %v10150 = vpack.c.b16 %v10084, %v10081
      %v10151 = vpack.c.b16 %v10088, %v10085
      %v10152 = vpack.c.b16 %v10089, %v10086
      %v10153 = vpack.c.b16 %v10090, %v10087
      %v10154 = vpack.c.b16 %v10094, %v10091
      %v10155 = vpack.c.b16 %v10095, %v10092
      %v10156 = vpack.c.b16 %v10096, %v10093
      %10217 = vmatprep.subr.bf16.mxu0 %v10119
      %10218 = vmatpush1.bf16.msra.mxu0 %v10118
      %10219 = vmatprep.subr.bf16.mxu0 %v10116
      %10220 = vmatpush1.bf16.msra.mxu0 %v10115
      %10221 = vmatprep.subr.bf16.mxu0 %v10113
      %10222 = vmatpush1.bf16.msra.mxu0 %v10112
      %10223 = vmatprep.subr.bf16.mxu0 %v10110
      %10224 = vmatpush1.bf16.msra.mxu0 %v10109
      %10225 = vmatprep.subr.bf16.mxu0 %v10107
      %10226 = vmatpush1.bf16.msra.mxu0 %v10106
      %10227 = vmatprep.subr.bf16.mxu0 %v10104
      %10228 = vmatpush1.bf16.msra.mxu0 %v10103
      %10229 = vmatprep.subr.bf16.mxu0 %v10101
      %10230 = vmatpush1.bf16.msra.mxu0 %v10100
      %10231 = vmatprep.subr.bf16.mxu0 %v10098
      %10232 = vmatpush1.bf16.msra.mxu0 %v10097
      %10233 = vmatprep.subr.bf16.mxu0 %v10143
      %10234 = vmatpush2.bf16.msra.mxu0 %v10142
      %10235 = vmatprep.subr.bf16.mxu0 %v10140
      %10236 = vmatpush2.bf16.msra.mxu0 %v10139
      %10237 = vmatprep.subr.bf16.mxu0 %v10137
      %10238 = vmatpush2.bf16.msra.mxu0 %v10136
      %10239 = vmatprep.subr.bf16.mxu0 %v10134
      %10240 = vmatpush2.bf16.msra.mxu0 %v10133
      %10241 = vmatprep.subr.bf16.mxu0 %v10131
      %10242 = vmatpush2.bf16.msra.mxu0 %v10130
      %10243 = vmatprep.subr.bf16.mxu0 %v10128
      %10244 = vmatpush2.bf16.msra.mxu0 %v10127
      %10245 = vmatprep.subr.bf16.mxu0 %v10125
      %10246 = vmatpush2.bf16.msra.mxu0 %v10124
      %10247 = vmatprep.subr.bf16.mxu0 %v10122
      %10248 = vmatpush2.bf16.msra.mxu0 %v10121
      %10249 = vmatprep.mubr.bf16.mxu0 %v9204
      %10250 = vmatmul.mubr.bf16.gmra.mxu0 %v9197
      %v10251 = vpop.f32.mrf.mxu0
      %v10252 = vadd.f32 0.0, %v10251
      %v10253 = vpop.f32.mrf.mxu0
      %v10254 = vadd.f32 0.0, %v10253
      %v10255 = vpop.f32.mrf.mxu0
      %v10256 = vpop.f32.mrf.mxu0
      %10257 = vdwg.mxu0
      %10258 = vmatprep.subr.bf16.mxu0 0
      %10259 = vmatpush1.bf16.msra.mxu0 0
      %10260 = vmatprep.subr.bf16.mxu0 0
      %10261 = vmatpush1.bf16.msra.mxu0 0
      %10262 = vmatprep.subr.bf16.mxu0 0
      %10263 = vmatpush1.bf16.msra.mxu0 0
      %10264 = vmatprep.subr.bf16.mxu0 0
      %10265 = vmatpush1.bf16.msra.mxu0 0
      %10266 = vmatprep.subr.bf16.mxu0 %v10155
      %10267 = vmatpush1.bf16.msra.mxu0 %v10154
      %10268 = vmatprep.subr.bf16.mxu0 %v10152
      %10269 = vmatpush1.bf16.msra.mxu0 %v10151
      %10270 = vmatprep.subr.bf16.mxu0 %v10149
      %10271 = vmatpush1.bf16.msra.mxu0 %v10148
      %10272 = vmatprep.subr.bf16.mxu0 %v10146
      %10273 = vmatpush1.bf16.msra.mxu0 %v10145
      %10274 = vmatprep.subr.bf16.mxu0 0
      %10275 = vmatpush2.bf16.msra.mxu0 0
      %10276 = vmatprep.subr.bf16.mxu0 0
      %10277 = vmatpush2.bf16.msra.mxu0 0
      %10278 = vmatprep.subr.bf16.mxu0 0
      %10279 = vmatpush2.bf16.msra.mxu0 0
      %10280 = vmatprep.subr.bf16.mxu0 0
      %10281 = vmatpush2.bf16.msra.mxu0 0
      %10282 = vmatprep.subr.bf16.mxu0 0
      %10283 = vmatpush2.bf16.msra.mxu0 0
      %10284 = vmatprep.subr.bf16.mxu0 0
      %10285 = vmatpush2.bf16.msra.mxu0 0
      %10286 = vmatprep.subr.bf16.mxu0 0
      %10287 = vmatpush2.bf16.msra.mxu0 0
      %10288 = vmatprep.subr.bf16.mxu0 0
      %10289 = vmatpush2.bf16.msra.mxu0 0
      %10290 = vmatprep.mubr.bf16.mxu0 0
      %10291 = vmatmul.mubr.bf16.gmra.mxu0 %v9534
      %v10292 = vpop.f32.mrf.mxu0
      %v10293 = vadd.f32 %v10252, %v10292
      %v10294 = vpop.f32.mrf.mxu0
      %v10295 = vadd.f32 %v10254, %v10294
      %v10296 = vpop.f32.mrf.mxu0
      %v10297 = vpop.f32.mrf.mxu0
      %10298 = vdwg.mxu0
      %10299 = vmatprep.subr.bf16.mxu0 0
      %10300 = vmatpush1.bf16.msra.mxu0 %v10120
      %10301 = vmatprep.subr.bf16.mxu0 0
      %10302 = vmatpush1.bf16.msra.mxu0 %v10117
      %10303 = vmatprep.subr.bf16.mxu0 0
      %10304 = vmatpush1.bf16.msra.mxu0 %v10114
      %10305 = vmatprep.subr.bf16.mxu0 0
      %10306 = vmatpush1.bf16.msra.mxu0 %v10111
      %10307 = vmatprep.subr.bf16.mxu0 0
      %10308 = vmatpush1.bf16.msra.mxu0 %v10108
      %10309 = vmatprep.subr.bf16.mxu0 0
      %10310 = vmatpush1.bf16.msra.mxu0 %v10105
      %10311 = vmatprep.subr.bf16.mxu0 0
      %10312 = vmatpush1.bf16.msra.mxu0 %v10102
      %10313 = vmatprep.subr.bf16.mxu0 0
      %10314 = vmatpush1.bf16.msra.mxu0 %v10099
      %10315 = vmatprep.subr.bf16.mxu0 0
      %10316 = vmatpush2.bf16.msra.mxu0 %v10144
      %10317 = vmatprep.subr.bf16.mxu0 0
      %10318 = vmatpush2.bf16.msra.mxu0 %v10141
      %10319 = vmatprep.subr.bf16.mxu0 0
      %10320 = vmatpush2.bf16.msra.mxu0 %v10138
      %10321 = vmatprep.subr.bf16.mxu0 0
      %10322 = vmatpush2.bf16.msra.mxu0 %v10135
      %10323 = vmatprep.subr.bf16.mxu0 0
      %10324 = vmatpush2.bf16.msra.mxu0 %v10132
      %10325 = vmatprep.subr.bf16.mxu0 0
      %10326 = vmatpush2.bf16.msra.mxu0 %v10129
      %10327 = vmatprep.subr.bf16.mxu0 0
      %10328 = vmatpush2.bf16.msra.mxu0 %v10126
      %10329 = vmatprep.subr.bf16.mxu0 0
      %10330 = vmatpush2.bf16.msra.mxu0 %v10123
      %10331 = vmatprep.mubr.bf16.mxu0 %v9204
      %10332 = vmatmul.mubr.bf16.gmra.mxu0 %v9197
      %v10333 = vpop.f32.mrf.mxu0
      %v10334 = vadd.f32 0.0, %v10333
      %v10335 = vpop.f32.mrf.mxu0
      %v10336 = vpop.f32.mrf.mxu0
      %v10337 = vpop.f32.mrf.mxu0
      %10338 = vdwg.mxu0
      %10339 = vmatprep.subr.bf16.mxu0 0
      %10340 = vmatpush1.bf16.msra.mxu0 0
      %10341 = vmatprep.subr.bf16.mxu0 0
      %10342 = vmatpush1.bf16.msra.mxu0 0
      %10343 = vmatprep.subr.bf16.mxu0 0
      %10344 = vmatpush1.bf16.msra.mxu0 0
      %10345 = vmatprep.subr.bf16.mxu0 0
      %10346 = vmatpush1.bf16.msra.mxu0 0
      %10347 = vmatprep.subr.bf16.mxu0 0
      %10348 = vmatpush1.bf16.msra.mxu0 %v10156
      %10349 = vmatprep.subr.bf16.mxu0 0
      %10350 = vmatpush1.bf16.msra.mxu0 %v10153
      %10351 = vmatprep.subr.bf16.mxu0 0
      %10352 = vmatpush1.bf16.msra.mxu0 %v10150
      %10353 = vmatprep.subr.bf16.mxu0 0
      %10354 = vmatpush1.bf16.msra.mxu0 %v10147
      %10355 = vmatprep.subr.bf16.mxu0 0
      %10356 = vmatpush2.bf16.msra.mxu0 0
      %10357 = vmatprep.subr.bf16.mxu0 0
      %10358 = vmatpush2.bf16.msra.mxu0 0
      %10359 = vmatprep.subr.bf16.mxu0 0
      %10360 = vmatpush2.bf16.msra.mxu0 0
      %10361 = vmatprep.subr.bf16.mxu0 0
      %10362 = vmatpush2.bf16.msra.mxu0 0
      %10363 = vmatprep.subr.bf16.mxu0 0
      %10364 = vmatpush2.bf16.msra.mxu0 0
      %10365 = vmatprep.subr.bf16.mxu0 0
      %10366 = vmatpush2.bf16.msra.mxu0 0
      %10367 = vmatprep.subr.bf16.mxu0 0
      %10368 = vmatpush2.bf16.msra.mxu0 0
      %10369 = vmatprep.subr.bf16.mxu0 0
      %10370 = vmatpush2.bf16.msra.mxu0 0
      %10371 = vmatprep.mubr.bf16.mxu0 0
      %10372 = vmatmul.mubr.bf16.gmra.mxu0 %v9534
      %v10373 = vpop.f32.mrf.mxu0
      %v10374 = vadd.f32 %v10334, %v10373
      %v10375 = vpop.f32.mrf.mxu0
      %v10376 = vpop.f32.mrf.mxu0
      %v10377 = vpop.f32.mrf.mxu0
      %10378 = vdwg.mxu0
      %v10382 = vrot.slane %v8622, 1
      %v10383 = vrot.slane %v8623, 1
      %v10384 = vrot.slane %v8624, 1
      %v10467 = vunpack.c.l.b16 %v9736
      %v10468 = vunpack.c.h.b16 %v9736
      %v10469 = vunpack.c.l.b16 %v9737
      %v10470 = vunpack.c.l.b16 %v9738
      %v10471 = vunpack.c.h.b16 %v9738
      %v10472 = vunpack.c.l.b16 %v9739
      %v10473 = vunpack.c.l.b16 %v9740
      %v10474 = vunpack.c.h.b16 %v9740
      %v10475 = vunpack.c.l.b16 %v9741
      %v10476 = vunpack.c.l.b16 %v9742
      %v10477 = vunpack.c.h.b16 %v9742
      %v10478 = vunpack.c.l.b16 %v9743
      %v10479 = vunpack.c.l.b16 %v9744
      %v10480 = vunpack.c.h.b16 %v9744
      %v10481 = vunpack.c.l.b16 %v9745
      %v10482 = vunpack.c.l.b16 %v9746
      %v10483 = vunpack.c.h.b16 %v9746
      %v10484 = vunpack.c.l.b16 %v9747
      %v10485 = vunpack.c.l.b16 %v9748
      %v10486 = vunpack.c.h.b16 %v9748
      %v10487 = vunpack.c.l.b16 %v9749
      %v10488 = vunpack.c.l.b16 %v9750
      %v10489 = vunpack.c.h.b16 %v9750
      %v10490 = vunpack.c.l.b16 %v9751
      %v10491 = vunpack.c.l.b16 %v9752
      %v10492 = vunpack.c.h.b16 %v9752
      %v10493 = vunpack.c.l.b16 %v9753
      %v10494 = vunpack.c.l.b16 %v9754
      %v10495 = vunpack.c.h.b16 %v9754
      %v10496 = vunpack.c.l.b16 %v9755
      %v10497 = vunpack.c.l.b16 %v9756
      %v10498 = vunpack.c.h.b16 %v9756
      %v10499 = vunpack.c.l.b16 %v9757
      %v10500 = vunpack.c.l.b16 %v9758
      %v10501 = vunpack.c.h.b16 %v9758
      %v10502 = vunpack.c.l.b16 %v9759
      %v10503 = vunpack.c.l.b16 %v9760
      %v10504 = vunpack.c.h.b16 %v9760
      %v10505 = vunpack.c.l.b16 %v9761
      %v10506 = vunpack.c.l.b16 %v9762
      %v10507 = vunpack.c.h.b16 %v9762
      %v10508 = vunpack.c.l.b16 %v9763
      %v10509 = vunpack.c.l.b16 %v9764
      %v10510 = vunpack.c.h.b16 %v9764
      %v10511 = vunpack.c.l.b16 %v9765
      %v10512 = vunpack.c.l.b16 %v9766
      %v10513 = vunpack.c.h.b16 %v9766
      %v10514 = vunpack.c.l.b16 %v9767
      %v10515 = vunpack.c.l.b16 %v9768
      %v10516 = vunpack.c.h.b16 %v9768
      %v10517 = vunpack.c.l.b16 %v9769
      %v10518 = vunpack.c.l.b16 %v9770
      %v10519 = vunpack.c.h.b16 %v9770
      %v10520 = vunpack.c.l.b16 %v9771
      %v10521 = vunpack.c.l.b16 %v9772
      %v10522 = vunpack.c.h.b16 %v9772
      %v10523 = vunpack.c.l.b16 %v9773
      %v10524 = vunpack.c.l.b16 %v9774
      %v10525 = vunpack.c.h.b16 %v9774
      %v10526 = vunpack.c.l.b16 %v9775
      %v10527 = vunpack.c.l.b16 %v9776
      %v10528 = vunpack.c.h.b16 %v9776
      %v10529 = vunpack.c.l.b16 %v9777
      %v10530 = vunpack.c.l.b16 %v9778
      %v10531 = vunpack.c.h.b16 %v9778
      %v10532 = vunpack.c.l.b16 %v9779
      %v10533 = vunpack.c.l.b16 %v9780
      %v10534 = vunpack.c.h.b16 %v9780
      %v10535 = vunpack.c.l.b16 %v9781
      %v10536 = vunpack.c.l.b16 %v9782
      %v10537 = vunpack.c.h.b16 %v9782
      %v10538 = vunpack.c.l.b16 %v9783
      %v10539 = vunpack.c.l.b16 %v9784
      %v10540 = vunpack.c.h.b16 %v9784
      %v10541 = vunpack.c.l.b16 %v9785
      %v10542 = vunpack.c.l.b16 %v9786
      %v10543 = vunpack.c.h.b16 %v9786
      %v10544 = vunpack.c.l.b16 %v9787
      %v10545 = vunpack.c.l.b16 %v9788
      %v10546 = vunpack.c.h.b16 %v9788
      %v10547 = vunpack.c.l.b16 %v9789
      %v10548 = vunpack.c.l.b16 %v9790
      %v10549 = vunpack.c.h.b16 %v9790
      %v10550 = vunpack.c.l.b16 %v9791
      %v10551 = vunpack.c.l.b16 %v9792
      %v10552 = vunpack.c.h.b16 %v9792
      %v10553 = vunpack.c.l.b16 %v9793
      %v10554 = vunpack.c.l.b16 %v9794
      %v10555 = vunpack.c.h.b16 %v9794
      %v10556 = vunpack.c.l.b16 %v9795
      %v10557 = vunpack.c.l.b16 %v9796
      %v10558 = vunpack.c.h.b16 %v9796
      %v10559 = vunpack.c.l.b16 %v9797
      %v10560 = vunpack.c.l.b16 %v9798
      %v10561 = vunpack.c.h.b16 %v9798
      %v10562 = vunpack.c.l.b16 %v9799
      %v10563 = vunpack.c.l.b16 %v9800
      %v10564 = vunpack.c.h.b16 %v9800
      %v10565 = vunpack.c.l.b16 %v9801
      %v10566 = vunpack.c.l.b16 %v9802
      %v10567 = vunpack.c.h.b16 %v9802
      %v10568 = vunpack.c.l.b16 %v9803
      %v10569 = vunpack.c.l.b16 %v9804
      %v10570 = vunpack.c.h.b16 %v9804
      %v10571 = vunpack.c.l.b16 %v9805
      %v10572 = vunpack.c.l.b16 %v9806
      %v10573 = vunpack.c.h.b16 %v9806
      %v10574 = vunpack.c.l.b16 %v9807
      %v10575 = vunpack.c.l.b16 %v9808
      %v10576 = vunpack.c.h.b16 %v9808
      %v10577 = vunpack.c.l.b16 %v9809
      %v10578 = vunpack.c.l.b16 %v9810
      %v10579 = vunpack.c.h.b16 %v9810
      %v10580 = vunpack.c.l.b16 %v9811
      %v10581 = vunpack.c.l.b16 %v9812
      %v10582 = vunpack.c.h.b16 %v9812
      %v10583 = vunpack.c.l.b16 %v9813
      %v10584 = vunpack.c.l.b16 %v9814
      %v10585 = vunpack.c.h.b16 %v9814
      %v10586 = vunpack.c.l.b16 %v9815
      %v10587 = vpack.c.b16 %v10470, %v10467
      %v10588 = vpack.c.b16 %v10471, %v10468
      %v10589 = vpack.c.b16 %v10472, %v10469
      %v10590 = vpack.c.b16 %v10476, %v10473
      %v10591 = vpack.c.b16 %v10477, %v10474
      %v10592 = vpack.c.b16 %v10478, %v10475
      %v10593 = vpack.c.b16 %v10482, %v10479
      %v10594 = vpack.c.b16 %v10483, %v10480
      %v10595 = vpack.c.b16 %v10484, %v10481
      %v10596 = vpack.c.b16 %v10488, %v10485
      %v10597 = vpack.c.b16 %v10489, %v10486
      %v10598 = vpack.c.b16 %v10490, %v10487
      %v10599 = vpack.c.b16 %v10494, %v10491
      %v10600 = vpack.c.b16 %v10495, %v10492
      %v10601 = vpack.c.b16 %v10496, %v10493
      %v10602 = vpack.c.b16 %v10500, %v10497
      %v10603 = vpack.c.b16 %v10501, %v10498
      %v10604 = vpack.c.b16 %v10502, %v10499
      %v10605 = vpack.c.b16 %v10506, %v10503
      %v10606 = vpack.c.b16 %v10507, %v10504
      %v10607 = vpack.c.b16 %v10508, %v10505
      %v10608 = vpack.c.b16 %v10512, %v10509
      %v10609 = vpack.c.b16 %v10513, %v10510
      %v10610 = vpack.c.b16 %v10514, %v10511
      %v10611 = vpack.c.b16 %v10518, %v10515
      %v10612 = vpack.c.b16 %v10519, %v10516
      %v10613 = vpack.c.b16 %v10520, %v10517
      %v10614 = vpack.c.b16 %v10524, %v10521
      %v10615 = vpack.c.b16 %v10525, %v10522
      %v10616 = vpack.c.b16 %v10526, %v10523
      %v10617 = vpack.c.b16 %v10530, %v10527
      %v10618 = vpack.c.b16 %v10531, %v10528
      %v10619 = vpack.c.b16 %v10532, %v10529
      %v10620 = vpack.c.b16 %v10536, %v10533
      %v10621 = vpack.c.b16 %v10537, %v10534
      %v10622 = vpack.c.b16 %v10538, %v10535
      %v10623 = vpack.c.b16 %v10542, %v10539
      %v10624 = vpack.c.b16 %v10543, %v10540
      %v10625 = vpack.c.b16 %v10544, %v10541
      %v10626 = vpack.c.b16 %v10548, %v10545
      %v10627 = vpack.c.b16 %v10549, %v10546
      %v10628 = vpack.c.b16 %v10550, %v10547
      %v10629 = vpack.c.b16 %v10554, %v10551
      %v10630 = vpack.c.b16 %v10555, %v10552
      %v10631 = vpack.c.b16 %v10556, %v10553
      %v10632 = vpack.c.b16 %v10560, %v10557
      %v10633 = vpack.c.b16 %v10561, %v10558
      %v10634 = vpack.c.b16 %v10562, %v10559
      %v10635 = vpack.c.b16 %v10566, %v10563
      %v10636 = vpack.c.b16 %v10567, %v10564
      %v10637 = vpack.c.b16 %v10568, %v10565
      %v10638 = vpack.c.b16 %v10572, %v10569
      %v10639 = vpack.c.b16 %v10573, %v10570
      %v10640 = vpack.c.b16 %v10574, %v10571
      %v10641 = vpack.c.b16 %v10578, %v10575
      %v10642 = vpack.c.b16 %v10579, %v10576
      %v10643 = vpack.c.b16 %v10580, %v10577
      %v10644 = vpack.c.b16 %v10584, %v10581
      %v10645 = vpack.c.b16 %v10585, %v10582
      %v10646 = vpack.c.b16 %v10586, %v10583
      %v10708 = vsel %vm2386, %v10384, 0
      %10710 = vmatprep.subr.bf16.mxu0 %v10609
      %10711 = vmatpush1.bf16.msra.mxu0 %v10608
      %10712 = vmatprep.subr.bf16.mxu0 %v10606
      %10713 = vmatpush1.bf16.msra.mxu0 %v10605
      %10714 = vmatprep.subr.bf16.mxu0 %v10603
      %10715 = vmatpush1.bf16.msra.mxu0 %v10602
      %10716 = vmatprep.subr.bf16.mxu0 %v10600
      %10717 = vmatpush1.bf16.msra.mxu0 %v10599
      %10718 = vmatprep.subr.bf16.mxu0 %v10597
      %10719 = vmatpush1.bf16.msra.mxu0 %v10596
      %10720 = vmatprep.subr.bf16.mxu0 %v10594
      %10721 = vmatpush1.bf16.msra.mxu0 %v10593
      %10722 = vmatprep.subr.bf16.mxu0 %v10591
      %10723 = vmatpush1.bf16.msra.mxu0 %v10590
      %10724 = vmatprep.subr.bf16.mxu0 %v10588
      %10725 = vmatpush1.bf16.msra.mxu0 %v10587
      %10726 = vmatprep.subr.bf16.mxu0 %v10633
      %10727 = vmatpush2.bf16.msra.mxu0 %v10632
      %10728 = vmatprep.subr.bf16.mxu0 %v10630
      %10729 = vmatpush2.bf16.msra.mxu0 %v10629
      %10730 = vmatprep.subr.bf16.mxu0 %v10627
      %10731 = vmatpush2.bf16.msra.mxu0 %v10626
      %10732 = vmatprep.subr.bf16.mxu0 %v10624
      %10733 = vmatpush2.bf16.msra.mxu0 %v10623
      %10734 = vmatprep.subr.bf16.mxu0 %v10621
      %10735 = vmatpush2.bf16.msra.mxu0 %v10620
      %10736 = vmatprep.subr.bf16.mxu0 %v10618
      %10737 = vmatpush2.bf16.msra.mxu0 %v10617
      %10738 = vmatprep.subr.bf16.mxu0 %v10615
      %10739 = vmatpush2.bf16.msra.mxu0 %v10614
      %10740 = vmatprep.subr.bf16.mxu0 %v10612
      %10741 = vmatpush2.bf16.msra.mxu0 %v10611
      %10742 = vmatprep.mubr.bf16.mxu0 %v10383
      %10743 = vmatmul.mubr.bf16.gmra.mxu0 %v10382
      %v10744 = vpop.f32.mrf.mxu0
      %v10745 = vadd.f32 %v10293, %v10744
      %v10746 = vpop.f32.mrf.mxu0
      %v10747 = vadd.f32 %v10295, %v10746
      %v10748 = vpop.f32.mrf.mxu0
      %v10749 = vpop.f32.mrf.mxu0
      %10750 = vdwg.mxu0
      %10751 = vmatprep.subr.bf16.mxu0 0
      %10752 = vmatpush1.bf16.msra.mxu0 0
      %10753 = vmatprep.subr.bf16.mxu0 0
      %10754 = vmatpush1.bf16.msra.mxu0 0
      %10755 = vmatprep.subr.bf16.mxu0 0
      %10756 = vmatpush1.bf16.msra.mxu0 0
      %10757 = vmatprep.subr.bf16.mxu0 0
      %10758 = vmatpush1.bf16.msra.mxu0 0
      %10759 = vmatprep.subr.bf16.mxu0 %v10645
      %10760 = vmatpush1.bf16.msra.mxu0 %v10644
      %10761 = vmatprep.subr.bf16.mxu0 %v10642
      %10762 = vmatpush1.bf16.msra.mxu0 %v10641
      %10763 = vmatprep.subr.bf16.mxu0 %v10639
      %10764 = vmatpush1.bf16.msra.mxu0 %v10638
      %10765 = vmatprep.subr.bf16.mxu0 %v10636
      %10766 = vmatpush1.bf16.msra.mxu0 %v10635
      %10767 = vmatprep.subr.bf16.mxu0 0
      %10768 = vmatpush2.bf16.msra.mxu0 0
      %10769 = vmatprep.subr.bf16.mxu0 0
      %10770 = vmatpush2.bf16.msra.mxu0 0
      %10771 = vmatprep.subr.bf16.mxu0 0
      %10772 = vmatpush2.bf16.msra.mxu0 0
      %10773 = vmatprep.subr.bf16.mxu0 0
      %10774 = vmatpush2.bf16.msra.mxu0 0
      %10775 = vmatprep.subr.bf16.mxu0 0
      %10776 = vmatpush2.bf16.msra.mxu0 0
      %10777 = vmatprep.subr.bf16.mxu0 0
      %10778 = vmatpush2.bf16.msra.mxu0 0
      %10779 = vmatprep.subr.bf16.mxu0 0
      %10780 = vmatpush2.bf16.msra.mxu0 0
      %10781 = vmatprep.subr.bf16.mxu0 0
      %10782 = vmatpush2.bf16.msra.mxu0 0
      %10783 = vmatprep.mubr.bf16.mxu0 0
      %10784 = vmatmul.mubr.bf16.gmra.mxu0 %v10708
      %v10785 = vpop.f32.mrf.mxu0
      %v10786 = vadd.f32 %v10745, %v10785
      %v10787 = vpop.f32.mrf.mxu0
      %v10788 = vadd.f32 %v10747, %v10787
      %v10789 = vpop.f32.mrf.mxu0
      %v10790 = vpop.f32.mrf.mxu0
      %10791 = vdwg.mxu0
      %10792 = vmatprep.subr.bf16.mxu0 0
      %10793 = vmatpush1.bf16.msra.mxu0 %v10610
      %10794 = vmatprep.subr.bf16.mxu0 0
      %10795 = vmatpush1.bf16.msra.mxu0 %v10607
      %10796 = vmatprep.subr.bf16.mxu0 0
      %10797 = vmatpush1.bf16.msra.mxu0 %v10604
      %10798 = vmatprep.subr.bf16.mxu0 0
      %10799 = vmatpush1.bf16.msra.mxu0 %v10601
      %10800 = vmatprep.subr.bf16.mxu0 0
      %10801 = vmatpush1.bf16.msra.mxu0 %v10598
      %10802 = vmatprep.subr.bf16.mxu0 0
      %10803 = vmatpush1.bf16.msra.mxu0 %v10595
      %10804 = vmatprep.subr.bf16.mxu0 0
      %10805 = vmatpush1.bf16.msra.mxu0 %v10592
      %10806 = vmatprep.subr.bf16.mxu0 0
      %10807 = vmatpush1.bf16.msra.mxu0 %v10589
      %10808 = vmatprep.subr.bf16.mxu0 0
      %10809 = vmatpush2.bf16.msra.mxu0 %v10634
      %10810 = vmatprep.subr.bf16.mxu0 0
      %10811 = vmatpush2.bf16.msra.mxu0 %v10631
      %10812 = vmatprep.subr.bf16.mxu0 0
      %10813 = vmatpush2.bf16.msra.mxu0 %v10628
      %10814 = vmatprep.subr.bf16.mxu0 0
      %10815 = vmatpush2.bf16.msra.mxu0 %v10625
      %10816 = vmatprep.subr.bf16.mxu0 0
      %10817 = vmatpush2.bf16.msra.mxu0 %v10622
      %10818 = vmatprep.subr.bf16.mxu0 0
      %10819 = vmatpush2.bf16.msra.mxu0 %v10619
      %10820 = vmatprep.subr.bf16.mxu0 0
      %10821 = vmatpush2.bf16.msra.mxu0 %v10616
      %10822 = vmatprep.subr.bf16.mxu0 0
      %10823 = vmatpush2.bf16.msra.mxu0 %v10613
      %10824 = vmatprep.mubr.bf16.mxu0 %v10383
      %10825 = vmatmul.mubr.bf16.gmra.mxu0 %v10382
      %v10826 = vpop.f32.mrf.mxu0
      %v10827 = vadd.f32 %v10374, %v10826
      %v10828 = vpop.f32.mrf.mxu0
      %v10829 = vpop.f32.mrf.mxu0
      %v10830 = vpop.f32.mrf.mxu0
      %10831 = vdwg.mxu0
      %10832 = vmatprep.subr.bf16.mxu0 0
      %10833 = vmatpush1.bf16.msra.mxu0 0
      %10834 = vmatprep.subr.bf16.mxu0 0
      %10835 = vmatpush1.bf16.msra.mxu0 0
      %10836 = vmatprep.subr.bf16.mxu0 0
      %10837 = vmatpush1.bf16.msra.mxu0 0
      %10838 = vmatprep.subr.bf16.mxu0 0
      %10839 = vmatpush1.bf16.msra.mxu0 0
      %10840 = vmatprep.subr.bf16.mxu0 0
      %10841 = vmatpush1.bf16.msra.mxu0 %v10646
      %10842 = vmatprep.subr.bf16.mxu0 0
      %10843 = vmatpush1.bf16.msra.mxu0 %v10643
      %10844 = vmatprep.subr.bf16.mxu0 0
      %10845 = vmatpush1.bf16.msra.mxu0 %v10640
      %10846 = vmatprep.subr.bf16.mxu0 0
      %10847 = vmatpush1.bf16.msra.mxu0 %v10637
      %10848 = vmatprep.subr.bf16.mxu0 0
      %10849 = vmatpush2.bf16.msra.mxu0 0
      %10850 = vmatprep.subr.bf16.mxu0 0
      %10851 = vmatpush2.bf16.msra.mxu0 0
      %10852 = vmatprep.subr.bf16.mxu0 0
      %10853 = vmatpush2.bf16.msra.mxu0 0
      %10854 = vmatprep.subr.bf16.mxu0 0
      %10855 = vmatpush2.bf16.msra.mxu0 0
      %10856 = vmatprep.subr.bf16.mxu0 0
      %10857 = vmatpush2.bf16.msra.mxu0 0
      %10858 = vmatprep.subr.bf16.mxu0 0
      %10859 = vmatpush2.bf16.msra.mxu0 0
      %10860 = vmatprep.subr.bf16.mxu0 0
      %10861 = vmatpush2.bf16.msra.mxu0 0
      %10862 = vmatprep.subr.bf16.mxu0 0
      %10863 = vmatpush2.bf16.msra.mxu0 0
      %10864 = vmatprep.mubr.bf16.mxu0 0
      %10865 = vmatmul.mubr.bf16.gmra.mxu0 %v10708
      %v10866 = vpop.f32.mrf.mxu0
      %v10867 = vadd.f32 %v10827, %v10866
      %v10868 = vpop.f32.mrf.mxu0
      %v10869 = vpop.f32.mrf.mxu0
      %v10870 = vpop.f32.mrf.mxu0
      %10871 = vdwg.mxu0
      %v10872 = vadd.f32 %v10786, %v9703
      %v10873 = vadd.f32 %v10788, %v9707
      %v10874 = vadd.f32 %v10867, %v9711
      %vm10875 = vcmp.gt.f32.partialorder %v10872, 0.0
      %vm10876 = vcmp.gt.f32.partialorder %v10873, 0.0
      %vm10877 = vcmp.gt.f32.partialorder %v10874, 0.0
      %v10878 = vmin.f32 %v10872, 0.0
      %v10879 = vmin.f32 %v10873, 0.0
      %v10880 = vmin.f32 %v10874, 0.0
      %v10881 = vmul.f32 %v10878, 1.442695
      %v10882 = vpow.pop %v10881
      %v10883 = vmul.f32 %v10879, 1.442695
      %v10884 = vpow.pop %v10883
      %v10885 = vmul.f32 %v10880, 1.442695
      %v10886 = vpow.pop %v10885
      %v10887 = vsub.f32 %v10882, 1.0
      %v10888 = vsub.f32 %v10884, 1.0
      %v10889 = vsub.f32 %v10886, 1.0
      %v10890 = vsel %vm10875, %v10872, %v10887
      %v10891 = vsel %vm10876, %v10873, %v10888
      %v10892 = vsel %vm10877, %v10874, %v10889
      %v10893 = vsel %vm1882, %v9733, 0.0
      %v10894 = vsel %vm1882, %v9734, 0.0
      %v10895 = vsel %vm1882, %v9735, 0.0
      %v10899 = vrot.slane %v10890, 7
      %v10900 = vrot.slane %v10891, 7
      %v10901 = vrot.slane %v10892, 7
      %v10905 = vsel %vm1895, 0.0, %v10899
      %v10906 = vsel %vm1895, 0.0, %v10900
      %v10907 = vsel %vm1895, 0.0, %v10901
      %s10908 = scalar_lea.vmem %s10, 160
      %v10909 = vld [vmem:[%s10908] sm:$0xf]
      %v10910 = vld [vmem:[%s10908 + $0x4] sm:$0xf]
      %v10911 = vld [vmem:[%s10908 + $0x8] sm:$0xf]
      %v10912 = vld [vmem:[%s10908 + $0xc] sm:$0xf]
      %v10913 = vld [vmem:[%s10908 + $0x10] sm:$0xf]
      %v10914 = vld [vmem:[%s10908 + $0x14] sm:$0xf]
      %v10915 = vld [vmem:[%s10908 + $0x18] sm:$0xf]
      %v10916 = vld [vmem:[%s10908 + $0x1c] sm:$0xf]
      %v10917 = vld [vmem:[%s10908 + $0x20] sm:$0xf]
      %v10918 = vld [vmem:[%s10908 + $0x24] sm:$0xf]
      %v10919 = vld [vmem:[%s10908 + $0x28] sm:$0xf]
      %v10920 = vld [vmem:[%s10908 + $0x2c] sm:$0xf]
      %v10921 = vld [vmem:[%s10908 + $0x30] sm:$0xf]
      %v10922 = vld [vmem:[%s10908 + $0x34] sm:$0xf]
      %v10923 = vld [vmem:[%s10908 + $0x38] sm:$0xf]
      %v10924 = vld [vmem:[%s10908 + $0x3c] sm:$0xf]
      %v10925 = vld [vmem:[%s10908 + $0x40] sm:$0xf]
      %v10926 = vld [vmem:[%s10908 + $0x44] sm:$0xf]
      %v10927 = vld [vmem:[%s10908 + $0x48] sm:$0xf]
      %v10928 = vld [vmem:[%s10908 + $0x4c] sm:$0xf]
      %v10929 = vld [vmem:[%s10908 + $0x50] sm:$0xf]
      %v10930 = vld [vmem:[%s10908 + $0x54] sm:$0xf]
      %v10931 = vld [vmem:[%s10908 + $0x58] sm:$0xf]
      %v10932 = vld [vmem:[%s10908 + $0x5c] sm:$0xf]
      %v10933 = vld [vmem:[%s10908 + $0x60] sm:$0xf]
      %v10934 = vld [vmem:[%s10908 + $0x64] sm:$0xf]
      %v10935 = vld [vmem:[%s10908 + $0x68] sm:$0xf]
      %v10936 = vld [vmem:[%s10908 + $0x6c] sm:$0xf]
      %v10937 = vld [vmem:[%s10908 + $0x70] sm:$0xf]
      %v10938 = vld [vmem:[%s10908 + $0x74] sm:$0xf]
      %v10939 = vld [vmem:[%s10908 + $0x78] sm:$0xf]
      %v10940 = vld [vmem:[%s10908 + $0x7c] sm:$0xf]
      %v10941 = vld [vmem:[%s10908 + $0x80] sm:$0xf]
      %v10942 = vld [vmem:[%s10908 + $0x84] sm:$0xf]
      %v10943 = vld [vmem:[%s10908 + $0x88] sm:$0xf]
      %v10944 = vld [vmem:[%s10908 + $0x8c] sm:$0xf]
      %v10945 = vld [vmem:[%s10908 + $0x90] sm:$0xf]
      %v10946 = vld [vmem:[%s10908 + $0x94] sm:$0xf]
      %v10947 = vld [vmem:[%s10908 + $0x98] sm:$0xf]
      %v10948 = vld [vmem:[%s10908 + $0x9c] sm:$0xf]
      %v10949 = vpack.c.bf16 %v10893, %v10893
      %v10950 = vpack.c.bf16 %v10894, %v10894
      %v10951 = vpack.c.bf16 %v10895, %v10895
      %s10952 = scalar_lea.vmem %s10, 480
      %v10953 = vld [vmem:[%s10952] sm:$0xf]
      %v10954 = vld [vmem:[%s10952 + $0x4] sm:$0xf]
      %v10955 = vld [vmem:[%s10952 + $0x8] sm:$0xf]
      %v10956 = vld [vmem:[%s10952 + $0xc] sm:$0xf]
      %v10957 = vld [vmem:[%s10952 + $0x10] sm:$0xf]
      %v10958 = vld [vmem:[%s10952 + $0x14] sm:$0xf]
      %v10959 = vld [vmem:[%s10952 + $0x18] sm:$0xf]
      %v10960 = vld [vmem:[%s10952 + $0x1c] sm:$0xf]
      %v10961 = vld [vmem:[%s10952 + $0x20] sm:$0xf]
      %v10962 = vld [vmem:[%s10952 + $0x24] sm:$0xf]
      %v10963 = vld [vmem:[%s10952 + $0x28] sm:$0xf]
      %v10964 = vld [vmem:[%s10952 + $0x2c] sm:$0xf]
      %v10965 = vld [vmem:[%s10952 + $0x30] sm:$0xf]
      %v10966 = vld [vmem:[%s10952 + $0x34] sm:$0xf]
      %v10967 = vld [vmem:[%s10952 + $0x38] sm:$0xf]
      %v10968 = vld [vmem:[%s10952 + $0x3c] sm:$0xf]
      %v10969 = vld [vmem:[%s10952 + $0x40] sm:$0xf]
      %v10970 = vld [vmem:[%s10952 + $0x44] sm:$0xf]
      %v10971 = vld [vmem:[%s10952 + $0x48] sm:$0xf]
      %v10972 = vld [vmem:[%s10952 + $0x4c] sm:$0xf]
      %v10973 = vld [vmem:[%s10952 + $0x50] sm:$0xf]
      %v10974 = vld [vmem:[%s10952 + $0x54] sm:$0xf]
      %v10975 = vld [vmem:[%s10952 + $0x58] sm:$0xf]
      %v10976 = vld [vmem:[%s10952 + $0x5c] sm:$0xf]
      %v10977 = vld [vmem:[%s10952 + $0x60] sm:$0xf]
      %v10978 = vld [vmem:[%s10952 + $0x64] sm:$0xf]
      %v10979 = vld [vmem:[%s10952 + $0x68] sm:$0xf]
      %v10980 = vld [vmem:[%s10952 + $0x6c] sm:$0xf]
      %v10981 = vld [vmem:[%s10952 + $0x70] sm:$0xf]
      %v10982 = vld [vmem:[%s10952 + $0x74] sm:$0xf]
      %v10983 = vld [vmem:[%s10952 + $0x78] sm:$0xf]
      %v10984 = vld [vmem:[%s10952 + $0x7c] sm:$0xf]
      %v10985 = vld [vmem:[%s10952 + $0x80] sm:$0xf]
      %v10986 = vld [vmem:[%s10952 + $0x84] sm:$0xf]
      %v10987 = vld [vmem:[%s10952 + $0x88] sm:$0xf]
      %v10988 = vld [vmem:[%s10952 + $0x8c] sm:$0xf]
      %v10989 = vld [vmem:[%s10952 + $0x90] sm:$0xf]
      %v10990 = vld [vmem:[%s10952 + $0x94] sm:$0xf]
      %v10991 = vld [vmem:[%s10952 + $0x98] sm:$0xf]
      %v10992 = vld [vmem:[%s10952 + $0x9c] sm:$0xf]
      %v10993 = vpack.c.bf16 %v10905, %v10905
      %v10994 = vpack.c.bf16 %v10906, %v10906
      %v10995 = vpack.c.bf16 %v10907, %v10907
      %v11036 = vunpack.c.l.b16 %v10953
      %v11037 = vunpack.c.l.b16 %v10954
      %v11038 = vunpack.c.l.b16 %v10955
      %v11039 = vunpack.c.l.b16 %v10956
      %v11040 = vunpack.c.l.b16 %v10957
      %v11041 = vunpack.c.l.b16 %v10958
      %v11042 = vunpack.c.l.b16 %v10959
      %v11043 = vunpack.c.l.b16 %v10960
      %v11044 = vunpack.c.l.b16 %v10961
      %v11045 = vunpack.c.l.b16 %v10962
      %v11046 = vunpack.c.l.b16 %v10963
      %v11047 = vunpack.c.l.b16 %v10964
      %v11048 = vunpack.c.l.b16 %v10965
      %v11049 = vunpack.c.l.b16 %v10966
      %v11050 = vunpack.c.l.b16 %v10967
      %v11051 = vunpack.c.l.b16 %v10968
      %v11052 = vunpack.c.l.b16 %v10969
      %v11053 = vunpack.c.l.b16 %v10970
      %v11054 = vunpack.c.l.b16 %v10971
      %v11055 = vunpack.c.l.b16 %v10972
      %v11056 = vunpack.c.l.b16 %v10973
      %v11057 = vunpack.c.l.b16 %v10974
      %v11058 = vunpack.c.l.b16 %v10975
      %v11059 = vunpack.c.l.b16 %v10976
      %v11060 = vunpack.c.l.b16 %v10977
      %v11061 = vunpack.c.l.b16 %v10978
      %v11062 = vunpack.c.l.b16 %v10979
      %v11063 = vunpack.c.l.b16 %v10980
      %v11064 = vunpack.c.l.b16 %v10981
      %v11065 = vunpack.c.l.b16 %v10982
      %v11066 = vunpack.c.l.b16 %v10983
      %v11067 = vunpack.c.l.b16 %v10984
      %v11068 = vunpack.c.l.b16 %v10985
      %v11069 = vunpack.c.l.b16 %v10986
      %v11070 = vunpack.c.l.b16 %v10987
      %v11071 = vunpack.c.l.b16 %v10988
      %v11072 = vunpack.c.l.b16 %v10989
      %v11073 = vunpack.c.l.b16 %v10990
      %v11074 = vunpack.c.l.b16 %v10991
      %v11075 = vunpack.c.l.b16 %v10992
      %v11076 = vpack.c.b16 %v11037, %v11036
      %v11077 = vpack.c.b16 %v11039, %v11038
      %v11078 = vpack.c.b16 %v11041, %v11040
      %v11079 = vpack.c.b16 %v11043, %v11042
      %v11080 = vpack.c.b16 %v11045, %v11044
      %v11081 = vpack.c.b16 %v11047, %v11046
      %v11082 = vpack.c.b16 %v11049, %v11048
      %v11083 = vpack.c.b16 %v11051, %v11050
      %v11084 = vpack.c.b16 %v11053, %v11052
      %v11085 = vpack.c.b16 %v11055, %v11054
      %v11086 = vpack.c.b16 %v11057, %v11056
      %v11087 = vpack.c.b16 %v11059, %v11058
      %v11088 = vpack.c.b16 %v11061, %v11060
      %v11089 = vpack.c.b16 %v11063, %v11062
      %v11090 = vpack.c.b16 %v11065, %v11064
      %v11091 = vpack.c.b16 %v11067, %v11066
      %v11092 = vpack.c.b16 %v11069, %v11068
      %v11093 = vpack.c.b16 %v11071, %v11070
      %v11094 = vpack.c.b16 %v11073, %v11072
      %v11095 = vpack.c.b16 %v11075, %v11074
      %v11117 = vsel %vm2386, %v10995, 0
      %11119 = vmatprep.subr.bf16.mxu0 0
      %11120 = vmatpush1.bf16.msra.mxu0 %v11083
      %11121 = vmatprep.subr.bf16.mxu0 0
      %11122 = vmatpush1.bf16.msra.mxu0 %v11082
      %11123 = vmatprep.subr.bf16.mxu0 0
      %11124 = vmatpush1.bf16.msra.mxu0 %v11081
      %11125 = vmatprep.subr.bf16.mxu0 0
      %11126 = vmatpush1.bf16.msra.mxu0 %v11080
      %11127 = vmatprep.subr.bf16.mxu0 0
      %11128 = vmatpush1.bf16.msra.mxu0 %v11079
      %11129 = vmatprep.subr.bf16.mxu0 0
      %11130 = vmatpush1.bf16.msra.mxu0 %v11078
      %11131 = vmatprep.subr.bf16.mxu0 0
      %11132 = vmatpush1.bf16.msra.mxu0 %v11077
      %11133 = vmatprep.subr.bf16.mxu0 0
      %11134 = vmatpush1.bf16.msra.mxu0 %v11076
      %11135 = vmatprep.subr.bf16.mxu0 0
      %11136 = vmatpush2.bf16.msra.mxu0 %v11091
      %11137 = vmatprep.subr.bf16.mxu0 0
      %11138 = vmatpush2.bf16.msra.mxu0 %v11090
      %11139 = vmatprep.subr.bf16.mxu0 0
      %11140 = vmatpush2.bf16.msra.mxu0 %v11089
      %11141 = vmatprep.subr.bf16.mxu0 0
      %11142 = vmatpush2.bf16.msra.mxu0 %v11088
      %11143 = vmatprep.subr.bf16.mxu0 0
      %11144 = vmatpush2.bf16.msra.mxu0 %v11087
      %11145 = vmatprep.subr.bf16.mxu0 0
      %11146 = vmatpush2.bf16.msra.mxu0 %v11086
      %11147 = vmatprep.subr.bf16.mxu0 0
      %11148 = vmatpush2.bf16.msra.mxu0 %v11085
      %11149 = vmatprep.subr.bf16.mxu0 0
      %11150 = vmatpush2.bf16.msra.mxu0 %v11084
      %11151 = vmatprep.mubr.bf16.mxu0 %v10994
      %11152 = vmatmul.mubr.bf16.gmra.mxu0 %v10993
      %v11153 = vpop.f32.mrf.mxu0
      %v11154 = vadd.f32 0.0, %v11153
      %v11155 = vpop.f32.mrf.mxu0
      %v11156 = vpop.f32.mrf.mxu0
      %v11157 = vpop.f32.mrf.mxu0
      %11158 = vdwg.mxu0
      %11159 = vmatprep.subr.bf16.mxu0 0
      %11160 = vmatpush1.bf16.msra.mxu0 0
      %11161 = vmatprep.subr.bf16.mxu0 0
      %11162 = vmatpush1.bf16.msra.mxu0 0
      %11163 = vmatprep.subr.bf16.mxu0 0
      %11164 = vmatpush1.bf16.msra.mxu0 0
      %11165 = vmatprep.subr.bf16.mxu0 0
      %11166 = vmatpush1.bf16.msra.mxu0 0
      %11167 = vmatprep.subr.bf16.mxu0 0
      %11168 = vmatpush1.bf16.msra.mxu0 %v11095
      %11169 = vmatprep.subr.bf16.mxu0 0
      %11170 = vmatpush1.bf16.msra.mxu0 %v11094
      %11171 = vmatprep.subr.bf16.mxu0 0
      %11172 = vmatpush1.bf16.msra.mxu0 %v11093
      %11173 = vmatprep.subr.bf16.mxu0 0
      %11174 = vmatpush1.bf16.msra.mxu0 %v11092
      %11175 = vmatprep.subr.bf16.mxu0 0
      %11176 = vmatpush2.bf16.msra.mxu0 0
      %11177 = vmatprep.subr.bf16.mxu0 0
      %11178 = vmatpush2.bf16.msra.mxu0 0
      %11179 = vmatprep.subr.bf16.mxu0 0
      %11180 = vmatpush2.bf16.msra.mxu0 0
      %11181 = vmatprep.subr.bf16.mxu0 0
      %11182 = vmatpush2.bf16.msra.mxu0 0
      %11183 = vmatprep.subr.bf16.mxu0 0
      %11184 = vmatpush2.bf16.msra.mxu0 0
      %11185 = vmatprep.subr.bf16.mxu0 0
      %11186 = vmatpush2.bf16.msra.mxu0 0
      %11187 = vmatprep.subr.bf16.mxu0 0
      %11188 = vmatpush2.bf16.msra.mxu0 0
      %11189 = vmatprep.subr.bf16.mxu0 0
      %11190 = vmatpush2.bf16.msra.mxu0 0
      %11191 = vmatprep.mubr.bf16.mxu0 0
      %11192 = vmatmul.mubr.bf16.gmra.mxu0 %v11117
      %v11193 = vpop.f32.mrf.mxu0
      %v11194 = vadd.f32 %v11154, %v11193
      %v11195 = vpop.f32.mrf.mxu0
      %v11196 = vpop.f32.mrf.mxu0
      %v11197 = vpop.f32.mrf.mxu0
      %11198 = vdwg.mxu0
      %v11239 = vunpack.c.l.b16 %v10909
      %v11240 = vunpack.c.l.b16 %v10910
      %v11241 = vunpack.c.l.b16 %v10911
      %v11242 = vunpack.c.l.b16 %v10912
      %v11243 = vunpack.c.l.b16 %v10913
      %v11244 = vunpack.c.l.b16 %v10914
      %v11245 = vunpack.c.l.b16 %v10915
      %v11246 = vunpack.c.l.b16 %v10916
      %v11247 = vunpack.c.l.b16 %v10917
      %v11248 = vunpack.c.l.b16 %v10918
      %v11249 = vunpack.c.l.b16 %v10919
      %v11250 = vunpack.c.l.b16 %v10920
      %v11251 = vunpack.c.l.b16 %v10921
      %v11252 = vunpack.c.l.b16 %v10922
      %v11253 = vunpack.c.l.b16 %v10923
      %v11254 = vunpack.c.l.b16 %v10924
      %v11255 = vunpack.c.l.b16 %v10925
      %v11256 = vunpack.c.l.b16 %v10926
      %v11257 = vunpack.c.l.b16 %v10927
      %v11258 = vunpack.c.l.b16 %v10928
      %v11259 = vunpack.c.l.b16 %v10929
      %v11260 = vunpack.c.l.b16 %v10930
      %v11261 = vunpack.c.l.b16 %v10931
      %v11262 = vunpack.c.l.b16 %v10932
      %v11263 = vunpack.c.l.b16 %v10933
      %v11264 = vunpack.c.l.b16 %v10934
      %v11265 = vunpack.c.l.b16 %v10935
      %v11266 = vunpack.c.l.b16 %v10936
      %v11267 = vunpack.c.l.b16 %v10937
      %v11268 = vunpack.c.l.b16 %v10938
      %v11269 = vunpack.c.l.b16 %v10939
      %v11270 = vunpack.c.l.b16 %v10940
      %v11271 = vunpack.c.l.b16 %v10941
      %v11272 = vunpack.c.l.b16 %v10942
      %v11273 = vunpack.c.l.b16 %v10943
      %v11274 = vunpack.c.l.b16 %v10944
      %v11275 = vunpack.c.l.b16 %v10945
      %v11276 = vunpack.c.l.b16 %v10946
      %v11277 = vunpack.c.l.b16 %v10947
      %v11278 = vunpack.c.l.b16 %v10948
      %v11279 = vpack.c.b16 %v11240, %v11239
      %v11280 = vpack.c.b16 %v11242, %v11241
      %v11281 = vpack.c.b16 %v11244, %v11243
      %v11282 = vpack.c.b16 %v11246, %v11245
      %v11283 = vpack.c.b16 %v11248, %v11247
      %v11284 = vpack.c.b16 %v11250, %v11249
      %v11285 = vpack.c.b16 %v11252, %v11251
      %v11286 = vpack.c.b16 %v11254, %v11253
      %v11287 = vpack.c.b16 %v11256, %v11255
      %v11288 = vpack.c.b16 %v11258, %v11257
      %v11289 = vpack.c.b16 %v11260, %v11259
      %v11290 = vpack.c.b16 %v11262, %v11261
      %v11291 = vpack.c.b16 %v11264, %v11263
      %v11292 = vpack.c.b16 %v11266, %v11265
      %v11293 = vpack.c.b16 %v11268, %v11267
      %v11294 = vpack.c.b16 %v11270, %v11269
      %v11295 = vpack.c.b16 %v11272, %v11271
      %v11296 = vpack.c.b16 %v11274, %v11273
      %v11297 = vpack.c.b16 %v11276, %v11275
      %v11298 = vpack.c.b16 %v11278, %v11277
      %v11320 = vsel %vm2386, %v10951, 0
      %11322 = vmatprep.subr.bf16.mxu0 0
      %11323 = vmatpush1.bf16.msra.mxu0 %v11286
      %11324 = vmatprep.subr.bf16.mxu0 0
      %11325 = vmatpush1.bf16.msra.mxu0 %v11285
      %11326 = vmatprep.subr.bf16.mxu0 0
      %11327 = vmatpush1.bf16.msra.mxu0 %v11284
      %11328 = vmatprep.subr.bf16.mxu0 0
      %11329 = vmatpush1.bf16.msra.mxu0 %v11283
      %11330 = vmatprep.subr.bf16.mxu0 0
      %11331 = vmatpush1.bf16.msra.mxu0 %v11282
      %11332 = vmatprep.subr.bf16.mxu0 0
      %11333 = vmatpush1.bf16.msra.mxu0 %v11281
      %11334 = vmatprep.subr.bf16.mxu0 0
      %11335 = vmatpush1.bf16.msra.mxu0 %v11280
      %11336 = vmatprep.subr.bf16.mxu0 0
      %11337 = vmatpush1.bf16.msra.mxu0 %v11279
      %11338 = vmatprep.subr.bf16.mxu0 0
      %11339 = vmatpush2.bf16.msra.mxu0 %v11294
      %11340 = vmatprep.subr.bf16.mxu0 0
      %11341 = vmatpush2.bf16.msra.mxu0 %v11293
      %11342 = vmatprep.subr.bf16.mxu0 0
      %11343 = vmatpush2.bf16.msra.mxu0 %v11292
      %11344 = vmatprep.subr.bf16.mxu0 0
      %11345 = vmatpush2.bf16.msra.mxu0 %v11291
      %11346 = vmatprep.subr.bf16.mxu0 0
      %11347 = vmatpush2.bf16.msra.mxu0 %v11290
      %11348 = vmatprep.subr.bf16.mxu0 0
      %11349 = vmatpush2.bf16.msra.mxu0 %v11289
      %11350 = vmatprep.subr.bf16.mxu0 0
      %11351 = vmatpush2.bf16.msra.mxu0 %v11288
      %11352 = vmatprep.subr.bf16.mxu0 0
      %11353 = vmatpush2.bf16.msra.mxu0 %v11287
      %11354 = vmatprep.mubr.bf16.mxu0 %v10950
      %11355 = vmatmul.mubr.bf16.gmra.mxu0 %v10949
      %v11356 = vpop.f32.mrf.mxu0
      %v11357 = vadd.f32 %v11194, %v11356
      %v11358 = vpop.f32.mrf.mxu0
      %v11359 = vpop.f32.mrf.mxu0
      %v11360 = vpop.f32.mrf.mxu0
      %11361 = vdwg.mxu0
      %11362 = vmatprep.subr.bf16.mxu0 0
      %11363 = vmatpush1.bf16.msra.mxu0 0
      %11364 = vmatprep.subr.bf16.mxu0 0
      %11365 = vmatpush1.bf16.msra.mxu0 0
      %11366 = vmatprep.subr.bf16.mxu0 0
      %11367 = vmatpush1.bf16.msra.mxu0 0
      %11368 = vmatprep.subr.bf16.mxu0 0
      %11369 = vmatpush1.bf16.msra.mxu0 0
      %11370 = vmatprep.subr.bf16.mxu0 0
      %11371 = vmatpush1.bf16.msra.mxu0 %v11298
      %11372 = vmatprep.subr.bf16.mxu0 0
      %11373 = vmatpush1.bf16.msra.mxu0 %v11297
      %11374 = vmatprep.subr.bf16.mxu0 0
      %11375 = vmatpush1.bf16.msra.mxu0 %v11296
      %11376 = vmatprep.subr.bf16.mxu0 0
      %11377 = vmatpush1.bf16.msra.mxu0 %v11295
      %11378 = vmatprep.subr.bf16.mxu0 0
      %11379 = vmatpush2.bf16.msra.mxu0 0
      %11380 = vmatprep.subr.bf16.mxu0 0
      %11381 = vmatpush2.bf16.msra.mxu0 0
      %11382 = vmatprep.subr.bf16.mxu0 0
      %11383 = vmatpush2.bf16.msra.mxu0 0
      %11384 = vmatprep.subr.bf16.mxu0 0
      %11385 = vmatpush2.bf16.msra.mxu0 0
      %11386 = vmatprep.subr.bf16.mxu0 0
      %11387 = vmatpush2.bf16.msra.mxu0 0
      %11388 = vmatprep.subr.bf16.mxu0 0
      %11389 = vmatpush2.bf16.msra.mxu0 0
      %11390 = vmatprep.subr.bf16.mxu0 0
      %11391 = vmatpush2.bf16.msra.mxu0 0
      %11392 = vmatprep.subr.bf16.mxu0 0
      %11393 = vmatpush2.bf16.msra.mxu0 0
      %11394 = vmatprep.mubr.bf16.mxu0 0
      %11395 = vmatmul.mubr.bf16.gmra.mxu0 %v11320
      %v11396 = vpop.f32.mrf.mxu0
      %v11397 = vadd.f32 %v11357, %v11396
      %v11398 = vpop.f32.mrf.mxu0
      %v11399 = vpop.f32.mrf.mxu0
      %v11400 = vpop.f32.mrf.mxu0
      %11401 = vdwg.mxu0
      %v11402 = vld [vmem:[%s18] sm:$0x1]
      %v11404 = vlaneseq
      %v11405 = vshrl.u32 %v11404, 7
      %v11406 = vsub.s32 0, %v11405
      %v11407 = vrot.slane %v11402, %v11406
      %v11409 = vadd.f32 %v11397, %v11407
      %vm11410 = vcmask 520192
      %11411 = vst.msk [vmem:[%s652] sm:$0x1f] %vm11410, %v11409
      %v11412 = vld [vmem:[%s10] sm:$0xf]
      %v11413 = vld [vmem:[%s10 + $0x4] sm:$0xf]
      %v11414 = vld [vmem:[%s10 + $0x8] sm:$0xf]
      %v11415 = vld [vmem:[%s10 + $0xc] sm:$0xf]
      %v11416 = vld [vmem:[%s10 + $0x10] sm:$0xf]
      %v11417 = vld [vmem:[%s10 + $0x14] sm:$0xf]
      %v11418 = vld [vmem:[%s10 + $0x18] sm:$0xf]
      %v11419 = vld [vmem:[%s10 + $0x1c] sm:$0xf]
      %v11420 = vld [vmem:[%s10 + $0x20] sm:$0xf]
      %v11421 = vld [vmem:[%s10 + $0x24] sm:$0xf]
      %v11422 = vld [vmem:[%s10 + $0x28] sm:$0xf]
      %v11423 = vld [vmem:[%s10 + $0x2c] sm:$0xf]
      %v11424 = vld [vmem:[%s10 + $0x30] sm:$0xf]
      %v11425 = vld [vmem:[%s10 + $0x34] sm:$0xf]
      %v11426 = vld [vmem:[%s10 + $0x38] sm:$0xf]
      %v11427 = vld [vmem:[%s10 + $0x3c] sm:$0xf]
      %v11428 = vld [vmem:[%s10 + $0x40] sm:$0xf]
      %v11429 = vld [vmem:[%s10 + $0x44] sm:$0xf]
      %v11430 = vld [vmem:[%s10 + $0x48] sm:$0xf]
      %v11431 = vld [vmem:[%s10 + $0x4c] sm:$0xf]
      %v11432 = vld [vmem:[%s10 + $0x50] sm:$0xf]
      %v11433 = vld [vmem:[%s10 + $0x54] sm:$0xf]
      %v11434 = vld [vmem:[%s10 + $0x58] sm:$0xf]
      %v11435 = vld [vmem:[%s10 + $0x5c] sm:$0xf]
      %v11436 = vld [vmem:[%s10 + $0x60] sm:$0xf]
      %v11437 = vld [vmem:[%s10 + $0x64] sm:$0xf]
      %v11438 = vld [vmem:[%s10 + $0x68] sm:$0xf]
      %v11439 = vld [vmem:[%s10 + $0x6c] sm:$0xf]
      %v11440 = vld [vmem:[%s10 + $0x70] sm:$0xf]
      %v11441 = vld [vmem:[%s10 + $0x74] sm:$0xf]
      %v11442 = vld [vmem:[%s10 + $0x78] sm:$0xf]
      %v11443 = vld [vmem:[%s10 + $0x7c] sm:$0xf]
      %v11444 = vld [vmem:[%s10 + $0x80] sm:$0xf]
      %v11445 = vld [vmem:[%s10 + $0x84] sm:$0xf]
      %v11446 = vld [vmem:[%s10 + $0x88] sm:$0xf]
      %v11447 = vld [vmem:[%s10 + $0x8c] sm:$0xf]
      %v11448 = vld [vmem:[%s10 + $0x90] sm:$0xf]
      %v11449 = vld [vmem:[%s10 + $0x94] sm:$0xf]
      %v11450 = vld [vmem:[%s10 + $0x98] sm:$0xf]
      %v11451 = vld [vmem:[%s10 + $0x9c] sm:$0xf]
      %s11452 = scalar_lea.vmem %s10, 320
      %v11453 = vld [vmem:[%s11452] sm:$0xf]
      %v11454 = vld [vmem:[%s11452 + $0x4] sm:$0xf]
      %v11455 = vld [vmem:[%s11452 + $0x8] sm:$0xf]
      %v11456 = vld [vmem:[%s11452 + $0xc] sm:$0xf]
      %v11457 = vld [vmem:[%s11452 + $0x10] sm:$0xf]
      %v11458 = vld [vmem:[%s11452 + $0x14] sm:$0xf]
      %v11459 = vld [vmem:[%s11452 + $0x18] sm:$0xf]
      %v11460 = vld [vmem:[%s11452 + $0x1c] sm:$0xf]
      %v11461 = vld [vmem:[%s11452 + $0x20] sm:$0xf]
      %v11462 = vld [vmem:[%s11452 + $0x24] sm:$0xf]
      %v11463 = vld [vmem:[%s11452 + $0x28] sm:$0xf]
      %v11464 = vld [vmem:[%s11452 + $0x2c] sm:$0xf]
      %v11465 = vld [vmem:[%s11452 + $0x30] sm:$0xf]
      %v11466 = vld [vmem:[%s11452 + $0x34] sm:$0xf]
      %v11467 = vld [vmem:[%s11452 + $0x38] sm:$0xf]
      %v11468 = vld [vmem:[%s11452 + $0x3c] sm:$0xf]
      %v11469 = vld [vmem:[%s11452 + $0x40] sm:$0xf]
      %v11470 = vld [vmem:[%s11452 + $0x44] sm:$0xf]
      %v11471 = vld [vmem:[%s11452 + $0x48] sm:$0xf]
      %v11472 = vld [vmem:[%s11452 + $0x4c] sm:$0xf]
      %v11473 = vld [vmem:[%s11452 + $0x50] sm:$0xf]
      %v11474 = vld [vmem:[%s11452 + $0x54] sm:$0xf]
      %v11475 = vld [vmem:[%s11452 + $0x58] sm:$0xf]
      %v11476 = vld [vmem:[%s11452 + $0x5c] sm:$0xf]
      %v11477 = vld [vmem:[%s11452 + $0x60] sm:$0xf]
      %v11478 = vld [vmem:[%s11452 + $0x64] sm:$0xf]
      %v11479 = vld [vmem:[%s11452 + $0x68] sm:$0xf]
      %v11480 = vld [vmem:[%s11452 + $0x6c] sm:$0xf]
      %v11481 = vld [vmem:[%s11452 + $0x70] sm:$0xf]
      %v11482 = vld [vmem:[%s11452 + $0x74] sm:$0xf]
      %v11483 = vld [vmem:[%s11452 + $0x78] sm:$0xf]
      %v11484 = vld [vmem:[%s11452 + $0x7c] sm:$0xf]
      %v11485 = vld [vmem:[%s11452 + $0x80] sm:$0xf]
      %v11486 = vld [vmem:[%s11452 + $0x84] sm:$0xf]
      %v11487 = vld [vmem:[%s11452 + $0x88] sm:$0xf]
      %v11488 = vld [vmem:[%s11452 + $0x8c] sm:$0xf]
      %v11489 = vld [vmem:[%s11452 + $0x90] sm:$0xf]
      %v11490 = vld [vmem:[%s11452 + $0x94] sm:$0xf]
      %v11491 = vld [vmem:[%s11452 + $0x98] sm:$0xf]
      %v11492 = vld [vmem:[%s11452 + $0x9c] sm:$0xf]
      %v11533 = vunpack.c.l.b16 %v11453
      %v11534 = vunpack.c.l.b16 %v11454
      %v11535 = vunpack.c.l.b16 %v11455
      %v11536 = vunpack.c.l.b16 %v11456
      %v11537 = vunpack.c.l.b16 %v11457
      %v11538 = vunpack.c.l.b16 %v11458
      %v11539 = vunpack.c.l.b16 %v11459
      %v11540 = vunpack.c.l.b16 %v11460
      %v11541 = vunpack.c.l.b16 %v11461
      %v11542 = vunpack.c.l.b16 %v11462
      %v11543 = vunpack.c.l.b16 %v11463
      %v11544 = vunpack.c.l.b16 %v11464
      %v11545 = vunpack.c.l.b16 %v11465
      %v11546 = vunpack.c.l.b16 %v11466
      %v11547 = vunpack.c.l.b16 %v11467
      %v11548 = vunpack.c.l.b16 %v11468
      %v11549 = vunpack.c.l.b16 %v11469
      %v11550 = vunpack.c.l.b16 %v11470
      %v11551 = vunpack.c.l.b16 %v11471
      %v11552 = vunpack.c.l.b16 %v11472
      %v11553 = vunpack.c.l.b16 %v11473
      %v11554 = vunpack.c.l.b16 %v11474
      %v11555 = vunpack.c.l.b16 %v11475
      %v11556 = vunpack.c.l.b16 %v11476
      %v11557 = vunpack.c.l.b16 %v11477
      %v11558 = vunpack.c.l.b16 %v11478
      %v11559 = vunpack.c.l.b16 %v11479
      %v11560 = vunpack.c.l.b16 %v11480
      %v11561 = vunpack.c.l.b16 %v11481
      %v11562 = vunpack.c.l.b16 %v11482
      %v11563 = vunpack.c.l.b16 %v11483
      %v11564 = vunpack.c.l.b16 %v11484
      %v11565 = vunpack.c.l.b16 %v11485
      %v11566 = vunpack.c.l.b16 %v11486
      %v11567 = vunpack.c.l.b16 %v11487
      %v11568 = vunpack.c.l.b16 %v11488
      %v11569 = vunpack.c.l.b16 %v11489
      %v11570 = vunpack.c.l.b16 %v11490
      %v11571 = vunpack.c.l.b16 %v11491
      %v11572 = vunpack.c.l.b16 %v11492
      %v11573 = vpack.c.b16 %v11534, %v11533
      %v11574 = vpack.c.b16 %v11536, %v11535
      %v11575 = vpack.c.b16 %v11538, %v11537
      %v11576 = vpack.c.b16 %v11540, %v11539
      %v11577 = vpack.c.b16 %v11542, %v11541
      %v11578 = vpack.c.b16 %v11544, %v11543
      %v11579 = vpack.c.b16 %v11546, %v11545
      %v11580 = vpack.c.b16 %v11548, %v11547
      %v11581 = vpack.c.b16 %v11550, %v11549
      %v11582 = vpack.c.b16 %v11552, %v11551
      %v11583 = vpack.c.b16 %v11554, %v11553
      %v11584 = vpack.c.b16 %v11556, %v11555
      %v11585 = vpack.c.b16 %v11558, %v11557
      %v11586 = vpack.c.b16 %v11560, %v11559
      %v11587 = vpack.c.b16 %v11562, %v11561
      %v11588 = vpack.c.b16 %v11564, %v11563
      %v11589 = vpack.c.b16 %v11566, %v11565
      %v11590 = vpack.c.b16 %v11568, %v11567
      %v11591 = vpack.c.b16 %v11570, %v11569
      %v11592 = vpack.c.b16 %v11572, %v11571
      %11613 = vmatprep.subr.bf16.mxu0 0
      %11614 = vmatpush1.bf16.msra.mxu0 %v11580
      %11615 = vmatprep.subr.bf16.mxu0 0
      %11616 = vmatpush1.bf16.msra.mxu0 %v11579
      %11617 = vmatprep.subr.bf16.mxu0 0
      %11618 = vmatpush1.bf16.msra.mxu0 %v11578
      %11619 = vmatprep.subr.bf16.mxu0 0
      %11620 = vmatpush1.bf16.msra.mxu0 %v11577
      %11621 = vmatprep.subr.bf16.mxu0 0
      %11622 = vmatpush1.bf16.msra.mxu0 %v11576
      %11623 = vmatprep.subr.bf16.mxu0 0
      %11624 = vmatpush1.bf16.msra.mxu0 %v11575
      %11625 = vmatprep.subr.bf16.mxu0 0
      %11626 = vmatpush1.bf16.msra.mxu0 %v11574
      %11627 = vmatprep.subr.bf16.mxu0 0
      %11628 = vmatpush1.bf16.msra.mxu0 %v11573
      %11629 = vmatprep.subr.bf16.mxu0 0
      %11630 = vmatpush2.bf16.msra.mxu0 %v11588
      %11631 = vmatprep.subr.bf16.mxu0 0
      %11632 = vmatpush2.bf16.msra.mxu0 %v11587
      %11633 = vmatprep.subr.bf16.mxu0 0
      %11634 = vmatpush2.bf16.msra.mxu0 %v11586
      %11635 = vmatprep.subr.bf16.mxu0 0
      %11636 = vmatpush2.bf16.msra.mxu0 %v11585
      %11637 = vmatprep.subr.bf16.mxu0 0
      %11638 = vmatpush2.bf16.msra.mxu0 %v11584
      %11639 = vmatprep.subr.bf16.mxu0 0
      %11640 = vmatpush2.bf16.msra.mxu0 %v11583
      %11641 = vmatprep.subr.bf16.mxu0 0
      %11642 = vmatpush2.bf16.msra.mxu0 %v11582
      %11643 = vmatprep.subr.bf16.mxu0 0
      %11644 = vmatpush2.bf16.msra.mxu0 %v11581
      %11645 = vmatprep.mubr.bf16.mxu0 %v10950
      %11646 = vmatmul.mubr.bf16.gmra.mxu0 %v10949
      %v11647 = vpop.f32.mrf.mxu0
      %v11648 = vadd.f32 0.0, %v11647
      %v11649 = vpop.f32.mrf.mxu0
      %v11650 = vpop.f32.mrf.mxu0
      %v11651 = vpop.f32.mrf.mxu0
      %11652 = vdwg.mxu0
      %11653 = vmatprep.subr.bf16.mxu0 0
      %11654 = vmatpush1.bf16.msra.mxu0 0
      %11655 = vmatprep.subr.bf16.mxu0 0
      %11656 = vmatpush1.bf16.msra.mxu0 0
      %11657 = vmatprep.subr.bf16.mxu0 0
      %11658 = vmatpush1.bf16.msra.mxu0 0
      %11659 = vmatprep.subr.bf16.mxu0 0
      %11660 = vmatpush1.bf16.msra.mxu0 0
      %11661 = vmatprep.subr.bf16.mxu0 0
      %11662 = vmatpush1.bf16.msra.mxu0 %v11592
      %11663 = vmatprep.subr.bf16.mxu0 0
      %11664 = vmatpush1.bf16.msra.mxu0 %v11591
      %11665 = vmatprep.subr.bf16.mxu0 0
      %11666 = vmatpush1.bf16.msra.mxu0 %v11590
      %11667 = vmatprep.subr.bf16.mxu0 0
      %11668 = vmatpush1.bf16.msra.mxu0 %v11589
      %11669 = vmatprep.subr.bf16.mxu0 0
      %11670 = vmatpush2.bf16.msra.mxu0 0
      %11671 = vmatprep.subr.bf16.mxu0 0
      %11672 = vmatpush2.bf16.msra.mxu0 0
      %11673 = vmatprep.subr.bf16.mxu0 0
      %11674 = vmatpush2.bf16.msra.mxu0 0
      %11675 = vmatprep.subr.bf16.mxu0 0
      %11676 = vmatpush2.bf16.msra.mxu0 0
      %11677 = vmatprep.subr.bf16.mxu0 0
      %11678 = vmatpush2.bf16.msra.mxu0 0
      %11679 = vmatprep.subr.bf16.mxu0 0
      %11680 = vmatpush2.bf16.msra.mxu0 0
      %11681 = vmatprep.subr.bf16.mxu0 0
      %11682 = vmatpush2.bf16.msra.mxu0 0
      %11683 = vmatprep.subr.bf16.mxu0 0
      %11684 = vmatpush2.bf16.msra.mxu0 0
      %11685 = vmatprep.mubr.bf16.mxu0 0
      %11686 = vmatmul.mubr.bf16.gmra.mxu0 %v11320
      %v11687 = vpop.f32.mrf.mxu0
      %v11688 = vadd.f32 %v11648, %v11687
      %v11689 = vpop.f32.mrf.mxu0
      %v11690 = vpop.f32.mrf.mxu0
      %v11691 = vpop.f32.mrf.mxu0
      %11692 = vdwg.mxu0
      %v11694 = vshrl.u32 %v10993, 16
      %v11696 = vshll.u32 %v10993, 16
      %v11698 = vrot.slane %v11696, 1
      %v11699 = vor.u32 %v11694, %v11698
      %v11701 = vshrl.u32 %v10994, 16
      %v11703 = vshll.u32 %v10994, 16
      %v11705 = vrot.slane %v11703, 1
      %v11706 = vor.u32 %v11701, %v11705
      %v11707 = vshrl.u32 %v10995, 16
      %v11709 = vshll.u32 %v10995, 16
      %v11711 = vrot.slane %v11709, 1
      %v11712 = vor.u32 %v11707, %v11711
      %v11755 = vunpack.c.l.b16 %v11412
      %v11756 = vunpack.c.l.b16 %v11413
      %v11757 = vunpack.c.l.b16 %v11414
      %v11758 = vunpack.c.l.b16 %v11415
      %v11759 = vunpack.c.l.b16 %v11416
      %v11760 = vunpack.c.l.b16 %v11417
      %v11761 = vunpack.c.l.b16 %v11418
      %v11762 = vunpack.c.l.b16 %v11419
      %v11763 = vunpack.c.l.b16 %v11420
      %v11764 = vunpack.c.l.b16 %v11421
      %v11765 = vunpack.c.l.b16 %v11422
      %v11766 = vunpack.c.l.b16 %v11423
      %v11767 = vunpack.c.l.b16 %v11424
      %v11768 = vunpack.c.l.b16 %v11425
      %v11769 = vunpack.c.l.b16 %v11426
      %v11770 = vunpack.c.l.b16 %v11427
      %v11771 = vunpack.c.l.b16 %v11428
      %v11772 = vunpack.c.l.b16 %v11429
      %v11773 = vunpack.c.l.b16 %v11430
      %v11774 = vunpack.c.l.b16 %v11431
      %v11775 = vunpack.c.l.b16 %v11432
      %v11776 = vunpack.c.l.b16 %v11433
      %v11777 = vunpack.c.l.b16 %v11434
      %v11778 = vunpack.c.l.b16 %v11435
      %v11779 = vunpack.c.l.b16 %v11436
      %v11780 = vunpack.c.l.b16 %v11437
      %v11781 = vunpack.c.l.b16 %v11438
      %v11782 = vunpack.c.l.b16 %v11439
      %v11783 = vunpack.c.l.b16 %v11440
      %v11784 = vunpack.c.l.b16 %v11441
      %v11785 = vunpack.c.l.b16 %v11442
      %v11786 = vunpack.c.l.b16 %v11443
      %v11787 = vunpack.c.l.b16 %v11444
      %v11788 = vunpack.c.l.b16 %v11445
      %v11789 = vunpack.c.l.b16 %v11446
      %v11790 = vunpack.c.l.b16 %v11447
      %v11791 = vunpack.c.l.b16 %v11448
      %v11792 = vunpack.c.l.b16 %v11449
      %v11793 = vunpack.c.l.b16 %v11450
      %v11794 = vunpack.c.l.b16 %v11451
      %v11795 = vpack.c.b16 %v11756, %v11755
      %v11796 = vpack.c.b16 %v11758, %v11757
      %v11797 = vpack.c.b16 %v11760, %v11759
      %v11798 = vpack.c.b16 %v11762, %v11761
      %v11799 = vpack.c.b16 %v11764, %v11763
      %v11800 = vpack.c.b16 %v11766, %v11765
      %v11801 = vpack.c.b16 %v11768, %v11767
      %v11802 = vpack.c.b16 %v11770, %v11769
      %v11803 = vpack.c.b16 %v11772, %v11771
      %v11804 = vpack.c.b16 %v11774, %v11773
      %v11805 = vpack.c.b16 %v11776, %v11775
      %v11806 = vpack.c.b16 %v11778, %v11777
      %v11807 = vpack.c.b16 %v11780, %v11779
      %v11808 = vpack.c.b16 %v11782, %v11781
      %v11809 = vpack.c.b16 %v11784, %v11783
      %v11810 = vpack.c.b16 %v11786, %v11785
      %v11811 = vpack.c.b16 %v11788, %v11787
      %v11812 = vpack.c.b16 %v11790, %v11789
      %v11813 = vpack.c.b16 %v11792, %v11791
      %v11814 = vpack.c.b16 %v11794, %v11793
      %v11836 = vsel %vm2386, %v11712, 0
      %11838 = vmatprep.subr.bf16.mxu0 0
      %11839 = vmatpush1.bf16.msra.mxu0 %v11802
      %11840 = vmatprep.subr.bf16.mxu0 0
      %11841 = vmatpush1.bf16.msra.mxu0 %v11801
      %11842 = vmatprep.subr.bf16.mxu0 0
      %11843 = vmatpush1.bf16.msra.mxu0 %v11800
      %11844 = vmatprep.subr.bf16.mxu0 0
      %11845 = vmatpush1.bf16.msra.mxu0 %v11799
      %11846 = vmatprep.subr.bf16.mxu0 0
      %11847 = vmatpush1.bf16.msra.mxu0 %v11798
      %11848 = vmatprep.subr.bf16.mxu0 0
      %11849 = vmatpush1.bf16.msra.mxu0 %v11797
      %11850 = vmatprep.subr.bf16.mxu0 0
      %11851 = vmatpush1.bf16.msra.mxu0 %v11796
      %11852 = vmatprep.subr.bf16.mxu0 0
      %11853 = vmatpush1.bf16.msra.mxu0 %v11795
      %11854 = vmatprep.subr.bf16.mxu0 0
      %11855 = vmatpush2.bf16.msra.mxu0 %v11810
      %11856 = vmatprep.subr.bf16.mxu0 0
      %11857 = vmatpush2.bf16.msra.mxu0 %v11809
      %11858 = vmatprep.subr.bf16.mxu0 0
      %11859 = vmatpush2.bf16.msra.mxu0 %v11808
      %11860 = vmatprep.subr.bf16.mxu0 0
      %11861 = vmatpush2.bf16.msra.mxu0 %v11807
      %11862 = vmatprep.subr.bf16.mxu0 0
      %11863 = vmatpush2.bf16.msra.mxu0 %v11806
      %11864 = vmatprep.subr.bf16.mxu0 0
      %11865 = vmatpush2.bf16.msra.mxu0 %v11805
      %11866 = vmatprep.subr.bf16.mxu0 0
      %11867 = vmatpush2.bf16.msra.mxu0 %v11804
      %11868 = vmatprep.subr.bf16.mxu0 0
      %11869 = vmatpush2.bf16.msra.mxu0 %v11803
      %11870 = vmatprep.mubr.bf16.mxu0 %v11706
      %11871 = vmatmul.mubr.bf16.gmra.mxu0 %v11699
      %v11872 = vpop.f32.mrf.mxu0
      %v11873 = vadd.f32 %v11688, %v11872
      %v11874 = vpop.f32.mrf.mxu0
      %v11875 = vpop.f32.mrf.mxu0
      %v11876 = vpop.f32.mrf.mxu0
      %11877 = vdwg.mxu0
      %11878 = vmatprep.subr.bf16.mxu0 0
      %11879 = vmatpush1.bf16.msra.mxu0 0
      %11880 = vmatprep.subr.bf16.mxu0 0
      %11881 = vmatpush1.bf16.msra.mxu0 0
      %11882 = vmatprep.subr.bf16.mxu0 0
      %11883 = vmatpush1.bf16.msra.mxu0 0
      %11884 = vmatprep.subr.bf16.mxu0 0
      %11885 = vmatpush1.bf16.msra.mxu0 0
      %11886 = vmatprep.subr.bf16.mxu0 0
      %11887 = vmatpush1.bf16.msra.mxu0 %v11814
      %11888 = vmatprep.subr.bf16.mxu0 0
      %11889 = vmatpush1.bf16.msra.mxu0 %v11813
      %11890 = vmatprep.subr.bf16.mxu0 0
      %11891 = vmatpush1.bf16.msra.mxu0 %v11812
      %11892 = vmatprep.subr.bf16.mxu0 0
      %11893 = vmatpush1.bf16.msra.mxu0 %v11811
      %11894 = vmatprep.subr.bf16.mxu0 0
      %11895 = vmatpush2.bf16.msra.mxu0 0
      %11896 = vmatprep.subr.bf16.mxu0 0
      %11897 = vmatpush2.bf16.msra.mxu0 0
      %11898 = vmatprep.subr.bf16.mxu0 0
      %11899 = vmatpush2.bf16.msra.mxu0 0
      %11900 = vmatprep.subr.bf16.mxu0 0
      %11901 = vmatpush2.bf16.msra.mxu0 0
      %11902 = vmatprep.subr.bf16.mxu0 0
      %11903 = vmatpush2.bf16.msra.mxu0 0
      %11904 = vmatprep.subr.bf16.mxu0 0
      %11905 = vmatpush2.bf16.msra.mxu0 0
      %11906 = vmatprep.subr.bf16.mxu0 0
      %11907 = vmatpush2.bf16.msra.mxu0 0
      %11908 = vmatprep.subr.bf16.mxu0 0
      %11909 = vmatpush2.bf16.msra.mxu0 0
      %11910 = vmatprep.mubr.bf16.mxu0 0
      %11911 = vmatmul.mubr.bf16.gmra.mxu0 %v11836
      %v11912 = vpop.f32.mrf.mxu0
      %v11913 = vadd.f32 %v11873, %v11912
      %v11914 = vpop.f32.mrf.mxu0
      %v11915 = vpop.f32.mrf.mxu0
      %v11916 = vpop.f32.mrf.mxu0
      %11917 = vdwg.mxu0
      %v11918 = vld [vmem:[%s18] sm:$0x1]
      %v11920 = vlaneseq
      %v11921 = vshrl.u32 %v11920, 7
      %v11922 = vsub.s32 0, %v11921
      %v11923 = vrot.slane %v11918, %v11922
      %v11925 = vadd.f32 %v11913, %v11923
      %s11926 = scalar_lea.vmem %s652, 8
      %11927 = vst.msk [vmem:[%s11926] sm:$0x1f] %vm11410, %v11925
      %v11928 = vld [vmem:[%s10908] sm:$0xf]
      %v11929 = vld [vmem:[%s10908 + $0x4] sm:$0xf]
      %v11930 = vld [vmem:[%s10908 + $0x8] sm:$0xf]
      %v11931 = vld [vmem:[%s10908 + $0xc] sm:$0xf]
      %v11932 = vld [vmem:[%s10908 + $0x10] sm:$0xf]
      %v11933 = vld [vmem:[%s10908 + $0x14] sm:$0xf]
      %v11934 = vld [vmem:[%s10908 + $0x18] sm:$0xf]
      %v11935 = vld [vmem:[%s10908 + $0x1c] sm:$0xf]
      %v11936 = vld [vmem:[%s10908 + $0x20] sm:$0xf]
      %v11937 = vld [vmem:[%s10908 + $0x24] sm:$0xf]
      %v11938 = vld [vmem:[%s10908 + $0x28] sm:$0xf]
      %v11939 = vld [vmem:[%s10908 + $0x2c] sm:$0xf]
      %v11940 = vld [vmem:[%s10908 + $0x30] sm:$0xf]
      %v11941 = vld [vmem:[%s10908 + $0x34] sm:$0xf]
      %v11942 = vld [vmem:[%s10908 + $0x38] sm:$0xf]
      %v11943 = vld [vmem:[%s10908 + $0x3c] sm:$0xf]
      %v11944 = vld [vmem:[%s10908 + $0x40] sm:$0xf]
      %v11945 = vld [vmem:[%s10908 + $0x44] sm:$0xf]
      %v11946 = vld [vmem:[%s10908 + $0x48] sm:$0xf]
      %v11947 = vld [vmem:[%s10908 + $0x4c] sm:$0xf]
      %v11948 = vld [vmem:[%s10908 + $0x50] sm:$0xf]
      %v11949 = vld [vmem:[%s10908 + $0x54] sm:$0xf]
      %v11950 = vld [vmem:[%s10908 + $0x58] sm:$0xf]
      %v11951 = vld [vmem:[%s10908 + $0x5c] sm:$0xf]
      %v11952 = vld [vmem:[%s10908 + $0x60] sm:$0xf]
      %v11953 = vld [vmem:[%s10908 + $0x64] sm:$0xf]
      %v11954 = vld [vmem:[%s10908 + $0x68] sm:$0xf]
      %v11955 = vld [vmem:[%s10908 + $0x6c] sm:$0xf]
      %v11956 = vld [vmem:[%s10908 + $0x70] sm:$0xf]
      %v11957 = vld [vmem:[%s10908 + $0x74] sm:$0xf]
      %v11958 = vld [vmem:[%s10908 + $0x78] sm:$0xf]
      %v11959 = vld [vmem:[%s10908 + $0x7c] sm:$0xf]
      %v11960 = vld [vmem:[%s10908 + $0x80] sm:$0xf]
      %v11961 = vld [vmem:[%s10908 + $0x84] sm:$0xf]
      %v11962 = vld [vmem:[%s10908 + $0x88] sm:$0xf]
      %v11963 = vld [vmem:[%s10908 + $0x8c] sm:$0xf]
      %v11964 = vld [vmem:[%s10908 + $0x90] sm:$0xf]
      %v11965 = vld [vmem:[%s10908 + $0x94] sm:$0xf]
      %v11966 = vld [vmem:[%s10908 + $0x98] sm:$0xf]
      %v11967 = vld [vmem:[%s10908 + $0x9c] sm:$0xf]
      %v11968 = vld [vmem:[%s10952] sm:$0xf]
      %v11969 = vld [vmem:[%s10952 + $0x4] sm:$0xf]
      %v11970 = vld [vmem:[%s10952 + $0x8] sm:$0xf]
      %v11971 = vld [vmem:[%s10952 + $0xc] sm:$0xf]
      %v11972 = vld [vmem:[%s10952 + $0x10] sm:$0xf]
      %v11973 = vld [vmem:[%s10952 + $0x14] sm:$0xf]
      %v11974 = vld [vmem:[%s10952 + $0x18] sm:$0xf]
      %v11975 = vld [vmem:[%s10952 + $0x1c] sm:$0xf]
      %v11976 = vld [vmem:[%s10952 + $0x20] sm:$0xf]
      %v11977 = vld [vmem:[%s10952 + $0x24] sm:$0xf]
      %v11978 = vld [vmem:[%s10952 + $0x28] sm:$0xf]
      %v11979 = vld [vmem:[%s10952 + $0x2c] sm:$0xf]
      %v11980 = vld [vmem:[%s10952 + $0x30] sm:$0xf]
      %v11981 = vld [vmem:[%s10952 + $0x34] sm:$0xf]
      %v11982 = vld [vmem:[%s10952 + $0x38] sm:$0xf]
      %v11983 = vld [vmem:[%s10952 + $0x3c] sm:$0xf]
      %v11984 = vld [vmem:[%s10952 + $0x40] sm:$0xf]
      %v11985 = vld [vmem:[%s10952 + $0x44] sm:$0xf]
      %v11986 = vld [vmem:[%s10952 + $0x48] sm:$0xf]
      %v11987 = vld [vmem:[%s10952 + $0x4c] sm:$0xf]
      %v11988 = vld [vmem:[%s10952 + $0x50] sm:$0xf]
      %v11989 = vld [vmem:[%s10952 + $0x54] sm:$0xf]
      %v11990 = vld [vmem:[%s10952 + $0x58] sm:$0xf]
      %v11991 = vld [vmem:[%s10952 + $0x5c] sm:$0xf]
      %v11992 = vld [vmem:[%s10952 + $0x60] sm:$0xf]
      %v11993 = vld [vmem:[%s10952 + $0x64] sm:$0xf]
      %v11994 = vld [vmem:[%s10952 + $0x68] sm:$0xf]
      %v11995 = vld [vmem:[%s10952 + $0x6c] sm:$0xf]
      %v11996 = vld [vmem:[%s10952 + $0x70] sm:$0xf]
      %v11997 = vld [vmem:[%s10952 + $0x74] sm:$0xf]
      %v11998 = vld [vmem:[%s10952 + $0x78] sm:$0xf]
      %v11999 = vld [vmem:[%s10952 + $0x7c] sm:$0xf]
      %v12000 = vld [vmem:[%s10952 + $0x80] sm:$0xf]
      %v12001 = vld [vmem:[%s10952 + $0x84] sm:$0xf]
      %v12002 = vld [vmem:[%s10952 + $0x88] sm:$0xf]
      %v12003 = vld [vmem:[%s10952 + $0x8c] sm:$0xf]
      %v12004 = vld [vmem:[%s10952 + $0x90] sm:$0xf]
      %v12005 = vld [vmem:[%s10952 + $0x94] sm:$0xf]
      %v12006 = vld [vmem:[%s10952 + $0x98] sm:$0xf]
      %v12007 = vld [vmem:[%s10952 + $0x9c] sm:$0xf]
      %v12048 = vunpack.c.l.b16 %v11968
      %v12049 = vunpack.c.l.b16 %v11969
      %v12050 = vunpack.c.l.b16 %v11970
      %v12051 = vunpack.c.l.b16 %v11971
      %v12052 = vunpack.c.l.b16 %v11972
      %v12053 = vunpack.c.l.b16 %v11973
      %v12054 = vunpack.c.l.b16 %v11974
      %v12055 = vunpack.c.l.b16 %v11975
      %v12056 = vunpack.c.l.b16 %v11976
      %v12057 = vunpack.c.l.b16 %v11977
      %v12058 = vunpack.c.l.b16 %v11978
      %v12059 = vunpack.c.l.b16 %v11979
      %v12060 = vunpack.c.l.b16 %v11980
      %v12061 = vunpack.c.l.b16 %v11981
      %v12062 = vunpack.c.l.b16 %v11982
      %v12063 = vunpack.c.l.b16 %v11983
      %v12064 = vunpack.c.l.b16 %v11984
      %v12065 = vunpack.c.l.b16 %v11985
      %v12066 = vunpack.c.l.b16 %v11986
      %v12067 = vunpack.c.l.b16 %v11987
      %v12068 = vunpack.c.l.b16 %v11988
      %v12069 = vunpack.c.l.b16 %v11989
      %v12070 = vunpack.c.l.b16 %v11990
      %v12071 = vunpack.c.l.b16 %v11991
      %v12072 = vunpack.c.l.b16 %v11992
      %v12073 = vunpack.c.l.b16 %v11993
      %v12074 = vunpack.c.l.b16 %v11994
      %v12075 = vunpack.c.l.b16 %v11995
      %v12076 = vunpack.c.l.b16 %v11996
      %v12077 = vunpack.c.l.b16 %v11997
      %v12078 = vunpack.c.l.b16 %v11998
      %v12079 = vunpack.c.l.b16 %v11999
      %v12080 = vunpack.c.l.b16 %v12000
      %v12081 = vunpack.c.l.b16 %v12001
      %v12082 = vunpack.c.l.b16 %v12002
      %v12083 = vunpack.c.l.b16 %v12003
      %v12084 = vunpack.c.l.b16 %v12004
      %v12085 = vunpack.c.l.b16 %v12005
      %v12086 = vunpack.c.l.b16 %v12006
      %v12087 = vunpack.c.l.b16 %v12007
      %v12088 = vpack.c.b16 %v12049, %v12048
      %v12089 = vpack.c.b16 %v12051, %v12050
      %v12090 = vpack.c.b16 %v12053, %v12052
      %v12091 = vpack.c.b16 %v12055, %v12054
      %v12092 = vpack.c.b16 %v12057, %v12056
      %v12093 = vpack.c.b16 %v12059, %v12058
      %v12094 = vpack.c.b16 %v12061, %v12060
      %v12095 = vpack.c.b16 %v12063, %v12062
      %v12096 = vpack.c.b16 %v12065, %v12064
      %v12097 = vpack.c.b16 %v12067, %v12066
      %v12098 = vpack.c.b16 %v12069, %v12068
      %v12099 = vpack.c.b16 %v12071, %v12070
      %v12100 = vpack.c.b16 %v12073, %v12072
      %v12101 = vpack.c.b16 %v12075, %v12074
      %v12102 = vpack.c.b16 %v12077, %v12076
      %v12103 = vpack.c.b16 %v12079, %v12078
      %v12104 = vpack.c.b16 %v12081, %v12080
      %v12105 = vpack.c.b16 %v12083, %v12082
      %v12106 = vpack.c.b16 %v12085, %v12084
      %v12107 = vpack.c.b16 %v12087, %v12086
      %12128 = vmatprep.subr.bf16.mxu0 0
      %12129 = vmatpush1.bf16.msra.mxu0 %v12095
      %12130 = vmatprep.subr.bf16.mxu0 0
      %12131 = vmatpush1.bf16.msra.mxu0 %v12094
      %12132 = vmatprep.subr.bf16.mxu0 0
      %12133 = vmatpush1.bf16.msra.mxu0 %v12093
      %12134 = vmatprep.subr.bf16.mxu0 0
      %12135 = vmatpush1.bf16.msra.mxu0 %v12092
      %12136 = vmatprep.subr.bf16.mxu0 0
      %12137 = vmatpush1.bf16.msra.mxu0 %v12091
      %12138 = vmatprep.subr.bf16.mxu0 0
      %12139 = vmatpush1.bf16.msra.mxu0 %v12090
      %12140 = vmatprep.subr.bf16.mxu0 0
      %12141 = vmatpush1.bf16.msra.mxu0 %v12089
      %12142 = vmatprep.subr.bf16.mxu0 0
      %12143 = vmatpush1.bf16.msra.mxu0 %v12088
      %12144 = vmatprep.subr.bf16.mxu0 0
      %12145 = vmatpush2.bf16.msra.mxu0 %v12103
      %12146 = vmatprep.subr.bf16.mxu0 0
      %12147 = vmatpush2.bf16.msra.mxu0 %v12102
      %12148 = vmatprep.subr.bf16.mxu0 0
      %12149 = vmatpush2.bf16.msra.mxu0 %v12101
      %12150 = vmatprep.subr.bf16.mxu0 0
      %12151 = vmatpush2.bf16.msra.mxu0 %v12100
      %12152 = vmatprep.subr.bf16.mxu0 0
      %12153 = vmatpush2.bf16.msra.mxu0 %v12099
      %12154 = vmatprep.subr.bf16.mxu0 0
      %12155 = vmatpush2.bf16.msra.mxu0 %v12098
      %12156 = vmatprep.subr.bf16.mxu0 0
      %12157 = vmatpush2.bf16.msra.mxu0 %v12097
      %12158 = vmatprep.subr.bf16.mxu0 0
      %12159 = vmatpush2.bf16.msra.mxu0 %v12096
      %12160 = vmatprep.mubr.bf16.mxu0 %v10950
      %12161 = vmatmul.mubr.bf16.gmra.mxu0 %v10949
      %v12162 = vpop.f32.mrf.mxu0
      %v12163 = vadd.f32 0.0, %v12162
      %v12164 = vpop.f32.mrf.mxu0
      %v12165 = vpop.f32.mrf.mxu0
      %v12166 = vpop.f32.mrf.mxu0
      %12167 = vdwg.mxu0
      %12168 = vmatprep.subr.bf16.mxu0 0
      %12169 = vmatpush1.bf16.msra.mxu0 0
      %12170 = vmatprep.subr.bf16.mxu0 0
      %12171 = vmatpush1.bf16.msra.mxu0 0
      %12172 = vmatprep.subr.bf16.mxu0 0
      %12173 = vmatpush1.bf16.msra.mxu0 0
      %12174 = vmatprep.subr.bf16.mxu0 0
      %12175 = vmatpush1.bf16.msra.mxu0 0
      %12176 = vmatprep.subr.bf16.mxu0 0
      %12177 = vmatpush1.bf16.msra.mxu0 %v12107
      %12178 = vmatprep.subr.bf16.mxu0 0
      %12179 = vmatpush1.bf16.msra.mxu0 %v12106
      %12180 = vmatprep.subr.bf16.mxu0 0
      %12181 = vmatpush1.bf16.msra.mxu0 %v12105
      %12182 = vmatprep.subr.bf16.mxu0 0
      %12183 = vmatpush1.bf16.msra.mxu0 %v12104
      %12184 = vmatprep.subr.bf16.mxu0 0
      %12185 = vmatpush2.bf16.msra.mxu0 0
      %12186 = vmatprep.subr.bf16.mxu0 0
      %12187 = vmatpush2.bf16.msra.mxu0 0
      %12188 = vmatprep.subr.bf16.mxu0 0
      %12189 = vmatpush2.bf16.msra.mxu0 0
      %12190 = vmatprep.subr.bf16.mxu0 0
      %12191 = vmatpush2.bf16.msra.mxu0 0
      %12192 = vmatprep.subr.bf16.mxu0 0
      %12193 = vmatpush2.bf16.msra.mxu0 0
      %12194 = vmatprep.subr.bf16.mxu0 0
      %12195 = vmatpush2.bf16.msra.mxu0 0
      %12196 = vmatprep.subr.bf16.mxu0 0
      %12197 = vmatpush2.bf16.msra.mxu0 0
      %12198 = vmatprep.subr.bf16.mxu0 0
      %12199 = vmatpush2.bf16.msra.mxu0 0
      %12200 = vmatprep.mubr.bf16.mxu0 0
      %12201 = vmatmul.mubr.bf16.gmra.mxu0 %v11320
      %v12202 = vpop.f32.mrf.mxu0
      %v12203 = vadd.f32 %v12163, %v12202
      %v12204 = vpop.f32.mrf.mxu0
      %v12205 = vpop.f32.mrf.mxu0
      %v12206 = vpop.f32.mrf.mxu0
      %12207 = vdwg.mxu0
      %v12248 = vunpack.c.l.b16 %v11928
      %v12249 = vunpack.c.l.b16 %v11929
      %v12250 = vunpack.c.l.b16 %v11930
      %v12251 = vunpack.c.l.b16 %v11931
      %v12252 = vunpack.c.l.b16 %v11932
      %v12253 = vunpack.c.l.b16 %v11933
      %v12254 = vunpack.c.l.b16 %v11934
      %v12255 = vunpack.c.l.b16 %v11935
      %v12256 = vunpack.c.l.b16 %v11936
      %v12257 = vunpack.c.l.b16 %v11937
      %v12258 = vunpack.c.l.b16 %v11938
      %v12259 = vunpack.c.l.b16 %v11939
      %v12260 = vunpack.c.l.b16 %v11940
      %v12261 = vunpack.c.l.b16 %v11941
      %v12262 = vunpack.c.l.b16 %v11942
      %v12263 = vunpack.c.l.b16 %v11943
      %v12264 = vunpack.c.l.b16 %v11944
      %v12265 = vunpack.c.l.b16 %v11945
      %v12266 = vunpack.c.l.b16 %v11946
      %v12267 = vunpack.c.l.b16 %v11947
      %v12268 = vunpack.c.l.b16 %v11948
      %v12269 = vunpack.c.l.b16 %v11949
      %v12270 = vunpack.c.l.b16 %v11950
      %v12271 = vunpack.c.l.b16 %v11951
      %v12272 = vunpack.c.l.b16 %v11952
      %v12273 = vunpack.c.l.b16 %v11953
      %v12274 = vunpack.c.l.b16 %v11954
      %v12275 = vunpack.c.l.b16 %v11955
      %v12276 = vunpack.c.l.b16 %v11956
      %v12277 = vunpack.c.l.b16 %v11957
      %v12278 = vunpack.c.l.b16 %v11958
      %v12279 = vunpack.c.l.b16 %v11959
      %v12280 = vunpack.c.l.b16 %v11960
      %v12281 = vunpack.c.l.b16 %v11961
      %v12282 = vunpack.c.l.b16 %v11962
      %v12283 = vunpack.c.l.b16 %v11963
      %v12284 = vunpack.c.l.b16 %v11964
      %v12285 = vunpack.c.l.b16 %v11965
      %v12286 = vunpack.c.l.b16 %v11966
      %v12287 = vunpack.c.l.b16 %v11967
      %v12288 = vpack.c.b16 %v12249, %v12248
      %v12289 = vpack.c.b16 %v12251, %v12250
      %v12290 = vpack.c.b16 %v12253, %v12252
      %v12291 = vpack.c.b16 %v12255, %v12254
      %v12292 = vpack.c.b16 %v12257, %v12256
      %v12293 = vpack.c.b16 %v12259, %v12258
      %v12294 = vpack.c.b16 %v12261, %v12260
      %v12295 = vpack.c.b16 %v12263, %v12262
      %v12296 = vpack.c.b16 %v12265, %v12264
      %v12297 = vpack.c.b16 %v12267, %v12266
      %v12298 = vpack.c.b16 %v12269, %v12268
      %v12299 = vpack.c.b16 %v12271, %v12270
      %v12300 = vpack.c.b16 %v12273, %v12272
      %v12301 = vpack.c.b16 %v12275, %v12274
      %v12302 = vpack.c.b16 %v12277, %v12276
      %v12303 = vpack.c.b16 %v12279, %v12278
      %v12304 = vpack.c.b16 %v12281, %v12280
      %v12305 = vpack.c.b16 %v12283, %v12282
      %v12306 = vpack.c.b16 %v12285, %v12284
      %v12307 = vpack.c.b16 %v12287, %v12286
      %12328 = vmatprep.subr.bf16.mxu0 0
      %12329 = vmatpush1.bf16.msra.mxu0 %v12295
      %12330 = vmatprep.subr.bf16.mxu0 0
      %12331 = vmatpush1.bf16.msra.mxu0 %v12294
      %12332 = vmatprep.subr.bf16.mxu0 0
      %12333 = vmatpush1.bf16.msra.mxu0 %v12293
      %12334 = vmatprep.subr.bf16.mxu0 0
      %12335 = vmatpush1.bf16.msra.mxu0 %v12292
      %12336 = vmatprep.subr.bf16.mxu0 0
      %12337 = vmatpush1.bf16.msra.mxu0 %v12291
      %12338 = vmatprep.subr.bf16.mxu0 0
      %12339 = vmatpush1.bf16.msra.mxu0 %v12290
      %12340 = vmatprep.subr.bf16.mxu0 0
      %12341 = vmatpush1.bf16.msra.mxu0 %v12289
      %12342 = vmatprep.subr.bf16.mxu0 0
      %12343 = vmatpush1.bf16.msra.mxu0 %v12288
      %12344 = vmatprep.subr.bf16.mxu0 0
      %12345 = vmatpush2.bf16.msra.mxu0 %v12303
      %12346 = vmatprep.subr.bf16.mxu0 0
      %12347 = vmatpush2.bf16.msra.mxu0 %v12302
      %12348 = vmatprep.subr.bf16.mxu0 0
      %12349 = vmatpush2.bf16.msra.mxu0 %v12301
      %12350 = vmatprep.subr.bf16.mxu0 0
      %12351 = vmatpush2.bf16.msra.mxu0 %v12300
      %12352 = vmatprep.subr.bf16.mxu0 0
      %12353 = vmatpush2.bf16.msra.mxu0 %v12299
      %12354 = vmatprep.subr.bf16.mxu0 0
      %12355 = vmatpush2.bf16.msra.mxu0 %v12298
      %12356 = vmatprep.subr.bf16.mxu0 0
      %12357 = vmatpush2.bf16.msra.mxu0 %v12297
      %12358 = vmatprep.subr.bf16.mxu0 0
      %12359 = vmatpush2.bf16.msra.mxu0 %v12296
      %12360 = vmatprep.mubr.bf16.mxu0 %v11706
      %12361 = vmatmul.mubr.bf16.gmra.mxu0 %v11699
      %v12362 = vpop.f32.mrf.mxu0
      %v12363 = vadd.f32 %v12203, %v12362
      %v12364 = vpop.f32.mrf.mxu0
      %v12365 = vpop.f32.mrf.mxu0
      %v12366 = vpop.f32.mrf.mxu0
      %12367 = vdwg.mxu0
      %12368 = vmatprep.subr.bf16.mxu0 0
      %12369 = vmatpush1.bf16.msra.mxu0 0
      %12370 = vmatprep.subr.bf16.mxu0 0
      %12371 = vmatpush1.bf16.msra.mxu0 0
      %12372 = vmatprep.subr.bf16.mxu0 0
      %12373 = vmatpush1.bf16.msra.mxu0 0
      %12374 = vmatprep.subr.bf16.mxu0 0
      %12375 = vmatpush1.bf16.msra.mxu0 0
      %12376 = vmatprep.subr.bf16.mxu0 0
      %12377 = vmatpush1.bf16.msra.mxu0 %v12307
      %12378 = vmatprep.subr.bf16.mxu0 0
      %12379 = vmatpush1.bf16.msra.mxu0 %v12306
      %12380 = vmatprep.subr.bf16.mxu0 0
      %12381 = vmatpush1.bf16.msra.mxu0 %v12305
      %12382 = vmatprep.subr.bf16.mxu0 0
      %12383 = vmatpush1.bf16.msra.mxu0 %v12304
      %12384 = vmatprep.subr.bf16.mxu0 0
      %12385 = vmatpush2.bf16.msra.mxu0 0
      %12386 = vmatprep.subr.bf16.mxu0 0
      %12387 = vmatpush2.bf16.msra.mxu0 0
      %12388 = vmatprep.subr.bf16.mxu0 0
      %12389 = vmatpush2.bf16.msra.mxu0 0
      %12390 = vmatprep.subr.bf16.mxu0 0
      %12391 = vmatpush2.bf16.msra.mxu0 0
      %12392 = vmatprep.subr.bf16.mxu0 0
      %12393 = vmatpush2.bf16.msra.mxu0 0
      %12394 = vmatprep.subr.bf16.mxu0 0
      %12395 = vmatpush2.bf16.msra.mxu0 0
      %12396 = vmatprep.subr.bf16.mxu0 0
      %12397 = vmatpush2.bf16.msra.mxu0 0
      %12398 = vmatprep.subr.bf16.mxu0 0
      %12399 = vmatpush2.bf16.msra.mxu0 0
      %12400 = vmatprep.mubr.bf16.mxu0 0
      %12401 = vmatmul.mubr.bf16.gmra.mxu0 %v11836
      %v12402 = vpop.f32.mrf.mxu0
      %v12403 = vadd.f32 %v12363, %v12402
      %v12404 = vpop.f32.mrf.mxu0
      %v12405 = vpop.f32.mrf.mxu0
      %v12406 = vpop.f32.mrf.mxu0
      %12407 = vdwg.mxu0
      %v12408 = vld [vmem:[%s18] sm:$0x1]
      %v12410 = vlaneseq
      %v12411 = vshrl.u32 %v12410, 7
      %v12412 = vsub.s32 0, %v12411
      %v12413 = vrot.slane %v12408, %v12412
      %v12415 = vadd.f32 %v12403, %v12413
      %s12416 = scalar_lea.vmem %s652, 16
      %12417 = vst.msk [vmem:[%s12416] sm:$0x1f] %vm11410, %v12415
      %v12418 = vld [vmem:[%s10] sm:$0xf]
      %v12419 = vld [vmem:[%s10 + $0x4] sm:$0xf]
      %v12420 = vld [vmem:[%s10 + $0x8] sm:$0xf]
      %v12421 = vld [vmem:[%s10 + $0xc] sm:$0xf]
      %v12422 = vld [vmem:[%s10 + $0x10] sm:$0xf]
      %v12423 = vld [vmem:[%s10 + $0x14] sm:$0xf]
      %v12424 = vld [vmem:[%s10 + $0x18] sm:$0xf]
      %v12425 = vld [vmem:[%s10 + $0x1c] sm:$0xf]
      %v12426 = vld [vmem:[%s10 + $0x20] sm:$0xf]
      %v12427 = vld [vmem:[%s10 + $0x24] sm:$0xf]
      %v12428 = vld [vmem:[%s10 + $0x28] sm:$0xf]
      %v12429 = vld [vmem:[%s10 + $0x2c] sm:$0xf]
      %v12430 = vld [vmem:[%s10 + $0x30] sm:$0xf]
      %v12431 = vld [vmem:[%s10 + $0x34] sm:$0xf]
      %v12432 = vld [vmem:[%s10 + $0x38] sm:$0xf]
      %v12433 = vld [vmem:[%s10 + $0x3c] sm:$0xf]
      %v12434 = vld [vmem:[%s10 + $0x40] sm:$0xf]
      %v12435 = vld [vmem:[%s10 + $0x44] sm:$0xf]
      %v12436 = vld [vmem:[%s10 + $0x48] sm:$0xf]
      %v12437 = vld [vmem:[%s10 + $0x4c] sm:$0xf]
      %v12438 = vld [vmem:[%s10 + $0x50] sm:$0xf]
      %v12439 = vld [vmem:[%s10 + $0x54] sm:$0xf]
      %v12440 = vld [vmem:[%s10 + $0x58] sm:$0xf]
      %v12441 = vld [vmem:[%s10 + $0x5c] sm:$0xf]
      %v12442 = vld [vmem:[%s10 + $0x60] sm:$0xf]
      %v12443 = vld [vmem:[%s10 + $0x64] sm:$0xf]
      %v12444 = vld [vmem:[%s10 + $0x68] sm:$0xf]
      %v12445 = vld [vmem:[%s10 + $0x6c] sm:$0xf]
      %v12446 = vld [vmem:[%s10 + $0x70] sm:$0xf]
      %v12447 = vld [vmem:[%s10 + $0x74] sm:$0xf]
      %v12448 = vld [vmem:[%s10 + $0x78] sm:$0xf]
      %v12449 = vld [vmem:[%s10 + $0x7c] sm:$0xf]
      %v12450 = vld [vmem:[%s10 + $0x80] sm:$0xf]
      %v12451 = vld [vmem:[%s10 + $0x84] sm:$0xf]
      %v12452 = vld [vmem:[%s10 + $0x88] sm:$0xf]
      %v12453 = vld [vmem:[%s10 + $0x8c] sm:$0xf]
      %v12454 = vld [vmem:[%s10 + $0x90] sm:$0xf]
      %v12455 = vld [vmem:[%s10 + $0x94] sm:$0xf]
      %v12456 = vld [vmem:[%s10 + $0x98] sm:$0xf]
      %v12457 = vld [vmem:[%s10 + $0x9c] sm:$0xf]
      %v12458 = vld [vmem:[%s11452] sm:$0xf]
      %v12459 = vld [vmem:[%s11452 + $0x4] sm:$0xf]
      %v12460 = vld [vmem:[%s11452 + $0x8] sm:$0xf]
      %v12461 = vld [vmem:[%s11452 + $0xc] sm:$0xf]
      %v12462 = vld [vmem:[%s11452 + $0x10] sm:$0xf]
      %v12463 = vld [vmem:[%s11452 + $0x14] sm:$0xf]
      %v12464 = vld [vmem:[%s11452 + $0x18] sm:$0xf]
      %v12465 = vld [vmem:[%s11452 + $0x1c] sm:$0xf]
      %v12466 = vld [vmem:[%s11452 + $0x20] sm:$0xf]
      %v12467 = vld [vmem:[%s11452 + $0x24] sm:$0xf]
      %v12468 = vld [vmem:[%s11452 + $0x28] sm:$0xf]
      %v12469 = vld [vmem:[%s11452 + $0x2c] sm:$0xf]
      %v12470 = vld [vmem:[%s11452 + $0x30] sm:$0xf]
      %v12471 = vld [vmem:[%s11452 + $0x34] sm:$0xf]
      %v12472 = vld [vmem:[%s11452 + $0x38] sm:$0xf]
      %v12473 = vld [vmem:[%s11452 + $0x3c] sm:$0xf]
      %v12474 = vld [vmem:[%s11452 + $0x40] sm:$0xf]
      %v12475 = vld [vmem:[%s11452 + $0x44] sm:$0xf]
      %v12476 = vld [vmem:[%s11452 + $0x48] sm:$0xf]
      %v12477 = vld [vmem:[%s11452 + $0x4c] sm:$0xf]
      %v12478 = vld [vmem:[%s11452 + $0x50] sm:$0xf]
      %v12479 = vld [vmem:[%s11452 + $0x54] sm:$0xf]
      %v12480 = vld [vmem:[%s11452 + $0x58] sm:$0xf]
      %v12481 = vld [vmem:[%s11452 + $0x5c] sm:$0xf]
      %v12482 = vld [vmem:[%s11452 + $0x60] sm:$0xf]
      %v12483 = vld [vmem:[%s11452 + $0x64] sm:$0xf]
      %v12484 = vld [vmem:[%s11452 + $0x68] sm:$0xf]
      %v12485 = vld [vmem:[%s11452 + $0x6c] sm:$0xf]
      %v12486 = vld [vmem:[%s11452 + $0x70] sm:$0xf]
      %v12487 = vld [vmem:[%s11452 + $0x74] sm:$0xf]
      %v12488 = vld [vmem:[%s11452 + $0x78] sm:$0xf]
      %v12489 = vld [vmem:[%s11452 + $0x7c] sm:$0xf]
      %v12490 = vld [vmem:[%s11452 + $0x80] sm:$0xf]
      %v12491 = vld [vmem:[%s11452 + $0x84] sm:$0xf]
      %v12492 = vld [vmem:[%s11452 + $0x88] sm:$0xf]
      %v12493 = vld [vmem:[%s11452 + $0x8c] sm:$0xf]
      %v12494 = vld [vmem:[%s11452 + $0x90] sm:$0xf]
      %v12495 = vld [vmem:[%s11452 + $0x94] sm:$0xf]
      %v12496 = vld [vmem:[%s11452 + $0x98] sm:$0xf]
      %v12497 = vld [vmem:[%s11452 + $0x9c] sm:$0xf]
      %v12538 = vunpack.c.l.b16 %v12458
      %v12539 = vunpack.c.l.b16 %v12459
      %v12540 = vunpack.c.l.b16 %v12460
      %v12541 = vunpack.c.l.b16 %v12461
      %v12542 = vunpack.c.l.b16 %v12462
      %v12543 = vunpack.c.l.b16 %v12463
      %v12544 = vunpack.c.l.b16 %v12464
      %v12545 = vunpack.c.l.b16 %v12465
      %v12546 = vunpack.c.l.b16 %v12466
      %v12547 = vunpack.c.l.b16 %v12467
      %v12548 = vunpack.c.l.b16 %v12468
      %v12549 = vunpack.c.l.b16 %v12469
      %v12550 = vunpack.c.l.b16 %v12470
      %v12551 = vunpack.c.l.b16 %v12471
      %v12552 = vunpack.c.l.b16 %v12472
      %v12553 = vunpack.c.l.b16 %v12473
      %v12554 = vunpack.c.l.b16 %v12474
      %v12555 = vunpack.c.l.b16 %v12475
      %v12556 = vunpack.c.l.b16 %v12476
      %v12557 = vunpack.c.l.b16 %v12477
      %v12558 = vunpack.c.l.b16 %v12478
      %v12559 = vunpack.c.l.b16 %v12479
      %v12560 = vunpack.c.l.b16 %v12480
      %v12561 = vunpack.c.l.b16 %v12481
      %v12562 = vunpack.c.l.b16 %v12482
      %v12563 = vunpack.c.l.b16 %v12483
      %v12564 = vunpack.c.l.b16 %v12484
      %v12565 = vunpack.c.l.b16 %v12485
      %v12566 = vunpack.c.l.b16 %v12486
      %v12567 = vunpack.c.l.b16 %v12487
      %v12568 = vunpack.c.l.b16 %v12488
      %v12569 = vunpack.c.l.b16 %v12489
      %v12570 = vunpack.c.l.b16 %v12490
      %v12571 = vunpack.c.l.b16 %v12491
      %v12572 = vunpack.c.l.b16 %v12492
      %v12573 = vunpack.c.l.b16 %v12493
      %v12574 = vunpack.c.l.b16 %v12494
      %v12575 = vunpack.c.l.b16 %v12495
      %v12576 = vunpack.c.l.b16 %v12496
      %v12577 = vunpack.c.l.b16 %v12497
      %v12578 = vpack.c.b16 %v12539, %v12538
      %v12579 = vpack.c.b16 %v12541, %v12540
      %v12580 = vpack.c.b16 %v12543, %v12542
      %v12581 = vpack.c.b16 %v12545, %v12544
      %v12582 = vpack.c.b16 %v12547, %v12546
      %v12583 = vpack.c.b16 %v12549, %v12548
      %v12584 = vpack.c.b16 %v12551, %v12550
      %v12585 = vpack.c.b16 %v12553, %v12552
      %v12586 = vpack.c.b16 %v12555, %v12554
      %v12587 = vpack.c.b16 %v12557, %v12556
      %v12588 = vpack.c.b16 %v12559, %v12558
      %v12589 = vpack.c.b16 %v12561, %v12560
      %v12590 = vpack.c.b16 %v12563, %v12562
      %v12591 = vpack.c.b16 %v12565, %v12564
      %v12592 = vpack.c.b16 %v12567, %v12566
      %v12593 = vpack.c.b16 %v12569, %v12568
      %v12594 = vpack.c.b16 %v12571, %v12570
      %v12595 = vpack.c.b16 %v12573, %v12572
      %v12596 = vpack.c.b16 %v12575, %v12574
      %v12597 = vpack.c.b16 %v12577, %v12576
      %12618 = vmatprep.subr.bf16.mxu0 0
      %12619 = vmatpush1.bf16.msra.mxu0 %v12585
      %12620 = vmatprep.subr.bf16.mxu0 0
      %12621 = vmatpush1.bf16.msra.mxu0 %v12584
      %12622 = vmatprep.subr.bf16.mxu0 0
      %12623 = vmatpush1.bf16.msra.mxu0 %v12583
      %12624 = vmatprep.subr.bf16.mxu0 0
      %12625 = vmatpush1.bf16.msra.mxu0 %v12582
      %12626 = vmatprep.subr.bf16.mxu0 0
      %12627 = vmatpush1.bf16.msra.mxu0 %v12581
      %12628 = vmatprep.subr.bf16.mxu0 0
      %12629 = vmatpush1.bf16.msra.mxu0 %v12580
      %12630 = vmatprep.subr.bf16.mxu0 0
      %12631 = vmatpush1.bf16.msra.mxu0 %v12579
      %12632 = vmatprep.subr.bf16.mxu0 0
      %12633 = vmatpush1.bf16.msra.mxu0 %v12578
      %12634 = vmatprep.subr.bf16.mxu0 0
      %12635 = vmatpush2.bf16.msra.mxu0 %v12593
      %12636 = vmatprep.subr.bf16.mxu0 0
      %12637 = vmatpush2.bf16.msra.mxu0 %v12592
      %12638 = vmatprep.subr.bf16.mxu0 0
      %12639 = vmatpush2.bf16.msra.mxu0 %v12591
      %12640 = vmatprep.subr.bf16.mxu0 0
      %12641 = vmatpush2.bf16.msra.mxu0 %v12590
      %12642 = vmatprep.subr.bf16.mxu0 0
      %12643 = vmatpush2.bf16.msra.mxu0 %v12589
      %12644 = vmatprep.subr.bf16.mxu0 0
      %12645 = vmatpush2.bf16.msra.mxu0 %v12588
      %12646 = vmatprep.subr.bf16.mxu0 0
      %12647 = vmatpush2.bf16.msra.mxu0 %v12587
      %12648 = vmatprep.subr.bf16.mxu0 0
      %12649 = vmatpush2.bf16.msra.mxu0 %v12586
      %12650 = vmatprep.mubr.bf16.mxu0 %v11706
      %12651 = vmatmul.mubr.bf16.gmra.mxu0 %v11699
      %v12652 = vpop.f32.mrf.mxu0
      %v12653 = vadd.f32 0.0, %v12652
      %v12654 = vpop.f32.mrf.mxu0
      %v12655 = vpop.f32.mrf.mxu0
      %v12656 = vpop.f32.mrf.mxu0
      %12657 = vdwg.mxu0
      %12658 = vmatprep.subr.bf16.mxu0 0
      %12659 = vmatpush1.bf16.msra.mxu0 0
      %12660 = vmatprep.subr.bf16.mxu0 0
      %12661 = vmatpush1.bf16.msra.mxu0 0
      %12662 = vmatprep.subr.bf16.mxu0 0
      %12663 = vmatpush1.bf16.msra.mxu0 0
      %12664 = vmatprep.subr.bf16.mxu0 0
      %12665 = vmatpush1.bf16.msra.mxu0 0
      %12666 = vmatprep.subr.bf16.mxu0 0
      %12667 = vmatpush1.bf16.msra.mxu0 %v12597
      %12668 = vmatprep.subr.bf16.mxu0 0
      %12669 = vmatpush1.bf16.msra.mxu0 %v12596
      %12670 = vmatprep.subr.bf16.mxu0 0
      %12671 = vmatpush1.bf16.msra.mxu0 %v12595
      %12672 = vmatprep.subr.bf16.mxu0 0
      %12673 = vmatpush1.bf16.msra.mxu0 %v12594
      %12674 = vmatprep.subr.bf16.mxu0 0
      %12675 = vmatpush2.bf16.msra.mxu0 0
      %12676 = vmatprep.subr.bf16.mxu0 0
      %12677 = vmatpush2.bf16.msra.mxu0 0
      %12678 = vmatprep.subr.bf16.mxu0 0
      %12679 = vmatpush2.bf16.msra.mxu0 0
      %12680 = vmatprep.subr.bf16.mxu0 0
      %12681 = vmatpush2.bf16.msra.mxu0 0
      %12682 = vmatprep.subr.bf16.mxu0 0
      %12683 = vmatpush2.bf16.msra.mxu0 0
      %12684 = vmatprep.subr.bf16.mxu0 0
      %12685 = vmatpush2.bf16.msra.mxu0 0
      %12686 = vmatprep.subr.bf16.mxu0 0
      %12687 = vmatpush2.bf16.msra.mxu0 0
      %12688 = vmatprep.subr.bf16.mxu0 0
      %12689 = vmatpush2.bf16.msra.mxu0 0
      %12690 = vmatprep.mubr.bf16.mxu0 0
      %12691 = vmatmul.mubr.bf16.gmra.mxu0 %v11836
      %v12692 = vpop.f32.mrf.mxu0
      %v12693 = vadd.f32 %v12653, %v12692
      %v12694 = vpop.f32.mrf.mxu0
      %v12695 = vpop.f32.mrf.mxu0
      %v12696 = vpop.f32.mrf.mxu0
      %12697 = vdwg.mxu0
      %v12699 = vshrl.u32 %v10949, 16
      %v12701 = vshll.u32 %v10949, 16
      %v12703 = vrot.slane %v12701, 1
      %v12704 = vor.u32 %v12699, %v12703
      %v12706 = vshrl.u32 %v10950, 16
      %v12708 = vshll.u32 %v10950, 16
      %v12710 = vrot.slane %v12708, 1
      %v12711 = vor.u32 %v12706, %v12710
      %v12712 = vshrl.u32 %v10951, 16
      %v12714 = vshll.u32 %v10951, 16
      %v12716 = vrot.slane %v12714, 1
      %v12717 = vor.u32 %v12712, %v12716
      %v12760 = vunpack.c.l.b16 %v12418
      %v12761 = vunpack.c.l.b16 %v12419
      %v12762 = vunpack.c.l.b16 %v12420
      %v12763 = vunpack.c.l.b16 %v12421
      %v12764 = vunpack.c.l.b16 %v12422
      %v12765 = vunpack.c.l.b16 %v12423
      %v12766 = vunpack.c.l.b16 %v12424
      %v12767 = vunpack.c.l.b16 %v12425
      %v12768 = vunpack.c.l.b16 %v12426
      %v12769 = vunpack.c.l.b16 %v12427
      %v12770 = vunpack.c.l.b16 %v12428
      %v12771 = vunpack.c.l.b16 %v12429
      %v12772 = vunpack.c.l.b16 %v12430
      %v12773 = vunpack.c.l.b16 %v12431
      %v12774 = vunpack.c.l.b16 %v12432
      %v12775 = vunpack.c.l.b16 %v12433
      %v12776 = vunpack.c.l.b16 %v12434
      %v12777 = vunpack.c.l.b16 %v12435
      %v12778 = vunpack.c.l.b16 %v12436
      %v12779 = vunpack.c.l.b16 %v12437
      %v12780 = vunpack.c.l.b16 %v12438
      %v12781 = vunpack.c.l.b16 %v12439
      %v12782 = vunpack.c.l.b16 %v12440
      %v12783 = vunpack.c.l.b16 %v12441
      %v12784 = vunpack.c.l.b16 %v12442
      %v12785 = vunpack.c.l.b16 %v12443
      %v12786 = vunpack.c.l.b16 %v12444
      %v12787 = vunpack.c.l.b16 %v12445
      %v12788 = vunpack.c.l.b16 %v12446
      %v12789 = vunpack.c.l.b16 %v12447
      %v12790 = vunpack.c.l.b16 %v12448
      %v12791 = vunpack.c.l.b16 %v12449
      %v12792 = vunpack.c.l.b16 %v12450
      %v12793 = vunpack.c.l.b16 %v12451
      %v12794 = vunpack.c.l.b16 %v12452
      %v12795 = vunpack.c.l.b16 %v12453
      %v12796 = vunpack.c.l.b16 %v12454
      %v12797 = vunpack.c.l.b16 %v12455
      %v12798 = vunpack.c.l.b16 %v12456
      %v12799 = vunpack.c.l.b16 %v12457
      %v12800 = vpack.c.b16 %v12761, %v12760
      %v12801 = vpack.c.b16 %v12763, %v12762
      %v12802 = vpack.c.b16 %v12765, %v12764
      %v12803 = vpack.c.b16 %v12767, %v12766
      %v12804 = vpack.c.b16 %v12769, %v12768
      %v12805 = vpack.c.b16 %v12771, %v12770
      %v12806 = vpack.c.b16 %v12773, %v12772
      %v12807 = vpack.c.b16 %v12775, %v12774
      %v12808 = vpack.c.b16 %v12777, %v12776
      %v12809 = vpack.c.b16 %v12779, %v12778
      %v12810 = vpack.c.b16 %v12781, %v12780
      %v12811 = vpack.c.b16 %v12783, %v12782
      %v12812 = vpack.c.b16 %v12785, %v12784
      %v12813 = vpack.c.b16 %v12787, %v12786
      %v12814 = vpack.c.b16 %v12789, %v12788
      %v12815 = vpack.c.b16 %v12791, %v12790
      %v12816 = vpack.c.b16 %v12793, %v12792
      %v12817 = vpack.c.b16 %v12795, %v12794
      %v12818 = vpack.c.b16 %v12797, %v12796
      %v12819 = vpack.c.b16 %v12799, %v12798
      %v12841 = vsel %vm2386, %v12717, 0
      %12843 = vmatprep.subr.bf16.mxu0 0
      %12844 = vmatpush1.bf16.msra.mxu0 %v12807
      %12845 = vmatprep.subr.bf16.mxu0 0
      %12846 = vmatpush1.bf16.msra.mxu0 %v12806
      %12847 = vmatprep.subr.bf16.mxu0 0
      %12848 = vmatpush1.bf16.msra.mxu0 %v12805
      %12849 = vmatprep.subr.bf16.mxu0 0
      %12850 = vmatpush1.bf16.msra.mxu0 %v12804
      %12851 = vmatprep.subr.bf16.mxu0 0
      %12852 = vmatpush1.bf16.msra.mxu0 %v12803
      %12853 = vmatprep.subr.bf16.mxu0 0
      %12854 = vmatpush1.bf16.msra.mxu0 %v12802
      %12855 = vmatprep.subr.bf16.mxu0 0
      %12856 = vmatpush1.bf16.msra.mxu0 %v12801
      %12857 = vmatprep.subr.bf16.mxu0 0
      %12858 = vmatpush1.bf16.msra.mxu0 %v12800
      %12859 = vmatprep.subr.bf16.mxu0 0
      %12860 = vmatpush2.bf16.msra.mxu0 %v12815
      %12861 = vmatprep.subr.bf16.mxu0 0
      %12862 = vmatpush2.bf16.msra.mxu0 %v12814
      %12863 = vmatprep.subr.bf16.mxu0 0
      %12864 = vmatpush2.bf16.msra.mxu0 %v12813
      %12865 = vmatprep.subr.bf16.mxu0 0
      %12866 = vmatpush2.bf16.msra.mxu0 %v12812
      %12867 = vmatprep.subr.bf16.mxu0 0
      %12868 = vmatpush2.bf16.msra.mxu0 %v12811
      %12869 = vmatprep.subr.bf16.mxu0 0
      %12870 = vmatpush2.bf16.msra.mxu0 %v12810
      %12871 = vmatprep.subr.bf16.mxu0 0
      %12872 = vmatpush2.bf16.msra.mxu0 %v12809
      %12873 = vmatprep.subr.bf16.mxu0 0
      %12874 = vmatpush2.bf16.msra.mxu0 %v12808
      %12875 = vmatprep.mubr.bf16.mxu0 %v12711
      %12876 = vmatmul.mubr.bf16.gmra.mxu0 %v12704
      %v12877 = vpop.f32.mrf.mxu0
      %v12878 = vadd.f32 %v12693, %v12877
      %v12879 = vpop.f32.mrf.mxu0
      %v12880 = vpop.f32.mrf.mxu0
      %v12881 = vpop.f32.mrf.mxu0
      %12882 = vdwg.mxu0
      %12883 = vmatprep.subr.bf16.mxu0 0
      %12884 = vmatpush1.bf16.msra.mxu0 0
      %12885 = vmatprep.subr.bf16.mxu0 0
      %12886 = vmatpush1.bf16.msra.mxu0 0
      %12887 = vmatprep.subr.bf16.mxu0 0
      %12888 = vmatpush1.bf16.msra.mxu0 0
      %12889 = vmatprep.subr.bf16.mxu0 0
      %12890 = vmatpush1.bf16.msra.mxu0 0
      %12891 = vmatprep.subr.bf16.mxu0 0
      %12892 = vmatpush1.bf16.msra.mxu0 %v12819
      %12893 = vmatprep.subr.bf16.mxu0 0
      %12894 = vmatpush1.bf16.msra.mxu0 %v12818
      %12895 = vmatprep.subr.bf16.mxu0 0
      %12896 = vmatpush1.bf16.msra.mxu0 %v12817
      %12897 = vmatprep.subr.bf16.mxu0 0
      %12898 = vmatpush1.bf16.msra.mxu0 %v12816
      %12899 = vmatprep.subr.bf16.mxu0 0
      %12900 = vmatpush2.bf16.msra.mxu0 0
      %12901 = vmatprep.subr.bf16.mxu0 0
      %12902 = vmatpush2.bf16.msra.mxu0 0
      %12903 = vmatprep.subr.bf16.mxu0 0
      %12904 = vmatpush2.bf16.msra.mxu0 0
      %12905 = vmatprep.subr.bf16.mxu0 0
      %12906 = vmatpush2.bf16.msra.mxu0 0
      %12907 = vmatprep.subr.bf16.mxu0 0
      %12908 = vmatpush2.bf16.msra.mxu0 0
      %12909 = vmatprep.subr.bf16.mxu0 0
      %12910 = vmatpush2.bf16.msra.mxu0 0
      %12911 = vmatprep.subr.bf16.mxu0 0
      %12912 = vmatpush2.bf16.msra.mxu0 0
      %12913 = vmatprep.subr.bf16.mxu0 0
      %12914 = vmatpush2.bf16.msra.mxu0 0
      %12915 = vmatprep.mubr.bf16.mxu0 0
      %12916 = vmatmul.mubr.bf16.gmra.mxu0 %v12841
      %v12917 = vpop.f32.mrf.mxu0
      %v12918 = vadd.f32 %v12878, %v12917
      %v12919 = vpop.f32.mrf.mxu0
      %v12920 = vpop.f32.mrf.mxu0
      %v12921 = vpop.f32.mrf.mxu0
      %12922 = vdwg.mxu0
      %v12923 = vld [vmem:[%s18] sm:$0x1]
      %v12925 = vlaneseq
      %v12926 = vshrl.u32 %v12925, 7
      %v12927 = vsub.s32 0, %v12926
      %v12928 = vrot.slane %v12923, %v12927
      %v12930 = vadd.f32 %v12918, %v12928
      %s12931 = scalar_lea.vmem %s652, 24
      %12932 = vst.msk [vmem:[%s12931] sm:$0x1f] %vm11410, %v12930
      %p12933 = scmp.lt.s32.totalorder %s32, 1
      %s12934 = scalar_select %p12933, %s32, 1
      %s12935 = scalar_lea.vmem %s19, %s12934
      %p12936 = scmp.lt.s32.totalorder %s32, 1
      %s12937 = scalar_select %p12936, %s32, 1
      %s12938 = smul.addr %s12937, 4
      %s12939 = smul.addr %s12938, 8
      %s12940 = scalar_lea.vmem %s20, %s12939
      // Predicated region
      $region97: #{bvae_forward.1} parent=95 // pred_check
        %p12941 = pneg %p459
      $region98: #{bvae_forward.1} parent=95 // pred_check_branch
        %12943 = sbr.rel (%p12941) target = $region100
      $region99: #{bvae_forward.1} parent=95 // pred_region
        _
      $region100: #{bvae_forward.1} parent=95 // pred_fallthru
        _
      // Predicated region
      $region101: #{bvae_forward.1} parent=95 // pred_check
        %p12944 = pneg %p485
      $region102: #{bvae_forward.1} parent=95 // pred_check_branch
        %12946 = sbr.rel (%p12944) target = $region104
      $region103: #{bvae_forward.1} parent=95 // pred_region
        _
      $region104: #{bvae_forward.1} parent=95 // pred_fallthru
        _
    $region96: #{bvae_forward.1} parent=5 // pred_fallthru
      _
    %p12947 = scmp.le.s32.totalorder 2, %s27
    // Predicated region
    $region105: #{bvae_forward.1} parent=5 // pred_check
      %p12948 = pneg %p12947
    $region106: #{bvae_forward.1} parent=5 // pred_check_branch
      %12950 = sbr.rel (%p12948) target = $region108
    $region107: #{bvae_forward.1} parent=5 // pred_region
      %s12951 = ssub.s32 %s27, 2
      // Predicated region
      $region109: #{bvae_forward.1} parent=107 // pred_check
        %p12952 = pneg %p465
      $region110: #{bvae_forward.1} parent=107 // pred_check_branch
        %12954 = sbr.rel (%p12952) target = $region112
      $region111: #{bvae_forward.1} parent=107 // pred_region
        %p12955 = scmp.lt.s32.totalorder %s33, 1
        %s12956 = scalar_select %p12955, %s33, 1
        %s12957 = scalar_lea.vmem %s19, %s12956
      $region112: #{bvae_forward.1} parent=107 // pred_fallthru
        _
      // Predicated region
      $region113: #{bvae_forward.1} parent=107 // pred_check
        %p12958 = pneg %p491
      $region114: #{bvae_forward.1} parent=107 // pred_check_branch
        %12960 = sbr.rel (%p12958) target = $region116
      $region115: #{bvae_forward.1} parent=107 // pred_region
        %p12961 = scmp.lt.s32.totalorder %s33, 1
        %s12962 = scalar_select %p12961, %s33, 1
        %s12963 = smul.addr %s12962, 4
        %s12964 = smul.addr %s12963, 8
        %s12965 = scalar_lea.vmem %s20, %s12964
      $region116: #{bvae_forward.1} parent=107 // pred_fallthru
        _
    $region108: #{bvae_forward.1} parent=5 // pred_fallthru
      _
  $region6: #{bvae_forward.1} parent=0 // loop_footer
    %s31 = sadd.s32 1, %s27
  $region7: #{bvae_forward.1} parent=0 // loop_footer_branch
    %26 = sbr.rel target = $region3
  $region8: #{bvae_forward.1} parent=0 // loop_exit
    _

</llo_original>
